<compile_context>
chip_gen: v7x
topology: tpu7x:2x2x1
jax: 0.10.0
libtpu: 0.0.40
codegen_flags: <defaults>
</compile_context>

<pallas_src>
import numpy as np

import jax
import jax.numpy as jnp
from jax import lax
from jax.experimental import pallas as pl
from jax.experimental.pallas import tpu as pltpu

EPS = 1e-5
_VMEM = pl.BlockSpec(memory_space=pltpu.MemorySpace.VMEM)


def _sigmoid(z):
    # 0.5*(tanh(z/2)+1): numerically stable, lowers to the EUP tanh unit.
    return 0.5 * (jnp.tanh(0.5 * z) + 1.0)


def _conv_out(s, k=5, st=2):
    return (s - (k - 1) - 1) // st + 1


# ------------------------------ fused kernel --------------------------------

def _policy_fused_kernel(
    a1_ref,
    r1_ref, w1_ref, b1_ref, g1_ref, be1_ref, p1_ref, pt1_ref,
    r2_ref, w2_ref, b2_ref, g2_ref, be2_ref, p2_ref, pt2_ref,
    r3_ref, w3_ref, b3_ref, g3_ref, be3_ref, p3_ref, pt3_ref,
    lsel_ref, whp_ref, hb_ref, wihp_ref, lb_ref, whh_ref, fcw_ref, fcb_ref,
    head_ref, fc_ref,
    gx_ref,
):
    def conv_bn_relu(act_bf, r_ref, w_ref, brow_ref, gamma_ref, beta_ref,
                     p_ref, pt_ref):
        # act_bf: (B*Hin, Win*Cin) bf16; result: (B*Ho, Wo*Cout) f32.
        k = r_ref.shape[0]
        acc = None
        for kh in range(k):
            rows = jnp.dot(r_ref[kh], act_bf,
                           preferred_element_type=jnp.float32
                           ).astype(jnp.bfloat16)
            part = jnp.dot(rows, w_ref[kh],
                           preferred_element_type=jnp.float32)
            acc = part if acc is None else acc + part
        # Conv bias (cancelled by train-mode BN, kept for fidelity -- cheap).
        acc = acc + brow_ref[...]

        # Train-mode BatchNorm over (N, H, W), single-pass statistics.
        cout = p_ref.shape[1]
        wo = w_ref.shape[2] // cout
        inv_n = 1.0 / float(acc.shape[0] * wo)          # 1 / (B*Ho*Wo)
        s1 = jnp.sum(acc, axis=0, keepdims=True)        # (1, Wo*Cout)
        s2 = jnp.sum(acc * acc, axis=0, keepdims=True)
        mean = jnp.dot(s1, p_ref[...], preferred_element_type=jnp.float32) * inv_n
        ex2 = jnp.dot(s2, p_ref[...], preferred_element_type=jnp.float32) * inv_n
        var = ex2 - mean * mean                         # biased, like torch BN
        scale = gamma_ref[...] * lax.rsqrt(var + EPS)
        shift = beta_ref[...] - mean * scale
        scale_b = jnp.dot(scale, pt_ref[...], preferred_element_type=jnp.float32)
        shift_b = jnp.dot(shift, pt_ref[...], preferred_element_type=jnp.float32)
        return jnp.maximum(acc * scale_b + shift_b, 0.0)

    o1 = conv_bn_relu(a1_ref[...].astype(jnp.bfloat16),
                      r1_ref, w1_ref, b1_ref, g1_ref, be1_ref, p1_ref, pt1_ref)
    o2 = conv_bn_relu(o1.astype(jnp.bfloat16),
                      r2_ref, w2_ref, b2_ref, g2_ref, be2_ref, p2_ref, pt2_ref)
    o3 = conv_bn_relu(o2.astype(jnp.bfloat16),
                      r3_ref, w3_ref, b3_ref, g3_ref, be3_ref, p3_ref, pt3_ref)

    # ---- head Linear + LSTM input projection (both fed by the NCHW flatten).
    # The NCHW-flatten permutation is folded into the pre-permuted weights
    # (whp / wihp); Lsel just picks the (b, ho) rows of o3 for every batch b.
    o3_bf = o3.astype(jnp.bfloat16)
    h3 = lsel_ref.shape[0]
    head = None
    gates_x = None
    for oh in range(h3):
        f_oh = jnp.dot(lsel_ref[oh], o3_bf,
                       preferred_element_type=jnp.float32).astype(jnp.bfloat16)
        ph = jnp.dot(f_oh, whp_ref[oh], preferred_element_type=jnp.float32)
        qh = jnp.dot(f_oh, wihp_ref[oh], preferred_element_type=jnp.float32)
        head = ph if head is None else head + ph
        gates_x = qh if gates_x is None else gates_x + qh
    head_ref[...] = head + hb_ref[...]
    gx_ref[...] = gates_x + lb_ref[...]     # (T=B, 4*hidden), bias pre-folded

    # ---- LSTM recurrence (batch 1, seq_len = B) fused with the final fc.
    hidden = whh_ref.shape[0]
    n_steps = lsel_ref.shape[1]             # == B (static at trace time)
    h = jnp.zeros((1, hidden), jnp.float32)
    c = jnp.zeros((1, hidden), jnp.float32)
    for t in range(n_steps):
        gates = gx_ref[t:t + 1, :] + jnp.dot(
            h.astype(jnp.bfloat16), whh_ref[...],
            preferred_element_type=jnp.float32)
        i_g = _sigmoid(gates[:, 0:hidden])
        f_g = _sigmoid(gates[:, hidden:2 * hidden])
        g_g = jnp.tanh(gates[:, 2 * hidden:3 * hidden])
        o_g = _sigmoid(gates[:, 3 * hidden:4 * hidden])
        c = f_g * c + i_g * g_g
        h = o_g * jnp.tanh(c)
    fc_ref[...] = jnp.dot(h, fcw_ref[...],
                          preferred_element_type=jnp.float32) + fcb_ref[...]


# --------------------------- parameter layout --------------------------------

def prepare_params(params, h, w, batch):
    """One-time parameter layout for the fused kernel."""
    k, st = 5, 2
    hs, ws = [h], [w]
    for _ in range(3):
        hs.append(_conv_out(hs[-1]))
        ws.append(_conv_out(ws[-1]))
    cs = [3, 16, 32, 32]

    def conv_layer(idx):
        cin, cout = cs[idx - 1], cs[idx]
        hin, win, ho, wo = hs[idx - 1], ws[idx - 1], hs[idx], ws[idx]
        wt = params[f"conv{idx}_w"]                       # (Cout, Cin, 5, 5)
        # R[kh, b*Ho+oh, b*Hin + 2*oh + kh] = 1   (row taps, stride 2)
        r = np.zeros((k, batch * ho, batch * hin), np.float32)
        for kh in range(k):
            for b in range(batch):
                for oh in range(ho):
                    r[kh, b * ho + oh, b * hin + st * oh + kh] = 1.0
        # T[kw, w, wo] = 1 iff w == 2*wo + kw   (col taps + stride 2)
        t = np.zeros((k, win, wo), np.float32)
        for kw in range(k):
            for ow in range(wo):
                t[kw, st * ow + kw, ow] = 1.0
        # Wbig[kh, w*Cin+ci, wo*Cout+co] = conv_w[co, ci, kh, w - 2*wo]
        wbig = jnp.einsum("kaw,oihk->haiwo", jnp.asarray(t), wt)
        wbig = wbig.reshape(k, win * cin, wo * cout)
        brow = jnp.tile(params[f"conv{idx}_b"], wo).reshape(1, wo * cout)
        p = np.tile(np.eye(cout, dtype=np.float32), (wo, 1))  # (Wo*Cout, Cout)
        return (jnp.asarray(r, jnp.bfloat16),
                wbig.astype(jnp.bfloat16),
                brow.astype(jnp.float32),
                params[f"bn{idx}_g"].reshape(1, cout),
                params[f"bn{idx}_b"].reshape(1, cout),
                jnp.asarray(p), jnp.asarray(p.T))

    h3, w3, c3 = hs[3], ws[3], cs[3]
    outputs = params["head_w"].shape[0]
    hidden = params["lstm_w_hh"].shape[1]

    # Row selector for the flatten: F_ho = Lsel[ho] @ O3 -> rows (b, ho).
    lsel = np.zeros((h3, batch, batch * h3), np.float32)
    for oh in range(h3):
        for b in range(batch):
            lsel[oh, b, b * h3 + oh] = 1.0

    def permute_flat_weight(wmat):
        # wmat: (G, feat) acting on PyTorch's NCHW flatten order (c, h, w).
        # Returns (h3, w3*c3, G) so that  sum_ho F_ho @ out[ho] == flat @ wmat^T.
        g = wmat.shape[0]
        w4 = wmat.reshape(g, c3, h3, w3)
        return jnp.stack(
            [w4[:, :, oh, :].transpose(2, 1, 0).reshape(w3 * c3, g)
             for oh in range(h3)], axis=0)

    return {
        "l1": conv_layer(1), "l2": conv_layer(2), "l3": conv_layer(3),
        "lsel": jnp.asarray(lsel, jnp.bfloat16),
        "whp": permute_flat_weight(params["head_w"]).astype(jnp.bfloat16),
        "hbrow": params["head_b"].reshape(1, outputs),
        "wihp": permute_flat_weight(params["lstm_w_ih"]).astype(jnp.bfloat16),
        "lbrow": (params["lstm_b_ih"] + params["lstm_b_hh"]).reshape(1, 4 * hidden),
        "whh_t": params["lstm_w_hh"].T.astype(jnp.bfloat16),   # (H, 4H)
        "fc_w_t": params["fc_w"].T,                            # (H, 1)
        "fc_b": params["fc_b"].reshape(1, 1),
    }


# ------------------------------ forward wrapper ------------------------------

def policy_forward(kp, x, seq=None, select=False):
    if seq is not None or select:
        # TODO(synk): the seq-concatenation (seq is not None) and select=True
        # extra-return paths are not fused; only (seq=None, select=False) is.
        raise NotImplementedError("only the (seq=None, select=False) path is fused")

    batch, cin, h, w = x.shape
    # One cheap XLA relayout of the *input only*: NCHW -> A1[b*H+h, w*C+c].
    a1 = x.transpose(0, 2, 3, 1).reshape(batch * h, w * cin)

    outputs = kp["hbrow"].shape[1]
    hidden = kp["whh_t"].shape[0]

    inputs = (a1,
              *kp["l1"], *kp["l2"], *kp["l3"],
              kp["lsel"], kp["whp"], kp["hbrow"],
              kp["wihp"], kp["lbrow"], kp["whh_t"],
              kp["fc_w_t"], kp["fc_b"])

    head_out, fc_out = pl.pallas_call(
        _policy_fused_kernel,
        out_shape=(jax.ShapeDtypeStruct((batch, outputs), jnp.float32),
                   jax.ShapeDtypeStruct((1, 1), jnp.float32)),
        in_specs=[_VMEM] * len(inputs),
        out_specs=(_VMEM, _VMEM),
        scratch_shapes=[pltpu.VMEM((batch, 4 * hidden), jnp.float32)],
    )(*inputs)

    return head_out, fc_out.reshape(1, 1, 1)   # (B, outputs), (1, 1, 1)


# ----------------------- torch-layout parameter init -------------------------

def init_params(key, h, w, outputs):
    convw = _conv_out(_conv_out(_conv_out(w)))
    convh = _conv_out(_conv_out(_conv_out(h)))
    feat = convw * convh * 32

    keys = jax.random.split(key, 14)

    def unif(k, shape, fan_in):
        bound = 1.0 / float(fan_in) ** 0.5
        return jax.random.uniform(k, shape, jnp.float32, -bound, bound)

    params = {
        "conv1_w": unif(keys[0], (16, 3, 5, 5), 3 * 25),
        "conv1_b": unif(keys[1], (16,), 3 * 25),
        "bn1_g": jnp.ones((16,), jnp.float32),
        "bn1_b": jnp.zeros((16,), jnp.float32),
        "conv2_w": unif(keys[2], (32, 16, 5, 5), 16 * 25),
        "conv2_b": unif(keys[3], (32,), 16 * 25),
        "bn2_g": jnp.ones((32,), jnp.float32),
        "bn2_b": jnp.zeros((32,), jnp.float32),
        "conv3_w": unif(keys[4], (32, 32, 5, 5), 32 * 25),
        "conv3_b": unif(keys[5], (32,), 32 * 25),
        "bn3_g": jnp.ones((32,), jnp.float32),
        "bn3_b": jnp.zeros((32,), jnp.float32),
        "head_w": unif(keys[6], (outputs, feat), feat),
        "head_b": unif(keys[7], (outputs,), feat),
        # torch LSTM layout: weight_ih (4H, in), weight_hh (4H, H); gates i,f,g,o
        "lstm_w_ih": unif(keys[8], (4 * 256, feat), 256),
        "lstm_w_hh": unif(keys[9], (4 * 256, 256), 256),
        "lstm_b_ih": unif(keys[10], (4 * 256,), 256),
        "lstm_b_hh": unif(keys[11], (4 * 256,), 256),
        "fc_w": unif(keys[12], (1, 256), 256),
        "fc_b": unif(keys[13], (1,), 256),
        # NOTE: mig_head exists in the torch __init__ but is never used in forward().
    }
    return params, feat


# ---------------------------- pure-JAX reference -----------------------------

def _reference_forward(params, x):
    def conv(z, wt, b):
        y = lax.conv_general_dilated(
            z, wt, (2, 2), "VALID",
            dimension_numbers=("NCHW", "OIHW", "NCHW"))
        return y + b.reshape(1, -1, 1, 1)

    def bn_relu(y, g, be):
        m = jnp.mean(y, axis=(0, 2, 3), keepdims=True)
        v = jnp.mean((y - m) ** 2, axis=(0, 2, 3), keepdims=True)
        yn = (y - m) * lax.rsqrt(v + EPS)
        return jnp.maximum(yn * g.reshape(1, -1, 1, 1) + be.reshape(1, -1, 1, 1), 0.0)

    y = bn_relu(conv(x, params["conv1_w"], params["conv1_b"]),
                params["bn1_g"], params["bn1_b"])
    y = bn_relu(conv(y, params["conv2_w"], params["conv2_b"]),
                params["bn2_g"], params["bn2_b"])
    y = bn_relu(conv(y, params["conv3_w"], params["conv3_b"]),
                params["bn3_g"], params["bn3_b"])
    batch = x.shape[0]
    flat = y.reshape(batch, -1)
    head = flat @ params["head_w"].T + params["head_b"]

    hid = 256
    wih, whh = params["lstm_w_ih"], params["lstm_w_hh"]
    b = params["lstm_b_ih"] + params["lstm_b_hh"]
    h = jnp.zeros((hid,), jnp.float32)
    c = jnp.zeros((hid,), jnp.float32)
    for t in range(batch):
        gates = wih @ flat[t] + whh @ h + b
        i = jax.nn.sigmoid(gates[0:hid])
        f = jax.nn.sigmoid(gates[hid:2 * hid])
        g = jnp.tanh(gates[2 * hid:3 * hid])
        o = jax.nn.sigmoid(gates[3 * hid:4 * hid])
        c = f * c + i * g
        h = o * jnp.tanh(c)
    fc = (params["fc_w"] @ h + params["fc_b"]).reshape(1, 1, 1)
    return head, fc


if __name__ == "__main__":
    # Spatial size must survive three k=5, s=2 convs; 40 -> 18 -> 7 -> 2,
    # giving linear_input_size = 2*2*32 = 128 (lane-aligned).
    H = W = 40
    B = 2
    OUTPUTS = 4

    key = jax.random.PRNGKey(0)
    pkey, xkey = jax.random.split(key)
    params, feat = init_params(pkey, H, W, OUTPUTS)
    kp = prepare_params(params, H, W, B)              # one-time weight layout
    x = jax.random.normal(xkey, (B, 3, H, W), jnp.float32)  # NCHW like torch

    fwd = jax.jit(policy_forward)
    head_out, fc_out = fwd(kp, x)
    jax.block_until_ready((head_out, fc_out))

    assert head_out.shape == (B, OUTPUTS), head_out.shape
    assert fc_out.shape == (1, 1, 1), fc_out.shape
    assert jnp.all(jnp.isfinite(head_out)) and jnp.all(jnp.isfinite(fc_out))

    # Correctness self-check against a pure-JAX f32 reference (loose tolerance
    # because matmul operands are bf16 inside the kernel).
    ref_head, ref_fc = _reference_forward(params, x)
    assert jnp.allclose(head_out, ref_head, atol=1e-1, rtol=1e-1), (
        float(jnp.max(jnp.abs(head_out - ref_head))))
    assert jnp.allclose(fc_out, ref_fc, atol=1e-1, rtol=1e-1), (
        float(jnp.max(jnp.abs(fc_out - ref_fc))))

    print("KERNEL_OK")
</pallas_src>

<mosaic_0001>
module attributes {stable_mosaic.version = 11 : i64} {
  func.func @_policy_fused_kernel(%arg0: memref<80x120xf32, #tpu.memory_space<vmem>>, %arg1: memref<5x36x80xbf16, #tpu.memory_space<vmem>>, %arg2: memref<5x120x288xbf16, #tpu.memory_space<vmem>>, %arg3: memref<1x288xf32, #tpu.memory_space<vmem>>, %arg4: memref<1x16xf32, #tpu.memory_space<vmem>>, %arg5: memref<1x16xf32, #tpu.memory_space<vmem>>, %arg6: memref<288x16xf32, #tpu.memory_space<vmem>>, %arg7: memref<16x288xf32, #tpu.memory_space<vmem>>, %arg8: memref<5x14x36xbf16, #tpu.memory_space<vmem>>, %arg9: memref<5x288x224xbf16, #tpu.memory_space<vmem>>, %arg10: memref<1x224xf32, #tpu.memory_space<vmem>>, %arg11: memref<1x32xf32, #tpu.memory_space<vmem>>, %arg12: memref<1x32xf32, #tpu.memory_space<vmem>>, %arg13: memref<224x32xf32, #tpu.memory_space<vmem>>, %arg14: memref<32x224xf32, #tpu.memory_space<vmem>>, %arg15: memref<5x4x14xbf16, #tpu.memory_space<vmem>>, %arg16: memref<5x224x64xbf16, #tpu.memory_space<vmem>>, %arg17: memref<1x64xf32, #tpu.memory_space<vmem>>, %arg18: memref<1x32xf32, #tpu.memory_space<vmem>>, %arg19: memref<1x32xf32, #tpu.memory_space<vmem>>, %arg20: memref<64x32xf32, #tpu.memory_space<vmem>>, %arg21: memref<32x64xf32, #tpu.memory_space<vmem>>, %arg22: memref<2x2x4xbf16, #tpu.memory_space<vmem>>, %arg23: memref<2x64x4xbf16, #tpu.memory_space<vmem>>, %arg24: memref<1x4xf32, #tpu.memory_space<vmem>>, %arg25: memref<2x64x1024xbf16, #tpu.memory_space<vmem>>, %arg26: memref<1x1024xf32, #tpu.memory_space<vmem>>, %arg27: memref<256x1024xbf16, #tpu.memory_space<vmem>>, %arg28: memref<256x1xf32, #tpu.memory_space<vmem>>, %arg29: memref<1x1xf32, #tpu.memory_space<vmem>>, %arg30: memref<2x4xf32, #tpu.memory_space<vmem>>, %arg31: memref<1x1xf32, #tpu.memory_space<vmem>>, %arg32: memref<2x1024xf32, #tpu.memory_space<vmem>>) attributes {dimension_semantics = [], scalar_prefetch = 0 : i64, scratch_operands = 1 : i64, tpu.core_type = #tpu.core_type<tc>} {
    %c0 = arith.constant 0 : index
    %c0_0 = arith.constant 0 : index
    %0 = vector.load %arg0[%c0, %c0_0] : memref<80x120xf32, #tpu.memory_space<vmem>>, vector<80x120xf32>
    %1 = arith.truncf %0 : vector<80x120xf32> to vector<80x120xbf16>
    %c0_1 = arith.constant 0 : index
    %c0_2 = arith.constant 0 : index
    %c0_3 = arith.constant 0 : index
    %2 = vector.load %arg1[%c0_1, %c0_2, %c0_3] : memref<5x36x80xbf16, #tpu.memory_space<vmem>>, vector<1x36x80xbf16>
    %3 = vector.shape_cast %2 : vector<1x36x80xbf16> to vector<36x80xbf16>
    %cst = arith.constant dense<0.000000e+00> : vector<36x120xf32>
    %4 = tpu.matmul %3, %1, %cst {dimension_numbers = #tpu.dot_dimension_numbers<[1], [0], [0], [1], [0, 0, 1, 1], [], []>} : vector<36x80xbf16>, vector<80x120xbf16>, vector<36x120xf32> -> vector<36x120xf32>
    %5 = arith.truncf %4 : vector<36x120xf32> to vector<36x120xbf16>
    %c0_4 = arith.constant 0 : index
    %c0_5 = arith.constant 0 : index
    %c0_6 = arith.constant 0 : index
    %6 = vector.load %arg2[%c0_4, %c0_5, %c0_6] : memref<5x120x288xbf16, #tpu.memory_space<vmem>>, vector<1x120x288xbf16>
    %7 = vector.shape_cast %6 : vector<1x120x288xbf16> to vector<120x288xbf16>
    %cst_7 = arith.constant dense<0.000000e+00> : vector<36x288xf32>
    %8 = tpu.matmul %5, %7, %cst_7 {dimension_numbers = #tpu.dot_dimension_numbers<[1], [0], [0], [1], [0, 0, 1, 1], [], []>} : vector<36x120xbf16>, vector<120x288xbf16>, vector<36x288xf32> -> vector<36x288xf32>
    %c1 = arith.constant 1 : index
    %c0_8 = arith.constant 0 : index
    %c0_9 = arith.constant 0 : index
    %9 = vector.load %arg1[%c1, %c0_8, %c0_9] : memref<5x36x80xbf16, #tpu.memory_space<vmem>>, vector<1x36x80xbf16>
    %10 = vector.shape_cast %9 : vector<1x36x80xbf16> to vector<36x80xbf16>
    %cst_10 = arith.constant dense<0.000000e+00> : vector<36x120xf32>
    %11 = tpu.matmul %10, %1, %cst_10 {dimension_numbers = #tpu.dot_dimension_numbers<[1], [0], [0], [1], [0, 0, 1, 1], [], []>} : vector<36x80xbf16>, vector<80x120xbf16>, vector<36x120xf32> -> vector<36x120xf32>
    %12 = arith.truncf %11 : vector<36x120xf32> to vector<36x120xbf16>
    %c1_11 = arith.constant 1 : index
    %c0_12 = arith.constant 0 : index
    %c0_13 = arith.constant 0 : index
    %13 = vector.load %arg2[%c1_11, %c0_12, %c0_13] : memref<5x120x288xbf16, #tpu.memory_space<vmem>>, vector<1x120x288xbf16>
    %14 = vector.shape_cast %13 : vector<1x120x288xbf16> to vector<120x288xbf16>
    %cst_14 = arith.constant dense<0.000000e+00> : vector<36x288xf32>
    %15 = tpu.matmul %12, %14, %cst_14 {dimension_numbers = #tpu.dot_dimension_numbers<[1], [0], [0], [1], [0, 0, 1, 1], [], []>} : vector<36x120xbf16>, vector<120x288xbf16>, vector<36x288xf32> -> vector<36x288xf32>
    %16 = arith.addf %8, %15 : vector<36x288xf32>
    %c2 = arith.constant 2 : index
    %c0_15 = arith.constant 0 : index
    %c0_16 = arith.constant 0 : index
    %17 = vector.load %arg1[%c2, %c0_15, %c0_16] : memref<5x36x80xbf16, #tpu.memory_space<vmem>>, vector<1x36x80xbf16>
    %18 = vector.shape_cast %17 : vector<1x36x80xbf16> to vector<36x80xbf16>
    %cst_17 = arith.constant dense<0.000000e+00> : vector<36x120xf32>
    %19 = tpu.matmul %18, %1, %cst_17 {dimension_numbers = #tpu.dot_dimension_numbers<[1], [0], [0], [1], [0, 0, 1, 1], [], []>} : vector<36x80xbf16>, vector<80x120xbf16>, vector<36x120xf32> -> vector<36x120xf32>
    %20 = arith.truncf %19 : vector<36x120xf32> to vector<36x120xbf16>
    %c2_18 = arith.constant 2 : index
    %c0_19 = arith.constant 0 : index
    %c0_20 = arith.constant 0 : index
    %21 = vector.load %arg2[%c2_18, %c0_19, %c0_20] : memref<5x120x288xbf16, #tpu.memory_space<vmem>>, vector<1x120x288xbf16>
    %22 = vector.shape_cast %21 : vector<1x120x288xbf16> to vector<120x288xbf16>
    %cst_21 = arith.constant dense<0.000000e+00> : vector<36x288xf32>
    %23 = tpu.matmul %20, %22, %cst_21 {dimension_numbers = #tpu.dot_dimension_numbers<[1], [0], [0], [1], [0, 0, 1, 1], [], []>} : vector<36x120xbf16>, vector<120x288xbf16>, vector<36x288xf32> -> vector<36x288xf32>
    %24 = arith.addf %16, %23 : vector<36x288xf32>
    %c3 = arith.constant 3 : index
    %c0_22 = arith.constant 0 : index
    %c0_23 = arith.constant 0 : index
    %25 = vector.load %arg1[%c3, %c0_22, %c0_23] : memref<5x36x80xbf16, #tpu.memory_space<vmem>>, vector<1x36x80xbf16>
    %26 = vector.shape_cast %25 : vector<1x36x80xbf16> to vector<36x80xbf16>
    %cst_24 = arith.constant dense<0.000000e+00> : vector<36x120xf32>
    %27 = tpu.matmul %26, %1, %cst_24 {dimension_numbers = #tpu.dot_dimension_numbers<[1], [0], [0], [1], [0, 0, 1, 1], [], []>} : vector<36x80xbf16>, vector<80x120xbf16>, vector<36x120xf32> -> vector<36x120xf32>
    %28 = arith.truncf %27 : vector<36x120xf32> to vector<36x120xbf16>
    %c3_25 = arith.constant 3 : index
    %c0_26 = arith.constant 0 : index
    %c0_27 = arith.constant 0 : index
    %29 = vector.load %arg2[%c3_25, %c0_26, %c0_27] : memref<5x120x288xbf16, #tpu.memory_space<vmem>>, vector<1x120x288xbf16>
    %30 = vector.shape_cast %29 : vector<1x120x288xbf16> to vector<120x288xbf16>
    %cst_28 = arith.constant dense<0.000000e+00> : vector<36x288xf32>
    %31 = tpu.matmul %28, %30, %cst_28 {dimension_numbers = #tpu.dot_dimension_numbers<[1], [0], [0], [1], [0, 0, 1, 1], [], []>} : vector<36x120xbf16>, vector<120x288xbf16>, vector<36x288xf32> -> vector<36x288xf32>
    %32 = arith.addf %24, %31 : vector<36x288xf32>
    %c4 = arith.constant 4 : index
    %c0_29 = arith.constant 0 : index
    %c0_30 = arith.constant 0 : index
    %33 = vector.load %arg1[%c4, %c0_29, %c0_30] : memref<5x36x80xbf16, #tpu.memory_space<vmem>>, vector<1x36x80xbf16>
    %34 = vector.shape_cast %33 : vector<1x36x80xbf16> to vector<36x80xbf16>
    %cst_31 = arith.constant dense<0.000000e+00> : vector<36x120xf32>
    %35 = tpu.matmul %34, %1, %cst_31 {dimension_numbers = #tpu.dot_dimension_numbers<[1], [0], [0], [1], [0, 0, 1, 1], [], []>} : vector<36x80xbf16>, vector<80x120xbf16>, vector<36x120xf32> -> vector<36x120xf32>
    %36 = arith.truncf %35 : vector<36x120xf32> to vector<36x120xbf16>
    %c4_32 = arith.constant 4 : index
    %c0_33 = arith.constant 0 : index
    %c0_34 = arith.constant 0 : index
    %37 = vector.load %arg2[%c4_32, %c0_33, %c0_34] : memref<5x120x288xbf16, #tpu.memory_space<vmem>>, vector<1x120x288xbf16>
    %38 = vector.shape_cast %37 : vector<1x120x288xbf16> to vector<120x288xbf16>
    %cst_35 = arith.constant dense<0.000000e+00> : vector<36x288xf32>
    %39 = tpu.matmul %36, %38, %cst_35 {dimension_numbers = #tpu.dot_dimension_numbers<[1], [0], [0], [1], [0, 0, 1, 1], [], []>} : vector<36x120xbf16>, vector<120x288xbf16>, vector<36x288xf32> -> vector<36x288xf32>
    %40 = arith.addf %32, %39 : vector<36x288xf32>
    %c0_36 = arith.constant 0 : index
    %c0_37 = arith.constant 0 : index
    %41 = vector.load %arg3[%c0_36, %c0_37] : memref<1x288xf32, #tpu.memory_space<vmem>>, vector<1x288xf32>
    %42 = vector.broadcast %41 : vector<1x288xf32> to vector<36x288xf32>
    %43 = arith.addf %40, %42 : vector<36x288xf32>
    %cst_38 = arith.constant dense<0.000000e+00> : vector<288xf32>
    %44 = vector.multi_reduction <add>, %43, %cst_38 [0] : vector<36x288xf32> to vector<288xf32>
    %45 = vector.shape_cast %44 : vector<288xf32> to vector<1x288xf32>
    %46 = arith.mulf %43, %43 : vector<36x288xf32>
    %cst_39 = arith.constant dense<0.000000e+00> : vector<288xf32>
    %47 = vector.multi_reduction <add>, %46, %cst_39 [0] : vector<36x288xf32> to vector<288xf32>
    %48 = vector.shape_cast %47 : vector<288xf32> to vector<1x288xf32>
    %c0_40 = arith.constant 0 : index
    %c0_41 = arith.constant 0 : index
    %49 = vector.load %arg6[%c0_40, %c0_41] : memref<288x16xf32, #tpu.memory_space<vmem>>, vector<288x16xf32>
    %cst_42 = arith.constant dense<0.000000e+00> : vector<1x16xf32>
    %50 = tpu.matmul %45, %49, %cst_42 {dimension_numbers = #tpu.dot_dimension_numbers<[1], [0], [0], [1], [0, 0, 1, 1], [], []>} : vector<1x288xf32>, vector<288x16xf32>, vector<1x16xf32> -> vector<1x16xf32>
    %cst_43 = arith.constant 0.00154320989 : f32
    %51 = vector.broadcast %cst_43 : f32 to vector<1x16xf32>
    %52 = arith.mulf %50, %51 : vector<1x16xf32>
    %c0_44 = arith.constant 0 : index
    %c0_45 = arith.constant 0 : index
    %53 = vector.load %arg6[%c0_44, %c0_45] : memref<288x16xf32, #tpu.memory_space<vmem>>, vector<288x16xf32>
    %cst_46 = arith.constant dense<0.000000e+00> : vector<1x16xf32>
    %54 = tpu.matmul %48, %53, %cst_46 {dimension_numbers = #tpu.dot_dimension_numbers<[1], [0], [0], [1], [0, 0, 1, 1], [], []>} : vector<1x288xf32>, vector<288x16xf32>, vector<1x16xf32> -> vector<1x16xf32>
    %cst_47 = arith.constant 0.00154320989 : f32
    %55 = vector.broadcast %cst_47 : f32 to vector<1x16xf32>
    %56 = arith.mulf %54, %55 : vector<1x16xf32>
    %57 = arith.mulf %52, %52 : vector<1x16xf32>
    %58 = arith.subf %56, %57 : vector<1x16xf32>
    %c0_48 = arith.constant 0 : index
    %c0_49 = arith.constant 0 : index
    %59 = vector.load %arg4[%c0_48, %c0_49] : memref<1x16xf32, #tpu.memory_space<vmem>>, vector<1x16xf32>
    %cst_50 = arith.constant 9.99999974E-6 : f32
    %60 = vector.broadcast %cst_50 : f32 to vector<1x16xf32>
    %61 = arith.addf %58, %60 : vector<1x16xf32>
    %62 = math.rsqrt %61 : vector<1x16xf32>
    %63 = arith.mulf %59, %62 : vector<1x16xf32>
    %c0_51 = arith.constant 0 : index
    %c0_52 = arith.constant 0 : index
    %64 = vector.load %arg5[%c0_51, %c0_52] : memref<1x16xf32, #tpu.memory_space<vmem>>, vector<1x16xf32>
    %65 = arith.mulf %52, %63 : vector<1x16xf32>
    %66 = arith.subf %64, %65 : vector<1x16xf32>
    %c0_53 = arith.constant 0 : index
    %c0_54 = arith.constant 0 : index
    %67 = vector.load %arg7[%c0_53, %c0_54] : memref<16x288xf32, #tpu.memory_space<vmem>>, vector<16x288xf32>
    %cst_55 = arith.constant dense<0.000000e+00> : vector<1x288xf32>
    %68 = tpu.matmul %63, %67, %cst_55 {dimension_numbers = #tpu.dot_dimension_numbers<[1], [0], [0], [1], [0, 0, 1, 1], [], []>} : vector<1x16xf32>, vector<16x288xf32>, vector<1x288xf32> -> vector<1x288xf32>
    %c0_56 = arith.constant 0 : index
    %c0_57 = arith.constant 0 : index
    %69 = vector.load %arg7[%c0_56, %c0_57] : memref<16x288xf32, #tpu.memory_space<vmem>>, vector<16x288xf32>
    %cst_58 = arith.constant dense<0.000000e+00> : vector<1x288xf32>
    %70 = tpu.matmul %66, %69, %cst_58 {dimension_numbers = #tpu.dot_dimension_numbers<[1], [0], [0], [1], [0, 0, 1, 1], [], []>} : vector<1x16xf32>, vector<16x288xf32>, vector<1x288xf32> -> vector<1x288xf32>
    %71 = vector.broadcast %68 : vector<1x288xf32> to vector<36x288xf32>
    %72 = arith.mulf %43, %71 : vector<36x288xf32>
    %73 = vector.broadcast %70 : vector<1x288xf32> to vector<36x288xf32>
    %74 = arith.addf %72, %73 : vector<36x288xf32>
    %cst_59 = arith.constant 0.000000e+00 : f32
    %75 = vector.broadcast %cst_59 : f32 to vector<36x288xf32>
    %76 = arith.maximumf %74, %75 : vector<36x288xf32>
    %77 = arith.truncf %76 : vector<36x288xf32> to vector<36x288xbf16>
    %c0_60 = arith.constant 0 : index
    %c0_61 = arith.constant 0 : index
    %c0_62 = arith.constant 0 : index
    %78 = vector.load %arg8[%c0_60, %c0_61, %c0_62] : memref<5x14x36xbf16, #tpu.memory_space<vmem>>, vector<1x14x36xbf16>
    %79 = vector.shape_cast %78 : vector<1x14x36xbf16> to vector<14x36xbf16>
    %cst_63 = arith.constant dense<0.000000e+00> : vector<14x288xf32>
    %80 = tpu.matmul %79, %77, %cst_63 {dimension_numbers = #tpu.dot_dimension_numbers<[1], [0], [0], [1], [0, 0, 1, 1], [], []>} : vector<14x36xbf16>, vector<36x288xbf16>, vector<14x288xf32> -> vector<14x288xf32>
    %81 = arith.truncf %80 : vector<14x288xf32> to vector<14x288xbf16>
    %c0_64 = arith.constant 0 : index
    %c0_65 = arith.constant 0 : index
    %c0_66 = arith.constant 0 : index
    %82 = vector.load %arg9[%c0_64, %c0_65, %c0_66] : memref<5x288x224xbf16, #tpu.memory_space<vmem>>, vector<1x288x224xbf16>
    %83 = vector.shape_cast %82 : vector<1x288x224xbf16> to vector<288x224xbf16>
    %cst_67 = arith.constant dense<0.000000e+00> : vector<14x224xf32>
    %84 = tpu.matmul %81, %83, %cst_67 {dimension_numbers = #tpu.dot_dimension_numbers<[1], [0], [0], [1], [0, 0, 1, 1], [], []>} : vector<14x288xbf16>, vector<288x224xbf16>, vector<14x224xf32> -> vector<14x224xf32>
    %c1_68 = arith.constant 1 : index
    %c0_69 = arith.constant 0 : index
    %c0_70 = arith.constant 0 : index
    %85 = vector.load %arg8[%c1_68, %c0_69, %c0_70] : memref<5x14x36xbf16, #tpu.memory_space<vmem>>, vector<1x14x36xbf16>
    %86 = vector.shape_cast %85 : vector<1x14x36xbf16> to vector<14x36xbf16>
    %cst_71 = arith.constant dense<0.000000e+00> : vector<14x288xf32>
    %87 = tpu.matmul %86, %77, %cst_71 {dimension_numbers = #tpu.dot_dimension_numbers<[1], [0], [0], [1], [0, 0, 1, 1], [], []>} : vector<14x36xbf16>, vector<36x288xbf16>, vector<14x288xf32> -> vector<14x288xf32>
    %88 = arith.truncf %87 : vector<14x288xf32> to vector<14x288xbf16>
    %c1_72 = arith.constant 1 : index
    %c0_73 = arith.constant 0 : index
    %c0_74 = arith.constant 0 : index
    %89 = vector.load %arg9[%c1_72, %c0_73, %c0_74] : memref<5x288x224xbf16, #tpu.memory_space<vmem>>, vector<1x288x224xbf16>
    %90 = vector.shape_cast %89 : vector<1x288x224xbf16> to vector<288x224xbf16>
    %cst_75 = arith.constant dense<0.000000e+00> : vector<14x224xf32>
    %91 = tpu.matmul %88, %90, %cst_75 {dimension_numbers = #tpu.dot_dimension_numbers<[1], [0], [0], [1], [0, 0, 1, 1], [], []>} : vector<14x288xbf16>, vector<288x224xbf16>, vector<14x224xf32> -> vector<14x224xf32>
    %92 = arith.addf %84, %91 : vector<14x224xf32>
    %c2_76 = arith.constant 2 : index
    %c0_77 = arith.constant 0 : index
    %c0_78 = arith.constant 0 : index
    %93 = vector.load %arg8[%c2_76, %c0_77, %c0_78] : memref<5x14x36xbf16, #tpu.memory_space<vmem>>, vector<1x14x36xbf16>
    %94 = vector.shape_cast %93 : vector<1x14x36xbf16> to vector<14x36xbf16>
    %cst_79 = arith.constant dense<0.000000e+00> : vector<14x288xf32>
    %95 = tpu.matmul %94, %77, %cst_79 {dimension_numbers = #tpu.dot_dimension_numbers<[1], [0], [0], [1], [0, 0, 1, 1], [], []>} : vector<14x36xbf16>, vector<36x288xbf16>, vector<14x288xf32> -> vector<14x288xf32>
    %96 = arith.truncf %95 : vector<14x288xf32> to vector<14x288xbf16>
    %c2_80 = arith.constant 2 : index
    %c0_81 = arith.constant 0 : index
    %c0_82 = arith.constant 0 : index
    %97 = vector.load %arg9[%c2_80, %c0_81, %c0_82] : memref<5x288x224xbf16, #tpu.memory_space<vmem>>, vector<1x288x224xbf16>
    %98 = vector.shape_cast %97 : vector<1x288x224xbf16> to vector<288x224xbf16>
    %cst_83 = arith.constant dense<0.000000e+00> : vector<14x224xf32>
    %99 = tpu.matmul %96, %98, %cst_83 {dimension_numbers = #tpu.dot_dimension_numbers<[1], [0], [0], [1], [0, 0, 1, 1], [], []>} : vector<14x288xbf16>, vector<288x224xbf16>, vector<14x224xf32> -> vector<14x224xf32>
    %100 = arith.addf %92, %99 : vector<14x224xf32>
    %c3_84 = arith.constant 3 : index
    %c0_85 = arith.constant 0 : index
    %c0_86 = arith.constant 0 : index
    %101 = vector.load %arg8[%c3_84, %c0_85, %c0_86] : memref<5x14x36xbf16, #tpu.memory_space<vmem>>, vector<1x14x36xbf16>
    %102 = vector.shape_cast %101 : vector<1x14x36xbf16> to vector<14x36xbf16>
    %cst_87 = arith.constant dense<0.000000e+00> : vector<14x288xf32>
    %103 = tpu.matmul %102, %77, %cst_87 {dimension_numbers = #tpu.dot_dimension_numbers<[1], [0], [0], [1], [0, 0, 1, 1], [], []>} : vector<14x36xbf16>, vector<36x288xbf16>, vector<14x288xf32> -> vector<14x288xf32>
    %104 = arith.truncf %103 : vector<14x288xf32> to vector<14x288xbf16>
    %c3_88 = arith.constant 3 : index
    %c0_89 = arith.constant 0 : index
    %c0_90 = arith.constant 0 : index
    %105 = vector.load %arg9[%c3_88, %c0_89, %c0_90] : memref<5x288x224xbf16, #tpu.memory_space<vmem>>, vector<1x288x224xbf16>
    %106 = vector.shape_cast %105 : vector<1x288x224xbf16> to vector<288x224xbf16>
    %cst_91 = arith.constant dense<0.000000e+00> : vector<14x224xf32>
    %107 = tpu.matmul %104, %106, %cst_91 {dimension_numbers = #tpu.dot_dimension_numbers<[1], [0], [0], [1], [0, 0, 1, 1], [], []>} : vector<14x288xbf16>, vector<288x224xbf16>, vector<14x224xf32> -> vector<14x224xf32>
    %108 = arith.addf %100, %107 : vector<14x224xf32>
    %c4_92 = arith.constant 4 : index
    %c0_93 = arith.constant 0 : index
    %c0_94 = arith.constant 0 : index
    %109 = vector.load %arg8[%c4_92, %c0_93, %c0_94] : memref<5x14x36xbf16, #tpu.memory_space<vmem>>, vector<1x14x36xbf16>
    %110 = vector.shape_cast %109 : vector<1x14x36xbf16> to vector<14x36xbf16>
    %cst_95 = arith.constant dense<0.000000e+00> : vector<14x288xf32>
    %111 = tpu.matmul %110, %77, %cst_95 {dimension_numbers = #tpu.dot_dimension_numbers<[1], [0], [0], [1], [0, 0, 1, 1], [], []>} : vector<14x36xbf16>, vector<36x288xbf16>, vector<14x288xf32> -> vector<14x288xf32>
    %112 = arith.truncf %111 : vector<14x288xf32> to vector<14x288xbf16>
    %c4_96 = arith.constant 4 : index
    %c0_97 = arith.constant 0 : index
    %c0_98 = arith.constant 0 : index
    %113 = vector.load %arg9[%c4_96, %c0_97, %c0_98] : memref<5x288x224xbf16, #tpu.memory_space<vmem>>, vector<1x288x224xbf16>
    %114 = vector.shape_cast %113 : vector<1x288x224xbf16> to vector<288x224xbf16>
    %cst_99 = arith.constant dense<0.000000e+00> : vector<14x224xf32>
    %115 = tpu.matmul %112, %114, %cst_99 {dimension_numbers = #tpu.dot_dimension_numbers<[1], [0], [0], [1], [0, 0, 1, 1], [], []>} : vector<14x288xbf16>, vector<288x224xbf16>, vector<14x224xf32> -> vector<14x224xf32>
    %116 = arith.addf %108, %115 : vector<14x224xf32>
    %c0_100 = arith.constant 0 : index
    %c0_101 = arith.constant 0 : index
    %117 = vector.load %arg10[%c0_100, %c0_101] : memref<1x224xf32, #tpu.memory_space<vmem>>, vector<1x224xf32>
    %118 = vector.broadcast %117 : vector<1x224xf32> to vector<14x224xf32>
    %119 = arith.addf %116, %118 : vector<14x224xf32>
    %cst_102 = arith.constant dense<0.000000e+00> : vector<224xf32>
    %120 = vector.multi_reduction <add>, %119, %cst_102 [0] : vector<14x224xf32> to vector<224xf32>
    %121 = vector.shape_cast %120 : vector<224xf32> to vector<1x224xf32>
    %122 = arith.mulf %119, %119 : vector<14x224xf32>
    %cst_103 = arith.constant dense<0.000000e+00> : vector<224xf32>
    %123 = vector.multi_reduction <add>, %122, %cst_103 [0] : vector<14x224xf32> to vector<224xf32>
    %124 = vector.shape_cast %123 : vector<224xf32> to vector<1x224xf32>
    %c0_104 = arith.constant 0 : index
    %c0_105 = arith.constant 0 : index
    %125 = vector.load %arg13[%c0_104, %c0_105] : memref<224x32xf32, #tpu.memory_space<vmem>>, vector<224x32xf32>
    %cst_106 = arith.constant dense<0.000000e+00> : vector<1x32xf32>
    %126 = tpu.matmul %121, %125, %cst_106 {dimension_numbers = #tpu.dot_dimension_numbers<[1], [0], [0], [1], [0, 0, 1, 1], [], []>} : vector<1x224xf32>, vector<224x32xf32>, vector<1x32xf32> -> vector<1x32xf32>
    %cst_107 = arith.constant 0.0102040814 : f32
    %127 = vector.broadcast %cst_107 : f32 to vector<1x32xf32>
    %128 = arith.mulf %126, %127 : vector<1x32xf32>
    %c0_108 = arith.constant 0 : index
    %c0_109 = arith.constant 0 : index
    %129 = vector.load %arg13[%c0_108, %c0_109] : memref<224x32xf32, #tpu.memory_space<vmem>>, vector<224x32xf32>
    %cst_110 = arith.constant dense<0.000000e+00> : vector<1x32xf32>
    %130 = tpu.matmul %124, %129, %cst_110 {dimension_numbers = #tpu.dot_dimension_numbers<[1], [0], [0], [1], [0, 0, 1, 1], [], []>} : vector<1x224xf32>, vector<224x32xf32>, vector<1x32xf32> -> vector<1x32xf32>
    %cst_111 = arith.constant 0.0102040814 : f32
    %131 = vector.broadcast %cst_111 : f32 to vector<1x32xf32>
    %132 = arith.mulf %130, %131 : vector<1x32xf32>
    %133 = arith.mulf %128, %128 : vector<1x32xf32>
    %134 = arith.subf %132, %133 : vector<1x32xf32>
    %c0_112 = arith.constant 0 : index
    %c0_113 = arith.constant 0 : index
    %135 = vector.load %arg11[%c0_112, %c0_113] : memref<1x32xf32, #tpu.memory_space<vmem>>, vector<1x32xf32>
    %cst_114 = arith.constant 9.99999974E-6 : f32
    %136 = vector.broadcast %cst_114 : f32 to vector<1x32xf32>
    %137 = arith.addf %134, %136 : vector<1x32xf32>
    %138 = math.rsqrt %137 : vector<1x32xf32>
    %139 = arith.mulf %135, %138 : vector<1x32xf32>
    %c0_115 = arith.constant 0 : index
    %c0_116 = arith.constant 0 : index
    %140 = vector.load %arg12[%c0_115, %c0_116] : memref<1x32xf32, #tpu.memory_space<vmem>>, vector<1x32xf32>
    %141 = arith.mulf %128, %139 : vector<1x32xf32>
    %142 = arith.subf %140, %141 : vector<1x32xf32>
    %c0_117 = arith.constant 0 : index
    %c0_118 = arith.constant 0 : index
    %143 = vector.load %arg14[%c0_117, %c0_118] : memref<32x224xf32, #tpu.memory_space<vmem>>, vector<32x224xf32>
    %cst_119 = arith.constant dense<0.000000e+00> : vector<1x224xf32>
    %144 = tpu.matmul %139, %143, %cst_119 {dimension_numbers = #tpu.dot_dimension_numbers<[1], [0], [0], [1], [0, 0, 1, 1], [], []>} : vector<1x32xf32>, vector<32x224xf32>, vector<1x224xf32> -> vector<1x224xf32>
    %c0_120 = arith.constant 0 : index
    %c0_121 = arith.constant 0 : index
    %145 = vector.load %arg14[%c0_120, %c0_121] : memref<32x224xf32, #tpu.memory_space<vmem>>, vector<32x224xf32>
    %cst_122 = arith.constant dense<0.000000e+00> : vector<1x224xf32>
    %146 = tpu.matmul %142, %145, %cst_122 {dimension_numbers = #tpu.dot_dimension_numbers<[1], [0], [0], [1], [0, 0, 1, 1], [], []>} : vector<1x32xf32>, vector<32x224xf32>, vector<1x224xf32> -> vector<1x224xf32>
    %147 = vector.broadcast %144 : vector<1x224xf32> to vector<14x224xf32>
    %148 = arith.mulf %119, %147 : vector<14x224xf32>
    %149 = vector.broadcast %146 : vector<1x224xf32> to vector<14x224xf32>
    %150 = arith.addf %148, %149 : vector<14x224xf32>
    %cst_123 = arith.constant 0.000000e+00 : f32
    %151 = vector.broadcast %cst_123 : f32 to vector<14x224xf32>
    %152 = arith.maximumf %150, %151 : vector<14x224xf32>
    %153 = arith.truncf %152 : vector<14x224xf32> to vector<14x224xbf16>
    %c0_124 = arith.constant 0 : index
    %c0_125 = arith.constant 0 : index
    %c0_126 = arith.constant 0 : index
    %154 = vector.load %arg15[%c0_124, %c0_125, %c0_126] : memref<5x4x14xbf16, #tpu.memory_space<vmem>>, vector<1x4x14xbf16>
    %155 = vector.shape_cast %154 : vector<1x4x14xbf16> to vector<4x14xbf16>
    %cst_127 = arith.constant dense<0.000000e+00> : vector<4x224xf32>
    %156 = tpu.matmul %155, %153, %cst_127 {dimension_numbers = #tpu.dot_dimension_numbers<[1], [0], [0], [1], [0, 0, 1, 1], [], []>} : vector<4x14xbf16>, vector<14x224xbf16>, vector<4x224xf32> -> vector<4x224xf32>
    %157 = arith.truncf %156 : vector<4x224xf32> to vector<4x224xbf16>
    %c0_128 = arith.constant 0 : index
    %c0_129 = arith.constant 0 : index
    %c0_130 = arith.constant 0 : index
    %158 = vector.load %arg16[%c0_128, %c0_129, %c0_130] : memref<5x224x64xbf16, #tpu.memory_space<vmem>>, vector<1x224x64xbf16>
    %159 = vector.shape_cast %158 : vector<1x224x64xbf16> to vector<224x64xbf16>
    %cst_131 = arith.constant dense<0.000000e+00> : vector<4x64xf32>
    %160 = tpu.matmul %157, %159, %cst_131 {dimension_numbers = #tpu.dot_dimension_numbers<[1], [0], [0], [1], [0, 0, 1, 1], [], []>} : vector<4x224xbf16>, vector<224x64xbf16>, vector<4x64xf32> -> vector<4x64xf32>
    %c1_132 = arith.constant 1 : index
    %c0_133 = arith.constant 0 : index
    %c0_134 = arith.constant 0 : index
    %161 = vector.load %arg15[%c1_132, %c0_133, %c0_134] : memref<5x4x14xbf16, #tpu.memory_space<vmem>>, vector<1x4x14xbf16>
    %162 = vector.shape_cast %161 : vector<1x4x14xbf16> to vector<4x14xbf16>
    %cst_135 = arith.constant dense<0.000000e+00> : vector<4x224xf32>
    %163 = tpu.matmul %162, %153, %cst_135 {dimension_numbers = #tpu.dot_dimension_numbers<[1], [0], [0], [1], [0, 0, 1, 1], [], []>} : vector<4x14xbf16>, vector<14x224xbf16>, vector<4x224xf32> -> vector<4x224xf32>
    %164 = arith.truncf %163 : vector<4x224xf32> to vector<4x224xbf16>
    %c1_136 = arith.constant 1 : index
    %c0_137 = arith.constant 0 : index
    %c0_138 = arith.constant 0 : index
    %165 = vector.load %arg16[%c1_136, %c0_137, %c0_138] : memref<5x224x64xbf16, #tpu.memory_space<vmem>>, vector<1x224x64xbf16>
    %166 = vector.shape_cast %165 : vector<1x224x64xbf16> to vector<224x64xbf16>
    %cst_139 = arith.constant dense<0.000000e+00> : vector<4x64xf32>
    %167 = tpu.matmul %164, %166, %cst_139 {dimension_numbers = #tpu.dot_dimension_numbers<[1], [0], [0], [1], [0, 0, 1, 1], [], []>} : vector<4x224xbf16>, vector<224x64xbf16>, vector<4x64xf32> -> vector<4x64xf32>
    %168 = arith.addf %160, %167 : vector<4x64xf32>
    %c2_140 = arith.constant 2 : index
    %c0_141 = arith.constant 0 : index
    %c0_142 = arith.constant 0 : index
    %169 = vector.load %arg15[%c2_140, %c0_141, %c0_142] : memref<5x4x14xbf16, #tpu.memory_space<vmem>>, vector<1x4x14xbf16>
    %170 = vector.shape_cast %169 : vector<1x4x14xbf16> to vector<4x14xbf16>
    %cst_143 = arith.constant dense<0.000000e+00> : vector<4x224xf32>
    %171 = tpu.matmul %170, %153, %cst_143 {dimension_numbers = #tpu.dot_dimension_numbers<[1], [0], [0], [1], [0, 0, 1, 1], [], []>} : vector<4x14xbf16>, vector<14x224xbf16>, vector<4x224xf32> -> vector<4x224xf32>
    %172 = arith.truncf %171 : vector<4x224xf32> to vector<4x224xbf16>
    %c2_144 = arith.constant 2 : index
    %c0_145 = arith.constant 0 : index
    %c0_146 = arith.constant 0 : index
    %173 = vector.load %arg16[%c2_144, %c0_145, %c0_146] : memref<5x224x64xbf16, #tpu.memory_space<vmem>>, vector<1x224x64xbf16>
    %174 = vector.shape_cast %173 : vector<1x224x64xbf16> to vector<224x64xbf16>
    %cst_147 = arith.constant dense<0.000000e+00> : vector<4x64xf32>
    %175 = tpu.matmul %172, %174, %cst_147 {dimension_numbers = #tpu.dot_dimension_numbers<[1], [0], [0], [1], [0, 0, 1, 1], [], []>} : vector<4x224xbf16>, vector<224x64xbf16>, vector<4x64xf32> -> vector<4x64xf32>
    %176 = arith.addf %168, %175 : vector<4x64xf32>
    %c3_148 = arith.constant 3 : index
    %c0_149 = arith.constant 0 : index
    %c0_150 = arith.constant 0 : index
    %177 = vector.load %arg15[%c3_148, %c0_149, %c0_150] : memref<5x4x14xbf16, #tpu.memory_space<vmem>>, vector<1x4x14xbf16>
    %178 = vector.shape_cast %177 : vector<1x4x14xbf16> to vector<4x14xbf16>
    %cst_151 = arith.constant dense<0.000000e+00> : vector<4x224xf32>
    %179 = tpu.matmul %178, %153, %cst_151 {dimension_numbers = #tpu.dot_dimension_numbers<[1], [0], [0], [1], [0, 0, 1, 1], [], []>} : vector<4x14xbf16>, vector<14x224xbf16>, vector<4x224xf32> -> vector<4x224xf32>
    %180 = arith.truncf %179 : vector<4x224xf32> to vector<4x224xbf16>
    %c3_152 = arith.constant 3 : index
    %c0_153 = arith.constant 0 : index
    %c0_154 = arith.constant 0 : index
    %181 = vector.load %arg16[%c3_152, %c0_153, %c0_154] : memref<5x224x64xbf16, #tpu.memory_space<vmem>>, vector<1x224x64xbf16>
    %182 = vector.shape_cast %181 : vector<1x224x64xbf16> to vector<224x64xbf16>
    %cst_155 = arith.constant dense<0.000000e+00> : vector<4x64xf32>
    %183 = tpu.matmul %180, %182, %cst_155 {dimension_numbers = #tpu.dot_dimension_numbers<[1], [0], [0], [1], [0, 0, 1, 1], [], []>} : vector<4x224xbf16>, vector<224x64xbf16>, vector<4x64xf32> -> vector<4x64xf32>
    %184 = arith.addf %176, %183 : vector<4x64xf32>
    %c4_156 = arith.constant 4 : index
    %c0_157 = arith.constant 0 : index
    %c0_158 = arith.constant 0 : index
    %185 = vector.load %arg15[%c4_156, %c0_157, %c0_158] : memref<5x4x14xbf16, #tpu.memory_space<vmem>>, vector<1x4x14xbf16>
    %186 = vector.shape_cast %185 : vector<1x4x14xbf16> to vector<4x14xbf16>
    %cst_159 = arith.constant dense<0.000000e+00> : vector<4x224xf32>
    %187 = tpu.matmul %186, %153, %cst_159 {dimension_numbers = #tpu.dot_dimension_numbers<[1], [0], [0], [1], [0, 0, 1, 1], [], []>} : vector<4x14xbf16>, vector<14x224xbf16>, vector<4x224xf32> -> vector<4x224xf32>
    %188 = arith.truncf %187 : vector<4x224xf32> to vector<4x224xbf16>
    %c4_160 = arith.constant 4 : index
    %c0_161 = arith.constant 0 : index
    %c0_162 = arith.constant 0 : index
    %189 = vector.load %arg16[%c4_160, %c0_161, %c0_162] : memref<5x224x64xbf16, #tpu.memory_space<vmem>>, vector<1x224x64xbf16>
    %190 = vector.shape_cast %189 : vector<1x224x64xbf16> to vector<224x64xbf16>
    %cst_163 = arith.constant dense<0.000000e+00> : vector<4x64xf32>
    %191 = tpu.matmul %188, %190, %cst_163 {dimension_numbers = #tpu.dot_dimension_numbers<[1], [0], [0], [1], [0, 0, 1, 1], [], []>} : vector<4x224xbf16>, vector<224x64xbf16>, vector<4x64xf32> -> vector<4x64xf32>
    %192 = arith.addf %184, %191 : vector<4x64xf32>
    %c0_164 = arith.constant 0 : index
    %c0_165 = arith.constant 0 : index
    %193 = vector.load %arg17[%c0_164, %c0_165] : memref<1x64xf32, #tpu.memory_space<vmem>>, vector<1x64xf32>
    %194 = vector.broadcast %193 : vector<1x64xf32> to vector<4x64xf32>
    %195 = arith.addf %192, %194 : vector<4x64xf32>
    %cst_166 = arith.constant dense<0.000000e+00> : vector<64xf32>
    %196 = vector.multi_reduction <add>, %195, %cst_166 [0] : vector<4x64xf32> to vector<64xf32>
    %197 = vector.shape_cast %196 : vector<64xf32> to vector<1x64xf32>
    %198 = arith.mulf %195, %195 : vector<4x64xf32>
    %cst_167 = arith.constant dense<0.000000e+00> : vector<64xf32>
    %199 = vector.multi_reduction <add>, %198, %cst_167 [0] : vector<4x64xf32> to vector<64xf32>
    %200 = vector.shape_cast %199 : vector<64xf32> to vector<1x64xf32>
    %c0_168 = arith.constant 0 : index
    %c0_169 = arith.constant 0 : index
    %201 = vector.load %arg20[%c0_168, %c0_169] : memref<64x32xf32, #tpu.memory_space<vmem>>, vector<64x32xf32>
    %cst_170 = arith.constant dense<0.000000e+00> : vector<1x32xf32>
    %202 = tpu.matmul %197, %201, %cst_170 {dimension_numbers = #tpu.dot_dimension_numbers<[1], [0], [0], [1], [0, 0, 1, 1], [], []>} : vector<1x64xf32>, vector<64x32xf32>, vector<1x32xf32> -> vector<1x32xf32>
    %cst_171 = arith.constant 1.250000e-01 : f32
    %203 = vector.broadcast %cst_171 : f32 to vector<1x32xf32>
    %204 = arith.mulf %202, %203 : vector<1x32xf32>
    %c0_172 = arith.constant 0 : index
    %c0_173 = arith.constant 0 : index
    %205 = vector.load %arg20[%c0_172, %c0_173] : memref<64x32xf32, #tpu.memory_space<vmem>>, vector<64x32xf32>
    %cst_174 = arith.constant dense<0.000000e+00> : vector<1x32xf32>
    %206 = tpu.matmul %200, %205, %cst_174 {dimension_numbers = #tpu.dot_dimension_numbers<[1], [0], [0], [1], [0, 0, 1, 1], [], []>} : vector<1x64xf32>, vector<64x32xf32>, vector<1x32xf32> -> vector<1x32xf32>
    %cst_175 = arith.constant 1.250000e-01 : f32
    %207 = vector.broadcast %cst_175 : f32 to vector<1x32xf32>
    %208 = arith.mulf %206, %207 : vector<1x32xf32>
    %209 = arith.mulf %204, %204 : vector<1x32xf32>
    %210 = arith.subf %208, %209 : vector<1x32xf32>
    %c0_176 = arith.constant 0 : index
    %c0_177 = arith.constant 0 : index
    %211 = vector.load %arg18[%c0_176, %c0_177] : memref<1x32xf32, #tpu.memory_space<vmem>>, vector<1x32xf32>
    %cst_178 = arith.constant 9.99999974E-6 : f32
    %212 = vector.broadcast %cst_178 : f32 to vector<1x32xf32>
    %213 = arith.addf %210, %212 : vector<1x32xf32>
    %214 = math.rsqrt %213 : vector<1x32xf32>
    %215 = arith.mulf %211, %214 : vector<1x32xf32>
    %c0_179 = arith.constant 0 : index
    %c0_180 = arith.constant 0 : index
    %216 = vector.load %arg19[%c0_179, %c0_180] : memref<1x32xf32, #tpu.memory_space<vmem>>, vector<1x32xf32>
    %217 = arith.mulf %204, %215 : vector<1x32xf32>
    %218 = arith.subf %216, %217 : vector<1x32xf32>
    %c0_181 = arith.constant 0 : index
    %c0_182 = arith.constant 0 : index
    %219 = vector.load %arg21[%c0_181, %c0_182] : memref<32x64xf32, #tpu.memory_space<vmem>>, vector<32x64xf32>
    %cst_183 = arith.constant dense<0.000000e+00> : vector<1x64xf32>
    %220 = tpu.matmul %215, %219, %cst_183 {dimension_numbers = #tpu.dot_dimension_numbers<[1], [0], [0], [1], [0, 0, 1, 1], [], []>} : vector<1x32xf32>, vector<32x64xf32>, vector<1x64xf32> -> vector<1x64xf32>
    %c0_184 = arith.constant 0 : index
    %c0_185 = arith.constant 0 : index
    %221 = vector.load %arg21[%c0_184, %c0_185] : memref<32x64xf32, #tpu.memory_space<vmem>>, vector<32x64xf32>
    %cst_186 = arith.constant dense<0.000000e+00> : vector<1x64xf32>
    %222 = tpu.matmul %218, %221, %cst_186 {dimension_numbers = #tpu.dot_dimension_numbers<[1], [0], [0], [1], [0, 0, 1, 1], [], []>} : vector<1x32xf32>, vector<32x64xf32>, vector<1x64xf32> -> vector<1x64xf32>
    %223 = vector.broadcast %220 : vector<1x64xf32> to vector<4x64xf32>
    %224 = arith.mulf %195, %223 : vector<4x64xf32>
    %225 = vector.broadcast %222 : vector<1x64xf32> to vector<4x64xf32>
    %226 = arith.addf %224, %225 : vector<4x64xf32>
    %cst_187 = arith.constant 0.000000e+00 : f32
    %227 = vector.broadcast %cst_187 : f32 to vector<4x64xf32>
    %228 = arith.maximumf %226, %227 : vector<4x64xf32>
    %229 = arith.truncf %228 : vector<4x64xf32> to vector<4x64xbf16>
    %c0_188 = arith.constant 0 : index
    %c0_189 = arith.constant 0 : index
    %c0_190 = arith.constant 0 : index
    %230 = vector.load %arg22[%c0_188, %c0_189, %c0_190] : memref<2x2x4xbf16, #tpu.memory_space<vmem>>, vector<1x2x4xbf16>
    %231 = vector.shape_cast %230 : vector<1x2x4xbf16> to vector<2x4xbf16>
    %cst_191 = arith.constant dense<0.000000e+00> : vector<2x64xf32>
    %232 = tpu.matmul %231, %229, %cst_191 {dimension_numbers = #tpu.dot_dimension_numbers<[1], [0], [0], [1], [0, 0, 1, 1], [], []>} : vector<2x4xbf16>, vector<4x64xbf16>, vector<2x64xf32> -> vector<2x64xf32>
    %233 = arith.truncf %232 : vector<2x64xf32> to vector<2x64xbf16>
    %c0_192 = arith.constant 0 : index
    %c0_193 = arith.constant 0 : index
    %c0_194 = arith.constant 0 : index
    %234 = vector.load %arg23[%c0_192, %c0_193, %c0_194] : memref<2x64x4xbf16, #tpu.memory_space<vmem>>, vector<1x64x4xbf16>
    %235 = vector.shape_cast %234 : vector<1x64x4xbf16> to vector<64x4xbf16>
    %cst_195 = arith.constant dense<0.000000e+00> : vector<2x4xf32>
    %236 = tpu.matmul %233, %235, %cst_195 {dimension_numbers = #tpu.dot_dimension_numbers<[1], [0], [0], [1], [0, 0, 1, 1], [], []>} : vector<2x64xbf16>, vector<64x4xbf16>, vector<2x4xf32> -> vector<2x4xf32>
    %c0_196 = arith.constant 0 : index
    %c0_197 = arith.constant 0 : index
    %c0_198 = arith.constant 0 : index
    %237 = vector.load %arg25[%c0_196, %c0_197, %c0_198] : memref<2x64x1024xbf16, #tpu.memory_space<vmem>>, vector<1x64x1024xbf16>
    %238 = vector.shape_cast %237 : vector<1x64x1024xbf16> to vector<64x1024xbf16>
    %cst_199 = arith.constant dense<0.000000e+00> : vector<2x1024xf32>
    %239 = tpu.matmul %233, %238, %cst_199 {dimension_numbers = #tpu.dot_dimension_numbers<[1], [0], [0], [1], [0, 0, 1, 1], [], []>} : vector<2x64xbf16>, vector<64x1024xbf16>, vector<2x1024xf32> -> vector<2x1024xf32>
    %c1_200 = arith.constant 1 : index
    %c0_201 = arith.constant 0 : index
    %c0_202 = arith.constant 0 : index
    %240 = vector.load %arg22[%c1_200, %c0_201, %c0_202] : memref<2x2x4xbf16, #tpu.memory_space<vmem>>, vector<1x2x4xbf16>
    %241 = vector.shape_cast %240 : vector<1x2x4xbf16> to vector<2x4xbf16>
    %cst_203 = arith.constant dense<0.000000e+00> : vector<2x64xf32>
    %242 = tpu.matmul %241, %229, %cst_203 {dimension_numbers = #tpu.dot_dimension_numbers<[1], [0], [0], [1], [0, 0, 1, 1], [], []>} : vector<2x4xbf16>, vector<4x64xbf16>, vector<2x64xf32> -> vector<2x64xf32>
    %243 = arith.truncf %242 : vector<2x64xf32> to vector<2x64xbf16>
    %c1_204 = arith.constant 1 : index
    %c0_205 = arith.constant 0 : index
    %c0_206 = arith.constant 0 : index
    %244 = vector.load %arg23[%c1_204, %c0_205, %c0_206] : memref<2x64x4xbf16, #tpu.memory_space<vmem>>, vector<1x64x4xbf16>
    %245 = vector.shape_cast %244 : vector<1x64x4xbf16> to vector<64x4xbf16>
    %cst_207 = arith.constant dense<0.000000e+00> : vector<2x4xf32>
    %246 = tpu.matmul %243, %245, %cst_207 {dimension_numbers = #tpu.dot_dimension_numbers<[1], [0], [0], [1], [0, 0, 1, 1], [], []>} : vector<2x64xbf16>, vector<64x4xbf16>, vector<2x4xf32> -> vector<2x4xf32>
    %c1_208 = arith.constant 1 : index
    %c0_209 = arith.constant 0 : index
    %c0_210 = arith.constant 0 : index
    %247 = vector.load %arg25[%c1_208, %c0_209, %c0_210] : memref<2x64x1024xbf16, #tpu.memory_space<vmem>>, vector<1x64x1024xbf16>
    %248 = vector.shape_cast %247 : vector<1x64x1024xbf16> to vector<64x1024xbf16>
    %cst_211 = arith.constant dense<0.000000e+00> : vector<2x1024xf32>
    %249 = tpu.matmul %243, %248, %cst_211 {dimension_numbers = #tpu.dot_dimension_numbers<[1], [0], [0], [1], [0, 0, 1, 1], [], []>} : vector<2x64xbf16>, vector<64x1024xbf16>, vector<2x1024xf32> -> vector<2x1024xf32>
    %250 = arith.addf %236, %246 : vector<2x4xf32>
    %251 = arith.addf %239, %249 : vector<2x1024xf32>
    %c0_212 = arith.constant 0 : index
    %c0_213 = arith.constant 0 : index
    %252 = vector.load %arg24[%c0_212, %c0_213] : memref<1x4xf32, #tpu.memory_space<vmem>>, vector<1x4xf32>
    %253 = vector.broadcast %252 : vector<1x4xf32> to vector<2x4xf32>
    %254 = arith.addf %250, %253 : vector<2x4xf32>
    %c0_214 = arith.constant 0 : index
    %c0_215 = arith.constant 0 : index
    %255 = vector.load %arg30[%c0_214, %c0_215] : memref<2x4xf32, #tpu.memory_space<vmem>>, vector<2x4xf32>
    tpu.vector_store %arg30[%c0_214, %c0_215], %254 {strides = array<i32>} : memref<2x4xf32, #tpu.memory_space<vmem>>, vector<2x4xf32>,
    %c0_216 = arith.constant 0 : index
    %c0_217 = arith.constant 0 : index
    %256 = vector.load %arg26[%c0_216, %c0_217] : memref<1x1024xf32, #tpu.memory_space<vmem>>, vector<1x1024xf32>
    %257 = vector.broadcast %256 : vector<1x1024xf32> to vector<2x1024xf32>
    %258 = arith.addf %251, %257 : vector<2x1024xf32>
    %c0_218 = arith.constant 0 : index
    %c0_219 = arith.constant 0 : index
    %259 = vector.load %arg32[%c0_218, %c0_219] : memref<2x1024xf32, #tpu.memory_space<vmem>>, vector<2x1024xf32>
    tpu.vector_store %arg32[%c0_218, %c0_219], %258 {strides = array<i32>} : memref<2x1024xf32, #tpu.memory_space<vmem>>, vector<2x1024xf32>,
    %cst_220 = arith.constant 0.000000e+00 : f32
    %260 = vector.broadcast %cst_220 : f32 to vector<1x256xf32>
    %cst_221 = arith.constant 0.000000e+00 : f32
    %261 = vector.broadcast %cst_221 : f32 to vector<1x256xf32>
    %c0_222 = arith.constant 0 : index
    %c0_223 = arith.constant 0 : index
    %262 = vector.load %arg32[%c0_222, %c0_223] : memref<2x1024xf32, #tpu.memory_space<vmem>>, vector<1x1024xf32>
    %263 = arith.truncf %260 : vector<1x256xf32> to vector<1x256xbf16>
    %c0_224 = arith.constant 0 : index
    %c0_225 = arith.constant 0 : index
    %264 = vector.load %arg27[%c0_224, %c0_225] : memref<256x1024xbf16, #tpu.memory_space<vmem>>, vector<256x1024xbf16>
    %cst_226 = arith.constant dense<0.000000e+00> : vector<1x1024xf32>
    %265 = tpu.matmul %263, %264, %cst_226 {dimension_numbers = #tpu.dot_dimension_numbers<[1], [0], [0], [1], [0, 0, 1, 1], [], []>} : vector<1x256xbf16>, vector<256x1024xbf16>, vector<1x1024xf32> -> vector<1x1024xf32>
    %266 = arith.addf %262, %265 : vector<1x1024xf32>
    %267 = vector.extract_strided_slice %266 {offsets = [0, 0], sizes = [1, 256], strides = [1, 1]} : vector<1x1024xf32> to vector<1x256xf32>
    %cst_227 = arith.constant 5.000000e-01 : f32
    %268 = vector.broadcast %cst_227 : f32 to vector<1x256xf32>
    %269 = arith.mulf %268, %267 : vector<1x256xf32>
    %270 = math.tanh %269 : vector<1x256xf32>
    %cst_228 = arith.constant 1.000000e+00 : f32
    %271 = vector.broadcast %cst_228 : f32 to vector<1x256xf32>
    %272 = arith.addf %270, %271 : vector<1x256xf32>
    %cst_229 = arith.constant 5.000000e-01 : f32
    %273 = vector.broadcast %cst_229 : f32 to vector<1x256xf32>
    %274 = arith.mulf %273, %272 : vector<1x256xf32>
    %275 = vector.extract_strided_slice %266 {offsets = [0, 256], sizes = [1, 256], strides = [1, 1]} : vector<1x1024xf32> to vector<1x256xf32>
    %cst_230 = arith.constant 5.000000e-01 : f32
    %276 = vector.broadcast %cst_230 : f32 to vector<1x256xf32>
    %277 = arith.mulf %276, %275 : vector<1x256xf32>
    %278 = math.tanh %277 : vector<1x256xf32>
    %cst_231 = arith.constant 1.000000e+00 : f32
    %279 = vector.broadcast %cst_231 : f32 to vector<1x256xf32>
    %280 = arith.addf %278, %279 : vector<1x256xf32>
    %cst_232 = arith.constant 5.000000e-01 : f32
    %281 = vector.broadcast %cst_232 : f32 to vector<1x256xf32>
    %282 = arith.mulf %281, %280 : vector<1x256xf32>
    %283 = vector.extract_strided_slice %266 {offsets = [0, 512], sizes = [1, 256], strides = [1, 1]} : vector<1x1024xf32> to vector<1x256xf32>
    %284 = math.tanh %283 : vector<1x256xf32>
    %285 = vector.extract_strided_slice %266 {offsets = [0, 768], sizes = [1, 256], strides = [1, 1]} : vector<1x1024xf32> to vector<1x256xf32>
    %cst_233 = arith.constant 5.000000e-01 : f32
    %286 = vector.broadcast %cst_233 : f32 to vector<1x256xf32>
    %287 = arith.mulf %286, %285 : vector<1x256xf32>
    %288 = math.tanh %287 : vector<1x256xf32>
    %cst_234 = arith.constant 1.000000e+00 : f32
    %289 = vector.broadcast %cst_234 : f32 to vector<1x256xf32>
    %290 = arith.addf %288, %289 : vector<1x256xf32>
    %cst_235 = arith.constant 5.000000e-01 : f32
    %291 = vector.broadcast %cst_235 : f32 to vector<1x256xf32>
    %292 = arith.mulf %291, %290 : vector<1x256xf32>
    %293 = arith.mulf %282, %261 : vector<1x256xf32>
    %294 = arith.mulf %274, %284 : vector<1x256xf32>
    %295 = arith.addf %293, %294 : vector<1x256xf32>
    %296 = math.tanh %295 : vector<1x256xf32>
    %297 = arith.mulf %292, %296 : vector<1x256xf32>
    %c1_236 = arith.constant 1 : index
    %c0_237 = arith.constant 0 : index
    %298 = vector.load %arg32[%c1_236, %c0_237] : memref<2x1024xf32, #tpu.memory_space<vmem>>, vector<1x1024xf32>
    %299 = arith.truncf %297 : vector<1x256xf32> to vector<1x256xbf16>
    %c0_238 = arith.constant 0 : index
    %c0_239 = arith.constant 0 : index
    %300 = vector.load %arg27[%c0_238, %c0_239] : memref<256x1024xbf16, #tpu.memory_space<vmem>>, vector<256x1024xbf16>
    %cst_240 = arith.constant dense<0.000000e+00> : vector<1x1024xf32>
    %301 = tpu.matmul %299, %300, %cst_240 {dimension_numbers = #tpu.dot_dimension_numbers<[1], [0], [0], [1], [0, 0, 1, 1], [], []>} : vector<1x256xbf16>, vector<256x1024xbf16>, vector<1x1024xf32> -> vector<1x1024xf32>
    %302 = arith.addf %298, %301 : vector<1x1024xf32>
    %303 = vector.extract_strided_slice %302 {offsets = [0, 0], sizes = [1, 256], strides = [1, 1]} : vector<1x1024xf32> to vector<1x256xf32>
    %cst_241 = arith.constant 5.000000e-01 : f32
    %304 = vector.broadcast %cst_241 : f32 to vector<1x256xf32>
    %305 = arith.mulf %304, %303 : vector<1x256xf32>
    %306 = math.tanh %305 : vector<1x256xf32>
    %cst_242 = arith.constant 1.000000e+00 : f32
    %307 = vector.broadcast %cst_242 : f32 to vector<1x256xf32>
    %308 = arith.addf %306, %307 : vector<1x256xf32>
    %cst_243 = arith.constant 5.000000e-01 : f32
    %309 = vector.broadcast %cst_243 : f32 to vector<1x256xf32>
    %310 = arith.mulf %309, %308 : vector<1x256xf32>
    %311 = vector.extract_strided_slice %302 {offsets = [0, 256], sizes = [1, 256], strides = [1, 1]} : vector<1x1024xf32> to vector<1x256xf32>
    %cst_244 = arith.constant 5.000000e-01 : f32
    %312 = vector.broadcast %cst_244 : f32 to vector<1x256xf32>
    %313 = arith.mulf %312, %311 : vector<1x256xf32>
    %314 = math.tanh %313 : vector<1x256xf32>
    %cst_245 = arith.constant 1.000000e+00 : f32
    %315 = vector.broadcast %cst_245 : f32 to vector<1x256xf32>
    %316 = arith.addf %314, %315 : vector<1x256xf32>
    %cst_246 = arith.constant 5.000000e-01 : f32
    %317 = vector.broadcast %cst_246 : f32 to vector<1x256xf32>
    %318 = arith.mulf %317, %316 : vector<1x256xf32>
    %319 = vector.extract_strided_slice %302 {offsets = [0, 512], sizes = [1, 256], strides = [1, 1]} : vector<1x1024xf32> to vector<1x256xf32>
    %320 = math.tanh %319 : vector<1x256xf32>
    %321 = vector.extract_strided_slice %302 {offsets = [0, 768], sizes = [1, 256], strides = [1, 1]} : vector<1x1024xf32> to vector<1x256xf32>
    %cst_247 = arith.constant 5.000000e-01 : f32
    %322 = vector.broadcast %cst_247 : f32 to vector<1x256xf32>
    %323 = arith.mulf %322, %321 : vector<1x256xf32>
    %324 = math.tanh %323 : vector<1x256xf32>
    %cst_248 = arith.constant 1.000000e+00 : f32
    %325 = vector.broadcast %cst_248 : f32 to vector<1x256xf32>
    %326 = arith.addf %324, %325 : vector<1x256xf32>
    %cst_249 = arith.constant 5.000000e-01 : f32
    %327 = vector.broadcast %cst_249 : f32 to vector<1x256xf32>
    %328 = arith.mulf %327, %326 : vector<1x256xf32>
    %329 = arith.mulf %318, %295 : vector<1x256xf32>
    %330 = arith.mulf %310, %320 : vector<1x256xf32>
    %331 = arith.addf %329, %330 : vector<1x256xf32>
    %332 = math.tanh %331 : vector<1x256xf32>
    %333 = arith.mulf %328, %332 : vector<1x256xf32>
    %c0_250 = arith.constant 0 : index
    %c0_251 = arith.constant 0 : index
    %334 = vector.load %arg28[%c0_250, %c0_251] : memref<256x1xf32, #tpu.memory_space<vmem>>, vector<256x1xf32>
    %cst_252 = arith.constant dense<0.000000e+00> : vector<1x1xf32>
    %335 = tpu.matmul %333, %334, %cst_252 {dimension_numbers = #tpu.dot_dimension_numbers<[1], [0], [0], [1], [0, 0, 1, 1], [], []>} : vector<1x256xf32>, vector<256x1xf32>, vector<1x1xf32> -> vector<1x1xf32>
    %c0_253 = arith.constant 0 : index
    %c0_254 = arith.constant 0 : index
    %336 = vector.load %arg29[%c0_253, %c0_254] : memref<1x1xf32, #tpu.memory_space<vmem>>, vector<1x1xf32>
    %337 = arith.addf %335, %336 : vector<1x1xf32>
    %c0_255 = arith.constant 0 : index
    %c0_256 = arith.constant 0 : index
    %338 = vector.load %arg31[%c0_255, %c0_256] : memref<1x1xf32, #tpu.memory_space<vmem>>, vector<1x1xf32>
    tpu.vector_store %arg31[%c0_255, %c0_256], %337 {strides = array<i32>} : memref<1x1xf32, #tpu.memory_space<vmem>>, vector<1x1xf32>,
    return
  }
}

</mosaic_0001>

<llo_original>
// kernel: policy_forward.1
$region0: #{policy_forward.1}
  #allocation0 [shape = 'u32[]', space=smem, size = 0x4, offset = 0x4, fixed_abs, tag = 'smem constant byte address 0x4 - core index']
  #allocation1 [shape = 'u32[144,128]{1,0:T(1,128)}', space=vmem, size = 0x12000, scoped, tag = 'internal scratch']
  #allocation2 [shape = 'f32[2,1024]{1,0:T(2,128)}', space=vmem, size = 0x2000, scoped, tag = 'scratch operand']
  #allocation3 [shape = 'f32[1,1]{1,0:T(1,128)S(1)}', space=vmem, size = 0x200, scoped, tag = 'scoped memory for policy_forward.1']
  %s0 = inlined_call_operand.smem [shape: u32[32], index: -1, kind: input, shape index: {}]
  %s1 = sld [smem:[%s0]]
  %s2 = scalar_lea.smem %s0, 1
  %s3 = sld [smem:[%s2]]
  %s4 = scalar_lea.smem %s0, 2
  %s5 = sld [smem:[%s4]]
  %s6 = scalar_lea.smem %s0, 3
  %s7 = sld [smem:[%s6]]
  %s8 = scalar_lea.smem %s0, 4
  %s9 = sld [smem:[%s8]]
  %s10 = scalar_lea.smem %s0, 5
  %s11 = sld [smem:[%s10]]
  %s12 = scalar_lea.smem %s0, 6
  %s13 = sld [smem:[%s12]]
  %s14 = scalar_lea.smem %s0, 7
  %s15 = sld [smem:[%s14]]
  %s16 = scalar_lea.smem %s0, 8
  %s17 = sld [smem:[%s16]]
  %s18 = scalar_lea.smem %s0, 9
  %s19 = sld [smem:[%s18]]
  %s20 = scalar_lea.smem %s0, 10
  %s21 = sld [smem:[%s20]]
  %s22 = scalar_lea.smem %s0, 11
  %s23 = sld [smem:[%s22]]
  %s24 = scalar_lea.smem %s0, 12
  %s25 = sld [smem:[%s24]]
  %s26 = scalar_lea.smem %s0, 13
  %s27 = sld [smem:[%s26]]
  %s28 = scalar_lea.smem %s0, 14
  %s29 = sld [smem:[%s28]]
  %s30 = scalar_lea.smem %s0, 15
  %s31 = sld [smem:[%s30]]
  %s32 = scalar_lea.smem %s0, 16
  %s33 = sld [smem:[%s32]]
  %s34 = scalar_lea.smem %s0, 17
  %s35 = sld [smem:[%s34]]
  %s36 = scalar_lea.smem %s0, 18
  %s37 = sld [smem:[%s36]]
  %s38 = scalar_lea.smem %s0, 19
  %s39 = sld [smem:[%s38]]
  %s40 = scalar_lea.smem %s0, 20
  %s41 = sld [smem:[%s40]]
  %s42 = scalar_lea.smem %s0, 21
  %s43 = sld [smem:[%s42]]
  %s44 = scalar_lea.smem %s0, 22
  %s45 = sld [smem:[%s44]]
  %s46 = scalar_lea.smem %s0, 23
  %s47 = sld [smem:[%s46]]
  %s48 = scalar_lea.smem %s0, 24
  %s49 = sld [smem:[%s48]]
  %s50 = scalar_lea.smem %s0, 25
  %s51 = sld [smem:[%s50]]
  %s52 = scalar_lea.smem %s0, 26
  %s53 = sld [smem:[%s52]]
  %s54 = scalar_lea.smem %s0, 27
  %s55 = sld [smem:[%s54]]
  %s56 = scalar_lea.smem %s0, 28
  %s57 = sld [smem:[%s56]]
  %s58 = scalar_lea.smem %s0, 29
  %s59 = sld [smem:[%s58]]
  %s60 = scalar_lea.smem %s0, 30
  %s61 = sld [smem:[%s60]]
  %s62 = scalar_lea.smem %s0, 31
  %s63 = sld [smem:[%s62]]
  %64 = xla_tuple %s61, %s63
  %s65 = sld [smem:[#allocation0]]
  $region186: #{policy_forward.1} parent=0
    _
  %s67 = ssub.s32 1, %s65
  %s68 = scalar_select 0, %s67, %s65
  %v69 = vstv %s59
  %70 = vst [vmem:[#allocation3] sm:$0x1] %v69
  $region1: #{policy_forward.1} parent=0
    #allocation4 [shape = 'u8[1536]{0}', space=vmem, size = 0x800, scoped, tag = 'input window, operand 3, single buffered']
    #allocation5 [shape = 's32[1]{0}', space=sflag, size = 0x4, scoped, tag = 'scoped memory for policy_forward.1']
    #allocation6 [shape = 's32[1]{0}', space=sflag, size = 0x4, scoped, tag = 'scoped memory for policy_forward.1']
    #allocation7 [shape = 'u8[512]{0}', space=vmem, size = 0x400, scoped, tag = 'input window, operand 4, single buffered']
    #allocation8 [shape = 's32[1]{0}', space=sflag, size = 0x4, scoped, tag = 'scoped memory for policy_forward.1']
    #allocation9 [shape = 'u8[512]{0}', space=vmem, size = 0x400, scoped, tag = 'input window, operand 5, single buffered']
    #allocation10 [shape = 'u8[20480]{0}', space=vmem, size = 0x5000, scoped, tag = 'input window, operand 8, single buffered']
    #allocation11 [shape = 's32[1]{0}', space=sflag, size = 0x4, scoped, tag = 'scoped memory for policy_forward.1']
    #allocation12 [shape = 'u8[512]{0}', space=vmem, size = 0x400, scoped, tag = 'input window, operand 11, single buffered']
    #allocation13 [shape = 'u8[512]{0}', space=vmem, size = 0x400, scoped, tag = 'input window, operand 12, single buffered']
    #allocation14 [shape = 's32[1]{0}', space=sflag, size = 0x4, scoped, tag = 'scoped memory for policy_forward.1']
    #allocation15 [shape = 'u8[5120]{0}', space=vmem, size = 0x1400, scoped, tag = 'input window, operand 15, single buffered']
    #allocation16 [shape = 'u8[512]{0}', space=vmem, size = 0x400, scoped, tag = 'input window, operand 17, single buffered']
    #allocation17 [shape = 's32[1]{0}', space=sflag, size = 0x4, scoped, tag = 'scoped memory for policy_forward.1']
    #allocation18 [shape = 'u8[512]{0}', space=vmem, size = 0x400, scoped, tag = 'input window, operand 18, single buffered']
    #allocation19 [shape = 'u8[512]{0}', space=vmem, size = 0x400, scoped, tag = 'input window, operand 19, single buffered']
    #allocation20 [shape = 's32[1]{0}', space=sflag, size = 0x4, scoped, tag = 'scoped memory for policy_forward.1']
    #allocation21 [shape = 'u8[512]{0}', space=vmem, size = 0x400, scoped, tag = 'input window, operand 24, single buffered']
    #allocation22 [shape = 'u8[4096]{0}', space=vmem, size = 0x1000, scoped, tag = 'input window, operand 26, single buffered']
    #allocation23 [shape = 's32[1]{0}', space=sflag, size = 0x4, scoped, tag = 'scoped memory for policy_forward.1']
    #allocation24 [shape = 'u8[1024]{0}', space=vmem, size = 0x400, scoped, tag = 'output window, operand 0, single buffered']
    #allocation25 [shape = 'u8[512]{0}', space=vmem, size = 0x400, scoped, tag = 'output window, operand 1, single buffered']
    #allocation26 [shape = 's32[1]{0}', space=sflag, size = 0x4, scoped, tag = 'scoped memory for policy_forward.1']
    %71 = vsyncpa [#allocation5], 0
    %72 = vsyncpa [#allocation8], 0
    %73 = vsyncpa [#allocation11], 0
    %74 = vsyncpa [#allocation14], 0
    %75 = vsyncpa [#allocation17], 0
    %76 = vsyncpa [#allocation20], 0
    %77 = vsyncpa [#allocation23], 0
    %78 = vsyncpa [#allocation6], 0
    %79 = vsyncpa [#allocation26], 0
    // Predicated region
    $region2: #{policy_forward.1} parent=1 // pred_check
      _
    $region3: #{policy_forward.1} parent=1 // pred_check_branch
      %81 = sbr.rel (0) target = $region5
    $region4: #{policy_forward.1} parent=1 // pred_region
      _
    $region5: #{policy_forward.1} parent=1 // pred_fallthru
      _
    // Predicated region
    $region6: #{policy_forward.1} parent=1 // pred_check
      _
    $region7: #{policy_forward.1} parent=1 // pred_check_branch
      %83 = sbr.rel (0) target = $region9
    $region8: #{policy_forward.1} parent=1 // pred_region
      _
    $region9: #{policy_forward.1} parent=1 // pred_fallthru
      _
    // Predicated region
    $region10: #{policy_forward.1} parent=1 // pred_check
      _
    $region11: #{policy_forward.1} parent=1 // pred_check_branch
      %85 = sbr.rel (0) target = $region13
    $region12: #{policy_forward.1} parent=1 // pred_region
      _
    $region13: #{policy_forward.1} parent=1 // pred_fallthru
      _
    // Predicated region
    $region14: #{policy_forward.1} parent=1 // pred_check
      _
    $region15: #{policy_forward.1} parent=1 // pred_check_branch
      %87 = sbr.rel (0) target = $region17
    $region16: #{policy_forward.1} parent=1 // pred_region
      %s89 = ssub.s32 48, 48
      %90 = vsyncadd [#allocation5], %s89
      %s92 = sshll.u32 [#allocation4], 4
      %s93 = int_to_ptr.vmem [resolvable:$true] %s92
      %95 = dma.hbm_to_vmem [thread:$0]  %s7, 48, %s93, [#allocation5]
    $region17: #{policy_forward.1} parent=1 // pred_fallthru
      _
    // Predicated region
    $region18: #{policy_forward.1} parent=1 // pred_check
      _
    $region19: #{policy_forward.1} parent=1 // pred_check_branch
      %97 = sbr.rel (0) target = $region21
    $region20: #{policy_forward.1} parent=1 // pred_region
      %s99 = ssub.s32 16, 16
      %100 = vsyncadd [#allocation8], %s99
      %s102 = sshll.u32 [#allocation7], 4
      %s103 = int_to_ptr.vmem [resolvable:$true] %s102
      %105 = dma.hbm_to_vmem [thread:$0]  %s9, 16, %s103, [#allocation8]
    $region21: #{policy_forward.1} parent=1 // pred_fallthru
      _
    // Predicated region
    $region22: #{policy_forward.1} parent=1 // pred_check
      _
    $region23: #{policy_forward.1} parent=1 // pred_check_branch
      %107 = sbr.rel (0) target = $region25
    $region24: #{policy_forward.1} parent=1 // pred_region
      %s109 = ssub.s32 16, 16
      %110 = vsyncadd [#allocation8], %s109
      %s112 = sshll.u32 [#allocation9], 4
      %s113 = int_to_ptr.vmem [resolvable:$true] %s112
      %115 = dma.hbm_to_vmem [thread:$0]  %s11, 16, %s113, [#allocation8]
    $region25: #{policy_forward.1} parent=1 // pred_fallthru
      _
    // Predicated region
    $region26: #{policy_forward.1} parent=1 // pred_check
      _
    $region27: #{policy_forward.1} parent=1 // pred_check_branch
      %117 = sbr.rel (0) target = $region29
    $region28: #{policy_forward.1} parent=1 // pred_region
      _
    $region29: #{policy_forward.1} parent=1 // pred_fallthru
      _
    // Predicated region
    $region30: #{policy_forward.1} parent=1 // pred_check
      _
    $region31: #{policy_forward.1} parent=1 // pred_check_branch
      %119 = sbr.rel (0) target = $region33
    $region32: #{policy_forward.1} parent=1 // pred_region
      _
    $region33: #{policy_forward.1} parent=1 // pred_fallthru
      _
    // Predicated region
    $region34: #{policy_forward.1} parent=1 // pred_check
      _
    $region35: #{policy_forward.1} parent=1 // pred_check_branch
      %121 = sbr.rel (0) target = $region37
    $region36: #{policy_forward.1} parent=1 // pred_region
      %s123 = ssub.s32 640, 640
      %124 = vsyncadd [#allocation11], %s123
      %s125 = sshll.u32 [#allocation10], 4
      %s126 = int_to_ptr.vmem [resolvable:$true] %s125
      %131 = dma.hbm_to_vmem [thread:$0]  %s17, 640, %s126, [#allocation11], 64, 64, 4
    $region37: #{policy_forward.1} parent=1 // pred_fallthru
      _
    // Predicated region
    $region38: #{policy_forward.1} parent=1 // pred_check
      _
    $region39: #{policy_forward.1} parent=1 // pred_check_branch
      %133 = sbr.rel (0) target = $region41
    $region40: #{policy_forward.1} parent=1 // pred_region
      _
    $region41: #{policy_forward.1} parent=1 // pred_fallthru
      _
    // Predicated region
    $region42: #{policy_forward.1} parent=1 // pred_check
      _
    $region43: #{policy_forward.1} parent=1 // pred_check_branch
      %135 = sbr.rel (0) target = $region45
    $region44: #{policy_forward.1} parent=1 // pred_region
      _
    $region45: #{policy_forward.1} parent=1 // pred_fallthru
      _
    // Predicated region
    $region46: #{policy_forward.1} parent=1 // pred_check
      _
    $region47: #{policy_forward.1} parent=1 // pred_check_branch
      %137 = sbr.rel (0) target = $region49
    $region48: #{policy_forward.1} parent=1 // pred_region
      %s139 = ssub.s32 16, 16
      %140 = vsyncadd [#allocation11], %s139
      %s142 = sshll.u32 [#allocation12], 4
      %s143 = int_to_ptr.vmem [resolvable:$true] %s142
      %145 = dma.hbm_to_vmem [thread:$0]  %s23, 16, %s143, [#allocation11]
    $region49: #{policy_forward.1} parent=1 // pred_fallthru
      _
    // Predicated region
    $region50: #{policy_forward.1} parent=1 // pred_check
      _
    $region51: #{policy_forward.1} parent=1 // pred_check_branch
      %147 = sbr.rel (0) target = $region53
    $region52: #{policy_forward.1} parent=1 // pred_region
      %s149 = ssub.s32 16, 16
      %150 = vsyncadd [#allocation14], %s149
      %s152 = sshll.u32 [#allocation13], 4
      %s153 = int_to_ptr.vmem [resolvable:$true] %s152
      %155 = dma.hbm_to_vmem [thread:$0]  %s25, 16, %s153, [#allocation14]
    $region53: #{policy_forward.1} parent=1 // pred_fallthru
      _
    // Predicated region
    $region54: #{policy_forward.1} parent=1 // pred_check
      _
    $region55: #{policy_forward.1} parent=1 // pred_check_branch
      %157 = sbr.rel (0) target = $region57
    $region56: #{policy_forward.1} parent=1 // pred_region
      _
    $region57: #{policy_forward.1} parent=1 // pred_fallthru
      _
    // Predicated region
    $region58: #{policy_forward.1} parent=1 // pred_check
      _
    $region59: #{policy_forward.1} parent=1 // pred_check_branch
      %159 = sbr.rel (0) target = $region61
    $region60: #{policy_forward.1} parent=1 // pred_region
      _
    $region61: #{policy_forward.1} parent=1 // pred_fallthru
      _
    // Predicated region
    $region62: #{policy_forward.1} parent=1 // pred_check
      _
    $region63: #{policy_forward.1} parent=1 // pred_check_branch
      %161 = sbr.rel (0) target = $region65
    $region64: #{policy_forward.1} parent=1 // pred_region
      %s163 = ssub.s32 160, 160
      %164 = vsyncadd [#allocation14], %s163
      %s165 = sshll.u32 [#allocation15], 4
      %s166 = int_to_ptr.vmem [resolvable:$true] %s165
      %171 = dma.hbm_to_vmem [thread:$0]  %s31, 160, %s166, [#allocation14], 32, 32, 2
    $region65: #{policy_forward.1} parent=1 // pred_fallthru
      _
    // Predicated region
    $region66: #{policy_forward.1} parent=1 // pred_check
      _
    $region67: #{policy_forward.1} parent=1 // pred_check_branch
      %173 = sbr.rel (0) target = $region69
    $region68: #{policy_forward.1} parent=1 // pred_region
      _
    $region69: #{policy_forward.1} parent=1 // pred_fallthru
      _
    // Predicated region
    $region70: #{policy_forward.1} parent=1 // pred_check
      _
    $region71: #{policy_forward.1} parent=1 // pred_check_branch
      %175 = sbr.rel (0) target = $region73
    $region72: #{policy_forward.1} parent=1 // pred_region
      %s177 = ssub.s32 16, 16
      %178 = vsyncadd [#allocation17], %s177
      %s180 = sshll.u32 [#allocation16], 4
      %s181 = int_to_ptr.vmem [resolvable:$true] %s180
      %183 = dma.hbm_to_vmem [thread:$0]  %s35, 16, %s181, [#allocation17]
    $region73: #{policy_forward.1} parent=1 // pred_fallthru
      _
    // Predicated region
    $region74: #{policy_forward.1} parent=1 // pred_check
      _
    $region75: #{policy_forward.1} parent=1 // pred_check_branch
      %185 = sbr.rel (0) target = $region77
    $region76: #{policy_forward.1} parent=1 // pred_region
      %s187 = ssub.s32 16, 16
      %188 = vsyncadd [#allocation17], %s187
      %s190 = sshll.u32 [#allocation18], 4
      %s191 = int_to_ptr.vmem [resolvable:$true] %s190
      %193 = dma.hbm_to_vmem [thread:$0]  %s37, 16, %s191, [#allocation17]
    $region77: #{policy_forward.1} parent=1 // pred_fallthru
      _
    // Predicated region
    $region78: #{policy_forward.1} parent=1 // pred_check
      _
    $region79: #{policy_forward.1} parent=1 // pred_check_branch
      %195 = sbr.rel (0) target = $region81
    $region80: #{policy_forward.1} parent=1 // pred_region
      %s197 = ssub.s32 16, 16
      %198 = vsyncadd [#allocation20], %s197
      %s200 = sshll.u32 [#allocation19], 4
      %s201 = int_to_ptr.vmem [resolvable:$true] %s200
      %203 = dma.hbm_to_vmem [thread:$0]  %s39, 16, %s201, [#allocation20]
    $region81: #{policy_forward.1} parent=1 // pred_fallthru
      _
    // Predicated region
    $region82: #{policy_forward.1} parent=1 // pred_check
      _
    $region83: #{policy_forward.1} parent=1 // pred_check_branch
      %205 = sbr.rel (0) target = $region85
    $region84: #{policy_forward.1} parent=1 // pred_region
      _
    $region85: #{policy_forward.1} parent=1 // pred_fallthru
      _
    // Predicated region
    $region86: #{policy_forward.1} parent=1 // pred_check
      _
    $region87: #{policy_forward.1} parent=1 // pred_check_branch
      %207 = sbr.rel (0) target = $region89
    $region88: #{policy_forward.1} parent=1 // pred_region
      _
    $region89: #{policy_forward.1} parent=1 // pred_fallthru
      _
    // Predicated region
    $region90: #{policy_forward.1} parent=1 // pred_check
      _
    $region91: #{policy_forward.1} parent=1 // pred_check_branch
      %209 = sbr.rel (0) target = $region93
    $region92: #{policy_forward.1} parent=1 // pred_region
      _
    $region93: #{policy_forward.1} parent=1 // pred_fallthru
      _
    // Predicated region
    $region94: #{policy_forward.1} parent=1 // pred_check
      _
    $region95: #{policy_forward.1} parent=1 // pred_check_branch
      %211 = sbr.rel (0) target = $region97
    $region96: #{policy_forward.1} parent=1 // pred_region
      _
    $region97: #{policy_forward.1} parent=1 // pred_fallthru
      _
    // Predicated region
    $region98: #{policy_forward.1} parent=1 // pred_check
      _
    $region99: #{policy_forward.1} parent=1 // pred_check_branch
      %213 = sbr.rel (0) target = $region101
    $region100: #{policy_forward.1} parent=1 // pred_region
      %s215 = ssub.s32 16, 16
      %216 = vsyncadd [#allocation20], %s215
      %s218 = sshll.u32 [#allocation21], 4
      %s219 = int_to_ptr.vmem [resolvable:$true] %s218
      %221 = dma.hbm_to_vmem [thread:$0]  %s49, 16, %s219, [#allocation20]
    $region101: #{policy_forward.1} parent=1 // pred_fallthru
      _
    // Predicated region
    $region102: #{policy_forward.1} parent=1 // pred_check
      _
    $region103: #{policy_forward.1} parent=1 // pred_check_branch
      %223 = sbr.rel (0) target = $region105
    $region104: #{policy_forward.1} parent=1 // pred_region
      _
    $region105: #{policy_forward.1} parent=1 // pred_fallthru
      _
    // Predicated region
    $region106: #{policy_forward.1} parent=1 // pred_check
      _
    $region107: #{policy_forward.1} parent=1 // pred_check_branch
      %225 = sbr.rel (0) target = $region109
    $region108: #{policy_forward.1} parent=1 // pred_region
      %s227 = ssub.s32 128, 128
      %228 = vsyncadd [#allocation23], %s227
      %s230 = sshll.u32 [#allocation22], 4
      %s231 = int_to_ptr.vmem [resolvable:$true] %s230
      %233 = dma.hbm_to_vmem [thread:$0]  %s53, 128, %s231, [#allocation23]
    $region109: #{policy_forward.1} parent=1 // pred_fallthru
      _
    // Predicated region
    $region110: #{policy_forward.1} parent=1 // pred_check
      _
    $region111: #{policy_forward.1} parent=1 // pred_check_branch
      %235 = sbr.rel (0) target = $region113
    $region112: #{policy_forward.1} parent=1 // pred_region
      _
    $region113: #{policy_forward.1} parent=1 // pred_fallthru
      _
    // Predicated region
    $region114: #{policy_forward.1} parent=1 // pred_check
      _
    $region115: #{policy_forward.1} parent=1 // pred_check_branch
      %237 = sbr.rel (0) target = $region117
    $region116: #{policy_forward.1} parent=1 // pred_region
      _
    $region117: #{policy_forward.1} parent=1 // pred_fallthru
      _
    // Predicated region
    $region118: #{policy_forward.1} parent=1 // pred_check
      _
    $region119: #{policy_forward.1} parent=1 // pred_check_branch
      %239 = sbr.rel (0) target = $region121
    $region120: #{policy_forward.1} parent=1 // pred_region
      _
    $region121: #{policy_forward.1} parent=1 // pred_fallthru
      _
    // Predicated region
    $region122: #{policy_forward.1} parent=1 // pred_check
      _
    $region123: #{policy_forward.1} parent=1 // pred_check_branch
      %241 = sbr.rel (0) target = $region125
    $region124: #{policy_forward.1} parent=1 // pred_region
      %242 = dma.done [#allocation5], 48
    $region125: #{policy_forward.1} parent=1 // pred_fallthru
      _
    // Predicated region
    $region126: #{policy_forward.1} parent=1 // pred_check
      _
    $region127: #{policy_forward.1} parent=1 // pred_check_branch
      %244 = sbr.rel (0) target = $region129
    $region128: #{policy_forward.1} parent=1 // pred_region
      %245 = dma.done [#allocation8], 16
    $region129: #{policy_forward.1} parent=1 // pred_fallthru
      _
    // Predicated region
    $region130: #{policy_forward.1} parent=1 // pred_check
      _
    $region131: #{policy_forward.1} parent=1 // pred_check_branch
      %247 = sbr.rel (0) target = $region133
    $region132: #{policy_forward.1} parent=1 // pred_region
      %248 = dma.done [#allocation8], 16
    $region133: #{policy_forward.1} parent=1 // pred_fallthru
      _
    // Predicated region
    $region134: #{policy_forward.1} parent=1 // pred_check
      _
    $region135: #{policy_forward.1} parent=1 // pred_check_branch
      %250 = sbr.rel (0) target = $region137
    $region136: #{policy_forward.1} parent=1 // pred_region
      %251 = dma.done [#allocation11], 640
    $region137: #{policy_forward.1} parent=1 // pred_fallthru
      _
    // Predicated region
    $region138: #{policy_forward.1} parent=1 // pred_check
      _
    $region139: #{policy_forward.1} parent=1 // pred_check_branch
      %253 = sbr.rel (0) target = $region141
    $region140: #{policy_forward.1} parent=1 // pred_region
      %254 = dma.done [#allocation11], 16
    $region141: #{policy_forward.1} parent=1 // pred_fallthru
      _
    // Predicated region
    $region142: #{policy_forward.1} parent=1 // pred_check
      _
    $region143: #{policy_forward.1} parent=1 // pred_check_branch
      %256 = sbr.rel (0) target = $region145
    $region144: #{policy_forward.1} parent=1 // pred_region
      %257 = dma.done [#allocation14], 16
    $region145: #{policy_forward.1} parent=1 // pred_fallthru
      _
    // Predicated region
    $region146: #{policy_forward.1} parent=1 // pred_check
      _
    $region147: #{policy_forward.1} parent=1 // pred_check_branch
      %259 = sbr.rel (0) target = $region149
    $region148: #{policy_forward.1} parent=1 // pred_region
      %260 = dma.done [#allocation14], 160
    $region149: #{policy_forward.1} parent=1 // pred_fallthru
      _
    // Predicated region
    $region150: #{policy_forward.1} parent=1 // pred_check
      _
    $region151: #{policy_forward.1} parent=1 // pred_check_branch
      %262 = sbr.rel (0) target = $region153
    $region152: #{policy_forward.1} parent=1 // pred_region
      %263 = dma.done [#allocation17], 16
    $region153: #{policy_forward.1} parent=1 // pred_fallthru
      _
    // Predicated region
    $region154: #{policy_forward.1} parent=1 // pred_check
      _
    $region155: #{policy_forward.1} parent=1 // pred_check_branch
      %265 = sbr.rel (0) target = $region157
    $region156: #{policy_forward.1} parent=1 // pred_region
      %266 = dma.done [#allocation17], 16
    $region157: #{policy_forward.1} parent=1 // pred_fallthru
      _
    // Predicated region
    $region158: #{policy_forward.1} parent=1 // pred_check
      _
    $region159: #{policy_forward.1} parent=1 // pred_check_branch
      %268 = sbr.rel (0) target = $region161
    $region160: #{policy_forward.1} parent=1 // pred_region
      %269 = dma.done [#allocation20], 16
    $region161: #{policy_forward.1} parent=1 // pred_fallthru
      _
    // Predicated region
    $region162: #{policy_forward.1} parent=1 // pred_check
      _
    $region163: #{policy_forward.1} parent=1 // pred_check_branch
      %271 = sbr.rel (0) target = $region165
    $region164: #{policy_forward.1} parent=1 // pred_region
      %272 = dma.done [#allocation20], 16
    $region165: #{policy_forward.1} parent=1 // pred_fallthru
      _
    // Predicated region
    $region166: #{policy_forward.1} parent=1 // pred_check
      _
    $region167: #{policy_forward.1} parent=1 // pred_check_branch
      %274 = sbr.rel (0) target = $region169
    $region168: #{policy_forward.1} parent=1 // pred_region
      %275 = dma.done [#allocation23], 128
    $region169: #{policy_forward.1} parent=1 // pred_fallthru
      _
    %v277 = vld [vmem:[%s1] sm:$0xff]
    %v278 = vld [vmem:[%s1 + $0x8] sm:$0xff]
    %v279 = vld [vmem:[%s1 + $0x10] sm:$0xff]
    %v280 = vld [vmem:[%s1 + $0x18] sm:$0xff]
    %v281 = vld [vmem:[%s1 + $0x20] sm:$0xff]
    %v282 = vld [vmem:[%s1 + $0x28] sm:$0xff]
    %v283 = vld [vmem:[%s1 + $0x30] sm:$0xff]
    %v284 = vld [vmem:[%s1 + $0x38] sm:$0xff]
    %v285 = vld [vmem:[%s1 + $0x40] sm:$0xff]
    %v286 = vld [vmem:[%s1 + $0x48] sm:$0xff]
    %v287 = vpack.c.bf16 %v278, %v277
    %v288 = vpack.c.bf16 %v280, %v279
    %v289 = vpack.c.bf16 %v282, %v281
    %v290 = vpack.c.bf16 %v284, %v283
    %v291 = vpack.c.bf16 %v286, %v285
    %v292 = vld [vmem:[%s3] sm:$0xf]
    %v293 = vld [vmem:[%s3 + $0x4] sm:$0xf]
    %v294 = vld [vmem:[%s3 + $0x8] sm:$0xf]
    %v295 = vld [vmem:[%s3 + $0xc] sm:$0xf]
    %v296 = vld [vmem:[%s3 + $0x10] sm:$0x3]
    %v302 = vunpack.c.l.b16 %v292
    %v303 = vunpack.c.l.b16 %v293
    %v304 = vunpack.c.l.b16 %v294
    %v305 = vunpack.c.l.b16 %v295
    %v306 = vunpack.c.l.b16 %v296
    %v307 = vpack.c.b16 %v303, %v302
    %v308 = vpack.c.b16 %v305, %v304
    %v309 = vpack.c.b16 %v306, %v306
    %vm310 = vcmask 654336
    %v312 = vsel %vm310, %v307, 0
    %v315 = vsel %vm310, %v308, 0
    %v318 = vsel %vm310, %v309, 0
    %320 = vmatprep.subr.bf16.mxu0 0
    %321 = vmatpush1.bf16.msra.mxu0 %v287
    %322 = vmatprep.subr.bf16.mxu0 0
    %323 = vmatpush1.bf16.msra.mxu0 %v288
    %324 = vmatprep.subr.bf16.mxu0 0
    %325 = vmatpush1.bf16.msra.mxu0 %v289
    %326 = vmatprep.subr.bf16.mxu0 0
    %327 = vmatpush1.bf16.msra.mxu0 %v290
    %328 = vmatprep.subr.bf16.mxu0 0
    %329 = vmatpush1.bf16.msra.mxu0 %v291
    %330 = vmatprep.subr.bf16.mxu0 0
    %331 = vmatpush1.bf16.msra.mxu0 0
    %332 = vmatprep.subr.bf16.mxu0 0
    %333 = vmatpush1.bf16.msra.mxu0 0
    %334 = vmatprep.subr.bf16.mxu0 0
    %335 = vmatpush1.bf16.msra.mxu0 0
    %336 = vmatprep.subr.bf16.mxu0 0
    %337 = vmatpush1.bf16.msra.mxu0 0
    %338 = vmatprep.subr.bf16.mxu0 0
    %339 = vmatpush1.bf16.msra.mxu0 0
    %340 = vmatprep.subr.bf16.mxu0 0
    %341 = vmatpush1.bf16.msra.mxu0 0
    %342 = vmatprep.subr.bf16.mxu0 0
    %343 = vmatpush1.bf16.msra.mxu0 0
    %344 = vmatprep.subr.bf16.mxu0 0
    %345 = vmatpush1.bf16.msra.mxu0 0
    %346 = vmatprep.subr.bf16.mxu0 0
    %347 = vmatpush1.bf16.msra.mxu0 0
    %348 = vmatprep.subr.bf16.mxu0 0
    %349 = vmatpush1.bf16.msra.mxu0 0
    %350 = vmatprep.subr.bf16.mxu0 0
    %351 = vmatpush1.bf16.msra.mxu0 0
    %352 = vmatprep.mubr.bf16.mxu0 0
    %353 = vmatmul.mubr.bf16.gmra.mrb[0].mxu0 %v312
    %v354 = vpop.f32.mrb[0].mxu0
    %v355 = vadd.f32 0.0, %v354
    %v356 = vpop.f32.mrb[0].mxu0
    %v357 = vpop.f32.mrb[0].mxu0
    %v358 = vadd.f32 0.0, %v357
    %v359 = vpop.f32.mrb[0].mxu0
    %360 = vmatprep.mubr.bf16.mxu0 0
    %361 = vmatmul.mubr.bf16.gmra.mrb[0].mxu0 %v315
    %v362 = vpop.f32.mrb[0].mxu0
    %v363 = vadd.f32 0.0, %v362
    %v364 = vpop.f32.mrb[0].mxu0
    %v365 = vpop.f32.mrb[0].mxu0
    %v366 = vadd.f32 0.0, %v365
    %v367 = vpop.f32.mrb[0].mxu0
    %368 = vmatprep.mubr.bf16.mxu0 0
    %369 = vmatmul.mubr.bf16.gmra.mrb[0].mxu0 %v318
    %v370 = vpop.f32.mrb[0].mxu0
    %v371 = vadd.f32 0.0, %v370
    %v372 = vpop.f32.mrb[0].mxu0
    %v373 = vpop.f32.mrb[0].mxu0
    %v374 = vpop.f32.mrb[0].mxu0
    %375 = vdwg.mxu0
    %v376 = vpack.c.bf16 %v358, %v355
    %v377 = vpack.c.bf16 %v366, %v363
    %v378 = vpack.c.bf16 %v371, %v371
    %v379 = vld [vmem:[%s5] sm:$0xff]
    %v380 = vld [vmem:[%s5 + $0x8] sm:$0xf]
    %v381 = vld [vmem:[%s5 + $0xc] sm:$0xff]
    %v382 = vld [vmem:[%s5 + $0x14] sm:$0xf]
    %v383 = vld [vmem:[%s5 + $0x18] sm:$0xff]
    %v384 = vld [vmem:[%s5 + $0x20] sm:$0xf]
    %v385 = vld [vmem:[%s5 + $0x24] sm:$0xff]
    %v386 = vld [vmem:[%s5 + $0x2c] sm:$0xf]
    %v387 = vld [vmem:[%s5 + $0x30] sm:$0xff]
    %v388 = vld [vmem:[%s5 + $0x38] sm:$0xf]
    %v389 = vld [vmem:[%s5 + $0x3c] sm:$0xff]
    %v390 = vld [vmem:[%s5 + $0x44] sm:$0xf]
    %v391 = vld [vmem:[%s5 + $0x48] sm:$0xff]
    %v392 = vld [vmem:[%s5 + $0x50] sm:$0xf]
    %v393 = vld [vmem:[%s5 + $0x54] sm:$0xff]
    %v394 = vld [vmem:[%s5 + $0x5c] sm:$0xf]
    %v395 = vld [vmem:[%s5 + $0x60] sm:$0xff]
    %v396 = vld [vmem:[%s5 + $0x68] sm:$0xf]
    %v397 = vld [vmem:[%s5 + $0x6c] sm:$0xff]
    %v398 = vld [vmem:[%s5 + $0x74] sm:$0xf]
    %v399 = vld [vmem:[%s5 + $0x78] sm:$0xff]
    %v400 = vld [vmem:[%s5 + $0x80] sm:$0xf]
    %v401 = vld [vmem:[%s5 + $0x84] sm:$0xff]
    %v402 = vld [vmem:[%s5 + $0x8c] sm:$0xf]
    %v403 = vld [vmem:[%s5 + $0x90] sm:$0xff]
    %v404 = vld [vmem:[%s5 + $0x98] sm:$0xf]
    %v405 = vld [vmem:[%s5 + $0x9c] sm:$0xff]
    %v406 = vld [vmem:[%s5 + $0xa4] sm:$0xf]
    %v407 = vld [vmem:[%s5 + $0xa8] sm:$0xff]
    %v408 = vld [vmem:[%s5 + $0xb0] sm:$0xf]
    %s409 = scalar_lea.vmem %s3, 20
    %v410 = vld [vmem:[%s409] sm:$0xf]
    %v411 = vld [vmem:[%s409 + $0x4] sm:$0xf]
    %v412 = vld [vmem:[%s409 + $0x8] sm:$0xf]
    %v413 = vld [vmem:[%s409 + $0xc] sm:$0xf]
    %v414 = vld [vmem:[%s409 + $0x10] sm:$0x3]
    %v420 = vunpack.c.l.b16 %v410
    %v421 = vunpack.c.l.b16 %v411
    %v422 = vunpack.c.l.b16 %v412
    %v423 = vunpack.c.l.b16 %v413
    %v424 = vunpack.c.l.b16 %v414
    %v425 = vpack.c.b16 %v421, %v420
    %v426 = vpack.c.b16 %v423, %v422
    %v427 = vpack.c.b16 %v424, %v424
    %v429 = vsel %vm310, %v425, 0
    %v432 = vsel %vm310, %v426, 0
    %v435 = vsel %vm310, %v427, 0
    %437 = vmatprep.subr.bf16.mxu0 0
    %438 = vmatpush1.bf16.msra.mxu0 %v287
    %439 = vmatprep.subr.bf16.mxu0 0
    %440 = vmatpush1.bf16.msra.mxu0 %v288
    %441 = vmatprep.subr.bf16.mxu0 0
    %442 = vmatpush1.bf16.msra.mxu0 %v289
    %443 = vmatprep.subr.bf16.mxu0 0
    %444 = vmatpush1.bf16.msra.mxu0 %v290
    %445 = vmatprep.subr.bf16.mxu0 0
    %446 = vmatpush1.bf16.msra.mxu0 %v291
    %447 = vmatprep.subr.bf16.mxu0 0
    %448 = vmatpush1.bf16.msra.mxu0 0
    %449 = vmatprep.subr.bf16.mxu0 0
    %450 = vmatpush1.bf16.msra.mxu0 0
    %451 = vmatprep.subr.bf16.mxu0 0
    %452 = vmatpush1.bf16.msra.mxu0 0
    %453 = vmatprep.subr.bf16.mxu0 0
    %454 = vmatpush1.bf16.msra.mxu0 0
    %455 = vmatprep.subr.bf16.mxu0 0
    %456 = vmatpush1.bf16.msra.mxu0 0
    %457 = vmatprep.subr.bf16.mxu0 0
    %458 = vmatpush1.bf16.msra.mxu0 0
    %459 = vmatprep.subr.bf16.mxu0 0
    %460 = vmatpush1.bf16.msra.mxu0 0
    %461 = vmatprep.subr.bf16.mxu0 0
    %462 = vmatpush1.bf16.msra.mxu0 0
    %463 = vmatprep.subr.bf16.mxu0 0
    %464 = vmatpush1.bf16.msra.mxu0 0
    %465 = vmatprep.subr.bf16.mxu0 0
    %466 = vmatpush1.bf16.msra.mxu0 0
    %467 = vmatprep.subr.bf16.mxu0 0
    %468 = vmatpush1.bf16.msra.mxu0 0
    %469 = vmatprep.mubr.bf16.mxu0 0
    %470 = vmatmul.mubr.bf16.gmra.mrb[0].mxu0 %v429
    %v471 = vpop.f32.mrb[0].mxu0
    %v472 = vadd.f32 0.0, %v471
    %v473 = vpop.f32.mrb[0].mxu0
    %v474 = vpop.f32.mrb[0].mxu0
    %v475 = vadd.f32 0.0, %v474
    %v476 = vpop.f32.mrb[0].mxu0
    %477 = vmatprep.mubr.bf16.mxu0 0
    %478 = vmatmul.mubr.bf16.gmra.mrb[0].mxu0 %v432
    %v479 = vpop.f32.mrb[0].mxu0
    %v480 = vadd.f32 0.0, %v479
    %v481 = vpop.f32.mrb[0].mxu0
    %v482 = vpop.f32.mrb[0].mxu0
    %v483 = vadd.f32 0.0, %v482
    %v484 = vpop.f32.mrb[0].mxu0
    %485 = vmatprep.mubr.bf16.mxu0 0
    %486 = vmatmul.mubr.bf16.gmra.mrb[0].mxu0 %v435
    %v487 = vpop.f32.mrb[0].mxu0
    %v488 = vadd.f32 0.0, %v487
    %v489 = vpop.f32.mrb[0].mxu0
    %v490 = vpop.f32.mrb[0].mxu0
    %v491 = vpop.f32.mrb[0].mxu0
    %492 = vdwg.mxu0
    %v493 = vpack.c.bf16 %v475, %v472
    %v494 = vpack.c.bf16 %v483, %v480
    %v495 = vpack.c.bf16 %v488, %v488
    %s496 = scalar_lea.vmem %s5, 180
    %v497 = vld [vmem:[%s496] sm:$0xff]
    %v498 = vld [vmem:[%s496 + $0x8] sm:$0xf]
    %v499 = vld [vmem:[%s496 + $0xc] sm:$0xff]
    %v500 = vld [vmem:[%s496 + $0x14] sm:$0xf]
    %v501 = vld [vmem:[%s496 + $0x18] sm:$0xff]
    %v502 = vld [vmem:[%s496 + $0x20] sm:$0xf]
    %v503 = vld [vmem:[%s496 + $0x24] sm:$0xff]
    %v504 = vld [vmem:[%s496 + $0x2c] sm:$0xf]
    %v505 = vld [vmem:[%s496 + $0x30] sm:$0xff]
    %v506 = vld [vmem:[%s496 + $0x38] sm:$0xf]
    %v507 = vld [vmem:[%s496 + $0x3c] sm:$0xff]
    %v508 = vld [vmem:[%s496 + $0x44] sm:$0xf]
    %v509 = vld [vmem:[%s496 + $0x48] sm:$0xff]
    %v510 = vld [vmem:[%s496 + $0x50] sm:$0xf]
    %v511 = vld [vmem:[%s496 + $0x54] sm:$0xff]
    %v512 = vld [vmem:[%s496 + $0x5c] sm:$0xf]
    %v513 = vld [vmem:[%s496 + $0x60] sm:$0xff]
    %v514 = vld [vmem:[%s496 + $0x68] sm:$0xf]
    %v515 = vld [vmem:[%s496 + $0x6c] sm:$0xff]
    %v516 = vld [vmem:[%s496 + $0x74] sm:$0xf]
    %v517 = vld [vmem:[%s496 + $0x78] sm:$0xff]
    %v518 = vld [vmem:[%s496 + $0x80] sm:$0xf]
    %v519 = vld [vmem:[%s496 + $0x84] sm:$0xff]
    %v520 = vld [vmem:[%s496 + $0x8c] sm:$0xf]
    %v521 = vld [vmem:[%s496 + $0x90] sm:$0xff]
    %v522 = vld [vmem:[%s496 + $0x98] sm:$0xf]
    %v523 = vld [vmem:[%s496 + $0x9c] sm:$0xff]
    %v524 = vld [vmem:[%s496 + $0xa4] sm:$0xf]
    %v525 = vld [vmem:[%s496 + $0xa8] sm:$0xff]
    %v526 = vld [vmem:[%s496 + $0xb0] sm:$0xf]
    %v557 = vunpack.c.l.b16 %v497
    %v558 = vunpack.c.h.b16 %v497
    %v559 = vunpack.c.l.b16 %v498
    %v560 = vunpack.c.l.b16 %v499
    %v561 = vunpack.c.h.b16 %v499
    %v562 = vunpack.c.l.b16 %v500
    %v563 = vunpack.c.l.b16 %v501
    %v564 = vunpack.c.h.b16 %v501
    %v565 = vunpack.c.l.b16 %v502
    %v566 = vunpack.c.l.b16 %v503
    %v567 = vunpack.c.h.b16 %v503
    %v568 = vunpack.c.l.b16 %v504
    %v569 = vunpack.c.l.b16 %v505
    %v570 = vunpack.c.h.b16 %v505
    %v571 = vunpack.c.l.b16 %v506
    %v572 = vunpack.c.l.b16 %v507
    %v573 = vunpack.c.h.b16 %v507
    %v574 = vunpack.c.l.b16 %v508
    %v575 = vunpack.c.l.b16 %v509
    %v576 = vunpack.c.h.b16 %v509
    %v577 = vunpack.c.l.b16 %v510
    %v578 = vunpack.c.l.b16 %v511
    %v579 = vunpack.c.h.b16 %v511
    %v580 = vunpack.c.l.b16 %v512
    %v581 = vunpack.c.l.b16 %v513
    %v582 = vunpack.c.h.b16 %v513
    %v583 = vunpack.c.l.b16 %v514
    %v584 = vunpack.c.l.b16 %v515
    %v585 = vunpack.c.h.b16 %v515
    %v586 = vunpack.c.l.b16 %v516
    %v587 = vunpack.c.l.b16 %v517
    %v588 = vunpack.c.h.b16 %v517
    %v589 = vunpack.c.l.b16 %v518
    %v590 = vunpack.c.l.b16 %v519
    %v591 = vunpack.c.h.b16 %v519
    %v592 = vunpack.c.l.b16 %v520
    %v593 = vunpack.c.l.b16 %v521
    %v594 = vunpack.c.h.b16 %v521
    %v595 = vunpack.c.l.b16 %v522
    %v596 = vunpack.c.l.b16 %v523
    %v597 = vunpack.c.h.b16 %v523
    %v598 = vunpack.c.l.b16 %v524
    %v599 = vunpack.c.l.b16 %v525
    %v600 = vunpack.c.h.b16 %v525
    %v601 = vunpack.c.l.b16 %v526
    %v602 = vpack.c.b16 %v560, %v557
    %v603 = vpack.c.b16 %v561, %v558
    %v604 = vpack.c.b16 %v562, %v559
    %v605 = vpack.c.b16 %v566, %v563
    %v606 = vpack.c.b16 %v567, %v564
    %v607 = vpack.c.b16 %v568, %v565
    %v608 = vpack.c.b16 %v572, %v569
    %v609 = vpack.c.b16 %v573, %v570
    %v610 = vpack.c.b16 %v574, %v571
    %v611 = vpack.c.b16 %v578, %v575
    %v612 = vpack.c.b16 %v579, %v576
    %v613 = vpack.c.b16 %v580, %v577
    %v614 = vpack.c.b16 %v584, %v581
    %v615 = vpack.c.b16 %v585, %v582
    %v616 = vpack.c.b16 %v586, %v583
    %v617 = vpack.c.b16 %v590, %v587
    %v618 = vpack.c.b16 %v591, %v588
    %v619 = vpack.c.b16 %v592, %v589
    %v620 = vpack.c.b16 %v596, %v593
    %v621 = vpack.c.b16 %v597, %v594
    %v622 = vpack.c.b16 %v598, %v595
    %v623 = vpack.c.b16 %v599, %v599
    %v624 = vpack.c.b16 %v600, %v600
    %v625 = vpack.c.b16 %v601, %v601
    %vm647 = vcmask 982016
    %v649 = vsel %vm647, %v493, 0
    %v652 = vsel %vm647, %v494, 0
    %v655 = vsel %vm647, %v495, 0
    %vm657 = vcmask 1043456
    %v659 = vsel %vm657, %v623, 0
    %v662 = vsel %vm657, %v624, 0
    %v665 = vsel %vm657, %v625, 0
    %667 = vmatprep.subr.bf16.mxu0 %v603
    %668 = vmatpush1.bf16.msra.mxu0 %v602
    %669 = vmatprep.subr.bf16.mxu0 %v606
    %670 = vmatpush1.bf16.msra.mxu0 %v605
    %671 = vmatprep.subr.bf16.mxu0 %v609
    %672 = vmatpush1.bf16.msra.mxu0 %v608
    %673 = vmatprep.subr.bf16.mxu0 %v612
    %674 = vmatpush1.bf16.msra.mxu0 %v611
    %675 = vmatprep.subr.bf16.mxu0 %v615
    %676 = vmatpush1.bf16.msra.mxu0 %v614
    %677 = vmatprep.subr.bf16.mxu0 %v618
    %678 = vmatpush1.bf16.msra.mxu0 %v617
    %679 = vmatprep.subr.bf16.mxu0 %v621
    %680 = vmatpush1.bf16.msra.mxu0 %v620
    %681 = vmatprep.subr.bf16.mxu0 %v662
    %682 = vmatpush1.bf16.msra.mxu0 %v659
    %683 = vmatprep.subr.bf16.mxu0 0
    %684 = vmatpush1.bf16.msra.mxu0 0
    %685 = vmatprep.subr.bf16.mxu0 0
    %686 = vmatpush1.bf16.msra.mxu0 0
    %687 = vmatprep.subr.bf16.mxu0 0
    %688 = vmatpush1.bf16.msra.mxu0 0
    %689 = vmatprep.subr.bf16.mxu0 0
    %690 = vmatpush1.bf16.msra.mxu0 0
    %691 = vmatprep.subr.bf16.mxu0 0
    %692 = vmatpush1.bf16.msra.mxu0 0
    %693 = vmatprep.subr.bf16.mxu0 0
    %694 = vmatpush1.bf16.msra.mxu0 0
    %695 = vmatprep.subr.bf16.mxu0 0
    %696 = vmatpush1.bf16.msra.mxu0 0
    %697 = vmatprep.subr.bf16.mxu0 0
    %698 = vmatpush1.bf16.msra.mxu0 0
    %699 = vmatprep.mubr.bf16.mxu0 0
    %700 = vmatmul.mubr.bf16.gmra.mrb[0].mxu0 %v649
    %v701 = vpop.f32.mrb[0].mxu0
    %v702 = vadd.f32 0.0, %v701
    %v703 = vpop.f32.mrb[0].mxu0
    %v704 = vadd.f32 0.0, %v703
    %v705 = vpop.f32.mrb[0].mxu0
    %v706 = vadd.f32 0.0, %v705
    %v707 = vpop.f32.mrb[0].mxu0
    %v708 = vadd.f32 0.0, %v707
    %709 = vmatprep.mubr.bf16.mxu0 0
    %710 = vmatmul.mubr.bf16.gmra.mrb[0].mxu0 %v652
    %v711 = vpop.f32.mrb[0].mxu0
    %v712 = vadd.f32 0.0, %v711
    %v713 = vpop.f32.mrb[0].mxu0
    %v714 = vadd.f32 0.0, %v713
    %v715 = vpop.f32.mrb[0].mxu0
    %v716 = vadd.f32 0.0, %v715
    %v717 = vpop.f32.mrb[0].mxu0
    %v718 = vadd.f32 0.0, %v717
    %719 = vmatprep.mubr.bf16.mxu0 0
    %720 = vmatmul.mubr.bf16.gmra.mrb[0].mxu0 %v655
    %v721 = vpop.f32.mrb[0].mxu0
    %v722 = vadd.f32 0.0, %v721
    %v723 = vpop.f32.mrb[0].mxu0
    %v724 = vadd.f32 0.0, %v723
    %v725 = vpop.f32.mrb[0].mxu0
    %v726 = vpop.f32.mrb[0].mxu0
    %727 = vdwg.mxu0
    %728 = vmatprep.subr.bf16.mxu0 0
    %729 = vmatpush1.bf16.msra.mxu0 %v604
    %730 = vmatprep.subr.bf16.mxu0 0
    %731 = vmatpush1.bf16.msra.mxu0 %v607
    %732 = vmatprep.subr.bf16.mxu0 0
    %733 = vmatpush1.bf16.msra.mxu0 %v610
    %734 = vmatprep.subr.bf16.mxu0 0
    %735 = vmatpush1.bf16.msra.mxu0 %v613
    %736 = vmatprep.subr.bf16.mxu0 0
    %737 = vmatpush1.bf16.msra.mxu0 %v616
    %738 = vmatprep.subr.bf16.mxu0 0
    %739 = vmatpush1.bf16.msra.mxu0 %v619
    %740 = vmatprep.subr.bf16.mxu0 0
    %741 = vmatpush1.bf16.msra.mxu0 %v622
    %742 = vmatprep.subr.bf16.mxu0 0
    %743 = vmatpush1.bf16.msra.mxu0 %v665
    %744 = vmatprep.subr.bf16.mxu0 0
    %745 = vmatpush1.bf16.msra.mxu0 0
    %746 = vmatprep.subr.bf16.mxu0 0
    %747 = vmatpush1.bf16.msra.mxu0 0
    %748 = vmatprep.subr.bf16.mxu0 0
    %749 = vmatpush1.bf16.msra.mxu0 0
    %750 = vmatprep.subr.bf16.mxu0 0
    %751 = vmatpush1.bf16.msra.mxu0 0
    %752 = vmatprep.subr.bf16.mxu0 0
    %753 = vmatpush1.bf16.msra.mxu0 0
    %754 = vmatprep.subr.bf16.mxu0 0
    %755 = vmatpush1.bf16.msra.mxu0 0
    %756 = vmatprep.subr.bf16.mxu0 0
    %757 = vmatpush1.bf16.msra.mxu0 0
    %758 = vmatprep.subr.bf16.mxu0 0
    %759 = vmatpush1.bf16.msra.mxu0 0
    %760 = vmatprep.mubr.bf16.mxu0 0
    %761 = vmatmul.mubr.bf16.gmra.mrb[0].mxu0 %v649
    %v762 = vpop.f32.mrb[0].mxu0
    %v763 = vadd.f32 0.0, %v762
    %v764 = vpop.f32.mrb[0].mxu0
    %v765 = vpop.f32.mrb[0].mxu0
    %v766 = vadd.f32 0.0, %v765
    %v767 = vpop.f32.mrb[0].mxu0
    %768 = vmatprep.mubr.bf16.mxu0 0
    %769 = vmatmul.mubr.bf16.gmra.mrb[0].mxu0 %v652
    %v770 = vpop.f32.mrb[0].mxu0
    %v771 = vadd.f32 0.0, %v770
    %v772 = vpop.f32.mrb[0].mxu0
    %v773 = vpop.f32.mrb[0].mxu0
    %v774 = vadd.f32 0.0, %v773
    %v775 = vpop.f32.mrb[0].mxu0
    %776 = vmatprep.mubr.bf16.mxu0 0
    %777 = vmatmul.mubr.bf16.gmra.mrb[0].mxu0 %v655
    %v778 = vpop.f32.mrb[0].mxu0
    %v779 = vadd.f32 0.0, %v778
    %v780 = vpop.f32.mrb[0].mxu0
    %v781 = vpop.f32.mrb[0].mxu0
    %v782 = vpop.f32.mrb[0].mxu0
    %783 = vdwg.mxu0
    %v814 = vunpack.c.l.b16 %v379
    %v815 = vunpack.c.h.b16 %v379
    %v816 = vunpack.c.l.b16 %v380
    %v817 = vunpack.c.l.b16 %v381
    %v818 = vunpack.c.h.b16 %v381
    %v819 = vunpack.c.l.b16 %v382
    %v820 = vunpack.c.l.b16 %v383
    %v821 = vunpack.c.h.b16 %v383
    %v822 = vunpack.c.l.b16 %v384
    %v823 = vunpack.c.l.b16 %v385
    %v824 = vunpack.c.h.b16 %v385
    %v825 = vunpack.c.l.b16 %v386
    %v826 = vunpack.c.l.b16 %v387
    %v827 = vunpack.c.h.b16 %v387
    %v828 = vunpack.c.l.b16 %v388
    %v829 = vunpack.c.l.b16 %v389
    %v830 = vunpack.c.h.b16 %v389
    %v831 = vunpack.c.l.b16 %v390
    %v832 = vunpack.c.l.b16 %v391
    %v833 = vunpack.c.h.b16 %v391
    %v834 = vunpack.c.l.b16 %v392
    %v835 = vunpack.c.l.b16 %v393
    %v836 = vunpack.c.h.b16 %v393
    %v837 = vunpack.c.l.b16 %v394
    %v838 = vunpack.c.l.b16 %v395
    %v839 = vunpack.c.h.b16 %v395
    %v840 = vunpack.c.l.b16 %v396
    %v841 = vunpack.c.l.b16 %v397
    %v842 = vunpack.c.h.b16 %v397
    %v843 = vunpack.c.l.b16 %v398
    %v844 = vunpack.c.l.b16 %v399
    %v845 = vunpack.c.h.b16 %v399
    %v846 = vunpack.c.l.b16 %v400
    %v847 = vunpack.c.l.b16 %v401
    %v848 = vunpack.c.h.b16 %v401
    %v849 = vunpack.c.l.b16 %v402
    %v850 = vunpack.c.l.b16 %v403
    %v851 = vunpack.c.h.b16 %v403
    %v852 = vunpack.c.l.b16 %v404
    %v853 = vunpack.c.l.b16 %v405
    %v854 = vunpack.c.h.b16 %v405
    %v855 = vunpack.c.l.b16 %v406
    %v856 = vunpack.c.l.b16 %v407
    %v857 = vunpack.c.h.b16 %v407
    %v858 = vunpack.c.l.b16 %v408
    %v859 = vpack.c.b16 %v817, %v814
    %v860 = vpack.c.b16 %v818, %v815
    %v861 = vpack.c.b16 %v819, %v816
    %v862 = vpack.c.b16 %v823, %v820
    %v863 = vpack.c.b16 %v824, %v821
    %v864 = vpack.c.b16 %v825, %v822
    %v865 = vpack.c.b16 %v829, %v826
    %v866 = vpack.c.b16 %v830, %v827
    %v867 = vpack.c.b16 %v831, %v828
    %v868 = vpack.c.b16 %v835, %v832
    %v869 = vpack.c.b16 %v836, %v833
    %v870 = vpack.c.b16 %v837, %v834
    %v871 = vpack.c.b16 %v841, %v838
    %v872 = vpack.c.b16 %v842, %v839
    %v873 = vpack.c.b16 %v843, %v840
    %v874 = vpack.c.b16 %v847, %v844
    %v875 = vpack.c.b16 %v848, %v845
    %v876 = vpack.c.b16 %v849, %v846
    %v877 = vpack.c.b16 %v853, %v850
    %v878 = vpack.c.b16 %v854, %v851
    %v879 = vpack.c.b16 %v855, %v852
    %v880 = vpack.c.b16 %v856, %v856
    %v881 = vpack.c.b16 %v857, %v857
    %v882 = vpack.c.b16 %v858, %v858
    %v905 = vsel %vm647, %v376, 0
    %v908 = vsel %vm647, %v377, 0
    %v911 = vsel %vm647, %v378, 0
    %v914 = vsel %vm657, %v880, 0
    %v917 = vsel %vm657, %v881, 0
    %v920 = vsel %vm657, %v882, 0
    %922 = vmatprep.subr.bf16.mxu0 %v860
    %923 = vmatpush1.bf16.msra.mxu0 %v859
    %924 = vmatprep.subr.bf16.mxu0 %v863
    %925 = vmatpush1.bf16.msra.mxu0 %v862
    %926 = vmatprep.subr.bf16.mxu0 %v866
    %927 = vmatpush1.bf16.msra.mxu0 %v865
    %928 = vmatprep.subr.bf16.mxu0 %v869
    %929 = vmatpush1.bf16.msra.mxu0 %v868
    %930 = vmatprep.subr.bf16.mxu0 %v872
    %931 = vmatpush1.bf16.msra.mxu0 %v871
    %932 = vmatprep.subr.bf16.mxu0 %v875
    %933 = vmatpush1.bf16.msra.mxu0 %v874
    %934 = vmatprep.subr.bf16.mxu0 %v878
    %935 = vmatpush1.bf16.msra.mxu0 %v877
    %936 = vmatprep.subr.bf16.mxu0 %v917
    %937 = vmatpush1.bf16.msra.mxu0 %v914
    %938 = vmatprep.subr.bf16.mxu0 0
    %939 = vmatpush1.bf16.msra.mxu0 0
    %940 = vmatprep.subr.bf16.mxu0 0
    %941 = vmatpush1.bf16.msra.mxu0 0
    %942 = vmatprep.subr.bf16.mxu0 0
    %943 = vmatpush1.bf16.msra.mxu0 0
    %944 = vmatprep.subr.bf16.mxu0 0
    %945 = vmatpush1.bf16.msra.mxu0 0
    %946 = vmatprep.subr.bf16.mxu0 0
    %947 = vmatpush1.bf16.msra.mxu0 0
    %948 = vmatprep.subr.bf16.mxu0 0
    %949 = vmatpush1.bf16.msra.mxu0 0
    %950 = vmatprep.subr.bf16.mxu0 0
    %951 = vmatpush1.bf16.msra.mxu0 0
    %952 = vmatprep.subr.bf16.mxu0 0
    %953 = vmatpush1.bf16.msra.mxu0 0
    %954 = vmatprep.mubr.bf16.mxu0 0
    %955 = vmatmul.mubr.bf16.gmra.mrb[0].mxu0 %v905
    %v956 = vpop.f32.mrb[0].mxu0
    %v957 = vadd.f32 %v702, %v956
    %v958 = vpop.f32.mrb[0].mxu0
    %v959 = vadd.f32 %v704, %v958
    %v960 = vpop.f32.mrb[0].mxu0
    %v961 = vadd.f32 %v706, %v960
    %v962 = vpop.f32.mrb[0].mxu0
    %v963 = vadd.f32 %v708, %v962
    %964 = vmatprep.mubr.bf16.mxu0 0
    %965 = vmatmul.mubr.bf16.gmra.mrb[0].mxu0 %v908
    %v966 = vpop.f32.mrb[0].mxu0
    %v967 = vadd.f32 %v712, %v966
    %v968 = vpop.f32.mrb[0].mxu0
    %v969 = vadd.f32 %v714, %v968
    %v970 = vpop.f32.mrb[0].mxu0
    %v971 = vadd.f32 %v716, %v970
    %v972 = vpop.f32.mrb[0].mxu0
    %v973 = vadd.f32 %v718, %v972
    %974 = vmatprep.mubr.bf16.mxu0 0
    %975 = vmatmul.mubr.bf16.gmra.mrb[0].mxu0 %v911
    %v976 = vpop.f32.mrb[0].mxu0
    %v977 = vadd.f32 %v722, %v976
    %v978 = vpop.f32.mrb[0].mxu0
    %v979 = vadd.f32 %v724, %v978
    %v980 = vpop.f32.mrb[0].mxu0
    %v981 = vpop.f32.mrb[0].mxu0
    %982 = vdwg.mxu0
    %983 = vmatprep.subr.bf16.mxu0 0
    %984 = vmatpush1.bf16.msra.mxu0 %v861
    %985 = vmatprep.subr.bf16.mxu0 0
    %986 = vmatpush1.bf16.msra.mxu0 %v864
    %987 = vmatprep.subr.bf16.mxu0 0
    %988 = vmatpush1.bf16.msra.mxu0 %v867
    %989 = vmatprep.subr.bf16.mxu0 0
    %990 = vmatpush1.bf16.msra.mxu0 %v870
    %991 = vmatprep.subr.bf16.mxu0 0
    %992 = vmatpush1.bf16.msra.mxu0 %v873
    %993 = vmatprep.subr.bf16.mxu0 0
    %994 = vmatpush1.bf16.msra.mxu0 %v876
    %995 = vmatprep.subr.bf16.mxu0 0
    %996 = vmatpush1.bf16.msra.mxu0 %v879
    %997 = vmatprep.subr.bf16.mxu0 0
    %998 = vmatpush1.bf16.msra.mxu0 %v920
    %999 = vmatprep.subr.bf16.mxu0 0
    %1000 = vmatpush1.bf16.msra.mxu0 0
    %1001 = vmatprep.subr.bf16.mxu0 0
    %1002 = vmatpush1.bf16.msra.mxu0 0
    %1003 = vmatprep.subr.bf16.mxu0 0
    %1004 = vmatpush1.bf16.msra.mxu0 0
    %1005 = vmatprep.subr.bf16.mxu0 0
    %1006 = vmatpush1.bf16.msra.mxu0 0
    %1007 = vmatprep.subr.bf16.mxu0 0
    %1008 = vmatpush1.bf16.msra.mxu0 0
    %1009 = vmatprep.subr.bf16.mxu0 0
    %1010 = vmatpush1.bf16.msra.mxu0 0
    %1011 = vmatprep.subr.bf16.mxu0 0
    %1012 = vmatpush1.bf16.msra.mxu0 0
    %1013 = vmatprep.subr.bf16.mxu0 0
    %1014 = vmatpush1.bf16.msra.mxu0 0
    %1015 = vmatprep.mubr.bf16.mxu0 0
    %1016 = vmatmul.mubr.bf16.gmra.mrb[0].mxu0 %v905
    %v1017 = vpop.f32.mrb[0].mxu0
    %v1018 = vadd.f32 %v763, %v1017
    %v1019 = vpop.f32.mrb[0].mxu0
    %v1020 = vpop.f32.mrb[0].mxu0
    %v1021 = vadd.f32 %v766, %v1020
    %v1022 = vpop.f32.mrb[0].mxu0
    %1023 = vmatprep.mubr.bf16.mxu0 0
    %1024 = vmatmul.mubr.bf16.gmra.mrb[0].mxu0 %v908
    %v1025 = vpop.f32.mrb[0].mxu0
    %v1026 = vadd.f32 %v771, %v1025
    %v1027 = vpop.f32.mrb[0].mxu0
    %v1028 = vpop.f32.mrb[0].mxu0
    %v1029 = vadd.f32 %v774, %v1028
    %v1030 = vpop.f32.mrb[0].mxu0
    %1031 = vmatprep.mubr.bf16.mxu0 0
    %1032 = vmatmul.mubr.bf16.gmra.mrb[0].mxu0 %v911
    %v1033 = vpop.f32.mrb[0].mxu0
    %v1034 = vadd.f32 %v779, %v1033
    %v1035 = vpop.f32.mrb[0].mxu0
    %v1036 = vpop.f32.mrb[0].mxu0
    %v1037 = vpop.f32.mrb[0].mxu0
    %1038 = vdwg.mxu0
    %s1039 = scalar_lea.vmem %s3, 40
    %v1040 = vld [vmem:[%s1039] sm:$0xf]
    %v1041 = vld [vmem:[%s1039 + $0x4] sm:$0xf]
    %v1042 = vld [vmem:[%s1039 + $0x8] sm:$0xf]
    %v1043 = vld [vmem:[%s1039 + $0xc] sm:$0xf]
    %v1044 = vld [vmem:[%s1039 + $0x10] sm:$0x3]
    %v1050 = vunpack.c.l.b16 %v1040
    %v1051 = vunpack.c.l.b16 %v1041
    %v1052 = vunpack.c.l.b16 %v1042
    %v1053 = vunpack.c.l.b16 %v1043
    %v1054 = vunpack.c.l.b16 %v1044
    %v1055 = vpack.c.b16 %v1051, %v1050
    %v1056 = vpack.c.b16 %v1053, %v1052
    %v1057 = vpack.c.b16 %v1054, %v1054
    %v1059 = vsel %vm310, %v1055, 0
    %v1062 = vsel %vm310, %v1056, 0
    %v1065 = vsel %vm310, %v1057, 0
    %1067 = vmatprep.subr.bf16.mxu0 0
    %1068 = vmatpush1.bf16.msra.mxu0 %v287
    %1069 = vmatprep.subr.bf16.mxu0 0
    %1070 = vmatpush1.bf16.msra.mxu0 %v288
    %1071 = vmatprep.subr.bf16.mxu0 0
    %1072 = vmatpush1.bf16.msra.mxu0 %v289
    %1073 = vmatprep.subr.bf16.mxu0 0
    %1074 = vmatpush1.bf16.msra.mxu0 %v290
    %1075 = vmatprep.subr.bf16.mxu0 0
    %1076 = vmatpush1.bf16.msra.mxu0 %v291
    %1077 = vmatprep.subr.bf16.mxu0 0
    %1078 = vmatpush1.bf16.msra.mxu0 0
    %1079 = vmatprep.subr.bf16.mxu0 0
    %1080 = vmatpush1.bf16.msra.mxu0 0
    %1081 = vmatprep.subr.bf16.mxu0 0
    %1082 = vmatpush1.bf16.msra.mxu0 0
    %1083 = vmatprep.subr.bf16.mxu0 0
    %1084 = vmatpush1.bf16.msra.mxu0 0
    %1085 = vmatprep.subr.bf16.mxu0 0
    %1086 = vmatpush1.bf16.msra.mxu0 0
    %1087 = vmatprep.subr.bf16.mxu0 0
    %1088 = vmatpush1.bf16.msra.mxu0 0
    %1089 = vmatprep.subr.bf16.mxu0 0
    %1090 = vmatpush1.bf16.msra.mxu0 0
    %1091 = vmatprep.subr.bf16.mxu0 0
    %1092 = vmatpush1.bf16.msra.mxu0 0
    %1093 = vmatprep.subr.bf16.mxu0 0
    %1094 = vmatpush1.bf16.msra.mxu0 0
    %1095 = vmatprep.subr.bf16.mxu0 0
    %1096 = vmatpush1.bf16.msra.mxu0 0
    %1097 = vmatprep.subr.bf16.mxu0 0
    %1098 = vmatpush1.bf16.msra.mxu0 0
    %1099 = vmatprep.mubr.bf16.mxu0 0
    %1100 = vmatmul.mubr.bf16.gmra.mrb[0].mxu0 %v1059
    %v1101 = vpop.f32.mrb[0].mxu0
    %v1102 = vadd.f32 0.0, %v1101
    %v1103 = vpop.f32.mrb[0].mxu0
    %v1104 = vpop.f32.mrb[0].mxu0
    %v1105 = vadd.f32 0.0, %v1104
    %v1106 = vpop.f32.mrb[0].mxu0
    %1107 = vmatprep.mubr.bf16.mxu0 0
    %1108 = vmatmul.mubr.bf16.gmra.mrb[0].mxu0 %v1062
    %v1109 = vpop.f32.mrb[0].mxu0
    %v1110 = vadd.f32 0.0, %v1109
    %v1111 = vpop.f32.mrb[0].mxu0
    %v1112 = vpop.f32.mrb[0].mxu0
    %v1113 = vadd.f32 0.0, %v1112
    %v1114 = vpop.f32.mrb[0].mxu0
    %1115 = vmatprep.mubr.bf16.mxu0 0
    %1116 = vmatmul.mubr.bf16.gmra.mrb[0].mxu0 %v1065
    %v1117 = vpop.f32.mrb[0].mxu0
    %v1118 = vadd.f32 0.0, %v1117
    %v1119 = vpop.f32.mrb[0].mxu0
    %v1120 = vpop.f32.mrb[0].mxu0
    %v1121 = vpop.f32.mrb[0].mxu0
    %1122 = vdwg.mxu0
    %v1123 = vpack.c.bf16 %v1105, %v1102
    %v1124 = vpack.c.bf16 %v1113, %v1110
    %v1125 = vpack.c.bf16 %v1118, %v1118
    %s1126 = scalar_lea.vmem %s5, 360
    %v1127 = vld [vmem:[%s1126] sm:$0xff]
    %v1128 = vld [vmem:[%s1126 + $0x8] sm:$0xf]
    %v1129 = vld [vmem:[%s1126 + $0xc] sm:$0xff]
    %v1130 = vld [vmem:[%s1126 + $0x14] sm:$0xf]
    %v1131 = vld [vmem:[%s1126 + $0x18] sm:$0xff]
    %v1132 = vld [vmem:[%s1126 + $0x20] sm:$0xf]
    %v1133 = vld [vmem:[%s1126 + $0x24] sm:$0xff]
    %v1134 = vld [vmem:[%s1126 + $0x2c] sm:$0xf]
    %v1135 = vld [vmem:[%s1126 + $0x30] sm:$0xff]
    %v1136 = vld [vmem:[%s1126 + $0x38] sm:$0xf]
    %v1137 = vld [vmem:[%s1126 + $0x3c] sm:$0xff]
    %v1138 = vld [vmem:[%s1126 + $0x44] sm:$0xf]
    %v1139 = vld [vmem:[%s1126 + $0x48] sm:$0xff]
    %v1140 = vld [vmem:[%s1126 + $0x50] sm:$0xf]
    %v1141 = vld [vmem:[%s1126 + $0x54] sm:$0xff]
    %v1142 = vld [vmem:[%s1126 + $0x5c] sm:$0xf]
    %v1143 = vld [vmem:[%s1126 + $0x60] sm:$0xff]
    %v1144 = vld [vmem:[%s1126 + $0x68] sm:$0xf]
    %v1145 = vld [vmem:[%s1126 + $0x6c] sm:$0xff]
    %v1146 = vld [vmem:[%s1126 + $0x74] sm:$0xf]
    %v1147 = vld [vmem:[%s1126 + $0x78] sm:$0xff]
    %v1148 = vld [vmem:[%s1126 + $0x80] sm:$0xf]
    %v1149 = vld [vmem:[%s1126 + $0x84] sm:$0xff]
    %v1150 = vld [vmem:[%s1126 + $0x8c] sm:$0xf]
    %v1151 = vld [vmem:[%s1126 + $0x90] sm:$0xff]
    %v1152 = vld [vmem:[%s1126 + $0x98] sm:$0xf]
    %v1153 = vld [vmem:[%s1126 + $0x9c] sm:$0xff]
    %v1154 = vld [vmem:[%s1126 + $0xa4] sm:$0xf]
    %v1155 = vld [vmem:[%s1126 + $0xa8] sm:$0xff]
    %v1156 = vld [vmem:[%s1126 + $0xb0] sm:$0xf]
    %v1187 = vunpack.c.l.b16 %v1127
    %v1188 = vunpack.c.h.b16 %v1127
    %v1189 = vunpack.c.l.b16 %v1128
    %v1190 = vunpack.c.l.b16 %v1129
    %v1191 = vunpack.c.h.b16 %v1129
    %v1192 = vunpack.c.l.b16 %v1130
    %v1193 = vunpack.c.l.b16 %v1131
    %v1194 = vunpack.c.h.b16 %v1131
    %v1195 = vunpack.c.l.b16 %v1132
    %v1196 = vunpack.c.l.b16 %v1133
    %v1197 = vunpack.c.h.b16 %v1133
    %v1198 = vunpack.c.l.b16 %v1134
    %v1199 = vunpack.c.l.b16 %v1135
    %v1200 = vunpack.c.h.b16 %v1135
    %v1201 = vunpack.c.l.b16 %v1136
    %v1202 = vunpack.c.l.b16 %v1137
    %v1203 = vunpack.c.h.b16 %v1137
    %v1204 = vunpack.c.l.b16 %v1138
    %v1205 = vunpack.c.l.b16 %v1139
    %v1206 = vunpack.c.h.b16 %v1139
    %v1207 = vunpack.c.l.b16 %v1140
    %v1208 = vunpack.c.l.b16 %v1141
    %v1209 = vunpack.c.h.b16 %v1141
    %v1210 = vunpack.c.l.b16 %v1142
    %v1211 = vunpack.c.l.b16 %v1143
    %v1212 = vunpack.c.h.b16 %v1143
    %v1213 = vunpack.c.l.b16 %v1144
    %v1214 = vunpack.c.l.b16 %v1145
    %v1215 = vunpack.c.h.b16 %v1145
    %v1216 = vunpack.c.l.b16 %v1146
    %v1217 = vunpack.c.l.b16 %v1147
    %v1218 = vunpack.c.h.b16 %v1147
    %v1219 = vunpack.c.l.b16 %v1148
    %v1220 = vunpack.c.l.b16 %v1149
    %v1221 = vunpack.c.h.b16 %v1149
    %v1222 = vunpack.c.l.b16 %v1150
    %v1223 = vunpack.c.l.b16 %v1151
    %v1224 = vunpack.c.h.b16 %v1151
    %v1225 = vunpack.c.l.b16 %v1152
    %v1226 = vunpack.c.l.b16 %v1153
    %v1227 = vunpack.c.h.b16 %v1153
    %v1228 = vunpack.c.l.b16 %v1154
    %v1229 = vunpack.c.l.b16 %v1155
    %v1230 = vunpack.c.h.b16 %v1155
    %v1231 = vunpack.c.l.b16 %v1156
    %v1232 = vpack.c.b16 %v1190, %v1187
    %v1233 = vpack.c.b16 %v1191, %v1188
    %v1234 = vpack.c.b16 %v1192, %v1189
    %v1235 = vpack.c.b16 %v1196, %v1193
    %v1236 = vpack.c.b16 %v1197, %v1194
    %v1237 = vpack.c.b16 %v1198, %v1195
    %v1238 = vpack.c.b16 %v1202, %v1199
    %v1239 = vpack.c.b16 %v1203, %v1200
    %v1240 = vpack.c.b16 %v1204, %v1201
    %v1241 = vpack.c.b16 %v1208, %v1205
    %v1242 = vpack.c.b16 %v1209, %v1206
    %v1243 = vpack.c.b16 %v1210, %v1207
    %v1244 = vpack.c.b16 %v1214, %v1211
    %v1245 = vpack.c.b16 %v1215, %v1212
    %v1246 = vpack.c.b16 %v1216, %v1213
    %v1247 = vpack.c.b16 %v1220, %v1217
    %v1248 = vpack.c.b16 %v1221, %v1218
    %v1249 = vpack.c.b16 %v1222, %v1219
    %v1250 = vpack.c.b16 %v1226, %v1223
    %v1251 = vpack.c.b16 %v1227, %v1224
    %v1252 = vpack.c.b16 %v1228, %v1225
    %v1253 = vpack.c.b16 %v1229, %v1229
    %v1254 = vpack.c.b16 %v1230, %v1230
    %v1255 = vpack.c.b16 %v1231, %v1231
    %v1278 = vsel %vm647, %v1123, 0
    %v1281 = vsel %vm647, %v1124, 0
    %v1284 = vsel %vm647, %v1125, 0
    %v1287 = vsel %vm657, %v1253, 0
    %v1290 = vsel %vm657, %v1254, 0
    %v1293 = vsel %vm657, %v1255, 0
    %1295 = vmatprep.subr.bf16.mxu0 %v1233
    %1296 = vmatpush1.bf16.msra.mxu0 %v1232
    %1297 = vmatprep.subr.bf16.mxu0 %v1236
    %1298 = vmatpush1.bf16.msra.mxu0 %v1235
    %1299 = vmatprep.subr.bf16.mxu0 %v1239
    %1300 = vmatpush1.bf16.msra.mxu0 %v1238
    %1301 = vmatprep.subr.bf16.mxu0 %v1242
    %1302 = vmatpush1.bf16.msra.mxu0 %v1241
    %1303 = vmatprep.subr.bf16.mxu0 %v1245
    %1304 = vmatpush1.bf16.msra.mxu0 %v1244
    %1305 = vmatprep.subr.bf16.mxu0 %v1248
    %1306 = vmatpush1.bf16.msra.mxu0 %v1247
    %1307 = vmatprep.subr.bf16.mxu0 %v1251
    %1308 = vmatpush1.bf16.msra.mxu0 %v1250
    %1309 = vmatprep.subr.bf16.mxu0 %v1290
    %1310 = vmatpush1.bf16.msra.mxu0 %v1287
    %1311 = vmatprep.subr.bf16.mxu0 0
    %1312 = vmatpush1.bf16.msra.mxu0 0
    %1313 = vmatprep.subr.bf16.mxu0 0
    %1314 = vmatpush1.bf16.msra.mxu0 0
    %1315 = vmatprep.subr.bf16.mxu0 0
    %1316 = vmatpush1.bf16.msra.mxu0 0
    %1317 = vmatprep.subr.bf16.mxu0 0
    %1318 = vmatpush1.bf16.msra.mxu0 0
    %1319 = vmatprep.subr.bf16.mxu0 0
    %1320 = vmatpush1.bf16.msra.mxu0 0
    %1321 = vmatprep.subr.bf16.mxu0 0
    %1322 = vmatpush1.bf16.msra.mxu0 0
    %1323 = vmatprep.subr.bf16.mxu0 0
    %1324 = vmatpush1.bf16.msra.mxu0 0
    %1325 = vmatprep.subr.bf16.mxu0 0
    %1326 = vmatpush1.bf16.msra.mxu0 0
    %1327 = vmatprep.mubr.bf16.mxu0 0
    %1328 = vmatmul.mubr.bf16.gmra.mrb[0].mxu0 %v1278
    %v1329 = vpop.f32.mrb[0].mxu0
    %v1330 = vadd.f32 0.0, %v1329
    %v1331 = vpop.f32.mrb[0].mxu0
    %v1332 = vadd.f32 0.0, %v1331
    %v1333 = vpop.f32.mrb[0].mxu0
    %v1334 = vadd.f32 0.0, %v1333
    %v1335 = vpop.f32.mrb[0].mxu0
    %v1336 = vadd.f32 0.0, %v1335
    %1337 = vmatprep.mubr.bf16.mxu0 0
    %1338 = vmatmul.mubr.bf16.gmra.mrb[0].mxu0 %v1281
    %v1339 = vpop.f32.mrb[0].mxu0
    %v1340 = vadd.f32 0.0, %v1339
    %v1341 = vpop.f32.mrb[0].mxu0
    %v1342 = vadd.f32 0.0, %v1341
    %v1343 = vpop.f32.mrb[0].mxu0
    %v1344 = vadd.f32 0.0, %v1343
    %v1345 = vpop.f32.mrb[0].mxu0
    %v1346 = vadd.f32 0.0, %v1345
    %1347 = vmatprep.mubr.bf16.mxu0 0
    %1348 = vmatmul.mubr.bf16.gmra.mrb[0].mxu0 %v1284
    %v1349 = vpop.f32.mrb[0].mxu0
    %v1350 = vadd.f32 0.0, %v1349
    %v1351 = vpop.f32.mrb[0].mxu0
    %v1352 = vadd.f32 0.0, %v1351
    %v1353 = vpop.f32.mrb[0].mxu0
    %v1354 = vpop.f32.mrb[0].mxu0
    %1355 = vdwg.mxu0
    %1356 = vmatprep.subr.bf16.mxu0 0
    %1357 = vmatpush1.bf16.msra.mxu0 %v1234
    %1358 = vmatprep.subr.bf16.mxu0 0
    %1359 = vmatpush1.bf16.msra.mxu0 %v1237
    %1360 = vmatprep.subr.bf16.mxu0 0
    %1361 = vmatpush1.bf16.msra.mxu0 %v1240
    %1362 = vmatprep.subr.bf16.mxu0 0
    %1363 = vmatpush1.bf16.msra.mxu0 %v1243
    %1364 = vmatprep.subr.bf16.mxu0 0
    %1365 = vmatpush1.bf16.msra.mxu0 %v1246
    %1366 = vmatprep.subr.bf16.mxu0 0
    %1367 = vmatpush1.bf16.msra.mxu0 %v1249
    %1368 = vmatprep.subr.bf16.mxu0 0
    %1369 = vmatpush1.bf16.msra.mxu0 %v1252
    %1370 = vmatprep.subr.bf16.mxu0 0
    %1371 = vmatpush1.bf16.msra.mxu0 %v1293
    %1372 = vmatprep.subr.bf16.mxu0 0
    %1373 = vmatpush1.bf16.msra.mxu0 0
    %1374 = vmatprep.subr.bf16.mxu0 0
    %1375 = vmatpush1.bf16.msra.mxu0 0
    %1376 = vmatprep.subr.bf16.mxu0 0
    %1377 = vmatpush1.bf16.msra.mxu0 0
    %1378 = vmatprep.subr.bf16.mxu0 0
    %1379 = vmatpush1.bf16.msra.mxu0 0
    %1380 = vmatprep.subr.bf16.mxu0 0
    %1381 = vmatpush1.bf16.msra.mxu0 0
    %1382 = vmatprep.subr.bf16.mxu0 0
    %1383 = vmatpush1.bf16.msra.mxu0 0
    %1384 = vmatprep.subr.bf16.mxu0 0
    %1385 = vmatpush1.bf16.msra.mxu0 0
    %1386 = vmatprep.subr.bf16.mxu0 0
    %1387 = vmatpush1.bf16.msra.mxu0 0
    %1388 = vmatprep.mubr.bf16.mxu0 0
    %1389 = vmatmul.mubr.bf16.gmra.mrb[0].mxu0 %v1278
    %v1390 = vpop.f32.mrb[0].mxu0
    %v1391 = vadd.f32 0.0, %v1390
    %v1392 = vpop.f32.mrb[0].mxu0
    %v1393 = vpop.f32.mrb[0].mxu0
    %v1394 = vadd.f32 0.0, %v1393
    %v1395 = vpop.f32.mrb[0].mxu0
    %1396 = vmatprep.mubr.bf16.mxu0 0
    %1397 = vmatmul.mubr.bf16.gmra.mrb[0].mxu0 %v1281
    %v1398 = vpop.f32.mrb[0].mxu0
    %v1399 = vadd.f32 0.0, %v1398
    %v1400 = vpop.f32.mrb[0].mxu0
    %v1401 = vpop.f32.mrb[0].mxu0
    %v1402 = vadd.f32 0.0, %v1401
    %v1403 = vpop.f32.mrb[0].mxu0
    %1404 = vmatprep.mubr.bf16.mxu0 0
    %1405 = vmatmul.mubr.bf16.gmra.mrb[0].mxu0 %v1284
    %v1406 = vpop.f32.mrb[0].mxu0
    %v1407 = vadd.f32 0.0, %v1406
    %v1408 = vpop.f32.mrb[0].mxu0
    %v1409 = vpop.f32.mrb[0].mxu0
    %v1410 = vpop.f32.mrb[0].mxu0
    %1411 = vdwg.mxu0
    %v1412 = vadd.f32 %v957, %v1330
    %v1413 = vadd.f32 %v959, %v1332
    %v1414 = vadd.f32 %v1018, %v1391
    %v1415 = vadd.f32 %v961, %v1334
    %v1416 = vadd.f32 %v963, %v1336
    %v1417 = vadd.f32 %v1021, %v1394
    %v1418 = vadd.f32 %v967, %v1340
    %v1419 = vadd.f32 %v969, %v1342
    %v1420 = vadd.f32 %v1026, %v1399
    %v1421 = vadd.f32 %v971, %v1344
    %v1422 = vadd.f32 %v973, %v1346
    %v1423 = vadd.f32 %v1029, %v1402
    %v1424 = vadd.f32 %v977, %v1350
    %v1425 = vadd.f32 %v979, %v1352
    %v1426 = vadd.f32 %v1034, %v1407
    %s1427 = scalar_lea.vmem %s3, 60
    %v1428 = vld [vmem:[%s1427] sm:$0xf]
    %v1429 = vld [vmem:[%s1427 + $0x4] sm:$0xf]
    %v1430 = vld [vmem:[%s1427 + $0x8] sm:$0xf]
    %v1431 = vld [vmem:[%s1427 + $0xc] sm:$0xf]
    %v1432 = vld [vmem:[%s1427 + $0x10] sm:$0x3]
    %v1438 = vunpack.c.l.b16 %v1428
    %v1439 = vunpack.c.l.b16 %v1429
    %v1440 = vunpack.c.l.b16 %v1430
    %v1441 = vunpack.c.l.b16 %v1431
    %v1442 = vunpack.c.l.b16 %v1432
    %v1443 = vpack.c.b16 %v1439, %v1438
    %v1444 = vpack.c.b16 %v1441, %v1440
    %v1445 = vpack.c.b16 %v1442, %v1442
    %v1447 = vsel %vm310, %v1443, 0
    %v1450 = vsel %vm310, %v1444, 0
    %v1453 = vsel %vm310, %v1445, 0
    %1455 = vmatprep.subr.bf16.mxu0 0
    %1456 = vmatpush1.bf16.msra.mxu0 %v287
    %1457 = vmatprep.subr.bf16.mxu0 0
    %1458 = vmatpush1.bf16.msra.mxu0 %v288
    %1459 = vmatprep.subr.bf16.mxu0 0
    %1460 = vmatpush1.bf16.msra.mxu0 %v289
    %1461 = vmatprep.subr.bf16.mxu0 0
    %1462 = vmatpush1.bf16.msra.mxu0 %v290
    %1463 = vmatprep.subr.bf16.mxu0 0
    %1464 = vmatpush1.bf16.msra.mxu0 %v291
    %1465 = vmatprep.subr.bf16.mxu0 0
    %1466 = vmatpush1.bf16.msra.mxu0 0
    %1467 = vmatprep.subr.bf16.mxu0 0
    %1468 = vmatpush1.bf16.msra.mxu0 0
    %1469 = vmatprep.subr.bf16.mxu0 0
    %1470 = vmatpush1.bf16.msra.mxu0 0
    %1471 = vmatprep.subr.bf16.mxu0 0
    %1472 = vmatpush1.bf16.msra.mxu0 0
    %1473 = vmatprep.subr.bf16.mxu0 0
    %1474 = vmatpush1.bf16.msra.mxu0 0
    %1475 = vmatprep.subr.bf16.mxu0 0
    %1476 = vmatpush1.bf16.msra.mxu0 0
    %1477 = vmatprep.subr.bf16.mxu0 0
    %1478 = vmatpush1.bf16.msra.mxu0 0
    %1479 = vmatprep.subr.bf16.mxu0 0
    %1480 = vmatpush1.bf16.msra.mxu0 0
    %1481 = vmatprep.subr.bf16.mxu0 0
    %1482 = vmatpush1.bf16.msra.mxu0 0
    %1483 = vmatprep.subr.bf16.mxu0 0
    %1484 = vmatpush1.bf16.msra.mxu0 0
    %1485 = vmatprep.subr.bf16.mxu0 0
    %1486 = vmatpush1.bf16.msra.mxu0 0
    %1487 = vmatprep.mubr.bf16.mxu0 0
    %1488 = vmatmul.mubr.bf16.gmra.mrb[0].mxu0 %v1447
    %v1489 = vpop.f32.mrb[0].mxu0
    %v1490 = vadd.f32 0.0, %v1489
    %v1491 = vpop.f32.mrb[0].mxu0
    %v1492 = vpop.f32.mrb[0].mxu0
    %v1493 = vadd.f32 0.0, %v1492
    %v1494 = vpop.f32.mrb[0].mxu0
    %1495 = vmatprep.mubr.bf16.mxu0 0
    %1496 = vmatmul.mubr.bf16.gmra.mrb[0].mxu0 %v1450
    %v1497 = vpop.f32.mrb[0].mxu0
    %v1498 = vadd.f32 0.0, %v1497
    %v1499 = vpop.f32.mrb[0].mxu0
    %v1500 = vpop.f32.mrb[0].mxu0
    %v1501 = vadd.f32 0.0, %v1500
    %v1502 = vpop.f32.mrb[0].mxu0
    %1503 = vmatprep.mubr.bf16.mxu0 0
    %1504 = vmatmul.mubr.bf16.gmra.mrb[0].mxu0 %v1453
    %v1505 = vpop.f32.mrb[0].mxu0
    %v1506 = vadd.f32 0.0, %v1505
    %v1507 = vpop.f32.mrb[0].mxu0
    %v1508 = vpop.f32.mrb[0].mxu0
    %v1509 = vpop.f32.mrb[0].mxu0
    %1510 = vdwg.mxu0
    %v1511 = vpack.c.bf16 %v1493, %v1490
    %v1512 = vpack.c.bf16 %v1501, %v1498
    %v1513 = vpack.c.bf16 %v1506, %v1506
    %s1514 = scalar_lea.vmem %s5, 540
    %v1515 = vld [vmem:[%s1514] sm:$0xff]
    %v1516 = vld [vmem:[%s1514 + $0x8] sm:$0xf]
    %v1517 = vld [vmem:[%s1514 + $0xc] sm:$0xff]
    %v1518 = vld [vmem:[%s1514 + $0x14] sm:$0xf]
    %v1519 = vld [vmem:[%s1514 + $0x18] sm:$0xff]
    %v1520 = vld [vmem:[%s1514 + $0x20] sm:$0xf]
    %v1521 = vld [vmem:[%s1514 + $0x24] sm:$0xff]
    %v1522 = vld [vmem:[%s1514 + $0x2c] sm:$0xf]
    %v1523 = vld [vmem:[%s1514 + $0x30] sm:$0xff]
    %v1524 = vld [vmem:[%s1514 + $0x38] sm:$0xf]
    %v1525 = vld [vmem:[%s1514 + $0x3c] sm:$0xff]
    %v1526 = vld [vmem:[%s1514 + $0x44] sm:$0xf]
    %v1527 = vld [vmem:[%s1514 + $0x48] sm:$0xff]
    %v1528 = vld [vmem:[%s1514 + $0x50] sm:$0xf]
    %v1529 = vld [vmem:[%s1514 + $0x54] sm:$0xff]
    %v1530 = vld [vmem:[%s1514 + $0x5c] sm:$0xf]
    %v1531 = vld [vmem:[%s1514 + $0x60] sm:$0xff]
    %v1532 = vld [vmem:[%s1514 + $0x68] sm:$0xf]
    %v1533 = vld [vmem:[%s1514 + $0x6c] sm:$0xff]
    %v1534 = vld [vmem:[%s1514 + $0x74] sm:$0xf]
    %v1535 = vld [vmem:[%s1514 + $0x78] sm:$0xff]
    %v1536 = vld [vmem:[%s1514 + $0x80] sm:$0xf]
    %v1537 = vld [vmem:[%s1514 + $0x84] sm:$0xff]
    %v1538 = vld [vmem:[%s1514 + $0x8c] sm:$0xf]
    %v1539 = vld [vmem:[%s1514 + $0x90] sm:$0xff]
    %v1540 = vld [vmem:[%s1514 + $0x98] sm:$0xf]
    %v1541 = vld [vmem:[%s1514 + $0x9c] sm:$0xff]
    %v1542 = vld [vmem:[%s1514 + $0xa4] sm:$0xf]
    %v1543 = vld [vmem:[%s1514 + $0xa8] sm:$0xff]
    %v1544 = vld [vmem:[%s1514 + $0xb0] sm:$0xf]
    %v1575 = vunpack.c.l.b16 %v1515
    %v1576 = vunpack.c.h.b16 %v1515
    %v1577 = vunpack.c.l.b16 %v1516
    %v1578 = vunpack.c.l.b16 %v1517
    %v1579 = vunpack.c.h.b16 %v1517
    %v1580 = vunpack.c.l.b16 %v1518
    %v1581 = vunpack.c.l.b16 %v1519
    %v1582 = vunpack.c.h.b16 %v1519
    %v1583 = vunpack.c.l.b16 %v1520
    %v1584 = vunpack.c.l.b16 %v1521
    %v1585 = vunpack.c.h.b16 %v1521
    %v1586 = vunpack.c.l.b16 %v1522
    %v1587 = vunpack.c.l.b16 %v1523
    %v1588 = vunpack.c.h.b16 %v1523
    %v1589 = vunpack.c.l.b16 %v1524
    %v1590 = vunpack.c.l.b16 %v1525
    %v1591 = vunpack.c.h.b16 %v1525
    %v1592 = vunpack.c.l.b16 %v1526
    %v1593 = vunpack.c.l.b16 %v1527
    %v1594 = vunpack.c.h.b16 %v1527
    %v1595 = vunpack.c.l.b16 %v1528
    %v1596 = vunpack.c.l.b16 %v1529
    %v1597 = vunpack.c.h.b16 %v1529
    %v1598 = vunpack.c.l.b16 %v1530
    %v1599 = vunpack.c.l.b16 %v1531
    %v1600 = vunpack.c.h.b16 %v1531
    %v1601 = vunpack.c.l.b16 %v1532
    %v1602 = vunpack.c.l.b16 %v1533
    %v1603 = vunpack.c.h.b16 %v1533
    %v1604 = vunpack.c.l.b16 %v1534
    %v1605 = vunpack.c.l.b16 %v1535
    %v1606 = vunpack.c.h.b16 %v1535
    %v1607 = vunpack.c.l.b16 %v1536
    %v1608 = vunpack.c.l.b16 %v1537
    %v1609 = vunpack.c.h.b16 %v1537
    %v1610 = vunpack.c.l.b16 %v1538
    %v1611 = vunpack.c.l.b16 %v1539
    %v1612 = vunpack.c.h.b16 %v1539
    %v1613 = vunpack.c.l.b16 %v1540
    %v1614 = vunpack.c.l.b16 %v1541
    %v1615 = vunpack.c.h.b16 %v1541
    %v1616 = vunpack.c.l.b16 %v1542
    %v1617 = vunpack.c.l.b16 %v1543
    %v1618 = vunpack.c.h.b16 %v1543
    %v1619 = vunpack.c.l.b16 %v1544
    %v1620 = vpack.c.b16 %v1578, %v1575
    %v1621 = vpack.c.b16 %v1579, %v1576
    %v1622 = vpack.c.b16 %v1580, %v1577
    %v1623 = vpack.c.b16 %v1584, %v1581
    %v1624 = vpack.c.b16 %v1585, %v1582
    %v1625 = vpack.c.b16 %v1586, %v1583
    %v1626 = vpack.c.b16 %v1590, %v1587
    %v1627 = vpack.c.b16 %v1591, %v1588
    %v1628 = vpack.c.b16 %v1592, %v1589
    %v1629 = vpack.c.b16 %v1596, %v1593
    %v1630 = vpack.c.b16 %v1597, %v1594
    %v1631 = vpack.c.b16 %v1598, %v1595
    %v1632 = vpack.c.b16 %v1602, %v1599
    %v1633 = vpack.c.b16 %v1603, %v1600
    %v1634 = vpack.c.b16 %v1604, %v1601
    %v1635 = vpack.c.b16 %v1608, %v1605
    %v1636 = vpack.c.b16 %v1609, %v1606
    %v1637 = vpack.c.b16 %v1610, %v1607
    %v1638 = vpack.c.b16 %v1614, %v1611
    %v1639 = vpack.c.b16 %v1615, %v1612
    %v1640 = vpack.c.b16 %v1616, %v1613
    %v1641 = vpack.c.b16 %v1617, %v1617
    %v1642 = vpack.c.b16 %v1618, %v1618
    %v1643 = vpack.c.b16 %v1619, %v1619
    %v1666 = vsel %vm647, %v1511, 0
    %v1669 = vsel %vm647, %v1512, 0
    %v1672 = vsel %vm647, %v1513, 0
    %v1675 = vsel %vm657, %v1641, 0
    %v1678 = vsel %vm657, %v1642, 0
    %v1681 = vsel %vm657, %v1643, 0
    %1683 = vmatprep.subr.bf16.mxu0 %v1621
    %1684 = vmatpush1.bf16.msra.mxu0 %v1620
    %1685 = vmatprep.subr.bf16.mxu0 %v1624
    %1686 = vmatpush1.bf16.msra.mxu0 %v1623
    %1687 = vmatprep.subr.bf16.mxu0 %v1627
    %1688 = vmatpush1.bf16.msra.mxu0 %v1626
    %1689 = vmatprep.subr.bf16.mxu0 %v1630
    %1690 = vmatpush1.bf16.msra.mxu0 %v1629
    %1691 = vmatprep.subr.bf16.mxu0 %v1633
    %1692 = vmatpush1.bf16.msra.mxu0 %v1632
    %1693 = vmatprep.subr.bf16.mxu0 %v1636
    %1694 = vmatpush1.bf16.msra.mxu0 %v1635
    %1695 = vmatprep.subr.bf16.mxu0 %v1639
    %1696 = vmatpush1.bf16.msra.mxu0 %v1638
    %1697 = vmatprep.subr.bf16.mxu0 %v1678
    %1698 = vmatpush1.bf16.msra.mxu0 %v1675
    %1699 = vmatprep.subr.bf16.mxu0 0
    %1700 = vmatpush1.bf16.msra.mxu0 0
    %1701 = vmatprep.subr.bf16.mxu0 0
    %1702 = vmatpush1.bf16.msra.mxu0 0
    %1703 = vmatprep.subr.bf16.mxu0 0
    %1704 = vmatpush1.bf16.msra.mxu0 0
    %1705 = vmatprep.subr.bf16.mxu0 0
    %1706 = vmatpush1.bf16.msra.mxu0 0
    %1707 = vmatprep.subr.bf16.mxu0 0
    %1708 = vmatpush1.bf16.msra.mxu0 0
    %1709 = vmatprep.subr.bf16.mxu0 0
    %1710 = vmatpush1.bf16.msra.mxu0 0
    %1711 = vmatprep.subr.bf16.mxu0 0
    %1712 = vmatpush1.bf16.msra.mxu0 0
    %1713 = vmatprep.subr.bf16.mxu0 0
    %1714 = vmatpush1.bf16.msra.mxu0 0
    %1715 = vmatprep.mubr.bf16.mxu0 0
    %1716 = vmatmul.mubr.bf16.gmra.mrb[0].mxu0 %v1666
    %v1717 = vpop.f32.mrb[0].mxu0
    %v1718 = vadd.f32 0.0, %v1717
    %v1719 = vpop.f32.mrb[0].mxu0
    %v1720 = vadd.f32 0.0, %v1719
    %v1721 = vpop.f32.mrb[0].mxu0
    %v1722 = vadd.f32 0.0, %v1721
    %v1723 = vpop.f32.mrb[0].mxu0
    %v1724 = vadd.f32 0.0, %v1723
    %1725 = vmatprep.mubr.bf16.mxu0 0
    %1726 = vmatmul.mubr.bf16.gmra.mrb[0].mxu0 %v1669
    %v1727 = vpop.f32.mrb[0].mxu0
    %v1728 = vadd.f32 0.0, %v1727
    %v1729 = vpop.f32.mrb[0].mxu0
    %v1730 = vadd.f32 0.0, %v1729
    %v1731 = vpop.f32.mrb[0].mxu0
    %v1732 = vadd.f32 0.0, %v1731
    %v1733 = vpop.f32.mrb[0].mxu0
    %v1734 = vadd.f32 0.0, %v1733
    %1735 = vmatprep.mubr.bf16.mxu0 0
    %1736 = vmatmul.mubr.bf16.gmra.mrb[0].mxu0 %v1672
    %v1737 = vpop.f32.mrb[0].mxu0
    %v1738 = vadd.f32 0.0, %v1737
    %v1739 = vpop.f32.mrb[0].mxu0
    %v1740 = vadd.f32 0.0, %v1739
    %v1741 = vpop.f32.mrb[0].mxu0
    %v1742 = vpop.f32.mrb[0].mxu0
    %1743 = vdwg.mxu0
    %1744 = vmatprep.subr.bf16.mxu0 0
    %1745 = vmatpush1.bf16.msra.mxu0 %v1622
    %1746 = vmatprep.subr.bf16.mxu0 0
    %1747 = vmatpush1.bf16.msra.mxu0 %v1625
    %1748 = vmatprep.subr.bf16.mxu0 0
    %1749 = vmatpush1.bf16.msra.mxu0 %v1628
    %1750 = vmatprep.subr.bf16.mxu0 0
    %1751 = vmatpush1.bf16.msra.mxu0 %v1631
    %1752 = vmatprep.subr.bf16.mxu0 0
    %1753 = vmatpush1.bf16.msra.mxu0 %v1634
    %1754 = vmatprep.subr.bf16.mxu0 0
    %1755 = vmatpush1.bf16.msra.mxu0 %v1637
    %1756 = vmatprep.subr.bf16.mxu0 0
    %1757 = vmatpush1.bf16.msra.mxu0 %v1640
    %1758 = vmatprep.subr.bf16.mxu0 0
    %1759 = vmatpush1.bf16.msra.mxu0 %v1681
    %1760 = vmatprep.subr.bf16.mxu0 0
    %1761 = vmatpush1.bf16.msra.mxu0 0
    %1762 = vmatprep.subr.bf16.mxu0 0
    %1763 = vmatpush1.bf16.msra.mxu0 0
    %1764 = vmatprep.subr.bf16.mxu0 0
    %1765 = vmatpush1.bf16.msra.mxu0 0
    %1766 = vmatprep.subr.bf16.mxu0 0
    %1767 = vmatpush1.bf16.msra.mxu0 0
    %1768 = vmatprep.subr.bf16.mxu0 0
    %1769 = vmatpush1.bf16.msra.mxu0 0
    %1770 = vmatprep.subr.bf16.mxu0 0
    %1771 = vmatpush1.bf16.msra.mxu0 0
    %1772 = vmatprep.subr.bf16.mxu0 0
    %1773 = vmatpush1.bf16.msra.mxu0 0
    %1774 = vmatprep.subr.bf16.mxu0 0
    %1775 = vmatpush1.bf16.msra.mxu0 0
    %1776 = vmatprep.mubr.bf16.mxu0 0
    %1777 = vmatmul.mubr.bf16.gmra.mrb[0].mxu0 %v1666
    %v1778 = vpop.f32.mrb[0].mxu0
    %v1779 = vadd.f32 0.0, %v1778
    %v1780 = vpop.f32.mrb[0].mxu0
    %v1781 = vpop.f32.mrb[0].mxu0
    %v1782 = vadd.f32 0.0, %v1781
    %v1783 = vpop.f32.mrb[0].mxu0
    %1784 = vmatprep.mubr.bf16.mxu0 0
    %1785 = vmatmul.mubr.bf16.gmra.mrb[0].mxu0 %v1669
    %v1786 = vpop.f32.mrb[0].mxu0
    %v1787 = vadd.f32 0.0, %v1786
    %v1788 = vpop.f32.mrb[0].mxu0
    %v1789 = vpop.f32.mrb[0].mxu0
    %v1790 = vadd.f32 0.0, %v1789
    %v1791 = vpop.f32.mrb[0].mxu0
    %1792 = vmatprep.mubr.bf16.mxu0 0
    %1793 = vmatmul.mubr.bf16.gmra.mrb[0].mxu0 %v1672
    %v1794 = vpop.f32.mrb[0].mxu0
    %v1795 = vadd.f32 0.0, %v1794
    %v1796 = vpop.f32.mrb[0].mxu0
    %v1797 = vpop.f32.mrb[0].mxu0
    %v1798 = vpop.f32.mrb[0].mxu0
    %1799 = vdwg.mxu0
    %v1800 = vadd.f32 %v1412, %v1718
    %v1801 = vadd.f32 %v1413, %v1720
    %v1802 = vadd.f32 %v1414, %v1779
    %v1803 = vadd.f32 %v1415, %v1722
    %v1804 = vadd.f32 %v1416, %v1724
    %v1805 = vadd.f32 %v1417, %v1782
    %v1806 = vadd.f32 %v1418, %v1728
    %v1807 = vadd.f32 %v1419, %v1730
    %v1808 = vadd.f32 %v1420, %v1787
    %v1809 = vadd.f32 %v1421, %v1732
    %v1810 = vadd.f32 %v1422, %v1734
    %v1811 = vadd.f32 %v1423, %v1790
    %v1812 = vadd.f32 %v1424, %v1738
    %v1813 = vadd.f32 %v1425, %v1740
    %v1814 = vadd.f32 %v1426, %v1795
    %s1815 = scalar_lea.vmem %s3, 80
    %v1816 = vld [vmem:[%s1815] sm:$0xf]
    %v1817 = vld [vmem:[%s1815 + $0x4] sm:$0xf]
    %v1818 = vld [vmem:[%s1815 + $0x8] sm:$0xf]
    %v1819 = vld [vmem:[%s1815 + $0xc] sm:$0xf]
    %v1820 = vld [vmem:[%s1815 + $0x10] sm:$0x3]
    %v1826 = vunpack.c.l.b16 %v1816
    %v1827 = vunpack.c.l.b16 %v1817
    %v1828 = vunpack.c.l.b16 %v1818
    %v1829 = vunpack.c.l.b16 %v1819
    %v1830 = vunpack.c.l.b16 %v1820
    %v1831 = vpack.c.b16 %v1827, %v1826
    %v1832 = vpack.c.b16 %v1829, %v1828
    %v1833 = vpack.c.b16 %v1830, %v1830
    %v1835 = vsel %vm310, %v1831, 0
    %v1838 = vsel %vm310, %v1832, 0
    %v1841 = vsel %vm310, %v1833, 0
    %1843 = vmatprep.subr.bf16.mxu0 0
    %1844 = vmatpush1.bf16.msra.mxu0 %v287
    %1845 = vmatprep.subr.bf16.mxu0 0
    %1846 = vmatpush1.bf16.msra.mxu0 %v288
    %1847 = vmatprep.subr.bf16.mxu0 0
    %1848 = vmatpush1.bf16.msra.mxu0 %v289
    %1849 = vmatprep.subr.bf16.mxu0 0
    %1850 = vmatpush1.bf16.msra.mxu0 %v290
    %1851 = vmatprep.subr.bf16.mxu0 0
    %1852 = vmatpush1.bf16.msra.mxu0 %v291
    %1853 = vmatprep.subr.bf16.mxu0 0
    %1854 = vmatpush1.bf16.msra.mxu0 0
    %1855 = vmatprep.subr.bf16.mxu0 0
    %1856 = vmatpush1.bf16.msra.mxu0 0
    %1857 = vmatprep.subr.bf16.mxu0 0
    %1858 = vmatpush1.bf16.msra.mxu0 0
    %1859 = vmatprep.subr.bf16.mxu0 0
    %1860 = vmatpush1.bf16.msra.mxu0 0
    %1861 = vmatprep.subr.bf16.mxu0 0
    %1862 = vmatpush1.bf16.msra.mxu0 0
    %1863 = vmatprep.subr.bf16.mxu0 0
    %1864 = vmatpush1.bf16.msra.mxu0 0
    %1865 = vmatprep.subr.bf16.mxu0 0
    %1866 = vmatpush1.bf16.msra.mxu0 0
    %1867 = vmatprep.subr.bf16.mxu0 0
    %1868 = vmatpush1.bf16.msra.mxu0 0
    %1869 = vmatprep.subr.bf16.mxu0 0
    %1870 = vmatpush1.bf16.msra.mxu0 0
    %1871 = vmatprep.subr.bf16.mxu0 0
    %1872 = vmatpush1.bf16.msra.mxu0 0
    %1873 = vmatprep.subr.bf16.mxu0 0
    %1874 = vmatpush1.bf16.msra.mxu0 0
    %1875 = vmatprep.mubr.bf16.mxu0 0
    %1876 = vmatmul.mubr.bf16.gmra.mrb[0].mxu0 %v1835
    %v1877 = vpop.f32.mrb[0].mxu0
    %v1878 = vadd.f32 0.0, %v1877
    %v1879 = vpop.f32.mrb[0].mxu0
    %v1880 = vpop.f32.mrb[0].mxu0
    %v1881 = vadd.f32 0.0, %v1880
    %v1882 = vpop.f32.mrb[0].mxu0
    %1883 = vmatprep.mubr.bf16.mxu0 0
    %1884 = vmatmul.mubr.bf16.gmra.mrb[0].mxu0 %v1838
    %v1885 = vpop.f32.mrb[0].mxu0
    %v1886 = vadd.f32 0.0, %v1885
    %v1887 = vpop.f32.mrb[0].mxu0
    %v1888 = vpop.f32.mrb[0].mxu0
    %v1889 = vadd.f32 0.0, %v1888
    %v1890 = vpop.f32.mrb[0].mxu0
    %1891 = vmatprep.mubr.bf16.mxu0 0
    %1892 = vmatmul.mubr.bf16.gmra.mrb[0].mxu0 %v1841
    %v1893 = vpop.f32.mrb[0].mxu0
    %v1894 = vadd.f32 0.0, %v1893
    %v1895 = vpop.f32.mrb[0].mxu0
    %v1896 = vpop.f32.mrb[0].mxu0
    %v1897 = vpop.f32.mrb[0].mxu0
    %1898 = vdwg.mxu0
    %v1899 = vpack.c.bf16 %v1881, %v1878
    %v1900 = vpack.c.bf16 %v1889, %v1886
    %v1901 = vpack.c.bf16 %v1894, %v1894
    %s1902 = scalar_lea.vmem %s5, 720
    %v1903 = vld [vmem:[%s1902] sm:$0xff]
    %v1904 = vld [vmem:[%s1902 + $0x8] sm:$0xf]
    %v1905 = vld [vmem:[%s1902 + $0xc] sm:$0xff]
    %v1906 = vld [vmem:[%s1902 + $0x14] sm:$0xf]
    %v1907 = vld [vmem:[%s1902 + $0x18] sm:$0xff]
    %v1908 = vld [vmem:[%s1902 + $0x20] sm:$0xf]
    %v1909 = vld [vmem:[%s1902 + $0x24] sm:$0xff]
    %v1910 = vld [vmem:[%s1902 + $0x2c] sm:$0xf]
    %v1911 = vld [vmem:[%s1902 + $0x30] sm:$0xff]
    %v1912 = vld [vmem:[%s1902 + $0x38] sm:$0xf]
    %v1913 = vld [vmem:[%s1902 + $0x3c] sm:$0xff]
    %v1914 = vld [vmem:[%s1902 + $0x44] sm:$0xf]
    %v1915 = vld [vmem:[%s1902 + $0x48] sm:$0xff]
    %v1916 = vld [vmem:[%s1902 + $0x50] sm:$0xf]
    %v1917 = vld [vmem:[%s1902 + $0x54] sm:$0xff]
    %v1918 = vld [vmem:[%s1902 + $0x5c] sm:$0xf]
    %v1919 = vld [vmem:[%s1902 + $0x60] sm:$0xff]
    %v1920 = vld [vmem:[%s1902 + $0x68] sm:$0xf]
    %v1921 = vld [vmem:[%s1902 + $0x6c] sm:$0xff]
    %v1922 = vld [vmem:[%s1902 + $0x74] sm:$0xf]
    %v1923 = vld [vmem:[%s1902 + $0x78] sm:$0xff]
    %v1924 = vld [vmem:[%s1902 + $0x80] sm:$0xf]
    %v1925 = vld [vmem:[%s1902 + $0x84] sm:$0xff]
    %v1926 = vld [vmem:[%s1902 + $0x8c] sm:$0xf]
    %v1927 = vld [vmem:[%s1902 + $0x90] sm:$0xff]
    %v1928 = vld [vmem:[%s1902 + $0x98] sm:$0xf]
    %v1929 = vld [vmem:[%s1902 + $0x9c] sm:$0xff]
    %v1930 = vld [vmem:[%s1902 + $0xa4] sm:$0xf]
    %v1931 = vld [vmem:[%s1902 + $0xa8] sm:$0xff]
    %v1932 = vld [vmem:[%s1902 + $0xb0] sm:$0xf]
    %v1963 = vunpack.c.l.b16 %v1903
    %v1964 = vunpack.c.h.b16 %v1903
    %v1965 = vunpack.c.l.b16 %v1904
    %v1966 = vunpack.c.l.b16 %v1905
    %v1967 = vunpack.c.h.b16 %v1905
    %v1968 = vunpack.c.l.b16 %v1906
    %v1969 = vunpack.c.l.b16 %v1907
    %v1970 = vunpack.c.h.b16 %v1907
    %v1971 = vunpack.c.l.b16 %v1908
    %v1972 = vunpack.c.l.b16 %v1909
    %v1973 = vunpack.c.h.b16 %v1909
    %v1974 = vunpack.c.l.b16 %v1910
    %v1975 = vunpack.c.l.b16 %v1911
    %v1976 = vunpack.c.h.b16 %v1911
    %v1977 = vunpack.c.l.b16 %v1912
    %v1978 = vunpack.c.l.b16 %v1913
    %v1979 = vunpack.c.h.b16 %v1913
    %v1980 = vunpack.c.l.b16 %v1914
    %v1981 = vunpack.c.l.b16 %v1915
    %v1982 = vunpack.c.h.b16 %v1915
    %v1983 = vunpack.c.l.b16 %v1916
    %v1984 = vunpack.c.l.b16 %v1917
    %v1985 = vunpack.c.h.b16 %v1917
    %v1986 = vunpack.c.l.b16 %v1918
    %v1987 = vunpack.c.l.b16 %v1919
    %v1988 = vunpack.c.h.b16 %v1919
    %v1989 = vunpack.c.l.b16 %v1920
    %v1990 = vunpack.c.l.b16 %v1921
    %v1991 = vunpack.c.h.b16 %v1921
    %v1992 = vunpack.c.l.b16 %v1922
    %v1993 = vunpack.c.l.b16 %v1923
    %v1994 = vunpack.c.h.b16 %v1923
    %v1995 = vunpack.c.l.b16 %v1924
    %v1996 = vunpack.c.l.b16 %v1925
    %v1997 = vunpack.c.h.b16 %v1925
    %v1998 = vunpack.c.l.b16 %v1926
    %v1999 = vunpack.c.l.b16 %v1927
    %v2000 = vunpack.c.h.b16 %v1927
    %v2001 = vunpack.c.l.b16 %v1928
    %v2002 = vunpack.c.l.b16 %v1929
    %v2003 = vunpack.c.h.b16 %v1929
    %v2004 = vunpack.c.l.b16 %v1930
    %v2005 = vunpack.c.l.b16 %v1931
    %v2006 = vunpack.c.h.b16 %v1931
    %v2007 = vunpack.c.l.b16 %v1932
    %v2008 = vpack.c.b16 %v1966, %v1963
    %v2009 = vpack.c.b16 %v1967, %v1964
    %v2010 = vpack.c.b16 %v1968, %v1965
    %v2011 = vpack.c.b16 %v1972, %v1969
    %v2012 = vpack.c.b16 %v1973, %v1970
    %v2013 = vpack.c.b16 %v1974, %v1971
    %v2014 = vpack.c.b16 %v1978, %v1975
    %v2015 = vpack.c.b16 %v1979, %v1976
    %v2016 = vpack.c.b16 %v1980, %v1977
    %v2017 = vpack.c.b16 %v1984, %v1981
    %v2018 = vpack.c.b16 %v1985, %v1982
    %v2019 = vpack.c.b16 %v1986, %v1983
    %v2020 = vpack.c.b16 %v1990, %v1987
    %v2021 = vpack.c.b16 %v1991, %v1988
    %v2022 = vpack.c.b16 %v1992, %v1989
    %v2023 = vpack.c.b16 %v1996, %v1993
    %v2024 = vpack.c.b16 %v1997, %v1994
    %v2025 = vpack.c.b16 %v1998, %v1995
    %v2026 = vpack.c.b16 %v2002, %v1999
    %v2027 = vpack.c.b16 %v2003, %v2000
    %v2028 = vpack.c.b16 %v2004, %v2001
    %v2029 = vpack.c.b16 %v2005, %v2005
    %v2030 = vpack.c.b16 %v2006, %v2006
    %v2031 = vpack.c.b16 %v2007, %v2007
    %v2054 = vsel %vm647, %v1899, 0
    %v2057 = vsel %vm647, %v1900, 0
    %v2060 = vsel %vm647, %v1901, 0
    %v2063 = vsel %vm657, %v2029, 0
    %v2066 = vsel %vm657, %v2030, 0
    %v2069 = vsel %vm657, %v2031, 0
    %2071 = vmatprep.subr.bf16.mxu0 %v2009
    %2072 = vmatpush1.bf16.msra.mxu0 %v2008
    %2073 = vmatprep.subr.bf16.mxu0 %v2012
    %2074 = vmatpush1.bf16.msra.mxu0 %v2011
    %2075 = vmatprep.subr.bf16.mxu0 %v2015
    %2076 = vmatpush1.bf16.msra.mxu0 %v2014
    %2077 = vmatprep.subr.bf16.mxu0 %v2018
    %2078 = vmatpush1.bf16.msra.mxu0 %v2017
    %2079 = vmatprep.subr.bf16.mxu0 %v2021
    %2080 = vmatpush1.bf16.msra.mxu0 %v2020
    %2081 = vmatprep.subr.bf16.mxu0 %v2024
    %2082 = vmatpush1.bf16.msra.mxu0 %v2023
    %2083 = vmatprep.subr.bf16.mxu0 %v2027
    %2084 = vmatpush1.bf16.msra.mxu0 %v2026
    %2085 = vmatprep.subr.bf16.mxu0 %v2066
    %2086 = vmatpush1.bf16.msra.mxu0 %v2063
    %2087 = vmatprep.subr.bf16.mxu0 0
    %2088 = vmatpush1.bf16.msra.mxu0 0
    %2089 = vmatprep.subr.bf16.mxu0 0
    %2090 = vmatpush1.bf16.msra.mxu0 0
    %2091 = vmatprep.subr.bf16.mxu0 0
    %2092 = vmatpush1.bf16.msra.mxu0 0
    %2093 = vmatprep.subr.bf16.mxu0 0
    %2094 = vmatpush1.bf16.msra.mxu0 0
    %2095 = vmatprep.subr.bf16.mxu0 0
    %2096 = vmatpush1.bf16.msra.mxu0 0
    %2097 = vmatprep.subr.bf16.mxu0 0
    %2098 = vmatpush1.bf16.msra.mxu0 0
    %2099 = vmatprep.subr.bf16.mxu0 0
    %2100 = vmatpush1.bf16.msra.mxu0 0
    %2101 = vmatprep.subr.bf16.mxu0 0
    %2102 = vmatpush1.bf16.msra.mxu0 0
    %2103 = vmatprep.mubr.bf16.mxu0 0
    %2104 = vmatmul.mubr.bf16.gmra.mrb[0].mxu0 %v2054
    %v2105 = vpop.f32.mrb[0].mxu0
    %v2106 = vadd.f32 0.0, %v2105
    %v2107 = vpop.f32.mrb[0].mxu0
    %v2108 = vadd.f32 0.0, %v2107
    %v2109 = vpop.f32.mrb[0].mxu0
    %v2110 = vadd.f32 0.0, %v2109
    %v2111 = vpop.f32.mrb[0].mxu0
    %v2112 = vadd.f32 0.0, %v2111
    %2113 = vmatprep.mubr.bf16.mxu0 0
    %2114 = vmatmul.mubr.bf16.gmra.mrb[0].mxu0 %v2057
    %v2115 = vpop.f32.mrb[0].mxu0
    %v2116 = vadd.f32 0.0, %v2115
    %v2117 = vpop.f32.mrb[0].mxu0
    %v2118 = vadd.f32 0.0, %v2117
    %v2119 = vpop.f32.mrb[0].mxu0
    %v2120 = vadd.f32 0.0, %v2119
    %v2121 = vpop.f32.mrb[0].mxu0
    %v2122 = vadd.f32 0.0, %v2121
    %2123 = vmatprep.mubr.bf16.mxu0 0
    %2124 = vmatmul.mubr.bf16.gmra.mrb[0].mxu0 %v2060
    %v2125 = vpop.f32.mrb[0].mxu0
    %v2126 = vadd.f32 0.0, %v2125
    %v2127 = vpop.f32.mrb[0].mxu0
    %v2128 = vadd.f32 0.0, %v2127
    %v2129 = vpop.f32.mrb[0].mxu0
    %v2130 = vpop.f32.mrb[0].mxu0
    %2131 = vdwg.mxu0
    %2132 = vmatprep.subr.bf16.mxu0 0
    %2133 = vmatpush1.bf16.msra.mxu0 %v2010
    %2134 = vmatprep.subr.bf16.mxu0 0
    %2135 = vmatpush1.bf16.msra.mxu0 %v2013
    %2136 = vmatprep.subr.bf16.mxu0 0
    %2137 = vmatpush1.bf16.msra.mxu0 %v2016
    %2138 = vmatprep.subr.bf16.mxu0 0
    %2139 = vmatpush1.bf16.msra.mxu0 %v2019
    %2140 = vmatprep.subr.bf16.mxu0 0
    %2141 = vmatpush1.bf16.msra.mxu0 %v2022
    %2142 = vmatprep.subr.bf16.mxu0 0
    %2143 = vmatpush1.bf16.msra.mxu0 %v2025
    %2144 = vmatprep.subr.bf16.mxu0 0
    %2145 = vmatpush1.bf16.msra.mxu0 %v2028
    %2146 = vmatprep.subr.bf16.mxu0 0
    %2147 = vmatpush1.bf16.msra.mxu0 %v2069
    %2148 = vmatprep.subr.bf16.mxu0 0
    %2149 = vmatpush1.bf16.msra.mxu0 0
    %2150 = vmatprep.subr.bf16.mxu0 0
    %2151 = vmatpush1.bf16.msra.mxu0 0
    %2152 = vmatprep.subr.bf16.mxu0 0
    %2153 = vmatpush1.bf16.msra.mxu0 0
    %2154 = vmatprep.subr.bf16.mxu0 0
    %2155 = vmatpush1.bf16.msra.mxu0 0
    %2156 = vmatprep.subr.bf16.mxu0 0
    %2157 = vmatpush1.bf16.msra.mxu0 0
    %2158 = vmatprep.subr.bf16.mxu0 0
    %2159 = vmatpush1.bf16.msra.mxu0 0
    %2160 = vmatprep.subr.bf16.mxu0 0
    %2161 = vmatpush1.bf16.msra.mxu0 0
    %2162 = vmatprep.subr.bf16.mxu0 0
    %2163 = vmatpush1.bf16.msra.mxu0 0
    %2164 = vmatprep.mubr.bf16.mxu0 0
    %2165 = vmatmul.mubr.bf16.gmra.mrb[0].mxu0 %v2054
    %v2166 = vpop.f32.mrb[0].mxu0
    %v2167 = vadd.f32 0.0, %v2166
    %v2168 = vpop.f32.mrb[0].mxu0
    %v2169 = vpop.f32.mrb[0].mxu0
    %v2170 = vadd.f32 0.0, %v2169
    %v2171 = vpop.f32.mrb[0].mxu0
    %2172 = vmatprep.mubr.bf16.mxu0 0
    %2173 = vmatmul.mubr.bf16.gmra.mrb[0].mxu0 %v2057
    %v2174 = vpop.f32.mrb[0].mxu0
    %v2175 = vadd.f32 0.0, %v2174
    %v2176 = vpop.f32.mrb[0].mxu0
    %v2177 = vpop.f32.mrb[0].mxu0
    %v2178 = vadd.f32 0.0, %v2177
    %v2179 = vpop.f32.mrb[0].mxu0
    %2180 = vmatprep.mubr.bf16.mxu0 0
    %2181 = vmatmul.mubr.bf16.gmra.mrb[0].mxu0 %v2060
    %v2182 = vpop.f32.mrb[0].mxu0
    %v2183 = vadd.f32 0.0, %v2182
    %v2184 = vpop.f32.mrb[0].mxu0
    %v2185 = vpop.f32.mrb[0].mxu0
    %v2186 = vpop.f32.mrb[0].mxu0
    %2187 = vdwg.mxu0
    %v2188 = vadd.f32 %v1800, %v2106
    %v2189 = vadd.f32 %v1801, %v2108
    %v2190 = vadd.f32 %v1802, %v2167
    %v2191 = vadd.f32 %v1803, %v2110
    %v2192 = vadd.f32 %v1804, %v2112
    %v2193 = vadd.f32 %v1805, %v2170
    %v2194 = vadd.f32 %v1806, %v2116
    %v2195 = vadd.f32 %v1807, %v2118
    %v2196 = vadd.f32 %v1808, %v2175
    %v2197 = vadd.f32 %v1809, %v2120
    %v2198 = vadd.f32 %v1810, %v2122
    %v2199 = vadd.f32 %v1811, %v2178
    %v2200 = vadd.f32 %v1812, %v2126
    %v2201 = vadd.f32 %v1813, %v2128
    %v2202 = vadd.f32 %v1814, %v2183
    %v2203 = vld [vmem:[#allocation4] sm:$0x7]
    %v2205 = vlaneseq
    %v2206 = vshrl.u32 %v2205, 7
    %v2207 = vsub.s32 0, %v2206
    %v2208 = vrot.slane %v2203, %v2207
    %v2209 = vlaneseq
    %v2210 = vshrl.u32 %v2209, 7
    %v2211 = vsub.s32 1, %v2210
    %v2212 = vrot.slane %v2203, %v2211
    %v2213 = vlaneseq
    %v2214 = vshrl.u32 %v2213, 7
    %v2215 = vsub.s32 2, %v2214
    %v2216 = vrot.slane %v2203, %v2215
    %v2220 = vadd.f32 %v2188, %v2208
    %v2221 = vadd.f32 %v2189, %v2212
    %v2222 = vadd.f32 %v2190, %v2216
    %v2223 = vadd.f32 %v2191, %v2208
    %v2224 = vadd.f32 %v2192, %v2212
    %v2225 = vadd.f32 %v2193, %v2216
    %v2226 = vadd.f32 %v2194, %v2208
    %v2227 = vadd.f32 %v2195, %v2212
    %v2228 = vadd.f32 %v2196, %v2216
    %v2229 = vadd.f32 %v2197, %v2208
    %v2230 = vadd.f32 %v2198, %v2212
    %v2231 = vadd.f32 %v2199, %v2216
    %v2232 = vadd.f32 %v2200, %v2208
    %v2233 = vadd.f32 %v2201, %v2212
    %v2234 = vadd.f32 %v2202, %v2216
    %v2235 = vadd.f32 %v2220, %v2223
    %v2236 = vadd.f32 %v2235, %v2226
    %v2237 = vadd.f32 %v2236, %v2229
    %v2238 = vsel %vm657, %v2232, 0.0
    %v2239 = vadd.f32 %v2237, %v2238
    %v2240 = vrot.slane %v2239, 4
    %v2241 = vadd.f32 %v2239, %v2240
    %v2242 = vrot.slane %v2241, 2
    %v2243 = vadd.f32 %v2241, %v2242
    %v2244 = vrot.slane %v2243, 1
    %v2245 = vadd.f32 %v2243, %v2244
    %v2246 = vadd.f32 %v2221, %v2224
    %v2247 = vadd.f32 %v2246, %v2227
    %v2248 = vadd.f32 %v2247, %v2230
    %v2249 = vsel %vm657, %v2233, 0.0
    %v2250 = vadd.f32 %v2248, %v2249
    %v2251 = vrot.slane %v2250, 4
    %v2252 = vadd.f32 %v2250, %v2251
    %v2253 = vrot.slane %v2252, 2
    %v2254 = vadd.f32 %v2252, %v2253
    %v2255 = vrot.slane %v2254, 1
    %v2256 = vadd.f32 %v2254, %v2255
    %vm2257 = vcmask 261120
    %v2258 = vsel %vm2257, %v2222, 0.0
    %v2259 = vsel %vm2257, %v2225, 0.0
    %v2260 = vadd.f32 %v2258, %v2259
    %v2261 = vsel %vm2257, %v2228, 0.0
    %v2262 = vadd.f32 %v2260, %v2261
    %v2263 = vsel %vm2257, %v2231, 0.0
    %v2264 = vadd.f32 %v2262, %v2263
    %vm2265 = vcmask 257024
    %v2266 = vsel %vm2265, %v2234, 0.0
    %v2267 = vadd.f32 %v2264, %v2266
    %v2268 = vrot.slane %v2267, 4
    %v2269 = vadd.f32 %v2267, %v2268
    %v2270 = vrot.slane %v2269, 2
    %v2271 = vadd.f32 %v2269, %v2270
    %v2272 = vrot.slane %v2271, 1
    %v2273 = vadd.f32 %v2271, %v2272
    %v2274 = vmul.f32 %v2220, %v2220
    %v2275 = vmul.f32 %v2221, %v2221
    %v2276 = vmul.f32 %v2222, %v2222
    %v2277 = vmul.f32 %v2223, %v2223
    %v2278 = vmul.f32 %v2224, %v2224
    %v2279 = vmul.f32 %v2225, %v2225
    %v2280 = vmul.f32 %v2226, %v2226
    %v2281 = vmul.f32 %v2227, %v2227
    %v2282 = vmul.f32 %v2228, %v2228
    %v2283 = vmul.f32 %v2229, %v2229
    %v2284 = vmul.f32 %v2230, %v2230
    %v2285 = vmul.f32 %v2231, %v2231
    %v2286 = vmul.f32 %v2232, %v2232
    %v2287 = vmul.f32 %v2233, %v2233
    %v2288 = vmul.f32 %v2234, %v2234
    %v2289 = vadd.f32 %v2274, %v2277
    %v2290 = vadd.f32 %v2289, %v2280
    %v2291 = vadd.f32 %v2290, %v2283
    %v2292 = vsel %vm657, %v2286, 0.0
    %v2293 = vadd.f32 %v2291, %v2292
    %v2294 = vrot.slane %v2293, 4
    %v2295 = vadd.f32 %v2293, %v2294
    %v2296 = vrot.slane %v2295, 2
    %v2297 = vadd.f32 %v2295, %v2296
    %v2298 = vrot.slane %v2297, 1
    %v2299 = vadd.f32 %v2297, %v2298
    %v2300 = vadd.f32 %v2275, %v2278
    %v2301 = vadd.f32 %v2300, %v2281
    %v2302 = vadd.f32 %v2301, %v2284
    %v2303 = vsel %vm657, %v2287, 0.0
    %v2304 = vadd.f32 %v2302, %v2303
    %v2305 = vrot.slane %v2304, 4
    %v2306 = vadd.f32 %v2304, %v2305
    %v2307 = vrot.slane %v2306, 2
    %v2308 = vadd.f32 %v2306, %v2307
    %v2309 = vrot.slane %v2308, 1
    %v2310 = vadd.f32 %v2308, %v2309
    %v2311 = vsel %vm2257, %v2276, 0.0
    %v2312 = vsel %vm2257, %v2279, 0.0
    %v2313 = vadd.f32 %v2311, %v2312
    %v2314 = vsel %vm2257, %v2282, 0.0
    %v2315 = vadd.f32 %v2313, %v2314
    %v2316 = vsel %vm2257, %v2285, 0.0
    %v2317 = vadd.f32 %v2315, %v2316
    %v2318 = vsel %vm2265, %v2288, 0.0
    %v2319 = vadd.f32 %v2317, %v2318
    %v2320 = vrot.slane %v2319, 4
    %v2321 = vadd.f32 %v2319, %v2320
    %v2322 = vrot.slane %v2321, 2
    %v2323 = vadd.f32 %v2321, %v2322
    %v2324 = vrot.slane %v2323, 1
    %v2325 = vadd.f32 %v2323, %v2324
    %v2326 = vld [vmem:[%s13] sm:$0xff]
    %v2327 = vld [vmem:[%s13 + $0x8] sm:$0xff]
    %v2328 = vld [vmem:[%s13 + $0x10] sm:$0xff]
    %v2329 = vld [vmem:[%s13 + $0x18] sm:$0xff]
    %v2330 = vld [vmem:[%s13 + $0x20] sm:$0xff]
    %v2331 = vld [vmem:[%s13 + $0x28] sm:$0xff]
    %v2332 = vld [vmem:[%s13 + $0x30] sm:$0xff]
    %v2333 = vld [vmem:[%s13 + $0x38] sm:$0xff]
    %v2334 = vld [vmem:[%s13 + $0x40] sm:$0xff]
    %v2335 = vld [vmem:[%s13 + $0x48] sm:$0xff]
    %v2336 = vld [vmem:[%s13 + $0x50] sm:$0xff]
    %v2337 = vld [vmem:[%s13 + $0x58] sm:$0xff]
    %v2338 = vld [vmem:[%s13 + $0x60] sm:$0xff]
    %v2339 = vld [vmem:[%s13 + $0x68] sm:$0xff]
    %v2340 = vld [vmem:[%s13 + $0x70] sm:$0xff]
    %v2341 = vld [vmem:[%s13 + $0x78] sm:$0xff]
    %v2342 = vld [vmem:[%s13 + $0x80] sm:$0xff]
    %v2343 = vld [vmem:[%s13 + $0x88] sm:$0xff]
    %v2344 = vld [vmem:[%s13 + $0x90] sm:$0xff]
    %v2345 = vld [vmem:[%s13 + $0x98] sm:$0xff]
    %v2346 = vld [vmem:[%s13 + $0xa0] sm:$0xff]
    %v2347 = vld [vmem:[%s13 + $0xa8] sm:$0xff]
    %v2348 = vld [vmem:[%s13 + $0xb0] sm:$0xff]
    %v2349 = vld [vmem:[%s13 + $0xb8] sm:$0xff]
    %v2350 = vld [vmem:[%s13 + $0xc0] sm:$0xff]
    %v2351 = vld [vmem:[%s13 + $0xc8] sm:$0xff]
    %v2352 = vld [vmem:[%s13 + $0xd0] sm:$0xff]
    %v2353 = vld [vmem:[%s13 + $0xd8] sm:$0xff]
    %v2354 = vld [vmem:[%s13 + $0xe0] sm:$0xff]
    %v2355 = vld [vmem:[%s13 + $0xe8] sm:$0xff]
    %v2356 = vld [vmem:[%s13 + $0xf0] sm:$0xff]
    %v2357 = vld [vmem:[%s13 + $0xf8] sm:$0xff]
    %v2358 = vld [vmem:[%s13 + $0x100] sm:$0xff]
    %v2359 = vld [vmem:[%s13 + $0x108] sm:$0xff]
    %v2360 = vld [vmem:[%s13 + $0x110] sm:$0xff]
    %v2361 = vld [vmem:[%s13 + $0x118] sm:$0xff]
    %v2363 = vsel %vm2257, %v2273, 0
    %2365 = vmatprep.subr.mxu0 0.0
    %2366 = vmatpush1.msra.mxu0 %v2326
    %2367 = vmatprep.subr.mxu0 0.0
    %2368 = vmatpush1.msra.mxu0 %v2327
    %2369 = vmatprep.subr.mxu0 0.0
    %2370 = vmatpush1.msra.mxu0 %v2328
    %2371 = vmatprep.subr.mxu0 0.0
    %2372 = vmatpush1.msra.mxu0 %v2329
    %2373 = vmatprep.subr.mxu0 0.0
    %2374 = vmatpush1.msra.mxu0 %v2330
    %2375 = vmatprep.subr.mxu0 0.0
    %2376 = vmatpush1.msra.mxu0 %v2331
    %2377 = vmatprep.subr.mxu0 0.0
    %2378 = vmatpush1.msra.mxu0 %v2332
    %2379 = vmatprep.subr.mxu0 0.0
    %2380 = vmatpush1.msra.mxu0 %v2333
    %2381 = vmatprep.subr.mxu0 0.0
    %2382 = vmatpush1.msra.mxu0 %v2334
    %2383 = vmatprep.subr.mxu0 0.0
    %2384 = vmatpush1.msra.mxu0 %v2335
    %2385 = vmatprep.subr.mxu0 0.0
    %2386 = vmatpush1.msra.mxu0 %v2336
    %2387 = vmatprep.subr.mxu0 0.0
    %2388 = vmatpush1.msra.mxu0 %v2337
    %2389 = vmatprep.subr.mxu0 0.0
    %2390 = vmatpush1.msra.mxu0 %v2338
    %2391 = vmatprep.subr.mxu0 0.0
    %2392 = vmatpush1.msra.mxu0 %v2339
    %2393 = vmatprep.subr.mxu0 0.0
    %2394 = vmatpush1.msra.mxu0 %v2340
    %2395 = vmatprep.subr.mxu0 0.0
    %2396 = vmatpush1.msra.mxu0 %v2341
    %2397 = vmatprep.subr.mxu0 0.0
    %2398 = vmatpush1.msra.mxu0 %v2342
    %2399 = vmatprep.subr.mxu0 0.0
    %2400 = vmatpush1.msra.mxu0 %v2343
    %2401 = vmatprep.subr.mxu0 0.0
    %2402 = vmatpush1.msra.mxu0 %v2344
    %2403 = vmatprep.subr.mxu0 0.0
    %2404 = vmatpush1.msra.mxu0 %v2345
    %2405 = vmatprep.subr.mxu0 0.0
    %2406 = vmatpush1.msra.mxu0 %v2346
    %2407 = vmatprep.subr.mxu0 0.0
    %2408 = vmatpush1.msra.mxu0 %v2347
    %2409 = vmatprep.subr.mxu0 0.0
    %2410 = vmatpush1.msra.mxu0 %v2348
    %2411 = vmatprep.subr.mxu0 0.0
    %2412 = vmatpush1.msra.mxu0 %v2349
    %2413 = vmatprep.subr.mxu0 0.0
    %2414 = vmatpush1.msra.mxu0 %v2350
    %2415 = vmatprep.subr.mxu0 0.0
    %2416 = vmatpush1.msra.mxu0 %v2351
    %2417 = vmatprep.subr.mxu0 0.0
    %2418 = vmatpush1.msra.mxu0 %v2352
    %2419 = vmatprep.subr.mxu0 0.0
    %2420 = vmatpush1.msra.mxu0 %v2353
    %2421 = vmatprep.subr.mxu0 0.0
    %2422 = vmatpush1.msra.mxu0 %v2354
    %2423 = vmatprep.subr.mxu0 0.0
    %2424 = vmatpush1.msra.mxu0 %v2355
    %2425 = vmatprep.subr.mxu0 0.0
    %2426 = vmatpush1.msra.mxu0 %v2356
    %2427 = vmatprep.subr.mxu0 0.0
    %2428 = vmatpush1.msra.mxu0 %v2357
    %2429 = vmatprep.mubr.f32.mxu0 %v2256
    %2430 = vmatmul.mubr.f32.gmra.mrb[0].mxu0 %v2245
    %v2431 = vpop.f32.mrb[0].mxu0
    %v2432 = vadd.f32 0.0, %v2431
    %v2433 = vpop.f32.mrb[0].mxu0
    %2434 = vdwg.mxu0
    %2435 = vmatprep.subr.mxu0 0.0
    %2436 = vmatpush1.msra.mxu0 %v2358
    %2437 = vmatprep.subr.mxu0 0.0
    %2438 = vmatpush1.msra.mxu0 %v2359
    %2439 = vmatprep.subr.mxu0 0.0
    %2440 = vmatpush1.msra.mxu0 %v2360
    %2441 = vmatprep.subr.mxu0 0.0
    %2442 = vmatpush1.msra.mxu0 %v2361
    %2443 = vmatprep.subr.mxu0 0.0
    %2444 = vmatpush1.msra.mxu0 0.0
    %2445 = vmatprep.subr.mxu0 0.0
    %2446 = vmatpush1.msra.mxu0 0.0
    %2447 = vmatprep.subr.mxu0 0.0
    %2448 = vmatpush1.msra.mxu0 0.0
    %2449 = vmatprep.subr.mxu0 0.0
    %2450 = vmatpush1.msra.mxu0 0.0
    %2451 = vmatprep.subr.mxu0 0.0
    %2452 = vmatpush1.msra.mxu0 0.0
    %2453 = vmatprep.subr.mxu0 0.0
    %2454 = vmatpush1.msra.mxu0 0.0
    %2455 = vmatprep.subr.mxu0 0.0
    %2456 = vmatpush1.msra.mxu0 0.0
    %2457 = vmatprep.subr.mxu0 0.0
    %2458 = vmatpush1.msra.mxu0 0.0
    %2459 = vmatprep.subr.mxu0 0.0
    %2460 = vmatpush1.msra.mxu0 0.0
    %2461 = vmatprep.subr.mxu0 0.0
    %2462 = vmatpush1.msra.mxu0 0.0
    %2463 = vmatprep.subr.mxu0 0.0
    %2464 = vmatpush1.msra.mxu0 0.0
    %2465 = vmatprep.subr.mxu0 0.0
    %2466 = vmatpush1.msra.mxu0 0.0
    %2467 = vmatprep.subr.mxu0 0.0
    %2468 = vmatpush1.msra.mxu0 0.0
    %2469 = vmatprep.subr.mxu0 0.0
    %2470 = vmatpush1.msra.mxu0 0.0
    %2471 = vmatprep.subr.mxu0 0.0
    %2472 = vmatpush1.msra.mxu0 0.0
    %2473 = vmatprep.subr.mxu0 0.0
    %2474 = vmatpush1.msra.mxu0 0.0
    %2475 = vmatprep.subr.mxu0 0.0
    %2476 = vmatpush1.msra.mxu0 0.0
    %2477 = vmatprep.subr.mxu0 0.0
    %2478 = vmatpush1.msra.mxu0 0.0
    %2479 = vmatprep.subr.mxu0 0.0
    %2480 = vmatpush1.msra.mxu0 0.0
    %2481 = vmatprep.subr.mxu0 0.0
    %2482 = vmatpush1.msra.mxu0 0.0
    %2483 = vmatprep.subr.mxu0 0.0
    %2484 = vmatpush1.msra.mxu0 0.0
    %2485 = vmatprep.subr.mxu0 0.0
    %2486 = vmatpush1.msra.mxu0 0.0
    %2487 = vmatprep.subr.mxu0 0.0
    %2488 = vmatpush1.msra.mxu0 0.0
    %2489 = vmatprep.subr.mxu0 0.0
    %2490 = vmatpush1.msra.mxu0 0.0
    %2491 = vmatprep.subr.mxu0 0.0
    %2492 = vmatpush1.msra.mxu0 0.0
    %2493 = vmatprep.subr.mxu0 0.0
    %2494 = vmatpush1.msra.mxu0 0.0
    %2495 = vmatprep.subr.mxu0 0.0
    %2496 = vmatpush1.msra.mxu0 0.0
    %2497 = vmatprep.subr.mxu0 0.0
    %2498 = vmatpush1.msra.mxu0 0.0
    %2499 = vmatprep.mubr.f32.mxu0 0.0
    %2500 = vmatmul.mubr.f32.gmra.mrb[0].mxu0 %v2363
    %v2501 = vpop.f32.mrb[0].mxu0
    %v2502 = vadd.f32 %v2432, %v2501
    %v2503 = vpop.f32.mrb[0].mxu0
    %2504 = vdwg.mxu0
    %v2505 = vmul.f32 %v2502, 0.0015432099
    %v2507 = vsel %vm2257, %v2325, 0
    %2509 = vmatprep.subr.mxu0 0.0
    %2510 = vmatpush1.msra.mxu0 %v2326
    %2511 = vmatprep.subr.mxu0 0.0
    %2512 = vmatpush1.msra.mxu0 %v2327
    %2513 = vmatprep.subr.mxu0 0.0
    %2514 = vmatpush1.msra.mxu0 %v2328
    %2515 = vmatprep.subr.mxu0 0.0
    %2516 = vmatpush1.msra.mxu0 %v2329
    %2517 = vmatprep.subr.mxu0 0.0
    %2518 = vmatpush1.msra.mxu0 %v2330
    %2519 = vmatprep.subr.mxu0 0.0
    %2520 = vmatpush1.msra.mxu0 %v2331
    %2521 = vmatprep.subr.mxu0 0.0
    %2522 = vmatpush1.msra.mxu0 %v2332
    %2523 = vmatprep.subr.mxu0 0.0
    %2524 = vmatpush1.msra.mxu0 %v2333
    %2525 = vmatprep.subr.mxu0 0.0
    %2526 = vmatpush1.msra.mxu0 %v2334
    %2527 = vmatprep.subr.mxu0 0.0
    %2528 = vmatpush1.msra.mxu0 %v2335
    %2529 = vmatprep.subr.mxu0 0.0
    %2530 = vmatpush1.msra.mxu0 %v2336
    %2531 = vmatprep.subr.mxu0 0.0
    %2532 = vmatpush1.msra.mxu0 %v2337
    %2533 = vmatprep.subr.mxu0 0.0
    %2534 = vmatpush1.msra.mxu0 %v2338
    %2535 = vmatprep.subr.mxu0 0.0
    %2536 = vmatpush1.msra.mxu0 %v2339
    %2537 = vmatprep.subr.mxu0 0.0
    %2538 = vmatpush1.msra.mxu0 %v2340
    %2539 = vmatprep.subr.mxu0 0.0
    %2540 = vmatpush1.msra.mxu0 %v2341
    %2541 = vmatprep.subr.mxu0 0.0
    %2542 = vmatpush1.msra.mxu0 %v2342
    %2543 = vmatprep.subr.mxu0 0.0
    %2544 = vmatpush1.msra.mxu0 %v2343
    %2545 = vmatprep.subr.mxu0 0.0
    %2546 = vmatpush1.msra.mxu0 %v2344
    %2547 = vmatprep.subr.mxu0 0.0
    %2548 = vmatpush1.msra.mxu0 %v2345
    %2549 = vmatprep.subr.mxu0 0.0
    %2550 = vmatpush1.msra.mxu0 %v2346
    %2551 = vmatprep.subr.mxu0 0.0
    %2552 = vmatpush1.msra.mxu0 %v2347
    %2553 = vmatprep.subr.mxu0 0.0
    %2554 = vmatpush1.msra.mxu0 %v2348
    %2555 = vmatprep.subr.mxu0 0.0
    %2556 = vmatpush1.msra.mxu0 %v2349
    %2557 = vmatprep.subr.mxu0 0.0
    %2558 = vmatpush1.msra.mxu0 %v2350
    %2559 = vmatprep.subr.mxu0 0.0
    %2560 = vmatpush1.msra.mxu0 %v2351
    %2561 = vmatprep.subr.mxu0 0.0
    %2562 = vmatpush1.msra.mxu0 %v2352
    %2563 = vmatprep.subr.mxu0 0.0
    %2564 = vmatpush1.msra.mxu0 %v2353
    %2565 = vmatprep.subr.mxu0 0.0
    %2566 = vmatpush1.msra.mxu0 %v2354
    %2567 = vmatprep.subr.mxu0 0.0
    %2568 = vmatpush1.msra.mxu0 %v2355
    %2569 = vmatprep.subr.mxu0 0.0
    %2570 = vmatpush1.msra.mxu0 %v2356
    %2571 = vmatprep.subr.mxu0 0.0
    %2572 = vmatpush1.msra.mxu0 %v2357
    %2573 = vmatprep.mubr.f32.mxu0 %v2310
    %2574 = vmatmul.mubr.f32.gmra.mrb[0].mxu0 %v2299
    %v2575 = vpop.f32.mrb[0].mxu0
    %v2576 = vadd.f32 0.0, %v2575
    %v2577 = vpop.f32.mrb[0].mxu0
    %2578 = vdwg.mxu0
    %2579 = vmatprep.subr.mxu0 0.0
    %2580 = vmatpush1.msra.mxu0 %v2358
    %2581 = vmatprep.subr.mxu0 0.0
    %2582 = vmatpush1.msra.mxu0 %v2359
    %2583 = vmatprep.subr.mxu0 0.0
    %2584 = vmatpush1.msra.mxu0 %v2360
    %2585 = vmatprep.subr.mxu0 0.0
    %2586 = vmatpush1.msra.mxu0 %v2361
    %2587 = vmatprep.subr.mxu0 0.0
    %2588 = vmatpush1.msra.mxu0 0.0
    %2589 = vmatprep.subr.mxu0 0.0
    %2590 = vmatpush1.msra.mxu0 0.0
    %2591 = vmatprep.subr.mxu0 0.0
    %2592 = vmatpush1.msra.mxu0 0.0
    %2593 = vmatprep.subr.mxu0 0.0
    %2594 = vmatpush1.msra.mxu0 0.0
    %2595 = vmatprep.subr.mxu0 0.0
    %2596 = vmatpush1.msra.mxu0 0.0
    %2597 = vmatprep.subr.mxu0 0.0
    %2598 = vmatpush1.msra.mxu0 0.0
    %2599 = vmatprep.subr.mxu0 0.0
    %2600 = vmatpush1.msra.mxu0 0.0
    %2601 = vmatprep.subr.mxu0 0.0
    %2602 = vmatpush1.msra.mxu0 0.0
    %2603 = vmatprep.subr.mxu0 0.0
    %2604 = vmatpush1.msra.mxu0 0.0
    %2605 = vmatprep.subr.mxu0 0.0
    %2606 = vmatpush1.msra.mxu0 0.0
    %2607 = vmatprep.subr.mxu0 0.0
    %2608 = vmatpush1.msra.mxu0 0.0
    %2609 = vmatprep.subr.mxu0 0.0
    %2610 = vmatpush1.msra.mxu0 0.0
    %2611 = vmatprep.subr.mxu0 0.0
    %2612 = vmatpush1.msra.mxu0 0.0
    %2613 = vmatprep.subr.mxu0 0.0
    %2614 = vmatpush1.msra.mxu0 0.0
    %2615 = vmatprep.subr.mxu0 0.0
    %2616 = vmatpush1.msra.mxu0 0.0
    %2617 = vmatprep.subr.mxu0 0.0
    %2618 = vmatpush1.msra.mxu0 0.0
    %2619 = vmatprep.subr.mxu0 0.0
    %2620 = vmatpush1.msra.mxu0 0.0
    %2621 = vmatprep.subr.mxu0 0.0
    %2622 = vmatpush1.msra.mxu0 0.0
    %2623 = vmatprep.subr.mxu0 0.0
    %2624 = vmatpush1.msra.mxu0 0.0
    %2625 = vmatprep.subr.mxu0 0.0
    %2626 = vmatpush1.msra.mxu0 0.0
    %2627 = vmatprep.subr.mxu0 0.0
    %2628 = vmatpush1.msra.mxu0 0.0
    %2629 = vmatprep.subr.mxu0 0.0
    %2630 = vmatpush1.msra.mxu0 0.0
    %2631 = vmatprep.subr.mxu0 0.0
    %2632 = vmatpush1.msra.mxu0 0.0
    %2633 = vmatprep.subr.mxu0 0.0
    %2634 = vmatpush1.msra.mxu0 0.0
    %2635 = vmatprep.subr.mxu0 0.0
    %2636 = vmatpush1.msra.mxu0 0.0
    %2637 = vmatprep.subr.mxu0 0.0
    %2638 = vmatpush1.msra.mxu0 0.0
    %2639 = vmatprep.subr.mxu0 0.0
    %2640 = vmatpush1.msra.mxu0 0.0
    %2641 = vmatprep.subr.mxu0 0.0
    %2642 = vmatpush1.msra.mxu0 0.0
    %2643 = vmatprep.mubr.f32.mxu0 0.0
    %2644 = vmatmul.mubr.f32.gmra.mrb[0].mxu0 %v2507
    %v2645 = vpop.f32.mrb[0].mxu0
    %v2646 = vadd.f32 %v2576, %v2645
    %v2647 = vpop.f32.mrb[0].mxu0
    %2648 = vdwg.mxu0
    %v2649 = vmul.f32 %v2646, 0.0015432099
    %v2650 = vmul.f32 %v2505, %v2505
    %v2651 = vsub.f32 %v2649, %v2650
    %v2652 = vld [vmem:[#allocation7] sm:$0x1]
    %v2653 = vadd.f32 %v2651, 1e-05
    %v2654 = vrsqrt.pop %v2653
    %v2655 = vmul.f32 %v2652, %v2654
    %v2656 = vld [vmem:[#allocation9] sm:$0x1]
    %v2657 = vmul.f32 %v2505, %v2655
    %v2658 = vsub.f32 %v2656, %v2657
    %v2659 = vld [vmem:[%s15] sm:$0xff]
    %v2660 = vld [vmem:[%s15 + $0x8] sm:$0xff]
    %v2661 = vld [vmem:[%s15 + $0x10] sm:$0xff]
    %v2662 = vld [vmem:[%s15 + $0x18] sm:$0xff]
    %v2663 = vld [vmem:[%s15 + $0x20] sm:$0xff]
    %v2664 = vld [vmem:[%s15 + $0x28] sm:$0xff]
    %vm2665 = vcmask 130048
    %v2667 = vsel %vm2665, %v2655, 0
    %2669 = vmatprep.subr.mxu0 %v2660
    %2670 = vmatpush1.msra.mxu0 %v2659
    %2671 = vmatprep.subr.mxu0 %v2663
    %2672 = vmatpush1.msra.mxu0 %v2662
    %2673 = vmatprep.subr.mxu0 0.0
    %2674 = vmatpush1.msra.mxu0 0.0
    %2675 = vmatprep.subr.mxu0 0.0
    %2676 = vmatpush1.msra.mxu0 0.0
    %2677 = vmatprep.subr.mxu0 0.0
    %2678 = vmatpush1.msra.mxu0 0.0
    %2679 = vmatprep.subr.mxu0 0.0
    %2680 = vmatpush1.msra.mxu0 0.0
    %2681 = vmatprep.subr.mxu0 0.0
    %2682 = vmatpush1.msra.mxu0 0.0
    %2683 = vmatprep.subr.mxu0 0.0
    %2684 = vmatpush1.msra.mxu0 0.0
    %2685 = vmatprep.subr.mxu0 0.0
    %2686 = vmatpush1.msra.mxu0 0.0
    %2687 = vmatprep.subr.mxu0 0.0
    %2688 = vmatpush1.msra.mxu0 0.0
    %2689 = vmatprep.subr.mxu0 0.0
    %2690 = vmatpush1.msra.mxu0 0.0
    %2691 = vmatprep.subr.mxu0 0.0
    %2692 = vmatpush1.msra.mxu0 0.0
    %2693 = vmatprep.subr.mxu0 0.0
    %2694 = vmatpush1.msra.mxu0 0.0
    %2695 = vmatprep.subr.mxu0 0.0
    %2696 = vmatpush1.msra.mxu0 0.0
    %2697 = vmatprep.subr.mxu0 0.0
    %2698 = vmatpush1.msra.mxu0 0.0
    %2699 = vmatprep.subr.mxu0 0.0
    %2700 = vmatpush1.msra.mxu0 0.0
    %2701 = vmatprep.subr.mxu0 0.0
    %2702 = vmatpush1.msra.mxu0 0.0
    %2703 = vmatprep.subr.mxu0 0.0
    %2704 = vmatpush1.msra.mxu0 0.0
    %2705 = vmatprep.subr.mxu0 0.0
    %2706 = vmatpush1.msra.mxu0 0.0
    %2707 = vmatprep.subr.mxu0 0.0
    %2708 = vmatpush1.msra.mxu0 0.0
    %2709 = vmatprep.subr.mxu0 0.0
    %2710 = vmatpush1.msra.mxu0 0.0
    %2711 = vmatprep.subr.mxu0 0.0
    %2712 = vmatpush1.msra.mxu0 0.0
    %2713 = vmatprep.subr.mxu0 0.0
    %2714 = vmatpush1.msra.mxu0 0.0
    %2715 = vmatprep.subr.mxu0 0.0
    %2716 = vmatpush1.msra.mxu0 0.0
    %2717 = vmatprep.subr.mxu0 0.0
    %2718 = vmatpush1.msra.mxu0 0.0
    %2719 = vmatprep.subr.mxu0 0.0
    %2720 = vmatpush1.msra.mxu0 0.0
    %2721 = vmatprep.subr.mxu0 0.0
    %2722 = vmatpush1.msra.mxu0 0.0
    %2723 = vmatprep.subr.mxu0 0.0
    %2724 = vmatpush1.msra.mxu0 0.0
    %2725 = vmatprep.subr.mxu0 0.0
    %2726 = vmatpush1.msra.mxu0 0.0
    %2727 = vmatprep.subr.mxu0 0.0
    %2728 = vmatpush1.msra.mxu0 0.0
    %2729 = vmatprep.subr.mxu0 0.0
    %2730 = vmatpush1.msra.mxu0 0.0
    %2731 = vmatprep.subr.mxu0 0.0
    %2732 = vmatpush1.msra.mxu0 0.0
    %2733 = vmatprep.mubr.f32.mxu0 0.0
    %2734 = vmatmul.mubr.f32.gmra.mrb[0].mxu0 %v2667
    %v2735 = vpop.f32.mrb[0].mxu0
    %v2736 = vadd.f32 0.0, %v2735
    %v2737 = vpop.f32.mrb[0].mxu0
    %v2738 = vadd.f32 0.0, %v2737
    %2739 = vdwg.mxu0
    %2740 = vmatprep.subr.mxu0 0.0
    %2741 = vmatpush1.msra.mxu0 %v2661
    %2742 = vmatprep.subr.mxu0 0.0
    %2743 = vmatpush1.msra.mxu0 %v2664
    %2744 = vmatprep.subr.mxu0 0.0
    %2745 = vmatpush1.msra.mxu0 0.0
    %2746 = vmatprep.subr.mxu0 0.0
    %2747 = vmatpush1.msra.mxu0 0.0
    %2748 = vmatprep.subr.mxu0 0.0
    %2749 = vmatpush1.msra.mxu0 0.0
    %2750 = vmatprep.subr.mxu0 0.0
    %2751 = vmatpush1.msra.mxu0 0.0
    %2752 = vmatprep.subr.mxu0 0.0
    %2753 = vmatpush1.msra.mxu0 0.0
    %2754 = vmatprep.subr.mxu0 0.0
    %2755 = vmatpush1.msra.mxu0 0.0
    %2756 = vmatprep.subr.mxu0 0.0
    %2757 = vmatpush1.msra.mxu0 0.0
    %2758 = vmatprep.subr.mxu0 0.0
    %2759 = vmatpush1.msra.mxu0 0.0
    %2760 = vmatprep.subr.mxu0 0.0
    %2761 = vmatpush1.msra.mxu0 0.0
    %2762 = vmatprep.subr.mxu0 0.0
    %2763 = vmatpush1.msra.mxu0 0.0
    %2764 = vmatprep.subr.mxu0 0.0
    %2765 = vmatpush1.msra.mxu0 0.0
    %2766 = vmatprep.subr.mxu0 0.0
    %2767 = vmatpush1.msra.mxu0 0.0
    %2768 = vmatprep.subr.mxu0 0.0
    %2769 = vmatpush1.msra.mxu0 0.0
    %2770 = vmatprep.subr.mxu0 0.0
    %2771 = vmatpush1.msra.mxu0 0.0
    %2772 = vmatprep.subr.mxu0 0.0
    %2773 = vmatpush1.msra.mxu0 0.0
    %2774 = vmatprep.subr.mxu0 0.0
    %2775 = vmatpush1.msra.mxu0 0.0
    %2776 = vmatprep.subr.mxu0 0.0
    %2777 = vmatpush1.msra.mxu0 0.0
    %2778 = vmatprep.subr.mxu0 0.0
    %2779 = vmatpush1.msra.mxu0 0.0
    %2780 = vmatprep.subr.mxu0 0.0
    %2781 = vmatpush1.msra.mxu0 0.0
    %2782 = vmatprep.subr.mxu0 0.0
    %2783 = vmatpush1.msra.mxu0 0.0
    %2784 = vmatprep.subr.mxu0 0.0
    %2785 = vmatpush1.msra.mxu0 0.0
    %2786 = vmatprep.subr.mxu0 0.0
    %2787 = vmatpush1.msra.mxu0 0.0
    %2788 = vmatprep.subr.mxu0 0.0
    %2789 = vmatpush1.msra.mxu0 0.0
    %2790 = vmatprep.subr.mxu0 0.0
    %2791 = vmatpush1.msra.mxu0 0.0
    %2792 = vmatprep.subr.mxu0 0.0
    %2793 = vmatpush1.msra.mxu0 0.0
    %2794 = vmatprep.subr.mxu0 0.0
    %2795 = vmatpush1.msra.mxu0 0.0
    %2796 = vmatprep.subr.mxu0 0.0
    %2797 = vmatpush1.msra.mxu0 0.0
    %2798 = vmatprep.subr.mxu0 0.0
    %2799 = vmatpush1.msra.mxu0 0.0
    %2800 = vmatprep.subr.mxu0 0.0
    %2801 = vmatpush1.msra.mxu0 0.0
    %2802 = vmatprep.subr.mxu0 0.0
    %2803 = vmatpush1.msra.mxu0 0.0
    %2804 = vmatprep.mubr.f32.mxu0 0.0
    %2805 = vmatmul.mubr.f32.gmra.mrb[0].mxu0 %v2667
    %v2806 = vpop.f32.mrb[0].mxu0
    %v2807 = vadd.f32 0.0, %v2806
    %v2808 = vpop.f32.mrb[0].mxu0
    %2809 = vdwg.mxu0
    %v2811 = vsel %vm2665, %v2658, 0
    %2813 = vmatprep.subr.mxu0 %v2660
    %2814 = vmatpush1.msra.mxu0 %v2659
    %2815 = vmatprep.subr.mxu0 %v2663
    %2816 = vmatpush1.msra.mxu0 %v2662
    %2817 = vmatprep.subr.mxu0 0.0
    %2818 = vmatpush1.msra.mxu0 0.0
    %2819 = vmatprep.subr.mxu0 0.0
    %2820 = vmatpush1.msra.mxu0 0.0
    %2821 = vmatprep.subr.mxu0 0.0
    %2822 = vmatpush1.msra.mxu0 0.0
    %2823 = vmatprep.subr.mxu0 0.0
    %2824 = vmatpush1.msra.mxu0 0.0
    %2825 = vmatprep.subr.mxu0 0.0
    %2826 = vmatpush1.msra.mxu0 0.0
    %2827 = vmatprep.subr.mxu0 0.0
    %2828 = vmatpush1.msra.mxu0 0.0
    %2829 = vmatprep.subr.mxu0 0.0
    %2830 = vmatpush1.msra.mxu0 0.0
    %2831 = vmatprep.subr.mxu0 0.0
    %2832 = vmatpush1.msra.mxu0 0.0
    %2833 = vmatprep.subr.mxu0 0.0
    %2834 = vmatpush1.msra.mxu0 0.0
    %2835 = vmatprep.subr.mxu0 0.0
    %2836 = vmatpush1.msra.mxu0 0.0
    %2837 = vmatprep.subr.mxu0 0.0
    %2838 = vmatpush1.msra.mxu0 0.0
    %2839 = vmatprep.subr.mxu0 0.0
    %2840 = vmatpush1.msra.mxu0 0.0
    %2841 = vmatprep.subr.mxu0 0.0
    %2842 = vmatpush1.msra.mxu0 0.0
    %2843 = vmatprep.subr.mxu0 0.0
    %2844 = vmatpush1.msra.mxu0 0.0
    %2845 = vmatprep.subr.mxu0 0.0
    %2846 = vmatpush1.msra.mxu0 0.0
    %2847 = vmatprep.subr.mxu0 0.0
    %2848 = vmatpush1.msra.mxu0 0.0
    %2849 = vmatprep.subr.mxu0 0.0
    %2850 = vmatpush1.msra.mxu0 0.0
    %2851 = vmatprep.subr.mxu0 0.0
    %2852 = vmatpush1.msra.mxu0 0.0
    %2853 = vmatprep.subr.mxu0 0.0
    %2854 = vmatpush1.msra.mxu0 0.0
    %2855 = vmatprep.subr.mxu0 0.0
    %2856 = vmatpush1.msra.mxu0 0.0
    %2857 = vmatprep.subr.mxu0 0.0
    %2858 = vmatpush1.msra.mxu0 0.0
    %2859 = vmatprep.subr.mxu0 0.0
    %2860 = vmatpush1.msra.mxu0 0.0
    %2861 = vmatprep.subr.mxu0 0.0
    %2862 = vmatpush1.msra.mxu0 0.0
    %2863 = vmatprep.subr.mxu0 0.0
    %2864 = vmatpush1.msra.mxu0 0.0
    %2865 = vmatprep.subr.mxu0 0.0
    %2866 = vmatpush1.msra.mxu0 0.0
    %2867 = vmatprep.subr.mxu0 0.0
    %2868 = vmatpush1.msra.mxu0 0.0
    %2869 = vmatprep.subr.mxu0 0.0
    %2870 = vmatpush1.msra.mxu0 0.0
    %2871 = vmatprep.subr.mxu0 0.0
    %2872 = vmatpush1.msra.mxu0 0.0
    %2873 = vmatprep.subr.mxu0 0.0
    %2874 = vmatpush1.msra.mxu0 0.0
    %2875 = vmatprep.subr.mxu0 0.0
    %2876 = vmatpush1.msra.mxu0 0.0
    %2877 = vmatprep.mubr.f32.mxu0 0.0
    %2878 = vmatmul.mubr.f32.gmra.mrb[0].mxu0 %v2811
    %v2879 = vpop.f32.mrb[0].mxu0
    %v2880 = vadd.f32 0.0, %v2879
    %v2881 = vpop.f32.mrb[0].mxu0
    %v2882 = vadd.f32 0.0, %v2881
    %2883 = vdwg.mxu0
    %2884 = vmatprep.subr.mxu0 0.0
    %2885 = vmatpush1.msra.mxu0 %v2661
    %2886 = vmatprep.subr.mxu0 0.0
    %2887 = vmatpush1.msra.mxu0 %v2664
    %2888 = vmatprep.subr.mxu0 0.0
    %2889 = vmatpush1.msra.mxu0 0.0
    %2890 = vmatprep.subr.mxu0 0.0
    %2891 = vmatpush1.msra.mxu0 0.0
    %2892 = vmatprep.subr.mxu0 0.0
    %2893 = vmatpush1.msra.mxu0 0.0
    %2894 = vmatprep.subr.mxu0 0.0
    %2895 = vmatpush1.msra.mxu0 0.0
    %2896 = vmatprep.subr.mxu0 0.0
    %2897 = vmatpush1.msra.mxu0 0.0
    %2898 = vmatprep.subr.mxu0 0.0
    %2899 = vmatpush1.msra.mxu0 0.0
    %2900 = vmatprep.subr.mxu0 0.0
    %2901 = vmatpush1.msra.mxu0 0.0
    %2902 = vmatprep.subr.mxu0 0.0
    %2903 = vmatpush1.msra.mxu0 0.0
    %2904 = vmatprep.subr.mxu0 0.0
    %2905 = vmatpush1.msra.mxu0 0.0
    %2906 = vmatprep.subr.mxu0 0.0
    %2907 = vmatpush1.msra.mxu0 0.0
    %2908 = vmatprep.subr.mxu0 0.0
    %2909 = vmatpush1.msra.mxu0 0.0
    %2910 = vmatprep.subr.mxu0 0.0
    %2911 = vmatpush1.msra.mxu0 0.0
    %2912 = vmatprep.subr.mxu0 0.0
    %2913 = vmatpush1.msra.mxu0 0.0
    %2914 = vmatprep.subr.mxu0 0.0
    %2915 = vmatpush1.msra.mxu0 0.0
    %2916 = vmatprep.subr.mxu0 0.0
    %2917 = vmatpush1.msra.mxu0 0.0
    %2918 = vmatprep.subr.mxu0 0.0
    %2919 = vmatpush1.msra.mxu0 0.0
    %2920 = vmatprep.subr.mxu0 0.0
    %2921 = vmatpush1.msra.mxu0 0.0
    %2922 = vmatprep.subr.mxu0 0.0
    %2923 = vmatpush1.msra.mxu0 0.0
    %2924 = vmatprep.subr.mxu0 0.0
    %2925 = vmatpush1.msra.mxu0 0.0
    %2926 = vmatprep.subr.mxu0 0.0
    %2927 = vmatpush1.msra.mxu0 0.0
    %2928 = vmatprep.subr.mxu0 0.0
    %2929 = vmatpush1.msra.mxu0 0.0
    %2930 = vmatprep.subr.mxu0 0.0
    %2931 = vmatpush1.msra.mxu0 0.0
    %2932 = vmatprep.subr.mxu0 0.0
    %2933 = vmatpush1.msra.mxu0 0.0
    %2934 = vmatprep.subr.mxu0 0.0
    %2935 = vmatpush1.msra.mxu0 0.0
    %2936 = vmatprep.subr.mxu0 0.0
    %2937 = vmatpush1.msra.mxu0 0.0
    %2938 = vmatprep.subr.mxu0 0.0
    %2939 = vmatpush1.msra.mxu0 0.0
    %2940 = vmatprep.subr.mxu0 0.0
    %2941 = vmatpush1.msra.mxu0 0.0
    %2942 = vmatprep.subr.mxu0 0.0
    %2943 = vmatpush1.msra.mxu0 0.0
    %2944 = vmatprep.subr.mxu0 0.0
    %2945 = vmatpush1.msra.mxu0 0.0
    %2946 = vmatprep.subr.mxu0 0.0
    %2947 = vmatpush1.msra.mxu0 0.0
    %2948 = vmatprep.mubr.f32.mxu0 0.0
    %2949 = vmatmul.mubr.f32.gmra.mrb[0].mxu0 %v2811
    %v2950 = vpop.f32.mrb[0].mxu0
    %v2951 = vadd.f32 0.0, %v2950
    %v2952 = vpop.f32.mrb[0].mxu0
    %2953 = vdwg.mxu0
    %v2954 = vlaneseq
    %v2955 = vshrl.u32 %v2954, 7
    %v2956 = vsub.s32 0, %v2955
    %v2957 = vrot.slane %v2736, %v2956
    %v2958 = vlaneseq
    %v2959 = vshrl.u32 %v2958, 7
    %v2960 = vsub.s32 0, %v2959
    %v2961 = vrot.slane %v2738, %v2960
    %v2962 = vlaneseq
    %v2963 = vshrl.u32 %v2962, 7
    %v2964 = vsub.s32 0, %v2963
    %v2965 = vrot.slane %v2807, %v2964
    %v2966 = vmul.f32 %v2220, %v2957
    %v2967 = vmul.f32 %v2221, %v2961
    %v2968 = vmul.f32 %v2222, %v2965
    %v2969 = vmul.f32 %v2223, %v2957
    %v2970 = vmul.f32 %v2224, %v2961
    %v2971 = vmul.f32 %v2225, %v2965
    %v2972 = vmul.f32 %v2226, %v2957
    %v2973 = vmul.f32 %v2227, %v2961
    %v2974 = vmul.f32 %v2228, %v2965
    %v2975 = vmul.f32 %v2229, %v2957
    %v2976 = vmul.f32 %v2230, %v2961
    %v2977 = vmul.f32 %v2231, %v2965
    %v2978 = vmul.f32 %v2232, %v2957
    %v2979 = vmul.f32 %v2233, %v2961
    %v2980 = vmul.f32 %v2234, %v2965
    %v2981 = vlaneseq
    %v2982 = vshrl.u32 %v2981, 7
    %v2983 = vsub.s32 0, %v2982
    %v2984 = vrot.slane %v2880, %v2983
    %v2985 = vlaneseq
    %v2986 = vshrl.u32 %v2985, 7
    %v2987 = vsub.s32 0, %v2986
    %v2988 = vrot.slane %v2882, %v2987
    %v2989 = vlaneseq
    %v2990 = vshrl.u32 %v2989, 7
    %v2991 = vsub.s32 0, %v2990
    %v2992 = vrot.slane %v2951, %v2991
    %v2993 = vadd.f32 %v2966, %v2984
    %v2994 = vadd.f32 %v2967, %v2988
    %v2995 = vadd.f32 %v2968, %v2992
    %v2996 = vadd.f32 %v2969, %v2984
    %v2997 = vadd.f32 %v2970, %v2988
    %v2998 = vadd.f32 %v2971, %v2992
    %v2999 = vadd.f32 %v2972, %v2984
    %v3000 = vadd.f32 %v2973, %v2988
    %v3001 = vadd.f32 %v2974, %v2992
    %v3002 = vadd.f32 %v2975, %v2984
    %v3003 = vadd.f32 %v2976, %v2988
    %v3004 = vadd.f32 %v2977, %v2992
    %v3005 = vadd.f32 %v2978, %v2984
    %v3006 = vadd.f32 %v2979, %v2988
    %v3007 = vadd.f32 %v2980, %v2992
    %v3008 = vmax.f32 %v2993, 0.0
    %v3009 = vmax.f32 %v2994, 0.0
    %v3010 = vmax.f32 %v2995, 0.0
    %v3011 = vmax.f32 %v2996, 0.0
    %v3012 = vmax.f32 %v2997, 0.0
    %v3013 = vmax.f32 %v2998, 0.0
    %v3014 = vmax.f32 %v2999, 0.0
    %v3015 = vmax.f32 %v3000, 0.0
    %v3016 = vmax.f32 %v3001, 0.0
    %v3017 = vmax.f32 %v3002, 0.0
    %v3018 = vmax.f32 %v3003, 0.0
    %v3019 = vmax.f32 %v3004, 0.0
    %v3020 = vmax.f32 %v3005, 0.0
    %v3021 = vmax.f32 %v3006, 0.0
    %v3022 = vmax.f32 %v3007, 0.0
    %v3023 = vpack.c.bf16 %v3011, %v3008
    %v3024 = vpack.c.bf16 %v3012, %v3009
    %v3025 = vpack.c.bf16 %v3013, %v3010
    %v3026 = vpack.c.bf16 %v3017, %v3014
    %v3027 = vpack.c.bf16 %v3018, %v3015
    %v3028 = vpack.c.bf16 %v3019, %v3016
    %v3029 = vpack.c.bf16 %v3020, %v3020
    %v3030 = vpack.c.bf16 %v3021, %v3021
    %v3031 = vpack.c.bf16 %v3022, %v3022
    %v3032 = vld [vmem:[#allocation10] sm:$0xf]
    %v3033 = vld [vmem:[#allocation10 + $0x4] sm:$0x7]
    %v3036 = vunpack.c.l.b16 %v3032
    %v3037 = vunpack.c.l.b16 %v3033
    %v3038 = vpack.c.b16 %v3037, %v3036
    %vm3039 = vcmask 293888
    %v3041 = vsel %vm3039, %v3038, 0
    %vm3043 = vcmask 1041408
    %v3045 = vsel %vm3043, %v3029, 0
    %v3048 = vsel %vm3043, %v3030, 0
    %v3051 = vsel %vm3043, %v3031, 0
    %3053 = vmatprep.subr.bf16.mxu0 %v3024
    %3054 = vmatpush1.bf16.msra.mxu0 %v3023
    %3055 = vmatprep.subr.bf16.mxu0 %v3027
    %3056 = vmatpush1.bf16.msra.mxu0 %v3026
    %3057 = vmatprep.subr.bf16.mxu0 %v3048
    %3058 = vmatpush1.bf16.msra.mxu0 %v3045
    %3059 = vmatprep.subr.bf16.mxu0 0
    %3060 = vmatpush1.bf16.msra.mxu0 0
    %3061 = vmatprep.subr.bf16.mxu0 0
    %3062 = vmatpush1.bf16.msra.mxu0 0
    %3063 = vmatprep.subr.bf16.mxu0 0
    %3064 = vmatpush1.bf16.msra.mxu0 0
    %3065 = vmatprep.subr.bf16.mxu0 0
    %3066 = vmatpush1.bf16.msra.mxu0 0
    %3067 = vmatprep.subr.bf16.mxu0 0
    %3068 = vmatpush1.bf16.msra.mxu0 0
    %3069 = vmatprep.subr.bf16.mxu0 0
    %3070 = vmatpush1.bf16.msra.mxu0 0
    %3071 = vmatprep.subr.bf16.mxu0 0
    %3072 = vmatpush1.bf16.msra.mxu0 0
    %3073 = vmatprep.subr.bf16.mxu0 0
    %3074 = vmatpush1.bf16.msra.mxu0 0
    %3075 = vmatprep.subr.bf16.mxu0 0
    %3076 = vmatpush1.bf16.msra.mxu0 0
    %3077 = vmatprep.subr.bf16.mxu0 0
    %3078 = vmatpush1.bf16.msra.mxu0 0
    %3079 = vmatprep.subr.bf16.mxu0 0
    %3080 = vmatpush1.bf16.msra.mxu0 0
    %3081 = vmatprep.subr.bf16.mxu0 0
    %3082 = vmatpush1.bf16.msra.mxu0 0
    %3083 = vmatprep.subr.bf16.mxu0 0
    %3084 = vmatpush1.bf16.msra.mxu0 0
    %3085 = vmatprep.mubr.bf16.mxu0 0
    %3086 = vmatmul.mubr.bf16.gmra.mrb[0].mxu0 %v3041
    %v3087 = vpop.f32.mrb[0].mxu0
    %v3088 = vadd.f32 0.0, %v3087
    %v3089 = vpop.f32.mrb[0].mxu0
    %v3090 = vadd.f32 0.0, %v3089
    %v3091 = vpop.f32.mrb[0].mxu0
    %v3092 = vadd.f32 0.0, %v3091
    %v3093 = vpop.f32.mrb[0].mxu0
    %v3094 = vadd.f32 0.0, %v3093
    %3095 = vdwg.mxu0
    %3096 = vmatprep.subr.bf16.mxu0 0
    %3097 = vmatpush1.bf16.msra.mxu0 %v3025
    %3098 = vmatprep.subr.bf16.mxu0 0
    %3099 = vmatpush1.bf16.msra.mxu0 %v3028
    %3100 = vmatprep.subr.bf16.mxu0 0
    %3101 = vmatpush1.bf16.msra.mxu0 %v3051
    %3102 = vmatprep.subr.bf16.mxu0 0
    %3103 = vmatpush1.bf16.msra.mxu0 0
    %3104 = vmatprep.subr.bf16.mxu0 0
    %3105 = vmatpush1.bf16.msra.mxu0 0
    %3106 = vmatprep.subr.bf16.mxu0 0
    %3107 = vmatpush1.bf16.msra.mxu0 0
    %3108 = vmatprep.subr.bf16.mxu0 0
    %3109 = vmatpush1.bf16.msra.mxu0 0
    %3110 = vmatprep.subr.bf16.mxu0 0
    %3111 = vmatpush1.bf16.msra.mxu0 0
    %3112 = vmatprep.subr.bf16.mxu0 0
    %3113 = vmatpush1.bf16.msra.mxu0 0
    %3114 = vmatprep.subr.bf16.mxu0 0
    %3115 = vmatpush1.bf16.msra.mxu0 0
    %3116 = vmatprep.subr.bf16.mxu0 0
    %3117 = vmatpush1.bf16.msra.mxu0 0
    %3118 = vmatprep.subr.bf16.mxu0 0
    %3119 = vmatpush1.bf16.msra.mxu0 0
    %3120 = vmatprep.subr.bf16.mxu0 0
    %3121 = vmatpush1.bf16.msra.mxu0 0
    %3122 = vmatprep.subr.bf16.mxu0 0
    %3123 = vmatpush1.bf16.msra.mxu0 0
    %3124 = vmatprep.subr.bf16.mxu0 0
    %3125 = vmatpush1.bf16.msra.mxu0 0
    %3126 = vmatprep.subr.bf16.mxu0 0
    %3127 = vmatpush1.bf16.msra.mxu0 0
    %3128 = vmatprep.mubr.bf16.mxu0 0
    %3129 = vmatmul.mubr.bf16.gmra.mrb[0].mxu0 %v3041
    %v3130 = vpop.f32.mrb[0].mxu0
    %v3131 = vadd.f32 0.0, %v3130
    %v3132 = vpop.f32.mrb[0].mxu0
    %v3133 = vpop.f32.mrb[0].mxu0
    %v3134 = vadd.f32 0.0, %v3133
    %v3135 = vpop.f32.mrb[0].mxu0
    %3136 = vdwg.mxu0
    %v3137 = vpack.c.bf16 %v3092, %v3088
    %v3138 = vpack.c.bf16 %v3094, %v3090
    %v3139 = vpack.c.bf16 %v3134, %v3131
    %v3140 = vld [vmem:[%s19] sm:$0xff]
    %v3141 = vld [vmem:[%s19 + $0x8] sm:$0xff]
    %v3142 = vld [vmem:[%s19 + $0x10] sm:$0xff]
    %v3143 = vld [vmem:[%s19 + $0x18] sm:$0xff]
    %v3144 = vld [vmem:[%s19 + $0x20] sm:$0xff]
    %v3145 = vld [vmem:[%s19 + $0x28] sm:$0xff]
    %v3146 = vld [vmem:[%s19 + $0x30] sm:$0xff]
    %v3147 = vld [vmem:[%s19 + $0x38] sm:$0xff]
    %v3148 = vld [vmem:[%s19 + $0x40] sm:$0xff]
    %v3149 = vld [vmem:[%s19 + $0x48] sm:$0xff]
    %v3150 = vld [vmem:[%s19 + $0x50] sm:$0xff]
    %v3151 = vld [vmem:[%s19 + $0x58] sm:$0xff]
    %v3152 = vld [vmem:[%s19 + $0x60] sm:$0xff]
    %v3153 = vld [vmem:[%s19 + $0x68] sm:$0xff]
    %v3154 = vld [vmem:[%s19 + $0x70] sm:$0xff]
    %v3155 = vld [vmem:[%s19 + $0x78] sm:$0xff]
    %v3156 = vld [vmem:[%s19 + $0x80] sm:$0xff]
    %v3157 = vld [vmem:[%s19 + $0x88] sm:$0xff]
    %v3158 = vld [vmem:[%s19 + $0x90] sm:$0xff]
    %v3159 = vld [vmem:[%s19 + $0x98] sm:$0xff]
    %v3160 = vld [vmem:[%s19 + $0xa0] sm:$0xff]
    %v3161 = vld [vmem:[%s19 + $0xa8] sm:$0xff]
    %v3162 = vld [vmem:[%s19 + $0xb0] sm:$0xff]
    %v3163 = vld [vmem:[%s19 + $0xb8] sm:$0xff]
    %v3164 = vld [vmem:[%s19 + $0xc0] sm:$0xff]
    %v3165 = vld [vmem:[%s19 + $0xc8] sm:$0xff]
    %v3166 = vld [vmem:[%s19 + $0xd0] sm:$0xff]
    %v3167 = vld [vmem:[%s19 + $0xd8] sm:$0xff]
    %v3168 = vld [vmem:[%s19 + $0xe0] sm:$0xff]
    %v3169 = vld [vmem:[%s19 + $0xe8] sm:$0xff]
    %v3170 = vld [vmem:[%s19 + $0xf0] sm:$0xff]
    %v3171 = vld [vmem:[%s19 + $0xf8] sm:$0xff]
    %v3172 = vld [vmem:[%s19 + $0x100] sm:$0xff]
    %v3173 = vld [vmem:[%s19 + $0x108] sm:$0xff]
    %v3174 = vld [vmem:[%s19 + $0x110] sm:$0xff]
    %v3175 = vld [vmem:[%s19 + $0x118] sm:$0xff]
    %s3176 = scalar_lea.vmem [#allocation10], 8
    %v3177 = vld [vmem:[%s3176] sm:$0xf]
    %v3178 = vld [vmem:[%s3176 + $0x4] sm:$0x7]
    %v3181 = vunpack.c.l.b16 %v3177
    %v3182 = vunpack.c.l.b16 %v3178
    %v3183 = vpack.c.b16 %v3182, %v3181
    %v3185 = vsel %vm3039, %v3183, 0
    %3187 = vmatprep.subr.bf16.mxu0 %v3024
    %3188 = vmatpush1.bf16.msra.mxu0 %v3023
    %3189 = vmatprep.subr.bf16.mxu0 %v3027
    %3190 = vmatpush1.bf16.msra.mxu0 %v3026
    %3191 = vmatprep.subr.bf16.mxu0 %v3048
    %3192 = vmatpush1.bf16.msra.mxu0 %v3045
    %3193 = vmatprep.subr.bf16.mxu0 0
    %3194 = vmatpush1.bf16.msra.mxu0 0
    %3195 = vmatprep.subr.bf16.mxu0 0
    %3196 = vmatpush1.bf16.msra.mxu0 0
    %3197 = vmatprep.subr.bf16.mxu0 0
    %3198 = vmatpush1.bf16.msra.mxu0 0
    %3199 = vmatprep.subr.bf16.mxu0 0
    %3200 = vmatpush1.bf16.msra.mxu0 0
    %3201 = vmatprep.subr.bf16.mxu0 0
    %3202 = vmatpush1.bf16.msra.mxu0 0
    %3203 = vmatprep.subr.bf16.mxu0 0
    %3204 = vmatpush1.bf16.msra.mxu0 0
    %3205 = vmatprep.subr.bf16.mxu0 0
    %3206 = vmatpush1.bf16.msra.mxu0 0
    %3207 = vmatprep.subr.bf16.mxu0 0
    %3208 = vmatpush1.bf16.msra.mxu0 0
    %3209 = vmatprep.subr.bf16.mxu0 0
    %3210 = vmatpush1.bf16.msra.mxu0 0
    %3211 = vmatprep.subr.bf16.mxu0 0
    %3212 = vmatpush1.bf16.msra.mxu0 0
    %3213 = vmatprep.subr.bf16.mxu0 0
    %3214 = vmatpush1.bf16.msra.mxu0 0
    %3215 = vmatprep.subr.bf16.mxu0 0
    %3216 = vmatpush1.bf16.msra.mxu0 0
    %3217 = vmatprep.subr.bf16.mxu0 0
    %3218 = vmatpush1.bf16.msra.mxu0 0
    %3219 = vmatprep.mubr.bf16.mxu0 0
    %3220 = vmatmul.mubr.bf16.gmra.mrb[0].mxu0 %v3185
    %v3221 = vpop.f32.mrb[0].mxu0
    %v3222 = vadd.f32 0.0, %v3221
    %v3223 = vpop.f32.mrb[0].mxu0
    %v3224 = vadd.f32 0.0, %v3223
    %v3225 = vpop.f32.mrb[0].mxu0
    %v3226 = vadd.f32 0.0, %v3225
    %v3227 = vpop.f32.mrb[0].mxu0
    %v3228 = vadd.f32 0.0, %v3227
    %3229 = vdwg.mxu0
    %3230 = vmatprep.subr.bf16.mxu0 0
    %3231 = vmatpush1.bf16.msra.mxu0 %v3025
    %3232 = vmatprep.subr.bf16.mxu0 0
    %3233 = vmatpush1.bf16.msra.mxu0 %v3028
    %3234 = vmatprep.subr.bf16.mxu0 0
    %3235 = vmatpush1.bf16.msra.mxu0 %v3051
    %3236 = vmatprep.subr.bf16.mxu0 0
    %3237 = vmatpush1.bf16.msra.mxu0 0
    %3238 = vmatprep.subr.bf16.mxu0 0
    %3239 = vmatpush1.bf16.msra.mxu0 0
    %3240 = vmatprep.subr.bf16.mxu0 0
    %3241 = vmatpush1.bf16.msra.mxu0 0
    %3242 = vmatprep.subr.bf16.mxu0 0
    %3243 = vmatpush1.bf16.msra.mxu0 0
    %3244 = vmatprep.subr.bf16.mxu0 0
    %3245 = vmatpush1.bf16.msra.mxu0 0
    %3246 = vmatprep.subr.bf16.mxu0 0
    %3247 = vmatpush1.bf16.msra.mxu0 0
    %3248 = vmatprep.subr.bf16.mxu0 0
    %3249 = vmatpush1.bf16.msra.mxu0 0
    %3250 = vmatprep.subr.bf16.mxu0 0
    %3251 = vmatpush1.bf16.msra.mxu0 0
    %3252 = vmatprep.subr.bf16.mxu0 0
    %3253 = vmatpush1.bf16.msra.mxu0 0
    %3254 = vmatprep.subr.bf16.mxu0 0
    %3255 = vmatpush1.bf16.msra.mxu0 0
    %3256 = vmatprep.subr.bf16.mxu0 0
    %3257 = vmatpush1.bf16.msra.mxu0 0
    %3258 = vmatprep.subr.bf16.mxu0 0
    %3259 = vmatpush1.bf16.msra.mxu0 0
    %3260 = vmatprep.subr.bf16.mxu0 0
    %3261 = vmatpush1.bf16.msra.mxu0 0
    %3262 = vmatprep.mubr.bf16.mxu0 0
    %3263 = vmatmul.mubr.bf16.gmra.mrb[0].mxu0 %v3185
    %v3264 = vpop.f32.mrb[0].mxu0
    %v3265 = vadd.f32 0.0, %v3264
    %v3266 = vpop.f32.mrb[0].mxu0
    %v3267 = vpop.f32.mrb[0].mxu0
    %v3268 = vadd.f32 0.0, %v3267
    %v3269 = vpop.f32.mrb[0].mxu0
    %3270 = vdwg.mxu0
    %v3271 = vpack.c.bf16 %v3226, %v3222
    %v3272 = vpack.c.bf16 %v3228, %v3224
    %v3273 = vpack.c.bf16 %v3268, %v3265
    %s3274 = scalar_lea.vmem %s19, 288
    %v3275 = vld [vmem:[%s3274] sm:$0xff]
    %v3276 = vld [vmem:[%s3274 + $0x8] sm:$0xff]
    %v3277 = vld [vmem:[%s3274 + $0x10] sm:$0xff]
    %v3278 = vld [vmem:[%s3274 + $0x18] sm:$0xff]
    %v3279 = vld [vmem:[%s3274 + $0x20] sm:$0xff]
    %v3280 = vld [vmem:[%s3274 + $0x28] sm:$0xff]
    %v3281 = vld [vmem:[%s3274 + $0x30] sm:$0xff]
    %v3282 = vld [vmem:[%s3274 + $0x38] sm:$0xff]
    %v3283 = vld [vmem:[%s3274 + $0x40] sm:$0xff]
    %v3284 = vld [vmem:[%s3274 + $0x48] sm:$0xff]
    %v3285 = vld [vmem:[%s3274 + $0x50] sm:$0xff]
    %v3286 = vld [vmem:[%s3274 + $0x58] sm:$0xff]
    %v3287 = vld [vmem:[%s3274 + $0x60] sm:$0xff]
    %v3288 = vld [vmem:[%s3274 + $0x68] sm:$0xff]
    %v3289 = vld [vmem:[%s3274 + $0x70] sm:$0xff]
    %v3290 = vld [vmem:[%s3274 + $0x78] sm:$0xff]
    %v3291 = vld [vmem:[%s3274 + $0x80] sm:$0xff]
    %v3292 = vld [vmem:[%s3274 + $0x88] sm:$0xff]
    %v3293 = vld [vmem:[%s3274 + $0x90] sm:$0xff]
    %v3294 = vld [vmem:[%s3274 + $0x98] sm:$0xff]
    %v3295 = vld [vmem:[%s3274 + $0xa0] sm:$0xff]
    %v3296 = vld [vmem:[%s3274 + $0xa8] sm:$0xff]
    %v3297 = vld [vmem:[%s3274 + $0xb0] sm:$0xff]
    %v3298 = vld [vmem:[%s3274 + $0xb8] sm:$0xff]
    %v3299 = vld [vmem:[%s3274 + $0xc0] sm:$0xff]
    %v3300 = vld [vmem:[%s3274 + $0xc8] sm:$0xff]
    %v3301 = vld [vmem:[%s3274 + $0xd0] sm:$0xff]
    %v3302 = vld [vmem:[%s3274 + $0xd8] sm:$0xff]
    %v3303 = vld [vmem:[%s3274 + $0xe0] sm:$0xff]
    %v3304 = vld [vmem:[%s3274 + $0xe8] sm:$0xff]
    %v3305 = vld [vmem:[%s3274 + $0xf0] sm:$0xff]
    %v3306 = vld [vmem:[%s3274 + $0xf8] sm:$0xff]
    %v3307 = vld [vmem:[%s3274 + $0x100] sm:$0xff]
    %v3308 = vld [vmem:[%s3274 + $0x108] sm:$0xff]
    %v3309 = vld [vmem:[%s3274 + $0x110] sm:$0xff]
    %v3310 = vld [vmem:[%s3274 + $0x118] sm:$0xff]
    %v3347 = vunpack.c.l.b16 %v3275
    %v3348 = vunpack.c.h.b16 %v3275
    %v3349 = vunpack.c.l.b16 %v3276
    %v3350 = vunpack.c.h.b16 %v3276
    %v3351 = vunpack.c.l.b16 %v3277
    %v3352 = vunpack.c.h.b16 %v3277
    %v3353 = vunpack.c.l.b16 %v3278
    %v3354 = vunpack.c.h.b16 %v3278
    %v3355 = vunpack.c.l.b16 %v3279
    %v3356 = vunpack.c.h.b16 %v3279
    %v3357 = vunpack.c.l.b16 %v3280
    %v3358 = vunpack.c.h.b16 %v3280
    %v3359 = vunpack.c.l.b16 %v3281
    %v3360 = vunpack.c.h.b16 %v3281
    %v3361 = vunpack.c.l.b16 %v3282
    %v3362 = vunpack.c.h.b16 %v3282
    %v3363 = vunpack.c.l.b16 %v3283
    %v3364 = vunpack.c.h.b16 %v3283
    %v3365 = vunpack.c.l.b16 %v3284
    %v3366 = vunpack.c.h.b16 %v3284
    %v3367 = vunpack.c.l.b16 %v3285
    %v3368 = vunpack.c.h.b16 %v3285
    %v3369 = vunpack.c.l.b16 %v3286
    %v3370 = vunpack.c.h.b16 %v3286
    %v3371 = vunpack.c.l.b16 %v3287
    %v3372 = vunpack.c.h.b16 %v3287
    %v3373 = vunpack.c.l.b16 %v3288
    %v3374 = vunpack.c.h.b16 %v3288
    %v3375 = vunpack.c.l.b16 %v3289
    %v3376 = vunpack.c.h.b16 %v3289
    %v3377 = vunpack.c.l.b16 %v3290
    %v3378 = vunpack.c.h.b16 %v3290
    %v3379 = vunpack.c.l.b16 %v3291
    %v3380 = vunpack.c.h.b16 %v3291
    %v3381 = vunpack.c.l.b16 %v3292
    %v3382 = vunpack.c.h.b16 %v3292
    %v3383 = vunpack.c.l.b16 %v3293
    %v3384 = vunpack.c.h.b16 %v3293
    %v3385 = vunpack.c.l.b16 %v3294
    %v3386 = vunpack.c.h.b16 %v3294
    %v3387 = vunpack.c.l.b16 %v3295
    %v3388 = vunpack.c.h.b16 %v3295
    %v3389 = vunpack.c.l.b16 %v3296
    %v3390 = vunpack.c.h.b16 %v3296
    %v3391 = vunpack.c.l.b16 %v3297
    %v3392 = vunpack.c.h.b16 %v3297
    %v3393 = vunpack.c.l.b16 %v3298
    %v3394 = vunpack.c.h.b16 %v3298
    %v3395 = vunpack.c.l.b16 %v3299
    %v3396 = vunpack.c.h.b16 %v3299
    %v3397 = vunpack.c.l.b16 %v3300
    %v3398 = vunpack.c.h.b16 %v3300
    %v3399 = vunpack.c.l.b16 %v3301
    %v3400 = vunpack.c.h.b16 %v3301
    %v3401 = vunpack.c.l.b16 %v3302
    %v3402 = vunpack.c.h.b16 %v3302
    %v3403 = vunpack.c.l.b16 %v3303
    %v3404 = vunpack.c.h.b16 %v3303
    %v3405 = vunpack.c.l.b16 %v3304
    %v3406 = vunpack.c.h.b16 %v3304
    %v3407 = vunpack.c.l.b16 %v3305
    %v3408 = vunpack.c.h.b16 %v3305
    %v3409 = vunpack.c.l.b16 %v3306
    %v3410 = vunpack.c.h.b16 %v3306
    %v3411 = vunpack.c.l.b16 %v3307
    %v3412 = vunpack.c.h.b16 %v3307
    %v3413 = vunpack.c.l.b16 %v3308
    %v3414 = vunpack.c.h.b16 %v3308
    %v3415 = vunpack.c.l.b16 %v3309
    %v3416 = vunpack.c.h.b16 %v3309
    %v3417 = vunpack.c.l.b16 %v3310
    %v3418 = vunpack.c.h.b16 %v3310
    %v3419 = vpack.c.b16 %v3349, %v3347
    %v3420 = vpack.c.b16 %v3350, %v3348
    %v3421 = vpack.c.b16 %v3353, %v3351
    %v3422 = vpack.c.b16 %v3354, %v3352
    %v3423 = vpack.c.b16 %v3357, %v3355
    %v3424 = vpack.c.b16 %v3358, %v3356
    %v3425 = vpack.c.b16 %v3361, %v3359
    %v3426 = vpack.c.b16 %v3362, %v3360
    %v3427 = vpack.c.b16 %v3365, %v3363
    %v3428 = vpack.c.b16 %v3366, %v3364
    %v3429 = vpack.c.b16 %v3369, %v3367
    %v3430 = vpack.c.b16 %v3370, %v3368
    %v3431 = vpack.c.b16 %v3373, %v3371
    %v3432 = vpack.c.b16 %v3374, %v3372
    %v3433 = vpack.c.b16 %v3377, %v3375
    %v3434 = vpack.c.b16 %v3378, %v3376
    %v3435 = vpack.c.b16 %v3381, %v3379
    %v3436 = vpack.c.b16 %v3382, %v3380
    %v3437 = vpack.c.b16 %v3385, %v3383
    %v3438 = vpack.c.b16 %v3386, %v3384
    %v3439 = vpack.c.b16 %v3389, %v3387
    %v3440 = vpack.c.b16 %v3390, %v3388
    %v3441 = vpack.c.b16 %v3393, %v3391
    %v3442 = vpack.c.b16 %v3394, %v3392
    %v3443 = vpack.c.b16 %v3397, %v3395
    %v3444 = vpack.c.b16 %v3398, %v3396
    %v3445 = vpack.c.b16 %v3401, %v3399
    %v3446 = vpack.c.b16 %v3402, %v3400
    %v3447 = vpack.c.b16 %v3405, %v3403
    %v3448 = vpack.c.b16 %v3406, %v3404
    %v3449 = vpack.c.b16 %v3409, %v3407
    %v3450 = vpack.c.b16 %v3410, %v3408
    %v3451 = vpack.c.b16 %v3413, %v3411
    %v3452 = vpack.c.b16 %v3414, %v3412
    %v3453 = vpack.c.b16 %v3417, %v3415
    %v3454 = vpack.c.b16 %v3418, %v3416
    %v3492 = vsel %vm2257, %v3273, 0
    %3494 = vmatprep.subr.bf16.mxu0 %v3420
    %3495 = vmatpush1.bf16.msra.mxu0 %v3419
    %3496 = vmatprep.subr.bf16.mxu0 %v3422
    %3497 = vmatpush1.bf16.msra.mxu0 %v3421
    %3498 = vmatprep.subr.bf16.mxu0 %v3424
    %3499 = vmatpush1.bf16.msra.mxu0 %v3423
    %3500 = vmatprep.subr.bf16.mxu0 %v3426
    %3501 = vmatpush1.bf16.msra.mxu0 %v3425
    %3502 = vmatprep.subr.bf16.mxu0 %v3428
    %3503 = vmatpush1.bf16.msra.mxu0 %v3427
    %3504 = vmatprep.subr.bf16.mxu0 %v3430
    %3505 = vmatpush1.bf16.msra.mxu0 %v3429
    %3506 = vmatprep.subr.bf16.mxu0 %v3432
    %3507 = vmatpush1.bf16.msra.mxu0 %v3431
    %3508 = vmatprep.subr.bf16.mxu0 %v3434
    %3509 = vmatpush1.bf16.msra.mxu0 %v3433
    %3510 = vmatprep.subr.bf16.mxu0 %v3436
    %3511 = vmatpush1.bf16.msra.mxu0 %v3435
    %3512 = vmatprep.subr.bf16.mxu0 %v3438
    %3513 = vmatpush1.bf16.msra.mxu0 %v3437
    %3514 = vmatprep.subr.bf16.mxu0 %v3440
    %3515 = vmatpush1.bf16.msra.mxu0 %v3439
    %3516 = vmatprep.subr.bf16.mxu0 %v3442
    %3517 = vmatpush1.bf16.msra.mxu0 %v3441
    %3518 = vmatprep.subr.bf16.mxu0 %v3444
    %3519 = vmatpush1.bf16.msra.mxu0 %v3443
    %3520 = vmatprep.subr.bf16.mxu0 %v3446
    %3521 = vmatpush1.bf16.msra.mxu0 %v3445
    %3522 = vmatprep.subr.bf16.mxu0 %v3448
    %3523 = vmatpush1.bf16.msra.mxu0 %v3447
    %3524 = vmatprep.subr.bf16.mxu0 %v3450
    %3525 = vmatpush1.bf16.msra.mxu0 %v3449
    %3526 = vmatprep.mubr.bf16.mxu0 %v3272
    %3527 = vmatmul.mubr.bf16.gmra.mrb[0].mxu0 %v3271
    %v3528 = vpop.f32.mrb[0].mxu0
    %v3529 = vadd.f32 0.0, %v3528
    %v3530 = vpop.f32.mrb[0].mxu0
    %v3531 = vadd.f32 0.0, %v3530
    %v3532 = vpop.f32.mrb[0].mxu0
    %v3533 = vadd.f32 0.0, %v3532
    %v3534 = vpop.f32.mrb[0].mxu0
    %v3535 = vadd.f32 0.0, %v3534
    %3536 = vdwg.mxu0
    %3537 = vmatprep.subr.bf16.mxu0 %v3452
    %3538 = vmatpush1.bf16.msra.mxu0 %v3451
    %3539 = vmatprep.subr.bf16.mxu0 %v3454
    %3540 = vmatpush1.bf16.msra.mxu0 %v3453
    %3541 = vmatprep.subr.bf16.mxu0 0
    %3542 = vmatpush1.bf16.msra.mxu0 0
    %3543 = vmatprep.subr.bf16.mxu0 0
    %3544 = vmatpush1.bf16.msra.mxu0 0
    %3545 = vmatprep.subr.bf16.mxu0 0
    %3546 = vmatpush1.bf16.msra.mxu0 0
    %3547 = vmatprep.subr.bf16.mxu0 0
    %3548 = vmatpush1.bf16.msra.mxu0 0
    %3549 = vmatprep.subr.bf16.mxu0 0
    %3550 = vmatpush1.bf16.msra.mxu0 0
    %3551 = vmatprep.subr.bf16.mxu0 0
    %3552 = vmatpush1.bf16.msra.mxu0 0
    %3553 = vmatprep.subr.bf16.mxu0 0
    %3554 = vmatpush1.bf16.msra.mxu0 0
    %3555 = vmatprep.subr.bf16.mxu0 0
    %3556 = vmatpush1.bf16.msra.mxu0 0
    %3557 = vmatprep.subr.bf16.mxu0 0
    %3558 = vmatpush1.bf16.msra.mxu0 0
    %3559 = vmatprep.subr.bf16.mxu0 0
    %3560 = vmatpush1.bf16.msra.mxu0 0
    %3561 = vmatprep.subr.bf16.mxu0 0
    %3562 = vmatpush1.bf16.msra.mxu0 0
    %3563 = vmatprep.subr.bf16.mxu0 0
    %3564 = vmatpush1.bf16.msra.mxu0 0
    %3565 = vmatprep.subr.bf16.mxu0 0
    %3566 = vmatpush1.bf16.msra.mxu0 0
    %3567 = vmatprep.subr.bf16.mxu0 0
    %3568 = vmatpush1.bf16.msra.mxu0 0
    %3569 = vmatprep.mubr.bf16.mxu0 0
    %3570 = vmatmul.mubr.bf16.gmra.mrb[0].mxu0 %v3492
    %v3571 = vpop.f32.mrb[0].mxu0
    %v3572 = vadd.f32 %v3529, %v3571
    %v3573 = vpop.f32.mrb[0].mxu0
    %v3574 = vadd.f32 %v3531, %v3573
    %v3575 = vpop.f32.mrb[0].mxu0
    %v3576 = vadd.f32 %v3533, %v3575
    %v3577 = vpop.f32.mrb[0].mxu0
    %v3578 = vadd.f32 %v3535, %v3577
    %3579 = vdwg.mxu0
    %v3616 = vunpack.c.l.b16 %v3140
    %v3617 = vunpack.c.h.b16 %v3140
    %v3618 = vunpack.c.l.b16 %v3141
    %v3619 = vunpack.c.h.b16 %v3141
    %v3620 = vunpack.c.l.b16 %v3142
    %v3621 = vunpack.c.h.b16 %v3142
    %v3622 = vunpack.c.l.b16 %v3143
    %v3623 = vunpack.c.h.b16 %v3143
    %v3624 = vunpack.c.l.b16 %v3144
    %v3625 = vunpack.c.h.b16 %v3144
    %v3626 = vunpack.c.l.b16 %v3145
    %v3627 = vunpack.c.h.b16 %v3145
    %v3628 = vunpack.c.l.b16 %v3146
    %v3629 = vunpack.c.h.b16 %v3146
    %v3630 = vunpack.c.l.b16 %v3147
    %v3631 = vunpack.c.h.b16 %v3147
    %v3632 = vunpack.c.l.b16 %v3148
    %v3633 = vunpack.c.h.b16 %v3148
    %v3634 = vunpack.c.l.b16 %v3149
    %v3635 = vunpack.c.h.b16 %v3149
    %v3636 = vunpack.c.l.b16 %v3150
    %v3637 = vunpack.c.h.b16 %v3150
    %v3638 = vunpack.c.l.b16 %v3151
    %v3639 = vunpack.c.h.b16 %v3151
    %v3640 = vunpack.c.l.b16 %v3152
    %v3641 = vunpack.c.h.b16 %v3152
    %v3642 = vunpack.c.l.b16 %v3153
    %v3643 = vunpack.c.h.b16 %v3153
    %v3644 = vunpack.c.l.b16 %v3154
    %v3645 = vunpack.c.h.b16 %v3154
    %v3646 = vunpack.c.l.b16 %v3155
    %v3647 = vunpack.c.h.b16 %v3155
    %v3648 = vunpack.c.l.b16 %v3156
    %v3649 = vunpack.c.h.b16 %v3156
    %v3650 = vunpack.c.l.b16 %v3157
    %v3651 = vunpack.c.h.b16 %v3157
    %v3652 = vunpack.c.l.b16 %v3158
    %v3653 = vunpack.c.h.b16 %v3158
    %v3654 = vunpack.c.l.b16 %v3159
    %v3655 = vunpack.c.h.b16 %v3159
    %v3656 = vunpack.c.l.b16 %v3160
    %v3657 = vunpack.c.h.b16 %v3160
    %v3658 = vunpack.c.l.b16 %v3161
    %v3659 = vunpack.c.h.b16 %v3161
    %v3660 = vunpack.c.l.b16 %v3162
    %v3661 = vunpack.c.h.b16 %v3162
    %v3662 = vunpack.c.l.b16 %v3163
    %v3663 = vunpack.c.h.b16 %v3163
    %v3664 = vunpack.c.l.b16 %v3164
    %v3665 = vunpack.c.h.b16 %v3164
    %v3666 = vunpack.c.l.b16 %v3165
    %v3667 = vunpack.c.h.b16 %v3165
    %v3668 = vunpack.c.l.b16 %v3166
    %v3669 = vunpack.c.h.b16 %v3166
    %v3670 = vunpack.c.l.b16 %v3167
    %v3671 = vunpack.c.h.b16 %v3167
    %v3672 = vunpack.c.l.b16 %v3168
    %v3673 = vunpack.c.h.b16 %v3168
    %v3674 = vunpack.c.l.b16 %v3169
    %v3675 = vunpack.c.h.b16 %v3169
    %v3676 = vunpack.c.l.b16 %v3170
    %v3677 = vunpack.c.h.b16 %v3170
    %v3678 = vunpack.c.l.b16 %v3171
    %v3679 = vunpack.c.h.b16 %v3171
    %v3680 = vunpack.c.l.b16 %v3172
    %v3681 = vunpack.c.h.b16 %v3172
    %v3682 = vunpack.c.l.b16 %v3173
    %v3683 = vunpack.c.h.b16 %v3173
    %v3684 = vunpack.c.l.b16 %v3174
    %v3685 = vunpack.c.h.b16 %v3174
    %v3686 = vunpack.c.l.b16 %v3175
    %v3687 = vunpack.c.h.b16 %v3175
    %v3688 = vpack.c.b16 %v3618, %v3616
    %v3689 = vpack.c.b16 %v3619, %v3617
    %v3690 = vpack.c.b16 %v3622, %v3620
    %v3691 = vpack.c.b16 %v3623, %v3621
    %v3692 = vpack.c.b16 %v3626, %v3624
    %v3693 = vpack.c.b16 %v3627, %v3625
    %v3694 = vpack.c.b16 %v3630, %v3628
    %v3695 = vpack.c.b16 %v3631, %v3629
    %v3696 = vpack.c.b16 %v3634, %v3632
    %v3697 = vpack.c.b16 %v3635, %v3633
    %v3698 = vpack.c.b16 %v3638, %v3636
    %v3699 = vpack.c.b16 %v3639, %v3637
    %v3700 = vpack.c.b16 %v3642, %v3640
    %v3701 = vpack.c.b16 %v3643, %v3641
    %v3702 = vpack.c.b16 %v3646, %v3644
    %v3703 = vpack.c.b16 %v3647, %v3645
    %v3704 = vpack.c.b16 %v3650, %v3648
    %v3705 = vpack.c.b16 %v3651, %v3649
    %v3706 = vpack.c.b16 %v3654, %v3652
    %v3707 = vpack.c.b16 %v3655, %v3653
    %v3708 = vpack.c.b16 %v3658, %v3656
    %v3709 = vpack.c.b16 %v3659, %v3657
    %v3710 = vpack.c.b16 %v3662, %v3660
    %v3711 = vpack.c.b16 %v3663, %v3661
    %v3712 = vpack.c.b16 %v3666, %v3664
    %v3713 = vpack.c.b16 %v3667, %v3665
    %v3714 = vpack.c.b16 %v3670, %v3668
    %v3715 = vpack.c.b16 %v3671, %v3669
    %v3716 = vpack.c.b16 %v3674, %v3672
    %v3717 = vpack.c.b16 %v3675, %v3673
    %v3718 = vpack.c.b16 %v3678, %v3676
    %v3719 = vpack.c.b16 %v3679, %v3677
    %v3720 = vpack.c.b16 %v3682, %v3680
    %v3721 = vpack.c.b16 %v3683, %v3681
    %v3722 = vpack.c.b16 %v3686, %v3684
    %v3723 = vpack.c.b16 %v3687, %v3685
    %v3761 = vsel %vm2257, %v3139, 0
    %3763 = vmatprep.subr.bf16.mxu0 %v3689
    %3764 = vmatpush1.bf16.msra.mxu0 %v3688
    %3765 = vmatprep.subr.bf16.mxu0 %v3691
    %3766 = vmatpush1.bf16.msra.mxu0 %v3690
    %3767 = vmatprep.subr.bf16.mxu0 %v3693
    %3768 = vmatpush1.bf16.msra.mxu0 %v3692
    %3769 = vmatprep.subr.bf16.mxu0 %v3695
    %3770 = vmatpush1.bf16.msra.mxu0 %v3694
    %3771 = vmatprep.subr.bf16.mxu0 %v3697
    %3772 = vmatpush1.bf16.msra.mxu0 %v3696
    %3773 = vmatprep.subr.bf16.mxu0 %v3699
    %3774 = vmatpush1.bf16.msra.mxu0 %v3698
    %3775 = vmatprep.subr.bf16.mxu0 %v3701
    %3776 = vmatpush1.bf16.msra.mxu0 %v3700
    %3777 = vmatprep.subr.bf16.mxu0 %v3703
    %3778 = vmatpush1.bf16.msra.mxu0 %v3702
    %3779 = vmatprep.subr.bf16.mxu0 %v3705
    %3780 = vmatpush1.bf16.msra.mxu0 %v3704
    %3781 = vmatprep.subr.bf16.mxu0 %v3707
    %3782 = vmatpush1.bf16.msra.mxu0 %v3706
    %3783 = vmatprep.subr.bf16.mxu0 %v3709
    %3784 = vmatpush1.bf16.msra.mxu0 %v3708
    %3785 = vmatprep.subr.bf16.mxu0 %v3711
    %3786 = vmatpush1.bf16.msra.mxu0 %v3710
    %3787 = vmatprep.subr.bf16.mxu0 %v3713
    %3788 = vmatpush1.bf16.msra.mxu0 %v3712
    %3789 = vmatprep.subr.bf16.mxu0 %v3715
    %3790 = vmatpush1.bf16.msra.mxu0 %v3714
    %3791 = vmatprep.subr.bf16.mxu0 %v3717
    %3792 = vmatpush1.bf16.msra.mxu0 %v3716
    %3793 = vmatprep.subr.bf16.mxu0 %v3719
    %3794 = vmatpush1.bf16.msra.mxu0 %v3718
    %3795 = vmatprep.mubr.bf16.mxu0 %v3138
    %3796 = vmatmul.mubr.bf16.gmra.mrb[0].mxu0 %v3137
    %v3797 = vpop.f32.mrb[0].mxu0
    %v3798 = vadd.f32 %v3572, %v3797
    %v3799 = vpop.f32.mrb[0].mxu0
    %v3800 = vadd.f32 %v3574, %v3799
    %v3801 = vpop.f32.mrb[0].mxu0
    %v3802 = vadd.f32 %v3576, %v3801
    %v3803 = vpop.f32.mrb[0].mxu0
    %v3804 = vadd.f32 %v3578, %v3803
    %3805 = vdwg.mxu0
    %3806 = vmatprep.subr.bf16.mxu0 %v3721
    %3807 = vmatpush1.bf16.msra.mxu0 %v3720
    %3808 = vmatprep.subr.bf16.mxu0 %v3723
    %3809 = vmatpush1.bf16.msra.mxu0 %v3722
    %3810 = vmatprep.subr.bf16.mxu0 0
    %3811 = vmatpush1.bf16.msra.mxu0 0
    %3812 = vmatprep.subr.bf16.mxu0 0
    %3813 = vmatpush1.bf16.msra.mxu0 0
    %3814 = vmatprep.subr.bf16.mxu0 0
    %3815 = vmatpush1.bf16.msra.mxu0 0
    %3816 = vmatprep.subr.bf16.mxu0 0
    %3817 = vmatpush1.bf16.msra.mxu0 0
    %3818 = vmatprep.subr.bf16.mxu0 0
    %3819 = vmatpush1.bf16.msra.mxu0 0
    %3820 = vmatprep.subr.bf16.mxu0 0
    %3821 = vmatpush1.bf16.msra.mxu0 0
    %3822 = vmatprep.subr.bf16.mxu0 0
    %3823 = vmatpush1.bf16.msra.mxu0 0
    %3824 = vmatprep.subr.bf16.mxu0 0
    %3825 = vmatpush1.bf16.msra.mxu0 0
    %3826 = vmatprep.subr.bf16.mxu0 0
    %3827 = vmatpush1.bf16.msra.mxu0 0
    %3828 = vmatprep.subr.bf16.mxu0 0
    %3829 = vmatpush1.bf16.msra.mxu0 0
    %3830 = vmatprep.subr.bf16.mxu0 0
    %3831 = vmatpush1.bf16.msra.mxu0 0
    %3832 = vmatprep.subr.bf16.mxu0 0
    %3833 = vmatpush1.bf16.msra.mxu0 0
    %3834 = vmatprep.subr.bf16.mxu0 0
    %3835 = vmatpush1.bf16.msra.mxu0 0
    %3836 = vmatprep.subr.bf16.mxu0 0
    %3837 = vmatpush1.bf16.msra.mxu0 0
    %3838 = vmatprep.mubr.bf16.mxu0 0
    %3839 = vmatmul.mubr.bf16.gmra.mrb[0].mxu0 %v3761
    %v3840 = vpop.f32.mrb[0].mxu0
    %v3841 = vadd.f32 %v3798, %v3840
    %v3842 = vpop.f32.mrb[0].mxu0
    %v3843 = vadd.f32 %v3800, %v3842
    %v3844 = vpop.f32.mrb[0].mxu0
    %v3845 = vadd.f32 %v3802, %v3844
    %v3846 = vpop.f32.mrb[0].mxu0
    %v3847 = vadd.f32 %v3804, %v3846
    %3848 = vdwg.mxu0
    %s3849 = scalar_lea.vmem [#allocation10], 16
    %v3850 = vld [vmem:[%s3849] sm:$0xf]
    %v3851 = vld [vmem:[%s3849 + $0x4] sm:$0x7]
    %v3854 = vunpack.c.l.b16 %v3850
    %v3855 = vunpack.c.l.b16 %v3851
    %v3856 = vpack.c.b16 %v3855, %v3854
    %v3858 = vsel %vm3039, %v3856, 0
    %3860 = vmatprep.subr.bf16.mxu0 %v3024
    %3861 = vmatpush1.bf16.msra.mxu0 %v3023
    %3862 = vmatprep.subr.bf16.mxu0 %v3027
    %3863 = vmatpush1.bf16.msra.mxu0 %v3026
    %3864 = vmatprep.subr.bf16.mxu0 %v3048
    %3865 = vmatpush1.bf16.msra.mxu0 %v3045
    %3866 = vmatprep.subr.bf16.mxu0 0
    %3867 = vmatpush1.bf16.msra.mxu0 0
    %3868 = vmatprep.subr.bf16.mxu0 0
    %3869 = vmatpush1.bf16.msra.mxu0 0
    %3870 = vmatprep.subr.bf16.mxu0 0
    %3871 = vmatpush1.bf16.msra.mxu0 0
    %3872 = vmatprep.subr.bf16.mxu0 0
    %3873 = vmatpush1.bf16.msra.mxu0 0
    %3874 = vmatprep.subr.bf16.mxu0 0
    %3875 = vmatpush1.bf16.msra.mxu0 0
    %3876 = vmatprep.subr.bf16.mxu0 0
    %3877 = vmatpush1.bf16.msra.mxu0 0
    %3878 = vmatprep.subr.bf16.mxu0 0
    %3879 = vmatpush1.bf16.msra.mxu0 0
    %3880 = vmatprep.subr.bf16.mxu0 0
    %3881 = vmatpush1.bf16.msra.mxu0 0
    %3882 = vmatprep.subr.bf16.mxu0 0
    %3883 = vmatpush1.bf16.msra.mxu0 0
    %3884 = vmatprep.subr.bf16.mxu0 0
    %3885 = vmatpush1.bf16.msra.mxu0 0
    %3886 = vmatprep.subr.bf16.mxu0 0
    %3887 = vmatpush1.bf16.msra.mxu0 0
    %3888 = vmatprep.subr.bf16.mxu0 0
    %3889 = vmatpush1.bf16.msra.mxu0 0
    %3890 = vmatprep.subr.bf16.mxu0 0
    %3891 = vmatpush1.bf16.msra.mxu0 0
    %3892 = vmatprep.mubr.bf16.mxu0 0
    %3893 = vmatmul.mubr.bf16.gmra.mrb[0].mxu0 %v3858
    %v3894 = vpop.f32.mrb[0].mxu0
    %v3895 = vadd.f32 0.0, %v3894
    %v3896 = vpop.f32.mrb[0].mxu0
    %v3897 = vadd.f32 0.0, %v3896
    %v3898 = vpop.f32.mrb[0].mxu0
    %v3899 = vadd.f32 0.0, %v3898
    %v3900 = vpop.f32.mrb[0].mxu0
    %v3901 = vadd.f32 0.0, %v3900
    %3902 = vdwg.mxu0
    %3903 = vmatprep.subr.bf16.mxu0 0
    %3904 = vmatpush1.bf16.msra.mxu0 %v3025
    %3905 = vmatprep.subr.bf16.mxu0 0
    %3906 = vmatpush1.bf16.msra.mxu0 %v3028
    %3907 = vmatprep.subr.bf16.mxu0 0
    %3908 = vmatpush1.bf16.msra.mxu0 %v3051
    %3909 = vmatprep.subr.bf16.mxu0 0
    %3910 = vmatpush1.bf16.msra.mxu0 0
    %3911 = vmatprep.subr.bf16.mxu0 0
    %3912 = vmatpush1.bf16.msra.mxu0 0
    %3913 = vmatprep.subr.bf16.mxu0 0
    %3914 = vmatpush1.bf16.msra.mxu0 0
    %3915 = vmatprep.subr.bf16.mxu0 0
    %3916 = vmatpush1.bf16.msra.mxu0 0
    %3917 = vmatprep.subr.bf16.mxu0 0
    %3918 = vmatpush1.bf16.msra.mxu0 0
    %3919 = vmatprep.subr.bf16.mxu0 0
    %3920 = vmatpush1.bf16.msra.mxu0 0
    %3921 = vmatprep.subr.bf16.mxu0 0
    %3922 = vmatpush1.bf16.msra.mxu0 0
    %3923 = vmatprep.subr.bf16.mxu0 0
    %3924 = vmatpush1.bf16.msra.mxu0 0
    %3925 = vmatprep.subr.bf16.mxu0 0
    %3926 = vmatpush1.bf16.msra.mxu0 0
    %3927 = vmatprep.subr.bf16.mxu0 0
    %3928 = vmatpush1.bf16.msra.mxu0 0
    %3929 = vmatprep.subr.bf16.mxu0 0
    %3930 = vmatpush1.bf16.msra.mxu0 0
    %3931 = vmatprep.subr.bf16.mxu0 0
    %3932 = vmatpush1.bf16.msra.mxu0 0
    %3933 = vmatprep.subr.bf16.mxu0 0
    %3934 = vmatpush1.bf16.msra.mxu0 0
    %3935 = vmatprep.mubr.bf16.mxu0 0
    %3936 = vmatmul.mubr.bf16.gmra.mrb[0].mxu0 %v3858
    %v3937 = vpop.f32.mrb[0].mxu0
    %v3938 = vadd.f32 0.0, %v3937
    %v3939 = vpop.f32.mrb[0].mxu0
    %v3940 = vpop.f32.mrb[0].mxu0
    %v3941 = vadd.f32 0.0, %v3940
    %v3942 = vpop.f32.mrb[0].mxu0
    %3943 = vdwg.mxu0
    %v3944 = vpack.c.bf16 %v3899, %v3895
    %v3945 = vpack.c.bf16 %v3901, %v3897
    %v3946 = vpack.c.bf16 %v3941, %v3938
    %s3947 = scalar_lea.vmem %s19, 576
    %v3948 = vld [vmem:[%s3947] sm:$0xff]
    %v3949 = vld [vmem:[%s3947 + $0x8] sm:$0xff]
    %v3950 = vld [vmem:[%s3947 + $0x10] sm:$0xff]
    %v3951 = vld [vmem:[%s3947 + $0x18] sm:$0xff]
    %v3952 = vld [vmem:[%s3947 + $0x20] sm:$0xff]
    %v3953 = vld [vmem:[%s3947 + $0x28] sm:$0xff]
    %v3954 = vld [vmem:[%s3947 + $0x30] sm:$0xff]
    %v3955 = vld [vmem:[%s3947 + $0x38] sm:$0xff]
    %v3956 = vld [vmem:[%s3947 + $0x40] sm:$0xff]
    %v3957 = vld [vmem:[%s3947 + $0x48] sm:$0xff]
    %v3958 = vld [vmem:[%s3947 + $0x50] sm:$0xff]
    %v3959 = vld [vmem:[%s3947 + $0x58] sm:$0xff]
    %v3960 = vld [vmem:[%s3947 + $0x60] sm:$0xff]
    %v3961 = vld [vmem:[%s3947 + $0x68] sm:$0xff]
    %v3962 = vld [vmem:[%s3947 + $0x70] sm:$0xff]
    %v3963 = vld [vmem:[%s3947 + $0x78] sm:$0xff]
    %v3964 = vld [vmem:[%s3947 + $0x80] sm:$0xff]
    %v3965 = vld [vmem:[%s3947 + $0x88] sm:$0xff]
    %v3966 = vld [vmem:[%s3947 + $0x90] sm:$0xff]
    %v3967 = vld [vmem:[%s3947 + $0x98] sm:$0xff]
    %v3968 = vld [vmem:[%s3947 + $0xa0] sm:$0xff]
    %v3969 = vld [vmem:[%s3947 + $0xa8] sm:$0xff]
    %v3970 = vld [vmem:[%s3947 + $0xb0] sm:$0xff]
    %v3971 = vld [vmem:[%s3947 + $0xb8] sm:$0xff]
    %v3972 = vld [vmem:[%s3947 + $0xc0] sm:$0xff]
    %v3973 = vld [vmem:[%s3947 + $0xc8] sm:$0xff]
    %v3974 = vld [vmem:[%s3947 + $0xd0] sm:$0xff]
    %v3975 = vld [vmem:[%s3947 + $0xd8] sm:$0xff]
    %v3976 = vld [vmem:[%s3947 + $0xe0] sm:$0xff]
    %v3977 = vld [vmem:[%s3947 + $0xe8] sm:$0xff]
    %v3978 = vld [vmem:[%s3947 + $0xf0] sm:$0xff]
    %v3979 = vld [vmem:[%s3947 + $0xf8] sm:$0xff]
    %v3980 = vld [vmem:[%s3947 + $0x100] sm:$0xff]
    %v3981 = vld [vmem:[%s3947 + $0x108] sm:$0xff]
    %v3982 = vld [vmem:[%s3947 + $0x110] sm:$0xff]
    %v3983 = vld [vmem:[%s3947 + $0x118] sm:$0xff]
    %v4020 = vunpack.c.l.b16 %v3948
    %v4021 = vunpack.c.h.b16 %v3948
    %v4022 = vunpack.c.l.b16 %v3949
    %v4023 = vunpack.c.h.b16 %v3949
    %v4024 = vunpack.c.l.b16 %v3950
    %v4025 = vunpack.c.h.b16 %v3950
    %v4026 = vunpack.c.l.b16 %v3951
    %v4027 = vunpack.c.h.b16 %v3951
    %v4028 = vunpack.c.l.b16 %v3952
    %v4029 = vunpack.c.h.b16 %v3952
    %v4030 = vunpack.c.l.b16 %v3953
    %v4031 = vunpack.c.h.b16 %v3953
    %v4032 = vunpack.c.l.b16 %v3954
    %v4033 = vunpack.c.h.b16 %v3954
    %v4034 = vunpack.c.l.b16 %v3955
    %v4035 = vunpack.c.h.b16 %v3955
    %v4036 = vunpack.c.l.b16 %v3956
    %v4037 = vunpack.c.h.b16 %v3956
    %v4038 = vunpack.c.l.b16 %v3957
    %v4039 = vunpack.c.h.b16 %v3957
    %v4040 = vunpack.c.l.b16 %v3958
    %v4041 = vunpack.c.h.b16 %v3958
    %v4042 = vunpack.c.l.b16 %v3959
    %v4043 = vunpack.c.h.b16 %v3959
    %v4044 = vunpack.c.l.b16 %v3960
    %v4045 = vunpack.c.h.b16 %v3960
    %v4046 = vunpack.c.l.b16 %v3961
    %v4047 = vunpack.c.h.b16 %v3961
    %v4048 = vunpack.c.l.b16 %v3962
    %v4049 = vunpack.c.h.b16 %v3962
    %v4050 = vunpack.c.l.b16 %v3963
    %v4051 = vunpack.c.h.b16 %v3963
    %v4052 = vunpack.c.l.b16 %v3964
    %v4053 = vunpack.c.h.b16 %v3964
    %v4054 = vunpack.c.l.b16 %v3965
    %v4055 = vunpack.c.h.b16 %v3965
    %v4056 = vunpack.c.l.b16 %v3966
    %v4057 = vunpack.c.h.b16 %v3966
    %v4058 = vunpack.c.l.b16 %v3967
    %v4059 = vunpack.c.h.b16 %v3967
    %v4060 = vunpack.c.l.b16 %v3968
    %v4061 = vunpack.c.h.b16 %v3968
    %v4062 = vunpack.c.l.b16 %v3969
    %v4063 = vunpack.c.h.b16 %v3969
    %v4064 = vunpack.c.l.b16 %v3970
    %v4065 = vunpack.c.h.b16 %v3970
    %v4066 = vunpack.c.l.b16 %v3971
    %v4067 = vunpack.c.h.b16 %v3971
    %v4068 = vunpack.c.l.b16 %v3972
    %v4069 = vunpack.c.h.b16 %v3972
    %v4070 = vunpack.c.l.b16 %v3973
    %v4071 = vunpack.c.h.b16 %v3973
    %v4072 = vunpack.c.l.b16 %v3974
    %v4073 = vunpack.c.h.b16 %v3974
    %v4074 = vunpack.c.l.b16 %v3975
    %v4075 = vunpack.c.h.b16 %v3975
    %v4076 = vunpack.c.l.b16 %v3976
    %v4077 = vunpack.c.h.b16 %v3976
    %v4078 = vunpack.c.l.b16 %v3977
    %v4079 = vunpack.c.h.b16 %v3977
    %v4080 = vunpack.c.l.b16 %v3978
    %v4081 = vunpack.c.h.b16 %v3978
    %v4082 = vunpack.c.l.b16 %v3979
    %v4083 = vunpack.c.h.b16 %v3979
    %v4084 = vunpack.c.l.b16 %v3980
    %v4085 = vunpack.c.h.b16 %v3980
    %v4086 = vunpack.c.l.b16 %v3981
    %v4087 = vunpack.c.h.b16 %v3981
    %v4088 = vunpack.c.l.b16 %v3982
    %v4089 = vunpack.c.h.b16 %v3982
    %v4090 = vunpack.c.l.b16 %v3983
    %v4091 = vunpack.c.h.b16 %v3983
    %v4092 = vpack.c.b16 %v4022, %v4020
    %v4093 = vpack.c.b16 %v4023, %v4021
    %v4094 = vpack.c.b16 %v4026, %v4024
    %v4095 = vpack.c.b16 %v4027, %v4025
    %v4096 = vpack.c.b16 %v4030, %v4028
    %v4097 = vpack.c.b16 %v4031, %v4029
    %v4098 = vpack.c.b16 %v4034, %v4032
    %v4099 = vpack.c.b16 %v4035, %v4033
    %v4100 = vpack.c.b16 %v4038, %v4036
    %v4101 = vpack.c.b16 %v4039, %v4037
    %v4102 = vpack.c.b16 %v4042, %v4040
    %v4103 = vpack.c.b16 %v4043, %v4041
    %v4104 = vpack.c.b16 %v4046, %v4044
    %v4105 = vpack.c.b16 %v4047, %v4045
    %v4106 = vpack.c.b16 %v4050, %v4048
    %v4107 = vpack.c.b16 %v4051, %v4049
    %v4108 = vpack.c.b16 %v4054, %v4052
    %v4109 = vpack.c.b16 %v4055, %v4053
    %v4110 = vpack.c.b16 %v4058, %v4056
    %v4111 = vpack.c.b16 %v4059, %v4057
    %v4112 = vpack.c.b16 %v4062, %v4060
    %v4113 = vpack.c.b16 %v4063, %v4061
    %v4114 = vpack.c.b16 %v4066, %v4064
    %v4115 = vpack.c.b16 %v4067, %v4065
    %v4116 = vpack.c.b16 %v4070, %v4068
    %v4117 = vpack.c.b16 %v4071, %v4069
    %v4118 = vpack.c.b16 %v4074, %v4072
    %v4119 = vpack.c.b16 %v4075, %v4073
    %v4120 = vpack.c.b16 %v4078, %v4076
    %v4121 = vpack.c.b16 %v4079, %v4077
    %v4122 = vpack.c.b16 %v4082, %v4080
    %v4123 = vpack.c.b16 %v4083, %v4081
    %v4124 = vpack.c.b16 %v4086, %v4084
    %v4125 = vpack.c.b16 %v4087, %v4085
    %v4126 = vpack.c.b16 %v4090, %v4088
    %v4127 = vpack.c.b16 %v4091, %v4089
    %v4165 = vsel %vm2257, %v3946, 0
    %4167 = vmatprep.subr.bf16.mxu0 %v4093
    %4168 = vmatpush1.bf16.msra.mxu0 %v4092
    %4169 = vmatprep.subr.bf16.mxu0 %v4095
    %4170 = vmatpush1.bf16.msra.mxu0 %v4094
    %4171 = vmatprep.subr.bf16.mxu0 %v4097
    %4172 = vmatpush1.bf16.msra.mxu0 %v4096
    %4173 = vmatprep.subr.bf16.mxu0 %v4099
    %4174 = vmatpush1.bf16.msra.mxu0 %v4098
    %4175 = vmatprep.subr.bf16.mxu0 %v4101
    %4176 = vmatpush1.bf16.msra.mxu0 %v4100
    %4177 = vmatprep.subr.bf16.mxu0 %v4103
    %4178 = vmatpush1.bf16.msra.mxu0 %v4102
    %4179 = vmatprep.subr.bf16.mxu0 %v4105
    %4180 = vmatpush1.bf16.msra.mxu0 %v4104
    %4181 = vmatprep.subr.bf16.mxu0 %v4107
    %4182 = vmatpush1.bf16.msra.mxu0 %v4106
    %4183 = vmatprep.subr.bf16.mxu0 %v4109
    %4184 = vmatpush1.bf16.msra.mxu0 %v4108
    %4185 = vmatprep.subr.bf16.mxu0 %v4111
    %4186 = vmatpush1.bf16.msra.mxu0 %v4110
    %4187 = vmatprep.subr.bf16.mxu0 %v4113
    %4188 = vmatpush1.bf16.msra.mxu0 %v4112
    %4189 = vmatprep.subr.bf16.mxu0 %v4115
    %4190 = vmatpush1.bf16.msra.mxu0 %v4114
    %4191 = vmatprep.subr.bf16.mxu0 %v4117
    %4192 = vmatpush1.bf16.msra.mxu0 %v4116
    %4193 = vmatprep.subr.bf16.mxu0 %v4119
    %4194 = vmatpush1.bf16.msra.mxu0 %v4118
    %4195 = vmatprep.subr.bf16.mxu0 %v4121
    %4196 = vmatpush1.bf16.msra.mxu0 %v4120
    %4197 = vmatprep.subr.bf16.mxu0 %v4123
    %4198 = vmatpush1.bf16.msra.mxu0 %v4122
    %4199 = vmatprep.mubr.bf16.mxu0 %v3945
    %4200 = vmatmul.mubr.bf16.gmra.mrb[0].mxu0 %v3944
    %v4201 = vpop.f32.mrb[0].mxu0
    %v4202 = vadd.f32 0.0, %v4201
    %v4203 = vpop.f32.mrb[0].mxu0
    %v4204 = vadd.f32 0.0, %v4203
    %v4205 = vpop.f32.mrb[0].mxu0
    %v4206 = vadd.f32 0.0, %v4205
    %v4207 = vpop.f32.mrb[0].mxu0
    %v4208 = vadd.f32 0.0, %v4207
    %4209 = vdwg.mxu0
    %4210 = vmatprep.subr.bf16.mxu0 %v4125
    %4211 = vmatpush1.bf16.msra.mxu0 %v4124
    %4212 = vmatprep.subr.bf16.mxu0 %v4127
    %4213 = vmatpush1.bf16.msra.mxu0 %v4126
    %4214 = vmatprep.subr.bf16.mxu0 0
    %4215 = vmatpush1.bf16.msra.mxu0 0
    %4216 = vmatprep.subr.bf16.mxu0 0
    %4217 = vmatpush1.bf16.msra.mxu0 0
    %4218 = vmatprep.subr.bf16.mxu0 0
    %4219 = vmatpush1.bf16.msra.mxu0 0
    %4220 = vmatprep.subr.bf16.mxu0 0
    %4221 = vmatpush1.bf16.msra.mxu0 0
    %4222 = vmatprep.subr.bf16.mxu0 0
    %4223 = vmatpush1.bf16.msra.mxu0 0
    %4224 = vmatprep.subr.bf16.mxu0 0
    %4225 = vmatpush1.bf16.msra.mxu0 0
    %4226 = vmatprep.subr.bf16.mxu0 0
    %4227 = vmatpush1.bf16.msra.mxu0 0
    %4228 = vmatprep.subr.bf16.mxu0 0
    %4229 = vmatpush1.bf16.msra.mxu0 0
    %4230 = vmatprep.subr.bf16.mxu0 0
    %4231 = vmatpush1.bf16.msra.mxu0 0
    %4232 = vmatprep.subr.bf16.mxu0 0
    %4233 = vmatpush1.bf16.msra.mxu0 0
    %4234 = vmatprep.subr.bf16.mxu0 0
    %4235 = vmatpush1.bf16.msra.mxu0 0
    %4236 = vmatprep.subr.bf16.mxu0 0
    %4237 = vmatpush1.bf16.msra.mxu0 0
    %4238 = vmatprep.subr.bf16.mxu0 0
    %4239 = vmatpush1.bf16.msra.mxu0 0
    %4240 = vmatprep.subr.bf16.mxu0 0
    %4241 = vmatpush1.bf16.msra.mxu0 0
    %4242 = vmatprep.mubr.bf16.mxu0 0
    %4243 = vmatmul.mubr.bf16.gmra.mrb[0].mxu0 %v4165
    %v4244 = vpop.f32.mrb[0].mxu0
    %v4245 = vadd.f32 %v4202, %v4244
    %v4246 = vpop.f32.mrb[0].mxu0
    %v4247 = vadd.f32 %v4204, %v4246
    %v4248 = vpop.f32.mrb[0].mxu0
    %v4249 = vadd.f32 %v4206, %v4248
    %v4250 = vpop.f32.mrb[0].mxu0
    %v4251 = vadd.f32 %v4208, %v4250
    %4252 = vdwg.mxu0
    %v4253 = vadd.f32 %v3841, %v4245
    %v4254 = vadd.f32 %v3843, %v4247
    %v4255 = vadd.f32 %v3845, %v4249
    %v4256 = vadd.f32 %v3847, %v4251
    %s4257 = scalar_lea.vmem [#allocation10], 24
    %v4258 = vld [vmem:[%s4257] sm:$0xf]
    %v4259 = vld [vmem:[%s4257 + $0x4] sm:$0x7]
    %v4262 = vunpack.c.l.b16 %v4258
    %v4263 = vunpack.c.l.b16 %v4259
    %v4264 = vpack.c.b16 %v4263, %v4262
    %v4266 = vsel %vm3039, %v4264, 0
    %4268 = vmatprep.subr.bf16.mxu0 %v3024
    %4269 = vmatpush1.bf16.msra.mxu0 %v3023
    %4270 = vmatprep.subr.bf16.mxu0 %v3027
    %4271 = vmatpush1.bf16.msra.mxu0 %v3026
    %4272 = vmatprep.subr.bf16.mxu0 %v3048
    %4273 = vmatpush1.bf16.msra.mxu0 %v3045
    %4274 = vmatprep.subr.bf16.mxu0 0
    %4275 = vmatpush1.bf16.msra.mxu0 0
    %4276 = vmatprep.subr.bf16.mxu0 0
    %4277 = vmatpush1.bf16.msra.mxu0 0
    %4278 = vmatprep.subr.bf16.mxu0 0
    %4279 = vmatpush1.bf16.msra.mxu0 0
    %4280 = vmatprep.subr.bf16.mxu0 0
    %4281 = vmatpush1.bf16.msra.mxu0 0
    %4282 = vmatprep.subr.bf16.mxu0 0
    %4283 = vmatpush1.bf16.msra.mxu0 0
    %4284 = vmatprep.subr.bf16.mxu0 0
    %4285 = vmatpush1.bf16.msra.mxu0 0
    %4286 = vmatprep.subr.bf16.mxu0 0
    %4287 = vmatpush1.bf16.msra.mxu0 0
    %4288 = vmatprep.subr.bf16.mxu0 0
    %4289 = vmatpush1.bf16.msra.mxu0 0
    %4290 = vmatprep.subr.bf16.mxu0 0
    %4291 = vmatpush1.bf16.msra.mxu0 0
    %4292 = vmatprep.subr.bf16.mxu0 0
    %4293 = vmatpush1.bf16.msra.mxu0 0
    %4294 = vmatprep.subr.bf16.mxu0 0
    %4295 = vmatpush1.bf16.msra.mxu0 0
    %4296 = vmatprep.subr.bf16.mxu0 0
    %4297 = vmatpush1.bf16.msra.mxu0 0
    %4298 = vmatprep.subr.bf16.mxu0 0
    %4299 = vmatpush1.bf16.msra.mxu0 0
    %4300 = vmatprep.mubr.bf16.mxu0 0
    %4301 = vmatmul.mubr.bf16.gmra.mrb[0].mxu0 %v4266
    %v4302 = vpop.f32.mrb[0].mxu0
    %v4303 = vadd.f32 0.0, %v4302
    %v4304 = vpop.f32.mrb[0].mxu0
    %v4305 = vadd.f32 0.0, %v4304
    %v4306 = vpop.f32.mrb[0].mxu0
    %v4307 = vadd.f32 0.0, %v4306
    %v4308 = vpop.f32.mrb[0].mxu0
    %v4309 = vadd.f32 0.0, %v4308
    %4310 = vdwg.mxu0
    %4311 = vmatprep.subr.bf16.mxu0 0
    %4312 = vmatpush1.bf16.msra.mxu0 %v3025
    %4313 = vmatprep.subr.bf16.mxu0 0
    %4314 = vmatpush1.bf16.msra.mxu0 %v3028
    %4315 = vmatprep.subr.bf16.mxu0 0
    %4316 = vmatpush1.bf16.msra.mxu0 %v3051
    %4317 = vmatprep.subr.bf16.mxu0 0
    %4318 = vmatpush1.bf16.msra.mxu0 0
    %4319 = vmatprep.subr.bf16.mxu0 0
    %4320 = vmatpush1.bf16.msra.mxu0 0
    %4321 = vmatprep.subr.bf16.mxu0 0
    %4322 = vmatpush1.bf16.msra.mxu0 0
    %4323 = vmatprep.subr.bf16.mxu0 0
    %4324 = vmatpush1.bf16.msra.mxu0 0
    %4325 = vmatprep.subr.bf16.mxu0 0
    %4326 = vmatpush1.bf16.msra.mxu0 0
    %4327 = vmatprep.subr.bf16.mxu0 0
    %4328 = vmatpush1.bf16.msra.mxu0 0
    %4329 = vmatprep.subr.bf16.mxu0 0
    %4330 = vmatpush1.bf16.msra.mxu0 0
    %4331 = vmatprep.subr.bf16.mxu0 0
    %4332 = vmatpush1.bf16.msra.mxu0 0
    %4333 = vmatprep.subr.bf16.mxu0 0
    %4334 = vmatpush1.bf16.msra.mxu0 0
    %4335 = vmatprep.subr.bf16.mxu0 0
    %4336 = vmatpush1.bf16.msra.mxu0 0
    %4337 = vmatprep.subr.bf16.mxu0 0
    %4338 = vmatpush1.bf16.msra.mxu0 0
    %4339 = vmatprep.subr.bf16.mxu0 0
    %4340 = vmatpush1.bf16.msra.mxu0 0
    %4341 = vmatprep.subr.bf16.mxu0 0
    %4342 = vmatpush1.bf16.msra.mxu0 0
    %4343 = vmatprep.mubr.bf16.mxu0 0
    %4344 = vmatmul.mubr.bf16.gmra.mrb[0].mxu0 %v4266
    %v4345 = vpop.f32.mrb[0].mxu0
    %v4346 = vadd.f32 0.0, %v4345
    %v4347 = vpop.f32.mrb[0].mxu0
    %v4348 = vpop.f32.mrb[0].mxu0
    %v4349 = vadd.f32 0.0, %v4348
    %v4350 = vpop.f32.mrb[0].mxu0
    %4351 = vdwg.mxu0
    %v4352 = vpack.c.bf16 %v4307, %v4303
    %v4353 = vpack.c.bf16 %v4309, %v4305
    %v4354 = vpack.c.bf16 %v4349, %v4346
    %s4355 = scalar_lea.vmem %s19, 864
    %v4356 = vld [vmem:[%s4355] sm:$0xff]
    %v4357 = vld [vmem:[%s4355 + $0x8] sm:$0xff]
    %v4358 = vld [vmem:[%s4355 + $0x10] sm:$0xff]
    %v4359 = vld [vmem:[%s4355 + $0x18] sm:$0xff]
    %v4360 = vld [vmem:[%s4355 + $0x20] sm:$0xff]
    %v4361 = vld [vmem:[%s4355 + $0x28] sm:$0xff]
    %v4362 = vld [vmem:[%s4355 + $0x30] sm:$0xff]
    %v4363 = vld [vmem:[%s4355 + $0x38] sm:$0xff]
    %v4364 = vld [vmem:[%s4355 + $0x40] sm:$0xff]
    %v4365 = vld [vmem:[%s4355 + $0x48] sm:$0xff]
    %v4366 = vld [vmem:[%s4355 + $0x50] sm:$0xff]
    %v4367 = vld [vmem:[%s4355 + $0x58] sm:$0xff]
    %v4368 = vld [vmem:[%s4355 + $0x60] sm:$0xff]
    %v4369 = vld [vmem:[%s4355 + $0x68] sm:$0xff]
    %v4370 = vld [vmem:[%s4355 + $0x70] sm:$0xff]
    %v4371 = vld [vmem:[%s4355 + $0x78] sm:$0xff]
    %v4372 = vld [vmem:[%s4355 + $0x80] sm:$0xff]
    %v4373 = vld [vmem:[%s4355 + $0x88] sm:$0xff]
    %v4374 = vld [vmem:[%s4355 + $0x90] sm:$0xff]
    %v4375 = vld [vmem:[%s4355 + $0x98] sm:$0xff]
    %v4376 = vld [vmem:[%s4355 + $0xa0] sm:$0xff]
    %v4377 = vld [vmem:[%s4355 + $0xa8] sm:$0xff]
    %v4378 = vld [vmem:[%s4355 + $0xb0] sm:$0xff]
    %v4379 = vld [vmem:[%s4355 + $0xb8] sm:$0xff]
    %v4380 = vld [vmem:[%s4355 + $0xc0] sm:$0xff]
    %v4381 = vld [vmem:[%s4355 + $0xc8] sm:$0xff]
    %v4382 = vld [vmem:[%s4355 + $0xd0] sm:$0xff]
    %v4383 = vld [vmem:[%s4355 + $0xd8] sm:$0xff]
    %v4384 = vld [vmem:[%s4355 + $0xe0] sm:$0xff]
    %v4385 = vld [vmem:[%s4355 + $0xe8] sm:$0xff]
    %v4386 = vld [vmem:[%s4355 + $0xf0] sm:$0xff]
    %v4387 = vld [vmem:[%s4355 + $0xf8] sm:$0xff]
    %v4388 = vld [vmem:[%s4355 + $0x100] sm:$0xff]
    %v4389 = vld [vmem:[%s4355 + $0x108] sm:$0xff]
    %v4390 = vld [vmem:[%s4355 + $0x110] sm:$0xff]
    %v4391 = vld [vmem:[%s4355 + $0x118] sm:$0xff]
    %v4428 = vunpack.c.l.b16 %v4356
    %v4429 = vunpack.c.h.b16 %v4356
    %v4430 = vunpack.c.l.b16 %v4357
    %v4431 = vunpack.c.h.b16 %v4357
    %v4432 = vunpack.c.l.b16 %v4358
    %v4433 = vunpack.c.h.b16 %v4358
    %v4434 = vunpack.c.l.b16 %v4359
    %v4435 = vunpack.c.h.b16 %v4359
    %v4436 = vunpack.c.l.b16 %v4360
    %v4437 = vunpack.c.h.b16 %v4360
    %v4438 = vunpack.c.l.b16 %v4361
    %v4439 = vunpack.c.h.b16 %v4361
    %v4440 = vunpack.c.l.b16 %v4362
    %v4441 = vunpack.c.h.b16 %v4362
    %v4442 = vunpack.c.l.b16 %v4363
    %v4443 = vunpack.c.h.b16 %v4363
    %v4444 = vunpack.c.l.b16 %v4364
    %v4445 = vunpack.c.h.b16 %v4364
    %v4446 = vunpack.c.l.b16 %v4365
    %v4447 = vunpack.c.h.b16 %v4365
    %v4448 = vunpack.c.l.b16 %v4366
    %v4449 = vunpack.c.h.b16 %v4366
    %v4450 = vunpack.c.l.b16 %v4367
    %v4451 = vunpack.c.h.b16 %v4367
    %v4452 = vunpack.c.l.b16 %v4368
    %v4453 = vunpack.c.h.b16 %v4368
    %v4454 = vunpack.c.l.b16 %v4369
    %v4455 = vunpack.c.h.b16 %v4369
    %v4456 = vunpack.c.l.b16 %v4370
    %v4457 = vunpack.c.h.b16 %v4370
    %v4458 = vunpack.c.l.b16 %v4371
    %v4459 = vunpack.c.h.b16 %v4371
    %v4460 = vunpack.c.l.b16 %v4372
    %v4461 = vunpack.c.h.b16 %v4372
    %v4462 = vunpack.c.l.b16 %v4373
    %v4463 = vunpack.c.h.b16 %v4373
    %v4464 = vunpack.c.l.b16 %v4374
    %v4465 = vunpack.c.h.b16 %v4374
    %v4466 = vunpack.c.l.b16 %v4375
    %v4467 = vunpack.c.h.b16 %v4375
    %v4468 = vunpack.c.l.b16 %v4376
    %v4469 = vunpack.c.h.b16 %v4376
    %v4470 = vunpack.c.l.b16 %v4377
    %v4471 = vunpack.c.h.b16 %v4377
    %v4472 = vunpack.c.l.b16 %v4378
    %v4473 = vunpack.c.h.b16 %v4378
    %v4474 = vunpack.c.l.b16 %v4379
    %v4475 = vunpack.c.h.b16 %v4379
    %v4476 = vunpack.c.l.b16 %v4380
    %v4477 = vunpack.c.h.b16 %v4380
    %v4478 = vunpack.c.l.b16 %v4381
    %v4479 = vunpack.c.h.b16 %v4381
    %v4480 = vunpack.c.l.b16 %v4382
    %v4481 = vunpack.c.h.b16 %v4382
    %v4482 = vunpack.c.l.b16 %v4383
    %v4483 = vunpack.c.h.b16 %v4383
    %v4484 = vunpack.c.l.b16 %v4384
    %v4485 = vunpack.c.h.b16 %v4384
    %v4486 = vunpack.c.l.b16 %v4385
    %v4487 = vunpack.c.h.b16 %v4385
    %v4488 = vunpack.c.l.b16 %v4386
    %v4489 = vunpack.c.h.b16 %v4386
    %v4490 = vunpack.c.l.b16 %v4387
    %v4491 = vunpack.c.h.b16 %v4387
    %v4492 = vunpack.c.l.b16 %v4388
    %v4493 = vunpack.c.h.b16 %v4388
    %v4494 = vunpack.c.l.b16 %v4389
    %v4495 = vunpack.c.h.b16 %v4389
    %v4496 = vunpack.c.l.b16 %v4390
    %v4497 = vunpack.c.h.b16 %v4390
    %v4498 = vunpack.c.l.b16 %v4391
    %v4499 = vunpack.c.h.b16 %v4391
    %v4500 = vpack.c.b16 %v4430, %v4428
    %v4501 = vpack.c.b16 %v4431, %v4429
    %v4502 = vpack.c.b16 %v4434, %v4432
    %v4503 = vpack.c.b16 %v4435, %v4433
    %v4504 = vpack.c.b16 %v4438, %v4436
    %v4505 = vpack.c.b16 %v4439, %v4437
    %v4506 = vpack.c.b16 %v4442, %v4440
    %v4507 = vpack.c.b16 %v4443, %v4441
    %v4508 = vpack.c.b16 %v4446, %v4444
    %v4509 = vpack.c.b16 %v4447, %v4445
    %v4510 = vpack.c.b16 %v4450, %v4448
    %v4511 = vpack.c.b16 %v4451, %v4449
    %v4512 = vpack.c.b16 %v4454, %v4452
    %v4513 = vpack.c.b16 %v4455, %v4453
    %v4514 = vpack.c.b16 %v4458, %v4456
    %v4515 = vpack.c.b16 %v4459, %v4457
    %v4516 = vpack.c.b16 %v4462, %v4460
    %v4517 = vpack.c.b16 %v4463, %v4461
    %v4518 = vpack.c.b16 %v4466, %v4464
    %v4519 = vpack.c.b16 %v4467, %v4465
    %v4520 = vpack.c.b16 %v4470, %v4468
    %v4521 = vpack.c.b16 %v4471, %v4469
    %v4522 = vpack.c.b16 %v4474, %v4472
    %v4523 = vpack.c.b16 %v4475, %v4473
    %v4524 = vpack.c.b16 %v4478, %v4476
    %v4525 = vpack.c.b16 %v4479, %v4477
    %v4526 = vpack.c.b16 %v4482, %v4480
    %v4527 = vpack.c.b16 %v4483, %v4481
    %v4528 = vpack.c.b16 %v4486, %v4484
    %v4529 = vpack.c.b16 %v4487, %v4485
    %v4530 = vpack.c.b16 %v4490, %v4488
    %v4531 = vpack.c.b16 %v4491, %v4489
    %v4532 = vpack.c.b16 %v4494, %v4492
    %v4533 = vpack.c.b16 %v4495, %v4493
    %v4534 = vpack.c.b16 %v4498, %v4496
    %v4535 = vpack.c.b16 %v4499, %v4497
    %v4573 = vsel %vm2257, %v4354, 0
    %4575 = vmatprep.subr.bf16.mxu0 %v4501
    %4576 = vmatpush1.bf16.msra.mxu0 %v4500
    %4577 = vmatprep.subr.bf16.mxu0 %v4503
    %4578 = vmatpush1.bf16.msra.mxu0 %v4502
    %4579 = vmatprep.subr.bf16.mxu0 %v4505
    %4580 = vmatpush1.bf16.msra.mxu0 %v4504
    %4581 = vmatprep.subr.bf16.mxu0 %v4507
    %4582 = vmatpush1.bf16.msra.mxu0 %v4506
    %4583 = vmatprep.subr.bf16.mxu0 %v4509
    %4584 = vmatpush1.bf16.msra.mxu0 %v4508
    %4585 = vmatprep.subr.bf16.mxu0 %v4511
    %4586 = vmatpush1.bf16.msra.mxu0 %v4510
    %4587 = vmatprep.subr.bf16.mxu0 %v4513
    %4588 = vmatpush1.bf16.msra.mxu0 %v4512
    %4589 = vmatprep.subr.bf16.mxu0 %v4515
    %4590 = vmatpush1.bf16.msra.mxu0 %v4514
    %4591 = vmatprep.subr.bf16.mxu0 %v4517
    %4592 = vmatpush1.bf16.msra.mxu0 %v4516
    %4593 = vmatprep.subr.bf16.mxu0 %v4519
    %4594 = vmatpush1.bf16.msra.mxu0 %v4518
    %4595 = vmatprep.subr.bf16.mxu0 %v4521
    %4596 = vmatpush1.bf16.msra.mxu0 %v4520
    %4597 = vmatprep.subr.bf16.mxu0 %v4523
    %4598 = vmatpush1.bf16.msra.mxu0 %v4522
    %4599 = vmatprep.subr.bf16.mxu0 %v4525
    %4600 = vmatpush1.bf16.msra.mxu0 %v4524
    %4601 = vmatprep.subr.bf16.mxu0 %v4527
    %4602 = vmatpush1.bf16.msra.mxu0 %v4526
    %4603 = vmatprep.subr.bf16.mxu0 %v4529
    %4604 = vmatpush1.bf16.msra.mxu0 %v4528
    %4605 = vmatprep.subr.bf16.mxu0 %v4531
    %4606 = vmatpush1.bf16.msra.mxu0 %v4530
    %4607 = vmatprep.mubr.bf16.mxu0 %v4353
    %4608 = vmatmul.mubr.bf16.gmra.mrb[0].mxu0 %v4352
    %v4609 = vpop.f32.mrb[0].mxu0
    %v4610 = vadd.f32 0.0, %v4609
    %v4611 = vpop.f32.mrb[0].mxu0
    %v4612 = vadd.f32 0.0, %v4611
    %v4613 = vpop.f32.mrb[0].mxu0
    %v4614 = vadd.f32 0.0, %v4613
    %v4615 = vpop.f32.mrb[0].mxu0
    %v4616 = vadd.f32 0.0, %v4615
    %4617 = vdwg.mxu0
    %4618 = vmatprep.subr.bf16.mxu0 %v4533
    %4619 = vmatpush1.bf16.msra.mxu0 %v4532
    %4620 = vmatprep.subr.bf16.mxu0 %v4535
    %4621 = vmatpush1.bf16.msra.mxu0 %v4534
    %4622 = vmatprep.subr.bf16.mxu0 0
    %4623 = vmatpush1.bf16.msra.mxu0 0
    %4624 = vmatprep.subr.bf16.mxu0 0
    %4625 = vmatpush1.bf16.msra.mxu0 0
    %4626 = vmatprep.subr.bf16.mxu0 0
    %4627 = vmatpush1.bf16.msra.mxu0 0
    %4628 = vmatprep.subr.bf16.mxu0 0
    %4629 = vmatpush1.bf16.msra.mxu0 0
    %4630 = vmatprep.subr.bf16.mxu0 0
    %4631 = vmatpush1.bf16.msra.mxu0 0
    %4632 = vmatprep.subr.bf16.mxu0 0
    %4633 = vmatpush1.bf16.msra.mxu0 0
    %4634 = vmatprep.subr.bf16.mxu0 0
    %4635 = vmatpush1.bf16.msra.mxu0 0
    %4636 = vmatprep.subr.bf16.mxu0 0
    %4637 = vmatpush1.bf16.msra.mxu0 0
    %4638 = vmatprep.subr.bf16.mxu0 0
    %4639 = vmatpush1.bf16.msra.mxu0 0
    %4640 = vmatprep.subr.bf16.mxu0 0
    %4641 = vmatpush1.bf16.msra.mxu0 0
    %4642 = vmatprep.subr.bf16.mxu0 0
    %4643 = vmatpush1.bf16.msra.mxu0 0
    %4644 = vmatprep.subr.bf16.mxu0 0
    %4645 = vmatpush1.bf16.msra.mxu0 0
    %4646 = vmatprep.subr.bf16.mxu0 0
    %4647 = vmatpush1.bf16.msra.mxu0 0
    %4648 = vmatprep.subr.bf16.mxu0 0
    %4649 = vmatpush1.bf16.msra.mxu0 0
    %4650 = vmatprep.mubr.bf16.mxu0 0
    %4651 = vmatmul.mubr.bf16.gmra.mrb[0].mxu0 %v4573
    %v4652 = vpop.f32.mrb[0].mxu0
    %v4653 = vadd.f32 %v4610, %v4652
    %v4654 = vpop.f32.mrb[0].mxu0
    %v4655 = vadd.f32 %v4612, %v4654
    %v4656 = vpop.f32.mrb[0].mxu0
    %v4657 = vadd.f32 %v4614, %v4656
    %v4658 = vpop.f32.mrb[0].mxu0
    %v4659 = vadd.f32 %v4616, %v4658
    %4660 = vdwg.mxu0
    %v4661 = vadd.f32 %v4253, %v4653
    %v4662 = vadd.f32 %v4254, %v4655
    %v4663 = vadd.f32 %v4255, %v4657
    %v4664 = vadd.f32 %v4256, %v4659
    %s4665 = scalar_lea.vmem [#allocation10], 32
    %v4666 = vld [vmem:[%s4665] sm:$0xf]
    %v4667 = vld [vmem:[%s4665 + $0x4] sm:$0x7]
    %v4670 = vunpack.c.l.b16 %v4666
    %v4671 = vunpack.c.l.b16 %v4667
    %v4672 = vpack.c.b16 %v4671, %v4670
    %v4674 = vsel %vm3039, %v4672, 0
    %4676 = vmatprep.subr.bf16.mxu0 %v3024
    %4677 = vmatpush1.bf16.msra.mxu0 %v3023
    %4678 = vmatprep.subr.bf16.mxu0 %v3027
    %4679 = vmatpush1.bf16.msra.mxu0 %v3026
    %4680 = vmatprep.subr.bf16.mxu0 %v3048
    %4681 = vmatpush1.bf16.msra.mxu0 %v3045
    %4682 = vmatprep.subr.bf16.mxu0 0
    %4683 = vmatpush1.bf16.msra.mxu0 0
    %4684 = vmatprep.subr.bf16.mxu0 0
    %4685 = vmatpush1.bf16.msra.mxu0 0
    %4686 = vmatprep.subr.bf16.mxu0 0
    %4687 = vmatpush1.bf16.msra.mxu0 0
    %4688 = vmatprep.subr.bf16.mxu0 0
    %4689 = vmatpush1.bf16.msra.mxu0 0
    %4690 = vmatprep.subr.bf16.mxu0 0
    %4691 = vmatpush1.bf16.msra.mxu0 0
    %4692 = vmatprep.subr.bf16.mxu0 0
    %4693 = vmatpush1.bf16.msra.mxu0 0
    %4694 = vmatprep.subr.bf16.mxu0 0
    %4695 = vmatpush1.bf16.msra.mxu0 0
    %4696 = vmatprep.subr.bf16.mxu0 0
    %4697 = vmatpush1.bf16.msra.mxu0 0
    %4698 = vmatprep.subr.bf16.mxu0 0
    %4699 = vmatpush1.bf16.msra.mxu0 0
    %4700 = vmatprep.subr.bf16.mxu0 0
    %4701 = vmatpush1.bf16.msra.mxu0 0
    %4702 = vmatprep.subr.bf16.mxu0 0
    %4703 = vmatpush1.bf16.msra.mxu0 0
    %4704 = vmatprep.subr.bf16.mxu0 0
    %4705 = vmatpush1.bf16.msra.mxu0 0
    %4706 = vmatprep.subr.bf16.mxu0 0
    %4707 = vmatpush1.bf16.msra.mxu0 0
    %4708 = vmatprep.mubr.bf16.mxu0 0
    %4709 = vmatmul.mubr.bf16.gmra.mrb[0].mxu0 %v4674
    %v4710 = vpop.f32.mrb[0].mxu0
    %v4711 = vadd.f32 0.0, %v4710
    %v4712 = vpop.f32.mrb[0].mxu0
    %v4713 = vadd.f32 0.0, %v4712
    %v4714 = vpop.f32.mrb[0].mxu0
    %v4715 = vadd.f32 0.0, %v4714
    %v4716 = vpop.f32.mrb[0].mxu0
    %v4717 = vadd.f32 0.0, %v4716
    %4718 = vdwg.mxu0
    %4719 = vmatprep.subr.bf16.mxu0 0
    %4720 = vmatpush1.bf16.msra.mxu0 %v3025
    %4721 = vmatprep.subr.bf16.mxu0 0
    %4722 = vmatpush1.bf16.msra.mxu0 %v3028
    %4723 = vmatprep.subr.bf16.mxu0 0
    %4724 = vmatpush1.bf16.msra.mxu0 %v3051
    %4725 = vmatprep.subr.bf16.mxu0 0
    %4726 = vmatpush1.bf16.msra.mxu0 0
    %4727 = vmatprep.subr.bf16.mxu0 0
    %4728 = vmatpush1.bf16.msra.mxu0 0
    %4729 = vmatprep.subr.bf16.mxu0 0
    %4730 = vmatpush1.bf16.msra.mxu0 0
    %4731 = vmatprep.subr.bf16.mxu0 0
    %4732 = vmatpush1.bf16.msra.mxu0 0
    %4733 = vmatprep.subr.bf16.mxu0 0
    %4734 = vmatpush1.bf16.msra.mxu0 0
    %4735 = vmatprep.subr.bf16.mxu0 0
    %4736 = vmatpush1.bf16.msra.mxu0 0
    %4737 = vmatprep.subr.bf16.mxu0 0
    %4738 = vmatpush1.bf16.msra.mxu0 0
    %4739 = vmatprep.subr.bf16.mxu0 0
    %4740 = vmatpush1.bf16.msra.mxu0 0
    %4741 = vmatprep.subr.bf16.mxu0 0
    %4742 = vmatpush1.bf16.msra.mxu0 0
    %4743 = vmatprep.subr.bf16.mxu0 0
    %4744 = vmatpush1.bf16.msra.mxu0 0
    %4745 = vmatprep.subr.bf16.mxu0 0
    %4746 = vmatpush1.bf16.msra.mxu0 0
    %4747 = vmatprep.subr.bf16.mxu0 0
    %4748 = vmatpush1.bf16.msra.mxu0 0
    %4749 = vmatprep.subr.bf16.mxu0 0
    %4750 = vmatpush1.bf16.msra.mxu0 0
    %4751 = vmatprep.mubr.bf16.mxu0 0
    %4752 = vmatmul.mubr.bf16.gmra.mrb[0].mxu0 %v4674
    %v4753 = vpop.f32.mrb[0].mxu0
    %v4754 = vadd.f32 0.0, %v4753
    %v4755 = vpop.f32.mrb[0].mxu0
    %v4756 = vpop.f32.mrb[0].mxu0
    %v4757 = vadd.f32 0.0, %v4756
    %v4758 = vpop.f32.mrb[0].mxu0
    %4759 = vdwg.mxu0
    %v4760 = vpack.c.bf16 %v4715, %v4711
    %v4761 = vpack.c.bf16 %v4717, %v4713
    %v4762 = vpack.c.bf16 %v4757, %v4754
    %s4763 = scalar_lea.vmem %s19, 1152
    %v4764 = vld [vmem:[%s4763] sm:$0xff]
    %v4765 = vld [vmem:[%s4763 + $0x8] sm:$0xff]
    %v4766 = vld [vmem:[%s4763 + $0x10] sm:$0xff]
    %v4767 = vld [vmem:[%s4763 + $0x18] sm:$0xff]
    %v4768 = vld [vmem:[%s4763 + $0x20] sm:$0xff]
    %v4769 = vld [vmem:[%s4763 + $0x28] sm:$0xff]
    %v4770 = vld [vmem:[%s4763 + $0x30] sm:$0xff]
    %v4771 = vld [vmem:[%s4763 + $0x38] sm:$0xff]
    %v4772 = vld [vmem:[%s4763 + $0x40] sm:$0xff]
    %v4773 = vld [vmem:[%s4763 + $0x48] sm:$0xff]
    %v4774 = vld [vmem:[%s4763 + $0x50] sm:$0xff]
    %v4775 = vld [vmem:[%s4763 + $0x58] sm:$0xff]
    %v4776 = vld [vmem:[%s4763 + $0x60] sm:$0xff]
    %v4777 = vld [vmem:[%s4763 + $0x68] sm:$0xff]
    %v4778 = vld [vmem:[%s4763 + $0x70] sm:$0xff]
    %v4779 = vld [vmem:[%s4763 + $0x78] sm:$0xff]
    %v4780 = vld [vmem:[%s4763 + $0x80] sm:$0xff]
    %v4781 = vld [vmem:[%s4763 + $0x88] sm:$0xff]
    %v4782 = vld [vmem:[%s4763 + $0x90] sm:$0xff]
    %v4783 = vld [vmem:[%s4763 + $0x98] sm:$0xff]
    %v4784 = vld [vmem:[%s4763 + $0xa0] sm:$0xff]
    %v4785 = vld [vmem:[%s4763 + $0xa8] sm:$0xff]
    %v4786 = vld [vmem:[%s4763 + $0xb0] sm:$0xff]
    %v4787 = vld [vmem:[%s4763 + $0xb8] sm:$0xff]
    %v4788 = vld [vmem:[%s4763 + $0xc0] sm:$0xff]
    %v4789 = vld [vmem:[%s4763 + $0xc8] sm:$0xff]
    %v4790 = vld [vmem:[%s4763 + $0xd0] sm:$0xff]
    %v4791 = vld [vmem:[%s4763 + $0xd8] sm:$0xff]
    %v4792 = vld [vmem:[%s4763 + $0xe0] sm:$0xff]
    %v4793 = vld [vmem:[%s4763 + $0xe8] sm:$0xff]
    %v4794 = vld [vmem:[%s4763 + $0xf0] sm:$0xff]
    %v4795 = vld [vmem:[%s4763 + $0xf8] sm:$0xff]
    %v4796 = vld [vmem:[%s4763 + $0x100] sm:$0xff]
    %v4797 = vld [vmem:[%s4763 + $0x108] sm:$0xff]
    %v4798 = vld [vmem:[%s4763 + $0x110] sm:$0xff]
    %v4799 = vld [vmem:[%s4763 + $0x118] sm:$0xff]
    %v4836 = vunpack.c.l.b16 %v4764
    %v4837 = vunpack.c.h.b16 %v4764
    %v4838 = vunpack.c.l.b16 %v4765
    %v4839 = vunpack.c.h.b16 %v4765
    %v4840 = vunpack.c.l.b16 %v4766
    %v4841 = vunpack.c.h.b16 %v4766
    %v4842 = vunpack.c.l.b16 %v4767
    %v4843 = vunpack.c.h.b16 %v4767
    %v4844 = vunpack.c.l.b16 %v4768
    %v4845 = vunpack.c.h.b16 %v4768
    %v4846 = vunpack.c.l.b16 %v4769
    %v4847 = vunpack.c.h.b16 %v4769
    %v4848 = vunpack.c.l.b16 %v4770
    %v4849 = vunpack.c.h.b16 %v4770
    %v4850 = vunpack.c.l.b16 %v4771
    %v4851 = vunpack.c.h.b16 %v4771
    %v4852 = vunpack.c.l.b16 %v4772
    %v4853 = vunpack.c.h.b16 %v4772
    %v4854 = vunpack.c.l.b16 %v4773
    %v4855 = vunpack.c.h.b16 %v4773
    %v4856 = vunpack.c.l.b16 %v4774
    %v4857 = vunpack.c.h.b16 %v4774
    %v4858 = vunpack.c.l.b16 %v4775
    %v4859 = vunpack.c.h.b16 %v4775
    %v4860 = vunpack.c.l.b16 %v4776
    %v4861 = vunpack.c.h.b16 %v4776
    %v4862 = vunpack.c.l.b16 %v4777
    %v4863 = vunpack.c.h.b16 %v4777
    %v4864 = vunpack.c.l.b16 %v4778
    %v4865 = vunpack.c.h.b16 %v4778
    %v4866 = vunpack.c.l.b16 %v4779
    %v4867 = vunpack.c.h.b16 %v4779
    %v4868 = vunpack.c.l.b16 %v4780
    %v4869 = vunpack.c.h.b16 %v4780
    %v4870 = vunpack.c.l.b16 %v4781
    %v4871 = vunpack.c.h.b16 %v4781
    %v4872 = vunpack.c.l.b16 %v4782
    %v4873 = vunpack.c.h.b16 %v4782
    %v4874 = vunpack.c.l.b16 %v4783
    %v4875 = vunpack.c.h.b16 %v4783
    %v4876 = vunpack.c.l.b16 %v4784
    %v4877 = vunpack.c.h.b16 %v4784
    %v4878 = vunpack.c.l.b16 %v4785
    %v4879 = vunpack.c.h.b16 %v4785
    %v4880 = vunpack.c.l.b16 %v4786
    %v4881 = vunpack.c.h.b16 %v4786
    %v4882 = vunpack.c.l.b16 %v4787
    %v4883 = vunpack.c.h.b16 %v4787
    %v4884 = vunpack.c.l.b16 %v4788
    %v4885 = vunpack.c.h.b16 %v4788
    %v4886 = vunpack.c.l.b16 %v4789
    %v4887 = vunpack.c.h.b16 %v4789
    %v4888 = vunpack.c.l.b16 %v4790
    %v4889 = vunpack.c.h.b16 %v4790
    %v4890 = vunpack.c.l.b16 %v4791
    %v4891 = vunpack.c.h.b16 %v4791
    %v4892 = vunpack.c.l.b16 %v4792
    %v4893 = vunpack.c.h.b16 %v4792
    %v4894 = vunpack.c.l.b16 %v4793
    %v4895 = vunpack.c.h.b16 %v4793
    %v4896 = vunpack.c.l.b16 %v4794
    %v4897 = vunpack.c.h.b16 %v4794
    %v4898 = vunpack.c.l.b16 %v4795
    %v4899 = vunpack.c.h.b16 %v4795
    %v4900 = vunpack.c.l.b16 %v4796
    %v4901 = vunpack.c.h.b16 %v4796
    %v4902 = vunpack.c.l.b16 %v4797
    %v4903 = vunpack.c.h.b16 %v4797
    %v4904 = vunpack.c.l.b16 %v4798
    %v4905 = vunpack.c.h.b16 %v4798
    %v4906 = vunpack.c.l.b16 %v4799
    %v4907 = vunpack.c.h.b16 %v4799
    %v4908 = vpack.c.b16 %v4838, %v4836
    %v4909 = vpack.c.b16 %v4839, %v4837
    %v4910 = vpack.c.b16 %v4842, %v4840
    %v4911 = vpack.c.b16 %v4843, %v4841
    %v4912 = vpack.c.b16 %v4846, %v4844
    %v4913 = vpack.c.b16 %v4847, %v4845
    %v4914 = vpack.c.b16 %v4850, %v4848
    %v4915 = vpack.c.b16 %v4851, %v4849
    %v4916 = vpack.c.b16 %v4854, %v4852
    %v4917 = vpack.c.b16 %v4855, %v4853
    %v4918 = vpack.c.b16 %v4858, %v4856
    %v4919 = vpack.c.b16 %v4859, %v4857
    %v4920 = vpack.c.b16 %v4862, %v4860
    %v4921 = vpack.c.b16 %v4863, %v4861
    %v4922 = vpack.c.b16 %v4866, %v4864
    %v4923 = vpack.c.b16 %v4867, %v4865
    %v4924 = vpack.c.b16 %v4870, %v4868
    %v4925 = vpack.c.b16 %v4871, %v4869
    %v4926 = vpack.c.b16 %v4874, %v4872
    %v4927 = vpack.c.b16 %v4875, %v4873
    %v4928 = vpack.c.b16 %v4878, %v4876
    %v4929 = vpack.c.b16 %v4879, %v4877
    %v4930 = vpack.c.b16 %v4882, %v4880
    %v4931 = vpack.c.b16 %v4883, %v4881
    %v4932 = vpack.c.b16 %v4886, %v4884
    %v4933 = vpack.c.b16 %v4887, %v4885
    %v4934 = vpack.c.b16 %v4890, %v4888
    %v4935 = vpack.c.b16 %v4891, %v4889
    %v4936 = vpack.c.b16 %v4894, %v4892
    %v4937 = vpack.c.b16 %v4895, %v4893
    %v4938 = vpack.c.b16 %v4898, %v4896
    %v4939 = vpack.c.b16 %v4899, %v4897
    %v4940 = vpack.c.b16 %v4902, %v4900
    %v4941 = vpack.c.b16 %v4903, %v4901
    %v4942 = vpack.c.b16 %v4906, %v4904
    %v4943 = vpack.c.b16 %v4907, %v4905
    %v4981 = vsel %vm2257, %v4762, 0
    %4983 = vmatprep.subr.bf16.mxu0 %v4909
    %4984 = vmatpush1.bf16.msra.mxu0 %v4908
    %4985 = vmatprep.subr.bf16.mxu0 %v4911
    %4986 = vmatpush1.bf16.msra.mxu0 %v4910
    %4987 = vmatprep.subr.bf16.mxu0 %v4913
    %4988 = vmatpush1.bf16.msra.mxu0 %v4912
    %4989 = vmatprep.subr.bf16.mxu0 %v4915
    %4990 = vmatpush1.bf16.msra.mxu0 %v4914
    %4991 = vmatprep.subr.bf16.mxu0 %v4917
    %4992 = vmatpush1.bf16.msra.mxu0 %v4916
    %4993 = vmatprep.subr.bf16.mxu0 %v4919
    %4994 = vmatpush1.bf16.msra.mxu0 %v4918
    %4995 = vmatprep.subr.bf16.mxu0 %v4921
    %4996 = vmatpush1.bf16.msra.mxu0 %v4920
    %4997 = vmatprep.subr.bf16.mxu0 %v4923
    %4998 = vmatpush1.bf16.msra.mxu0 %v4922
    %4999 = vmatprep.subr.bf16.mxu0 %v4925
    %5000 = vmatpush1.bf16.msra.mxu0 %v4924
    %5001 = vmatprep.subr.bf16.mxu0 %v4927
    %5002 = vmatpush1.bf16.msra.mxu0 %v4926
    %5003 = vmatprep.subr.bf16.mxu0 %v4929
    %5004 = vmatpush1.bf16.msra.mxu0 %v4928
    %5005 = vmatprep.subr.bf16.mxu0 %v4931
    %5006 = vmatpush1.bf16.msra.mxu0 %v4930
    %5007 = vmatprep.subr.bf16.mxu0 %v4933
    %5008 = vmatpush1.bf16.msra.mxu0 %v4932
    %5009 = vmatprep.subr.bf16.mxu0 %v4935
    %5010 = vmatpush1.bf16.msra.mxu0 %v4934
    %5011 = vmatprep.subr.bf16.mxu0 %v4937
    %5012 = vmatpush1.bf16.msra.mxu0 %v4936
    %5013 = vmatprep.subr.bf16.mxu0 %v4939
    %5014 = vmatpush1.bf16.msra.mxu0 %v4938
    %5015 = vmatprep.mubr.bf16.mxu0 %v4761
    %5016 = vmatmul.mubr.bf16.gmra.mrb[0].mxu0 %v4760
    %v5017 = vpop.f32.mrb[0].mxu0
    %v5018 = vadd.f32 0.0, %v5017
    %v5019 = vpop.f32.mrb[0].mxu0
    %v5020 = vadd.f32 0.0, %v5019
    %v5021 = vpop.f32.mrb[0].mxu0
    %v5022 = vadd.f32 0.0, %v5021
    %v5023 = vpop.f32.mrb[0].mxu0
    %v5024 = vadd.f32 0.0, %v5023
    %5025 = vdwg.mxu0
    %5026 = vmatprep.subr.bf16.mxu0 %v4941
    %5027 = vmatpush1.bf16.msra.mxu0 %v4940
    %5028 = vmatprep.subr.bf16.mxu0 %v4943
    %5029 = vmatpush1.bf16.msra.mxu0 %v4942
    %5030 = vmatprep.subr.bf16.mxu0 0
    %5031 = vmatpush1.bf16.msra.mxu0 0
    %5032 = vmatprep.subr.bf16.mxu0 0
    %5033 = vmatpush1.bf16.msra.mxu0 0
    %5034 = vmatprep.subr.bf16.mxu0 0
    %5035 = vmatpush1.bf16.msra.mxu0 0
    %5036 = vmatprep.subr.bf16.mxu0 0
    %5037 = vmatpush1.bf16.msra.mxu0 0
    %5038 = vmatprep.subr.bf16.mxu0 0
    %5039 = vmatpush1.bf16.msra.mxu0 0
    %5040 = vmatprep.subr.bf16.mxu0 0
    %5041 = vmatpush1.bf16.msra.mxu0 0
    %5042 = vmatprep.subr.bf16.mxu0 0
    %5043 = vmatpush1.bf16.msra.mxu0 0
    %5044 = vmatprep.subr.bf16.mxu0 0
    %5045 = vmatpush1.bf16.msra.mxu0 0
    %5046 = vmatprep.subr.bf16.mxu0 0
    %5047 = vmatpush1.bf16.msra.mxu0 0
    %5048 = vmatprep.subr.bf16.mxu0 0
    %5049 = vmatpush1.bf16.msra.mxu0 0
    %5050 = vmatprep.subr.bf16.mxu0 0
    %5051 = vmatpush1.bf16.msra.mxu0 0
    %5052 = vmatprep.subr.bf16.mxu0 0
    %5053 = vmatpush1.bf16.msra.mxu0 0
    %5054 = vmatprep.subr.bf16.mxu0 0
    %5055 = vmatpush1.bf16.msra.mxu0 0
    %5056 = vmatprep.subr.bf16.mxu0 0
    %5057 = vmatpush1.bf16.msra.mxu0 0
    %5058 = vmatprep.mubr.bf16.mxu0 0
    %5059 = vmatmul.mubr.bf16.gmra.mrb[0].mxu0 %v4981
    %v5060 = vpop.f32.mrb[0].mxu0
    %v5061 = vadd.f32 %v5018, %v5060
    %v5062 = vpop.f32.mrb[0].mxu0
    %v5063 = vadd.f32 %v5020, %v5062
    %v5064 = vpop.f32.mrb[0].mxu0
    %v5065 = vadd.f32 %v5022, %v5064
    %v5066 = vpop.f32.mrb[0].mxu0
    %v5067 = vadd.f32 %v5024, %v5066
    %5068 = vdwg.mxu0
    %v5069 = vadd.f32 %v4661, %v5061
    %v5070 = vadd.f32 %v4662, %v5063
    %v5071 = vadd.f32 %v4663, %v5065
    %v5072 = vadd.f32 %v4664, %v5067
    %v5073 = vld [vmem:[%s21] sm:$0x3]
    %v5075 = vlaneseq
    %v5076 = vshrl.u32 %v5075, 7
    %v5077 = vsub.s32 0, %v5076
    %v5078 = vrot.slane %v5073, %v5077
    %v5079 = vlaneseq
    %v5080 = vshrl.u32 %v5079, 7
    %v5081 = vsub.s32 1, %v5080
    %v5082 = vrot.slane %v5073, %v5081
    %v5085 = vadd.f32 %v5069, %v5078
    %v5086 = vadd.f32 %v5070, %v5082
    %v5087 = vadd.f32 %v5071, %v5078
    %v5088 = vadd.f32 %v5072, %v5082
    %vm5089 = vcmask 1045504
    %v5090 = vsel %vm5089, %v5087, 0.0
    %v5091 = vadd.f32 %v5085, %v5090
    %v5092 = vrot.slane %v5091, 4
    %v5093 = vadd.f32 %v5091, %v5092
    %v5094 = vrot.slane %v5093, 2
    %v5095 = vadd.f32 %v5093, %v5094
    %v5096 = vrot.slane %v5095, 1
    %v5097 = vadd.f32 %v5095, %v5096
    %vm5098 = vcmask 785408
    %v5099 = vsel %vm5098, %v5086, 0.0
    %vm5100 = vcmask 783360
    %v5101 = vsel %vm5100, %v5088, 0.0
    %v5102 = vadd.f32 %v5099, %v5101
    %v5103 = vrot.slane %v5102, 4
    %v5104 = vadd.f32 %v5102, %v5103
    %v5105 = vrot.slane %v5104, 2
    %v5106 = vadd.f32 %v5104, %v5105
    %v5107 = vrot.slane %v5106, 1
    %v5108 = vadd.f32 %v5106, %v5107
    %v5109 = vmul.f32 %v5085, %v5085
    %v5110 = vmul.f32 %v5086, %v5086
    %v5111 = vmul.f32 %v5087, %v5087
    %v5112 = vmul.f32 %v5088, %v5088
    %v5113 = vsel %vm5089, %v5111, 0.0
    %v5114 = vadd.f32 %v5109, %v5113
    %v5115 = vrot.slane %v5114, 4
    %v5116 = vadd.f32 %v5114, %v5115
    %v5117 = vrot.slane %v5116, 2
    %v5118 = vadd.f32 %v5116, %v5117
    %v5119 = vrot.slane %v5118, 1
    %v5120 = vadd.f32 %v5118, %v5119
    %v5121 = vsel %vm5098, %v5110, 0.0
    %v5122 = vsel %vm5100, %v5112, 0.0
    %v5123 = vadd.f32 %v5121, %v5122
    %v5124 = vrot.slane %v5123, 4
    %v5125 = vadd.f32 %v5123, %v5124
    %v5126 = vrot.slane %v5125, 2
    %v5127 = vadd.f32 %v5125, %v5126
    %v5128 = vrot.slane %v5127, 1
    %v5129 = vadd.f32 %v5127, %v5128
    %v5130 = vld [vmem:[%s27] sm:$0xff]
    %v5131 = vld [vmem:[%s27 + $0x8] sm:$0xff]
    %v5132 = vld [vmem:[%s27 + $0x10] sm:$0xff]
    %v5133 = vld [vmem:[%s27 + $0x18] sm:$0xff]
    %v5134 = vld [vmem:[%s27 + $0x20] sm:$0xff]
    %v5135 = vld [vmem:[%s27 + $0x28] sm:$0xff]
    %v5136 = vld [vmem:[%s27 + $0x30] sm:$0xff]
    %v5137 = vld [vmem:[%s27 + $0x38] sm:$0xff]
    %v5138 = vld [vmem:[%s27 + $0x40] sm:$0xff]
    %v5139 = vld [vmem:[%s27 + $0x48] sm:$0xff]
    %v5140 = vld [vmem:[%s27 + $0x50] sm:$0xff]
    %v5141 = vld [vmem:[%s27 + $0x58] sm:$0xff]
    %v5142 = vld [vmem:[%s27 + $0x60] sm:$0xff]
    %v5143 = vld [vmem:[%s27 + $0x68] sm:$0xff]
    %v5144 = vld [vmem:[%s27 + $0x70] sm:$0xff]
    %v5145 = vld [vmem:[%s27 + $0x78] sm:$0xff]
    %v5146 = vld [vmem:[%s27 + $0x80] sm:$0xff]
    %v5147 = vld [vmem:[%s27 + $0x88] sm:$0xff]
    %v5148 = vld [vmem:[%s27 + $0x90] sm:$0xff]
    %v5149 = vld [vmem:[%s27 + $0x98] sm:$0xff]
    %v5150 = vld [vmem:[%s27 + $0xa0] sm:$0xff]
    %v5151 = vld [vmem:[%s27 + $0xa8] sm:$0xff]
    %v5152 = vld [vmem:[%s27 + $0xb0] sm:$0xff]
    %v5153 = vld [vmem:[%s27 + $0xb8] sm:$0xff]
    %v5154 = vld [vmem:[%s27 + $0xc0] sm:$0xff]
    %v5155 = vld [vmem:[%s27 + $0xc8] sm:$0xff]
    %v5156 = vld [vmem:[%s27 + $0xd0] sm:$0xff]
    %v5157 = vld [vmem:[%s27 + $0xd8] sm:$0xff]
    %v5159 = vsel %vm5098, %v5108, 0
    %5161 = vmatprep.subr.mxu0 0.0
    %5162 = vmatpush1.msra.mxu0 %v5130
    %5163 = vmatprep.subr.mxu0 0.0
    %5164 = vmatpush1.msra.mxu0 %v5131
    %5165 = vmatprep.subr.mxu0 0.0
    %5166 = vmatpush1.msra.mxu0 %v5132
    %5167 = vmatprep.subr.mxu0 0.0
    %5168 = vmatpush1.msra.mxu0 %v5133
    %5169 = vmatprep.subr.mxu0 0.0
    %5170 = vmatpush1.msra.mxu0 %v5134
    %5171 = vmatprep.subr.mxu0 0.0
    %5172 = vmatpush1.msra.mxu0 %v5135
    %5173 = vmatprep.subr.mxu0 0.0
    %5174 = vmatpush1.msra.mxu0 %v5136
    %5175 = vmatprep.subr.mxu0 0.0
    %5176 = vmatpush1.msra.mxu0 %v5137
    %5177 = vmatprep.subr.mxu0 0.0
    %5178 = vmatpush1.msra.mxu0 %v5138
    %5179 = vmatprep.subr.mxu0 0.0
    %5180 = vmatpush1.msra.mxu0 %v5139
    %5181 = vmatprep.subr.mxu0 0.0
    %5182 = vmatpush1.msra.mxu0 %v5140
    %5183 = vmatprep.subr.mxu0 0.0
    %5184 = vmatpush1.msra.mxu0 %v5141
    %5185 = vmatprep.subr.mxu0 0.0
    %5186 = vmatpush1.msra.mxu0 %v5142
    %5187 = vmatprep.subr.mxu0 0.0
    %5188 = vmatpush1.msra.mxu0 %v5143
    %5189 = vmatprep.subr.mxu0 0.0
    %5190 = vmatpush1.msra.mxu0 %v5144
    %5191 = vmatprep.subr.mxu0 0.0
    %5192 = vmatpush1.msra.mxu0 %v5145
    %5193 = vmatprep.subr.mxu0 0.0
    %5194 = vmatpush1.msra.mxu0 %v5146
    %5195 = vmatprep.subr.mxu0 0.0
    %5196 = vmatpush1.msra.mxu0 %v5147
    %5197 = vmatprep.subr.mxu0 0.0
    %5198 = vmatpush1.msra.mxu0 %v5148
    %5199 = vmatprep.subr.mxu0 0.0
    %5200 = vmatpush1.msra.mxu0 %v5149
    %5201 = vmatprep.subr.mxu0 0.0
    %5202 = vmatpush1.msra.mxu0 %v5150
    %5203 = vmatprep.subr.mxu0 0.0
    %5204 = vmatpush1.msra.mxu0 %v5151
    %5205 = vmatprep.subr.mxu0 0.0
    %5206 = vmatpush1.msra.mxu0 %v5152
    %5207 = vmatprep.subr.mxu0 0.0
    %5208 = vmatpush1.msra.mxu0 %v5153
    %5209 = vmatprep.subr.mxu0 0.0
    %5210 = vmatpush1.msra.mxu0 %v5154
    %5211 = vmatprep.subr.mxu0 0.0
    %5212 = vmatpush1.msra.mxu0 %v5155
    %5213 = vmatprep.subr.mxu0 0.0
    %5214 = vmatpush1.msra.mxu0 %v5156
    %5215 = vmatprep.subr.mxu0 0.0
    %5216 = vmatpush1.msra.mxu0 %v5157
    %5217 = vmatprep.subr.mxu0 0.0
    %5218 = vmatpush1.msra.mxu0 0.0
    %5219 = vmatprep.subr.mxu0 0.0
    %5220 = vmatpush1.msra.mxu0 0.0
    %5221 = vmatprep.subr.mxu0 0.0
    %5222 = vmatpush1.msra.mxu0 0.0
    %5223 = vmatprep.subr.mxu0 0.0
    %5224 = vmatpush1.msra.mxu0 0.0
    %5225 = vmatprep.mubr.f32.mxu0 %v5159
    %5226 = vmatmul.mubr.f32.gmra.mrb[0].mxu0 %v5097
    %v5227 = vpop.f32.mrb[0].mxu0
    %v5228 = vadd.f32 0.0, %v5227
    %v5229 = vpop.f32.mrb[0].mxu0
    %5230 = vdwg.mxu0
    %v5231 = vmul.f32 %v5228, 0.010204081
    %v5233 = vsel %vm5098, %v5129, 0
    %5235 = vmatprep.subr.mxu0 0.0
    %5236 = vmatpush1.msra.mxu0 %v5130
    %5237 = vmatprep.subr.mxu0 0.0
    %5238 = vmatpush1.msra.mxu0 %v5131
    %5239 = vmatprep.subr.mxu0 0.0
    %5240 = vmatpush1.msra.mxu0 %v5132
    %5241 = vmatprep.subr.mxu0 0.0
    %5242 = vmatpush1.msra.mxu0 %v5133
    %5243 = vmatprep.subr.mxu0 0.0
    %5244 = vmatpush1.msra.mxu0 %v5134
    %5245 = vmatprep.subr.mxu0 0.0
    %5246 = vmatpush1.msra.mxu0 %v5135
    %5247 = vmatprep.subr.mxu0 0.0
    %5248 = vmatpush1.msra.mxu0 %v5136
    %5249 = vmatprep.subr.mxu0 0.0
    %5250 = vmatpush1.msra.mxu0 %v5137
    %5251 = vmatprep.subr.mxu0 0.0
    %5252 = vmatpush1.msra.mxu0 %v5138
    %5253 = vmatprep.subr.mxu0 0.0
    %5254 = vmatpush1.msra.mxu0 %v5139
    %5255 = vmatprep.subr.mxu0 0.0
    %5256 = vmatpush1.msra.mxu0 %v5140
    %5257 = vmatprep.subr.mxu0 0.0
    %5258 = vmatpush1.msra.mxu0 %v5141
    %5259 = vmatprep.subr.mxu0 0.0
    %5260 = vmatpush1.msra.mxu0 %v5142
    %5261 = vmatprep.subr.mxu0 0.0
    %5262 = vmatpush1.msra.mxu0 %v5143
    %5263 = vmatprep.subr.mxu0 0.0
    %5264 = vmatpush1.msra.mxu0 %v5144
    %5265 = vmatprep.subr.mxu0 0.0
    %5266 = vmatpush1.msra.mxu0 %v5145
    %5267 = vmatprep.subr.mxu0 0.0
    %5268 = vmatpush1.msra.mxu0 %v5146
    %5269 = vmatprep.subr.mxu0 0.0
    %5270 = vmatpush1.msra.mxu0 %v5147
    %5271 = vmatprep.subr.mxu0 0.0
    %5272 = vmatpush1.msra.mxu0 %v5148
    %5273 = vmatprep.subr.mxu0 0.0
    %5274 = vmatpush1.msra.mxu0 %v5149
    %5275 = vmatprep.subr.mxu0 0.0
    %5276 = vmatpush1.msra.mxu0 %v5150
    %5277 = vmatprep.subr.mxu0 0.0
    %5278 = vmatpush1.msra.mxu0 %v5151
    %5279 = vmatprep.subr.mxu0 0.0
    %5280 = vmatpush1.msra.mxu0 %v5152
    %5281 = vmatprep.subr.mxu0 0.0
    %5282 = vmatpush1.msra.mxu0 %v5153
    %5283 = vmatprep.subr.mxu0 0.0
    %5284 = vmatpush1.msra.mxu0 %v5154
    %5285 = vmatprep.subr.mxu0 0.0
    %5286 = vmatpush1.msra.mxu0 %v5155
    %5287 = vmatprep.subr.mxu0 0.0
    %5288 = vmatpush1.msra.mxu0 %v5156
    %5289 = vmatprep.subr.mxu0 0.0
    %5290 = vmatpush1.msra.mxu0 %v5157
    %5291 = vmatprep.subr.mxu0 0.0
    %5292 = vmatpush1.msra.mxu0 0.0
    %5293 = vmatprep.subr.mxu0 0.0
    %5294 = vmatpush1.msra.mxu0 0.0
    %5295 = vmatprep.subr.mxu0 0.0
    %5296 = vmatpush1.msra.mxu0 0.0
    %5297 = vmatprep.subr.mxu0 0.0
    %5298 = vmatpush1.msra.mxu0 0.0
    %5299 = vmatprep.mubr.f32.mxu0 %v5233
    %5300 = vmatmul.mubr.f32.gmra.mrb[0].mxu0 %v5120
    %v5301 = vpop.f32.mrb[0].mxu0
    %v5302 = vadd.f32 0.0, %v5301
    %v5303 = vpop.f32.mrb[0].mxu0
    %5304 = vdwg.mxu0
    %v5305 = vmul.f32 %v5302, 0.010204081
    %v5306 = vmul.f32 %v5231, %v5231
    %v5307 = vsub.f32 %v5305, %v5306
    %v5308 = vld [vmem:[#allocation12] sm:$0x1]
    %v5309 = vadd.f32 %v5307, 1e-05
    %v5310 = vrsqrt.pop %v5309
    %v5311 = vmul.f32 %v5308, %v5310
    %v5312 = vld [vmem:[#allocation13] sm:$0x1]
    %v5313 = vmul.f32 %v5231, %v5311
    %v5314 = vsub.f32 %v5312, %v5313
    %v5315 = vld [vmem:[%s29] sm:$0xff]
    %v5316 = vld [vmem:[%s29 + $0x8] sm:$0xff]
    %v5317 = vld [vmem:[%s29 + $0x10] sm:$0xff]
    %v5318 = vld [vmem:[%s29 + $0x18] sm:$0xff]
    %v5319 = vld [vmem:[%s29 + $0x20] sm:$0xff]
    %v5320 = vld [vmem:[%s29 + $0x28] sm:$0xff]
    %v5321 = vld [vmem:[%s29 + $0x30] sm:$0xff]
    %v5322 = vld [vmem:[%s29 + $0x38] sm:$0xff]
    %v5324 = vsel %vm2257, %v5311, 0
    %5326 = vmatprep.subr.mxu0 %v5316
    %5327 = vmatpush1.msra.mxu0 %v5315
    %5328 = vmatprep.subr.mxu0 %v5318
    %5329 = vmatpush1.msra.mxu0 %v5317
    %5330 = vmatprep.subr.mxu0 %v5320
    %5331 = vmatpush1.msra.mxu0 %v5319
    %5332 = vmatprep.subr.mxu0 %v5322
    %5333 = vmatpush1.msra.mxu0 %v5321
    %5334 = vmatprep.subr.mxu0 0.0
    %5335 = vmatpush1.msra.mxu0 0.0
    %5336 = vmatprep.subr.mxu0 0.0
    %5337 = vmatpush1.msra.mxu0 0.0
    %5338 = vmatprep.subr.mxu0 0.0
    %5339 = vmatpush1.msra.mxu0 0.0
    %5340 = vmatprep.subr.mxu0 0.0
    %5341 = vmatpush1.msra.mxu0 0.0
    %5342 = vmatprep.subr.mxu0 0.0
    %5343 = vmatpush1.msra.mxu0 0.0
    %5344 = vmatprep.subr.mxu0 0.0
    %5345 = vmatpush1.msra.mxu0 0.0
    %5346 = vmatprep.subr.mxu0 0.0
    %5347 = vmatpush1.msra.mxu0 0.0
    %5348 = vmatprep.subr.mxu0 0.0
    %5349 = vmatpush1.msra.mxu0 0.0
    %5350 = vmatprep.subr.mxu0 0.0
    %5351 = vmatpush1.msra.mxu0 0.0
    %5352 = vmatprep.subr.mxu0 0.0
    %5353 = vmatpush1.msra.mxu0 0.0
    %5354 = vmatprep.subr.mxu0 0.0
    %5355 = vmatpush1.msra.mxu0 0.0
    %5356 = vmatprep.subr.mxu0 0.0
    %5357 = vmatpush1.msra.mxu0 0.0
    %5358 = vmatprep.subr.mxu0 0.0
    %5359 = vmatpush1.msra.mxu0 0.0
    %5360 = vmatprep.subr.mxu0 0.0
    %5361 = vmatpush1.msra.mxu0 0.0
    %5362 = vmatprep.subr.mxu0 0.0
    %5363 = vmatpush1.msra.mxu0 0.0
    %5364 = vmatprep.subr.mxu0 0.0
    %5365 = vmatpush1.msra.mxu0 0.0
    %5366 = vmatprep.subr.mxu0 0.0
    %5367 = vmatpush1.msra.mxu0 0.0
    %5368 = vmatprep.subr.mxu0 0.0
    %5369 = vmatpush1.msra.mxu0 0.0
    %5370 = vmatprep.subr.mxu0 0.0
    %5371 = vmatpush1.msra.mxu0 0.0
    %5372 = vmatprep.subr.mxu0 0.0
    %5373 = vmatpush1.msra.mxu0 0.0
    %5374 = vmatprep.subr.mxu0 0.0
    %5375 = vmatpush1.msra.mxu0 0.0
    %5376 = vmatprep.subr.mxu0 0.0
    %5377 = vmatpush1.msra.mxu0 0.0
    %5378 = vmatprep.subr.mxu0 0.0
    %5379 = vmatpush1.msra.mxu0 0.0
    %5380 = vmatprep.subr.mxu0 0.0
    %5381 = vmatpush1.msra.mxu0 0.0
    %5382 = vmatprep.subr.mxu0 0.0
    %5383 = vmatpush1.msra.mxu0 0.0
    %5384 = vmatprep.subr.mxu0 0.0
    %5385 = vmatpush1.msra.mxu0 0.0
    %5386 = vmatprep.subr.mxu0 0.0
    %5387 = vmatpush1.msra.mxu0 0.0
    %5388 = vmatprep.subr.mxu0 0.0
    %5389 = vmatpush1.msra.mxu0 0.0
    %5390 = vmatprep.mubr.f32.mxu0 0.0
    %5391 = vmatmul.mubr.f32.gmra.mrb[0].mxu0 %v5324
    %v5392 = vpop.f32.mrb[0].mxu0
    %v5393 = vadd.f32 0.0, %v5392
    %v5394 = vpop.f32.mrb[0].mxu0
    %v5395 = vadd.f32 0.0, %v5394
    %5396 = vdwg.mxu0
    %v5398 = vsel %vm2257, %v5314, 0
    %5400 = vmatprep.subr.mxu0 %v5316
    %5401 = vmatpush1.msra.mxu0 %v5315
    %5402 = vmatprep.subr.mxu0 %v5318
    %5403 = vmatpush1.msra.mxu0 %v5317
    %5404 = vmatprep.subr.mxu0 %v5320
    %5405 = vmatpush1.msra.mxu0 %v5319
    %5406 = vmatprep.subr.mxu0 %v5322
    %5407 = vmatpush1.msra.mxu0 %v5321
    %5408 = vmatprep.subr.mxu0 0.0
    %5409 = vmatpush1.msra.mxu0 0.0
    %5410 = vmatprep.subr.mxu0 0.0
    %5411 = vmatpush1.msra.mxu0 0.0
    %5412 = vmatprep.subr.mxu0 0.0
    %5413 = vmatpush1.msra.mxu0 0.0
    %5414 = vmatprep.subr.mxu0 0.0
    %5415 = vmatpush1.msra.mxu0 0.0
    %5416 = vmatprep.subr.mxu0 0.0
    %5417 = vmatpush1.msra.mxu0 0.0
    %5418 = vmatprep.subr.mxu0 0.0
    %5419 = vmatpush1.msra.mxu0 0.0
    %5420 = vmatprep.subr.mxu0 0.0
    %5421 = vmatpush1.msra.mxu0 0.0
    %5422 = vmatprep.subr.mxu0 0.0
    %5423 = vmatpush1.msra.mxu0 0.0
    %5424 = vmatprep.subr.mxu0 0.0
    %5425 = vmatpush1.msra.mxu0 0.0
    %5426 = vmatprep.subr.mxu0 0.0
    %5427 = vmatpush1.msra.mxu0 0.0
    %5428 = vmatprep.subr.mxu0 0.0
    %5429 = vmatpush1.msra.mxu0 0.0
    %5430 = vmatprep.subr.mxu0 0.0
    %5431 = vmatpush1.msra.mxu0 0.0
    %5432 = vmatprep.subr.mxu0 0.0
    %5433 = vmatpush1.msra.mxu0 0.0
    %5434 = vmatprep.subr.mxu0 0.0
    %5435 = vmatpush1.msra.mxu0 0.0
    %5436 = vmatprep.subr.mxu0 0.0
    %5437 = vmatpush1.msra.mxu0 0.0
    %5438 = vmatprep.subr.mxu0 0.0
    %5439 = vmatpush1.msra.mxu0 0.0
    %5440 = vmatprep.subr.mxu0 0.0
    %5441 = vmatpush1.msra.mxu0 0.0
    %5442 = vmatprep.subr.mxu0 0.0
    %5443 = vmatpush1.msra.mxu0 0.0
    %5444 = vmatprep.subr.mxu0 0.0
    %5445 = vmatpush1.msra.mxu0 0.0
    %5446 = vmatprep.subr.mxu0 0.0
    %5447 = vmatpush1.msra.mxu0 0.0
    %5448 = vmatprep.subr.mxu0 0.0
    %5449 = vmatpush1.msra.mxu0 0.0
    %5450 = vmatprep.subr.mxu0 0.0
    %5451 = vmatpush1.msra.mxu0 0.0
    %5452 = vmatprep.subr.mxu0 0.0
    %5453 = vmatpush1.msra.mxu0 0.0
    %5454 = vmatprep.subr.mxu0 0.0
    %5455 = vmatpush1.msra.mxu0 0.0
    %5456 = vmatprep.subr.mxu0 0.0
    %5457 = vmatpush1.msra.mxu0 0.0
    %5458 = vmatprep.subr.mxu0 0.0
    %5459 = vmatpush1.msra.mxu0 0.0
    %5460 = vmatprep.subr.mxu0 0.0
    %5461 = vmatpush1.msra.mxu0 0.0
    %5462 = vmatprep.subr.mxu0 0.0
    %5463 = vmatpush1.msra.mxu0 0.0
    %5464 = vmatprep.mubr.f32.mxu0 0.0
    %5465 = vmatmul.mubr.f32.gmra.mrb[0].mxu0 %v5398
    %v5466 = vpop.f32.mrb[0].mxu0
    %v5467 = vadd.f32 0.0, %v5466
    %v5468 = vpop.f32.mrb[0].mxu0
    %v5469 = vadd.f32 0.0, %v5468
    %5470 = vdwg.mxu0
    %v5471 = vlaneseq
    %v5472 = vshrl.u32 %v5471, 7
    %v5473 = vsub.s32 0, %v5472
    %v5474 = vrot.slane %v5393, %v5473
    %v5475 = vlaneseq
    %v5476 = vshrl.u32 %v5475, 7
    %v5477 = vsub.s32 0, %v5476
    %v5478 = vrot.slane %v5395, %v5477
    %v5479 = vmul.f32 %v5085, %v5474
    %v5480 = vmul.f32 %v5086, %v5478
    %v5481 = vmul.f32 %v5087, %v5474
    %v5482 = vmul.f32 %v5088, %v5478
    %v5483 = vlaneseq
    %v5484 = vshrl.u32 %v5483, 7
    %v5485 = vsub.s32 0, %v5484
    %v5486 = vrot.slane %v5467, %v5485
    %v5487 = vlaneseq
    %v5488 = vshrl.u32 %v5487, 7
    %v5489 = vsub.s32 0, %v5488
    %v5490 = vrot.slane %v5469, %v5489
    %v5491 = vadd.f32 %v5479, %v5486
    %v5492 = vadd.f32 %v5480, %v5490
    %v5493 = vadd.f32 %v5481, %v5486
    %v5494 = vadd.f32 %v5482, %v5490
    %v5495 = vmax.f32 %v5491, 0.0
    %v5496 = vmax.f32 %v5492, 0.0
    %v5497 = vmax.f32 %v5493, 0.0
    %v5498 = vmax.f32 %v5494, 0.0
    %v5499 = vpack.c.bf16 %v5497, %v5495
    %v5500 = vpack.c.bf16 %v5498, %v5496
    %v5501 = vld [vmem:[#allocation15] sm:$0x3]
    %vm5502 = vcmask 113664
    %v5504 = vsel %vm5502, %v5501, 0
    %vm5506 = vcmask 1046528
    %v5508 = vsel %vm5506, %v5499, 0
    %v5511 = vsel %vm5506, %v5500, 0
    %5513 = vmatprep.subr.bf16.mxu0 %v5511
    %5514 = vmatpush1.bf16.msra.mxu0 %v5508
    %5515 = vmatprep.subr.bf16.mxu0 0
    %5516 = vmatpush1.bf16.msra.mxu0 0
    %5517 = vmatprep.subr.bf16.mxu0 0
    %5518 = vmatpush1.bf16.msra.mxu0 0
    %5519 = vmatprep.subr.bf16.mxu0 0
    %5520 = vmatpush1.bf16.msra.mxu0 0
    %5521 = vmatprep.subr.bf16.mxu0 0
    %5522 = vmatpush1.bf16.msra.mxu0 0
    %5523 = vmatprep.subr.bf16.mxu0 0
    %5524 = vmatpush1.bf16.msra.mxu0 0
    %5525 = vmatprep.subr.bf16.mxu0 0
    %5526 = vmatpush1.bf16.msra.mxu0 0
    %5527 = vmatprep.subr.bf16.mxu0 0
    %5528 = vmatpush1.bf16.msra.mxu0 0
    %5529 = vmatprep.subr.bf16.mxu0 0
    %5530 = vmatpush1.bf16.msra.mxu0 0
    %5531 = vmatprep.subr.bf16.mxu0 0
    %5532 = vmatpush1.bf16.msra.mxu0 0
    %5533 = vmatprep.subr.bf16.mxu0 0
    %5534 = vmatpush1.bf16.msra.mxu0 0
    %5535 = vmatprep.subr.bf16.mxu0 0
    %5536 = vmatpush1.bf16.msra.mxu0 0
    %5537 = vmatprep.subr.bf16.mxu0 0
    %5538 = vmatpush1.bf16.msra.mxu0 0
    %5539 = vmatprep.subr.bf16.mxu0 0
    %5540 = vmatpush1.bf16.msra.mxu0 0
    %5541 = vmatprep.subr.bf16.mxu0 0
    %5542 = vmatpush1.bf16.msra.mxu0 0
    %5543 = vmatprep.subr.bf16.mxu0 0
    %5544 = vmatpush1.bf16.msra.mxu0 0
    %5545 = vmatprep.mubr.bf16.mxu0 0
    %5546 = vmatmul.mubr.bf16.gmra.mrb[0].mxu0 %v5504
    %v5547 = vpop.f32.mrb[0].mxu0
    %v5548 = vadd.f32 0.0, %v5547
    %v5549 = vpop.f32.mrb[0].mxu0
    %v5550 = vadd.f32 0.0, %v5549
    %v5551 = vpop.f32.mrb[0].mxu0
    %v5552 = vpop.f32.mrb[0].mxu0
    %5553 = vdwg.mxu0
    %v5554 = vpack.c.bf16 %v5548, %v5548
    %v5555 = vpack.c.bf16 %v5550, %v5550
    %v5556 = vld [vmem:[%s33] sm:$0xf]
    %v5557 = vld [vmem:[%s33 + $0x4] sm:$0xf]
    %v5558 = vld [vmem:[%s33 + $0x8] sm:$0xf]
    %v5559 = vld [vmem:[%s33 + $0xc] sm:$0xf]
    %v5560 = vld [vmem:[%s33 + $0x10] sm:$0xf]
    %v5561 = vld [vmem:[%s33 + $0x14] sm:$0xf]
    %v5562 = vld [vmem:[%s33 + $0x18] sm:$0xf]
    %v5563 = vld [vmem:[%s33 + $0x1c] sm:$0xf]
    %v5564 = vld [vmem:[%s33 + $0x20] sm:$0xf]
    %v5565 = vld [vmem:[%s33 + $0x24] sm:$0xf]
    %v5566 = vld [vmem:[%s33 + $0x28] sm:$0xf]
    %v5567 = vld [vmem:[%s33 + $0x2c] sm:$0xf]
    %v5568 = vld [vmem:[%s33 + $0x30] sm:$0xf]
    %v5569 = vld [vmem:[%s33 + $0x34] sm:$0xf]
    %v5570 = vld [vmem:[%s33 + $0x38] sm:$0xf]
    %v5571 = vld [vmem:[%s33 + $0x3c] sm:$0xf]
    %v5572 = vld [vmem:[%s33 + $0x40] sm:$0xf]
    %v5573 = vld [vmem:[%s33 + $0x44] sm:$0xf]
    %v5574 = vld [vmem:[%s33 + $0x48] sm:$0xf]
    %v5575 = vld [vmem:[%s33 + $0x4c] sm:$0xf]
    %v5576 = vld [vmem:[%s33 + $0x50] sm:$0xf]
    %v5577 = vld [vmem:[%s33 + $0x54] sm:$0xf]
    %v5578 = vld [vmem:[%s33 + $0x58] sm:$0xf]
    %v5579 = vld [vmem:[%s33 + $0x5c] sm:$0xf]
    %v5580 = vld [vmem:[%s33 + $0x60] sm:$0xf]
    %v5581 = vld [vmem:[%s33 + $0x64] sm:$0xf]
    %v5582 = vld [vmem:[%s33 + $0x68] sm:$0xf]
    %v5583 = vld [vmem:[%s33 + $0x6c] sm:$0xf]
    %s5584 = scalar_lea.vmem [#allocation15], 2
    %v5585 = vld [vmem:[%s5584] sm:$0x3]
    %v5587 = vsel %vm5502, %v5585, 0
    %5589 = vmatprep.subr.bf16.mxu0 %v5511
    %5590 = vmatpush1.bf16.msra.mxu0 %v5508
    %5591 = vmatprep.subr.bf16.mxu0 0
    %5592 = vmatpush1.bf16.msra.mxu0 0
    %5593 = vmatprep.subr.bf16.mxu0 0
    %5594 = vmatpush1.bf16.msra.mxu0 0
    %5595 = vmatprep.subr.bf16.mxu0 0
    %5596 = vmatpush1.bf16.msra.mxu0 0
    %5597 = vmatprep.subr.bf16.mxu0 0
    %5598 = vmatpush1.bf16.msra.mxu0 0
    %5599 = vmatprep.subr.bf16.mxu0 0
    %5600 = vmatpush1.bf16.msra.mxu0 0
    %5601 = vmatprep.subr.bf16.mxu0 0
    %5602 = vmatpush1.bf16.msra.mxu0 0
    %5603 = vmatprep.subr.bf16.mxu0 0
    %5604 = vmatpush1.bf16.msra.mxu0 0
    %5605 = vmatprep.subr.bf16.mxu0 0
    %5606 = vmatpush1.bf16.msra.mxu0 0
    %5607 = vmatprep.subr.bf16.mxu0 0
    %5608 = vmatpush1.bf16.msra.mxu0 0
    %5609 = vmatprep.subr.bf16.mxu0 0
    %5610 = vmatpush1.bf16.msra.mxu0 0
    %5611 = vmatprep.subr.bf16.mxu0 0
    %5612 = vmatpush1.bf16.msra.mxu0 0
    %5613 = vmatprep.subr.bf16.mxu0 0
    %5614 = vmatpush1.bf16.msra.mxu0 0
    %5615 = vmatprep.subr.bf16.mxu0 0
    %5616 = vmatpush1.bf16.msra.mxu0 0
    %5617 = vmatprep.subr.bf16.mxu0 0
    %5618 = vmatpush1.bf16.msra.mxu0 0
    %5619 = vmatprep.subr.bf16.mxu0 0
    %5620 = vmatpush1.bf16.msra.mxu0 0
    %5621 = vmatprep.mubr.bf16.mxu0 0
    %5622 = vmatmul.mubr.bf16.gmra.mrb[0].mxu0 %v5587
    %v5623 = vpop.f32.mrb[0].mxu0
    %v5624 = vadd.f32 0.0, %v5623
    %v5625 = vpop.f32.mrb[0].mxu0
    %v5626 = vadd.f32 0.0, %v5625
    %v5627 = vpop.f32.mrb[0].mxu0
    %v5628 = vpop.f32.mrb[0].mxu0
    %5629 = vdwg.mxu0
    %v5630 = vpack.c.bf16 %v5624, %v5624
    %v5631 = vpack.c.bf16 %v5626, %v5626
    %s5632 = scalar_lea.vmem %s33, 112
    %v5633 = vld [vmem:[%s5632] sm:$0xf]
    %v5634 = vld [vmem:[%s5632 + $0x4] sm:$0xf]
    %v5635 = vld [vmem:[%s5632 + $0x8] sm:$0xf]
    %v5636 = vld [vmem:[%s5632 + $0xc] sm:$0xf]
    %v5637 = vld [vmem:[%s5632 + $0x10] sm:$0xf]
    %v5638 = vld [vmem:[%s5632 + $0x14] sm:$0xf]
    %v5639 = vld [vmem:[%s5632 + $0x18] sm:$0xf]
    %v5640 = vld [vmem:[%s5632 + $0x1c] sm:$0xf]
    %v5641 = vld [vmem:[%s5632 + $0x20] sm:$0xf]
    %v5642 = vld [vmem:[%s5632 + $0x24] sm:$0xf]
    %v5643 = vld [vmem:[%s5632 + $0x28] sm:$0xf]
    %v5644 = vld [vmem:[%s5632 + $0x2c] sm:$0xf]
    %v5645 = vld [vmem:[%s5632 + $0x30] sm:$0xf]
    %v5646 = vld [vmem:[%s5632 + $0x34] sm:$0xf]
    %v5647 = vld [vmem:[%s5632 + $0x38] sm:$0xf]
    %v5648 = vld [vmem:[%s5632 + $0x3c] sm:$0xf]
    %v5649 = vld [vmem:[%s5632 + $0x40] sm:$0xf]
    %v5650 = vld [vmem:[%s5632 + $0x44] sm:$0xf]
    %v5651 = vld [vmem:[%s5632 + $0x48] sm:$0xf]
    %v5652 = vld [vmem:[%s5632 + $0x4c] sm:$0xf]
    %v5653 = vld [vmem:[%s5632 + $0x50] sm:$0xf]
    %v5654 = vld [vmem:[%s5632 + $0x54] sm:$0xf]
    %v5655 = vld [vmem:[%s5632 + $0x58] sm:$0xf]
    %v5656 = vld [vmem:[%s5632 + $0x5c] sm:$0xf]
    %v5657 = vld [vmem:[%s5632 + $0x60] sm:$0xf]
    %v5658 = vld [vmem:[%s5632 + $0x64] sm:$0xf]
    %v5659 = vld [vmem:[%s5632 + $0x68] sm:$0xf]
    %v5660 = vld [vmem:[%s5632 + $0x6c] sm:$0xf]
    %v5689 = vunpack.c.l.b16 %v5633
    %v5690 = vunpack.c.l.b16 %v5634
    %v5691 = vunpack.c.l.b16 %v5635
    %v5692 = vunpack.c.l.b16 %v5636
    %v5693 = vunpack.c.l.b16 %v5637
    %v5694 = vunpack.c.l.b16 %v5638
    %v5695 = vunpack.c.l.b16 %v5639
    %v5696 = vunpack.c.l.b16 %v5640
    %v5697 = vunpack.c.l.b16 %v5641
    %v5698 = vunpack.c.l.b16 %v5642
    %v5699 = vunpack.c.l.b16 %v5643
    %v5700 = vunpack.c.l.b16 %v5644
    %v5701 = vunpack.c.l.b16 %v5645
    %v5702 = vunpack.c.l.b16 %v5646
    %v5703 = vunpack.c.l.b16 %v5647
    %v5704 = vunpack.c.l.b16 %v5648
    %v5705 = vunpack.c.l.b16 %v5649
    %v5706 = vunpack.c.l.b16 %v5650
    %v5707 = vunpack.c.l.b16 %v5651
    %v5708 = vunpack.c.l.b16 %v5652
    %v5709 = vunpack.c.l.b16 %v5653
    %v5710 = vunpack.c.l.b16 %v5654
    %v5711 = vunpack.c.l.b16 %v5655
    %v5712 = vunpack.c.l.b16 %v5656
    %v5713 = vunpack.c.l.b16 %v5657
    %v5714 = vunpack.c.l.b16 %v5658
    %v5715 = vunpack.c.l.b16 %v5659
    %v5716 = vunpack.c.l.b16 %v5660
    %v5717 = vpack.c.b16 %v5690, %v5689
    %v5718 = vpack.c.b16 %v5692, %v5691
    %v5719 = vpack.c.b16 %v5694, %v5693
    %v5720 = vpack.c.b16 %v5696, %v5695
    %v5721 = vpack.c.b16 %v5698, %v5697
    %v5722 = vpack.c.b16 %v5700, %v5699
    %v5723 = vpack.c.b16 %v5702, %v5701
    %v5724 = vpack.c.b16 %v5704, %v5703
    %v5725 = vpack.c.b16 %v5706, %v5705
    %v5726 = vpack.c.b16 %v5708, %v5707
    %v5727 = vpack.c.b16 %v5710, %v5709
    %v5728 = vpack.c.b16 %v5712, %v5711
    %v5729 = vpack.c.b16 %v5714, %v5713
    %v5730 = vpack.c.b16 %v5716, %v5715
    %v5746 = vsel %vm5098, %v5631, 0
    %5748 = vmatprep.subr.bf16.mxu0 0
    %5749 = vmatpush1.bf16.msra.mxu0 %v5717
    %5750 = vmatprep.subr.bf16.mxu0 0
    %5751 = vmatpush1.bf16.msra.mxu0 %v5718
    %5752 = vmatprep.subr.bf16.mxu0 0
    %5753 = vmatpush1.bf16.msra.mxu0 %v5719
    %5754 = vmatprep.subr.bf16.mxu0 0
    %5755 = vmatpush1.bf16.msra.mxu0 %v5720
    %5756 = vmatprep.subr.bf16.mxu0 0
    %5757 = vmatpush1.bf16.msra.mxu0 %v5721
    %5758 = vmatprep.subr.bf16.mxu0 0
    %5759 = vmatpush1.bf16.msra.mxu0 %v5722
    %5760 = vmatprep.subr.bf16.mxu0 0
    %5761 = vmatpush1.bf16.msra.mxu0 %v5723
    %5762 = vmatprep.subr.bf16.mxu0 0
    %5763 = vmatpush1.bf16.msra.mxu0 %v5724
    %5764 = vmatprep.subr.bf16.mxu0 0
    %5765 = vmatpush1.bf16.msra.mxu0 %v5725
    %5766 = vmatprep.subr.bf16.mxu0 0
    %5767 = vmatpush1.bf16.msra.mxu0 %v5726
    %5768 = vmatprep.subr.bf16.mxu0 0
    %5769 = vmatpush1.bf16.msra.mxu0 %v5727
    %5770 = vmatprep.subr.bf16.mxu0 0
    %5771 = vmatpush1.bf16.msra.mxu0 %v5728
    %5772 = vmatprep.subr.bf16.mxu0 0
    %5773 = vmatpush1.bf16.msra.mxu0 %v5729
    %5774 = vmatprep.subr.bf16.mxu0 0
    %5775 = vmatpush1.bf16.msra.mxu0 %v5730
    %5776 = vmatprep.subr.bf16.mxu0 0
    %5777 = vmatpush1.bf16.msra.mxu0 0
    %5778 = vmatprep.subr.bf16.mxu0 0
    %5779 = vmatpush1.bf16.msra.mxu0 0
    %5780 = vmatprep.mubr.bf16.mxu0 %v5746
    %5781 = vmatmul.mubr.bf16.gmra.mrb[0].mxu0 %v5630
    %v5782 = vpop.f32.mrb[0].mxu0
    %v5783 = vadd.f32 0.0, %v5782
    %v5784 = vpop.f32.mrb[0].mxu0
    %v5785 = vpop.f32.mrb[0].mxu0
    %v5786 = vpop.f32.mrb[0].mxu0
    %5787 = vdwg.mxu0
    %v5816 = vunpack.c.l.b16 %v5556
    %v5817 = vunpack.c.l.b16 %v5557
    %v5818 = vunpack.c.l.b16 %v5558
    %v5819 = vunpack.c.l.b16 %v5559
    %v5820 = vunpack.c.l.b16 %v5560
    %v5821 = vunpack.c.l.b16 %v5561
    %v5822 = vunpack.c.l.b16 %v5562
    %v5823 = vunpack.c.l.b16 %v5563
    %v5824 = vunpack.c.l.b16 %v5564
    %v5825 = vunpack.c.l.b16 %v5565
    %v5826 = vunpack.c.l.b16 %v5566
    %v5827 = vunpack.c.l.b16 %v5567
    %v5828 = vunpack.c.l.b16 %v5568
    %v5829 = vunpack.c.l.b16 %v5569
    %v5830 = vunpack.c.l.b16 %v5570
    %v5831 = vunpack.c.l.b16 %v5571
    %v5832 = vunpack.c.l.b16 %v5572
    %v5833 = vunpack.c.l.b16 %v5573
    %v5834 = vunpack.c.l.b16 %v5574
    %v5835 = vunpack.c.l.b16 %v5575
    %v5836 = vunpack.c.l.b16 %v5576
    %v5837 = vunpack.c.l.b16 %v5577
    %v5838 = vunpack.c.l.b16 %v5578
    %v5839 = vunpack.c.l.b16 %v5579
    %v5840 = vunpack.c.l.b16 %v5580
    %v5841 = vunpack.c.l.b16 %v5581
    %v5842 = vunpack.c.l.b16 %v5582
    %v5843 = vunpack.c.l.b16 %v5583
    %v5844 = vpack.c.b16 %v5817, %v5816
    %v5845 = vpack.c.b16 %v5819, %v5818
    %v5846 = vpack.c.b16 %v5821, %v5820
    %v5847 = vpack.c.b16 %v5823, %v5822
    %v5848 = vpack.c.b16 %v5825, %v5824
    %v5849 = vpack.c.b16 %v5827, %v5826
    %v5850 = vpack.c.b16 %v5829, %v5828
    %v5851 = vpack.c.b16 %v5831, %v5830
    %v5852 = vpack.c.b16 %v5833, %v5832
    %v5853 = vpack.c.b16 %v5835, %v5834
    %v5854 = vpack.c.b16 %v5837, %v5836
    %v5855 = vpack.c.b16 %v5839, %v5838
    %v5856 = vpack.c.b16 %v5841, %v5840
    %v5857 = vpack.c.b16 %v5843, %v5842
    %v5873 = vsel %vm5098, %v5555, 0
    %5875 = vmatprep.subr.bf16.mxu0 0
    %5876 = vmatpush1.bf16.msra.mxu0 %v5844
    %5877 = vmatprep.subr.bf16.mxu0 0
    %5878 = vmatpush1.bf16.msra.mxu0 %v5845
    %5879 = vmatprep.subr.bf16.mxu0 0
    %5880 = vmatpush1.bf16.msra.mxu0 %v5846
    %5881 = vmatprep.subr.bf16.mxu0 0
    %5882 = vmatpush1.bf16.msra.mxu0 %v5847
    %5883 = vmatprep.subr.bf16.mxu0 0
    %5884 = vmatpush1.bf16.msra.mxu0 %v5848
    %5885 = vmatprep.subr.bf16.mxu0 0
    %5886 = vmatpush1.bf16.msra.mxu0 %v5849
    %5887 = vmatprep.subr.bf16.mxu0 0
    %5888 = vmatpush1.bf16.msra.mxu0 %v5850
    %5889 = vmatprep.subr.bf16.mxu0 0
    %5890 = vmatpush1.bf16.msra.mxu0 %v5851
    %5891 = vmatprep.subr.bf16.mxu0 0
    %5892 = vmatpush1.bf16.msra.mxu0 %v5852
    %5893 = vmatprep.subr.bf16.mxu0 0
    %5894 = vmatpush1.bf16.msra.mxu0 %v5853
    %5895 = vmatprep.subr.bf16.mxu0 0
    %5896 = vmatpush1.bf16.msra.mxu0 %v5854
    %5897 = vmatprep.subr.bf16.mxu0 0
    %5898 = vmatpush1.bf16.msra.mxu0 %v5855
    %5899 = vmatprep.subr.bf16.mxu0 0
    %5900 = vmatpush1.bf16.msra.mxu0 %v5856
    %5901 = vmatprep.subr.bf16.mxu0 0
    %5902 = vmatpush1.bf16.msra.mxu0 %v5857
    %5903 = vmatprep.subr.bf16.mxu0 0
    %5904 = vmatpush1.bf16.msra.mxu0 0
    %5905 = vmatprep.subr.bf16.mxu0 0
    %5906 = vmatpush1.bf16.msra.mxu0 0
    %5907 = vmatprep.mubr.bf16.mxu0 %v5873
    %5908 = vmatmul.mubr.bf16.gmra.mrb[0].mxu0 %v5554
    %v5909 = vpop.f32.mrb[0].mxu0
    %v5910 = vadd.f32 %v5783, %v5909
    %v5911 = vpop.f32.mrb[0].mxu0
    %v5912 = vpop.f32.mrb[0].mxu0
    %v5913 = vpop.f32.mrb[0].mxu0
    %5914 = vdwg.mxu0
    %s5915 = scalar_lea.vmem [#allocation15], 4
    %v5916 = vld [vmem:[%s5915] sm:$0x3]
    %v5918 = vsel %vm5502, %v5916, 0
    %5920 = vmatprep.subr.bf16.mxu0 %v5511
    %5921 = vmatpush1.bf16.msra.mxu0 %v5508
    %5922 = vmatprep.subr.bf16.mxu0 0
    %5923 = vmatpush1.bf16.msra.mxu0 0
    %5924 = vmatprep.subr.bf16.mxu0 0
    %5925 = vmatpush1.bf16.msra.mxu0 0
    %5926 = vmatprep.subr.bf16.mxu0 0
    %5927 = vmatpush1.bf16.msra.mxu0 0
    %5928 = vmatprep.subr.bf16.mxu0 0
    %5929 = vmatpush1.bf16.msra.mxu0 0
    %5930 = vmatprep.subr.bf16.mxu0 0
    %5931 = vmatpush1.bf16.msra.mxu0 0
    %5932 = vmatprep.subr.bf16.mxu0 0
    %5933 = vmatpush1.bf16.msra.mxu0 0
    %5934 = vmatprep.subr.bf16.mxu0 0
    %5935 = vmatpush1.bf16.msra.mxu0 0
    %5936 = vmatprep.subr.bf16.mxu0 0
    %5937 = vmatpush1.bf16.msra.mxu0 0
    %5938 = vmatprep.subr.bf16.mxu0 0
    %5939 = vmatpush1.bf16.msra.mxu0 0
    %5940 = vmatprep.subr.bf16.mxu0 0
    %5941 = vmatpush1.bf16.msra.mxu0 0
    %5942 = vmatprep.subr.bf16.mxu0 0
    %5943 = vmatpush1.bf16.msra.mxu0 0
    %5944 = vmatprep.subr.bf16.mxu0 0
    %5945 = vmatpush1.bf16.msra.mxu0 0
    %5946 = vmatprep.subr.bf16.mxu0 0
    %5947 = vmatpush1.bf16.msra.mxu0 0
    %5948 = vmatprep.subr.bf16.mxu0 0
    %5949 = vmatpush1.bf16.msra.mxu0 0
    %5950 = vmatprep.subr.bf16.mxu0 0
    %5951 = vmatpush1.bf16.msra.mxu0 0
    %5952 = vmatprep.mubr.bf16.mxu0 0
    %5953 = vmatmul.mubr.bf16.gmra.mrb[0].mxu0 %v5918
    %v5954 = vpop.f32.mrb[0].mxu0
    %v5955 = vadd.f32 0.0, %v5954
    %v5956 = vpop.f32.mrb[0].mxu0
    %v5957 = vadd.f32 0.0, %v5956
    %v5958 = vpop.f32.mrb[0].mxu0
    %v5959 = vpop.f32.mrb[0].mxu0
    %5960 = vdwg.mxu0
    %v5961 = vpack.c.bf16 %v5955, %v5955
    %v5962 = vpack.c.bf16 %v5957, %v5957
    %s5963 = scalar_lea.vmem %s33, 224
    %v5964 = vld [vmem:[%s5963] sm:$0xf]
    %v5965 = vld [vmem:[%s5963 + $0x4] sm:$0xf]
    %v5966 = vld [vmem:[%s5963 + $0x8] sm:$0xf]
    %v5967 = vld [vmem:[%s5963 + $0xc] sm:$0xf]
    %v5968 = vld [vmem:[%s5963 + $0x10] sm:$0xf]
    %v5969 = vld [vmem:[%s5963 + $0x14] sm:$0xf]
    %v5970 = vld [vmem:[%s5963 + $0x18] sm:$0xf]
    %v5971 = vld [vmem:[%s5963 + $0x1c] sm:$0xf]
    %v5972 = vld [vmem:[%s5963 + $0x20] sm:$0xf]
    %v5973 = vld [vmem:[%s5963 + $0x24] sm:$0xf]
    %v5974 = vld [vmem:[%s5963 + $0x28] sm:$0xf]
    %v5975 = vld [vmem:[%s5963 + $0x2c] sm:$0xf]
    %v5976 = vld [vmem:[%s5963 + $0x30] sm:$0xf]
    %v5977 = vld [vmem:[%s5963 + $0x34] sm:$0xf]
    %v5978 = vld [vmem:[%s5963 + $0x38] sm:$0xf]
    %v5979 = vld [vmem:[%s5963 + $0x3c] sm:$0xf]
    %v5980 = vld [vmem:[%s5963 + $0x40] sm:$0xf]
    %v5981 = vld [vmem:[%s5963 + $0x44] sm:$0xf]
    %v5982 = vld [vmem:[%s5963 + $0x48] sm:$0xf]
    %v5983 = vld [vmem:[%s5963 + $0x4c] sm:$0xf]
    %v5984 = vld [vmem:[%s5963 + $0x50] sm:$0xf]
    %v5985 = vld [vmem:[%s5963 + $0x54] sm:$0xf]
    %v5986 = vld [vmem:[%s5963 + $0x58] sm:$0xf]
    %v5987 = vld [vmem:[%s5963 + $0x5c] sm:$0xf]
    %v5988 = vld [vmem:[%s5963 + $0x60] sm:$0xf]
    %v5989 = vld [vmem:[%s5963 + $0x64] sm:$0xf]
    %v5990 = vld [vmem:[%s5963 + $0x68] sm:$0xf]
    %v5991 = vld [vmem:[%s5963 + $0x6c] sm:$0xf]
    %v6020 = vunpack.c.l.b16 %v5964
    %v6021 = vunpack.c.l.b16 %v5965
    %v6022 = vunpack.c.l.b16 %v5966
    %v6023 = vunpack.c.l.b16 %v5967
    %v6024 = vunpack.c.l.b16 %v5968
    %v6025 = vunpack.c.l.b16 %v5969
    %v6026 = vunpack.c.l.b16 %v5970
    %v6027 = vunpack.c.l.b16 %v5971
    %v6028 = vunpack.c.l.b16 %v5972
    %v6029 = vunpack.c.l.b16 %v5973
    %v6030 = vunpack.c.l.b16 %v5974
    %v6031 = vunpack.c.l.b16 %v5975
    %v6032 = vunpack.c.l.b16 %v5976
    %v6033 = vunpack.c.l.b16 %v5977
    %v6034 = vunpack.c.l.b16 %v5978
    %v6035 = vunpack.c.l.b16 %v5979
    %v6036 = vunpack.c.l.b16 %v5980
    %v6037 = vunpack.c.l.b16 %v5981
    %v6038 = vunpack.c.l.b16 %v5982
    %v6039 = vunpack.c.l.b16 %v5983
    %v6040 = vunpack.c.l.b16 %v5984
    %v6041 = vunpack.c.l.b16 %v5985
    %v6042 = vunpack.c.l.b16 %v5986
    %v6043 = vunpack.c.l.b16 %v5987
    %v6044 = vunpack.c.l.b16 %v5988
    %v6045 = vunpack.c.l.b16 %v5989
    %v6046 = vunpack.c.l.b16 %v5990
    %v6047 = vunpack.c.l.b16 %v5991
    %v6048 = vpack.c.b16 %v6021, %v6020
    %v6049 = vpack.c.b16 %v6023, %v6022
    %v6050 = vpack.c.b16 %v6025, %v6024
    %v6051 = vpack.c.b16 %v6027, %v6026
    %v6052 = vpack.c.b16 %v6029, %v6028
    %v6053 = vpack.c.b16 %v6031, %v6030
    %v6054 = vpack.c.b16 %v6033, %v6032
    %v6055 = vpack.c.b16 %v6035, %v6034
    %v6056 = vpack.c.b16 %v6037, %v6036
    %v6057 = vpack.c.b16 %v6039, %v6038
    %v6058 = vpack.c.b16 %v6041, %v6040
    %v6059 = vpack.c.b16 %v6043, %v6042
    %v6060 = vpack.c.b16 %v6045, %v6044
    %v6061 = vpack.c.b16 %v6047, %v6046
    %v6077 = vsel %vm5098, %v5962, 0
    %6079 = vmatprep.subr.bf16.mxu0 0
    %6080 = vmatpush1.bf16.msra.mxu0 %v6048
    %6081 = vmatprep.subr.bf16.mxu0 0
    %6082 = vmatpush1.bf16.msra.mxu0 %v6049
    %6083 = vmatprep.subr.bf16.mxu0 0
    %6084 = vmatpush1.bf16.msra.mxu0 %v6050
    %6085 = vmatprep.subr.bf16.mxu0 0
    %6086 = vmatpush1.bf16.msra.mxu0 %v6051
    %6087 = vmatprep.subr.bf16.mxu0 0
    %6088 = vmatpush1.bf16.msra.mxu0 %v6052
    %6089 = vmatprep.subr.bf16.mxu0 0
    %6090 = vmatpush1.bf16.msra.mxu0 %v6053
    %6091 = vmatprep.subr.bf16.mxu0 0
    %6092 = vmatpush1.bf16.msra.mxu0 %v6054
    %6093 = vmatprep.subr.bf16.mxu0 0
    %6094 = vmatpush1.bf16.msra.mxu0 %v6055
    %6095 = vmatprep.subr.bf16.mxu0 0
    %6096 = vmatpush1.bf16.msra.mxu0 %v6056
    %6097 = vmatprep.subr.bf16.mxu0 0
    %6098 = vmatpush1.bf16.msra.mxu0 %v6057
    %6099 = vmatprep.subr.bf16.mxu0 0
    %6100 = vmatpush1.bf16.msra.mxu0 %v6058
    %6101 = vmatprep.subr.bf16.mxu0 0
    %6102 = vmatpush1.bf16.msra.mxu0 %v6059
    %6103 = vmatprep.subr.bf16.mxu0 0
    %6104 = vmatpush1.bf16.msra.mxu0 %v6060
    %6105 = vmatprep.subr.bf16.mxu0 0
    %6106 = vmatpush1.bf16.msra.mxu0 %v6061
    %6107 = vmatprep.subr.bf16.mxu0 0
    %6108 = vmatpush1.bf16.msra.mxu0 0
    %6109 = vmatprep.subr.bf16.mxu0 0
    %6110 = vmatpush1.bf16.msra.mxu0 0
    %6111 = vmatprep.mubr.bf16.mxu0 %v6077
    %6112 = vmatmul.mubr.bf16.gmra.mrb[0].mxu0 %v5961
    %v6113 = vpop.f32.mrb[0].mxu0
    %v6114 = vadd.f32 0.0, %v6113
    %v6115 = vpop.f32.mrb[0].mxu0
    %v6116 = vpop.f32.mrb[0].mxu0
    %v6117 = vpop.f32.mrb[0].mxu0
    %6118 = vdwg.mxu0
    %v6119 = vadd.f32 %v5910, %v6114
    %s6120 = scalar_lea.vmem [#allocation15], 6
    %v6121 = vld [vmem:[%s6120] sm:$0x3]
    %v6123 = vsel %vm5502, %v6121, 0
    %6125 = vmatprep.subr.bf16.mxu0 %v5511
    %6126 = vmatpush1.bf16.msra.mxu0 %v5508
    %6127 = vmatprep.subr.bf16.mxu0 0
    %6128 = vmatpush1.bf16.msra.mxu0 0
    %6129 = vmatprep.subr.bf16.mxu0 0
    %6130 = vmatpush1.bf16.msra.mxu0 0
    %6131 = vmatprep.subr.bf16.mxu0 0
    %6132 = vmatpush1.bf16.msra.mxu0 0
    %6133 = vmatprep.subr.bf16.mxu0 0
    %6134 = vmatpush1.bf16.msra.mxu0 0
    %6135 = vmatprep.subr.bf16.mxu0 0
    %6136 = vmatpush1.bf16.msra.mxu0 0
    %6137 = vmatprep.subr.bf16.mxu0 0
    %6138 = vmatpush1.bf16.msra.mxu0 0
    %6139 = vmatprep.subr.bf16.mxu0 0
    %6140 = vmatpush1.bf16.msra.mxu0 0
    %6141 = vmatprep.subr.bf16.mxu0 0
    %6142 = vmatpush1.bf16.msra.mxu0 0
    %6143 = vmatprep.subr.bf16.mxu0 0
    %6144 = vmatpush1.bf16.msra.mxu0 0
    %6145 = vmatprep.subr.bf16.mxu0 0
    %6146 = vmatpush1.bf16.msra.mxu0 0
    %6147 = vmatprep.subr.bf16.mxu0 0
    %6148 = vmatpush1.bf16.msra.mxu0 0
    %6149 = vmatprep.subr.bf16.mxu0 0
    %6150 = vmatpush1.bf16.msra.mxu0 0
    %6151 = vmatprep.subr.bf16.mxu0 0
    %6152 = vmatpush1.bf16.msra.mxu0 0
    %6153 = vmatprep.subr.bf16.mxu0 0
    %6154 = vmatpush1.bf16.msra.mxu0 0
    %6155 = vmatprep.subr.bf16.mxu0 0
    %6156 = vmatpush1.bf16.msra.mxu0 0
    %6157 = vmatprep.mubr.bf16.mxu0 0
    %6158 = vmatmul.mubr.bf16.gmra.mrb[0].mxu0 %v6123
    %v6159 = vpop.f32.mrb[0].mxu0
    %v6160 = vadd.f32 0.0, %v6159
    %v6161 = vpop.f32.mrb[0].mxu0
    %v6162 = vadd.f32 0.0, %v6161
    %v6163 = vpop.f32.mrb[0].mxu0
    %v6164 = vpop.f32.mrb[0].mxu0
    %6165 = vdwg.mxu0
    %v6166 = vpack.c.bf16 %v6160, %v6160
    %v6167 = vpack.c.bf16 %v6162, %v6162
    %s6168 = scalar_lea.vmem %s33, 336
    %v6169 = vld [vmem:[%s6168] sm:$0xf]
    %v6170 = vld [vmem:[%s6168 + $0x4] sm:$0xf]
    %v6171 = vld [vmem:[%s6168 + $0x8] sm:$0xf]
    %v6172 = vld [vmem:[%s6168 + $0xc] sm:$0xf]
    %v6173 = vld [vmem:[%s6168 + $0x10] sm:$0xf]
    %v6174 = vld [vmem:[%s6168 + $0x14] sm:$0xf]
    %v6175 = vld [vmem:[%s6168 + $0x18] sm:$0xf]
    %v6176 = vld [vmem:[%s6168 + $0x1c] sm:$0xf]
    %v6177 = vld [vmem:[%s6168 + $0x20] sm:$0xf]
    %v6178 = vld [vmem:[%s6168 + $0x24] sm:$0xf]
    %v6179 = vld [vmem:[%s6168 + $0x28] sm:$0xf]
    %v6180 = vld [vmem:[%s6168 + $0x2c] sm:$0xf]
    %v6181 = vld [vmem:[%s6168 + $0x30] sm:$0xf]
    %v6182 = vld [vmem:[%s6168 + $0x34] sm:$0xf]
    %v6183 = vld [vmem:[%s6168 + $0x38] sm:$0xf]
    %v6184 = vld [vmem:[%s6168 + $0x3c] sm:$0xf]
    %v6185 = vld [vmem:[%s6168 + $0x40] sm:$0xf]
    %v6186 = vld [vmem:[%s6168 + $0x44] sm:$0xf]
    %v6187 = vld [vmem:[%s6168 + $0x48] sm:$0xf]
    %v6188 = vld [vmem:[%s6168 + $0x4c] sm:$0xf]
    %v6189 = vld [vmem:[%s6168 + $0x50] sm:$0xf]
    %v6190 = vld [vmem:[%s6168 + $0x54] sm:$0xf]
    %v6191 = vld [vmem:[%s6168 + $0x58] sm:$0xf]
    %v6192 = vld [vmem:[%s6168 + $0x5c] sm:$0xf]
    %v6193 = vld [vmem:[%s6168 + $0x60] sm:$0xf]
    %v6194 = vld [vmem:[%s6168 + $0x64] sm:$0xf]
    %v6195 = vld [vmem:[%s6168 + $0x68] sm:$0xf]
    %v6196 = vld [vmem:[%s6168 + $0x6c] sm:$0xf]
    %v6225 = vunpack.c.l.b16 %v6169
    %v6226 = vunpack.c.l.b16 %v6170
    %v6227 = vunpack.c.l.b16 %v6171
    %v6228 = vunpack.c.l.b16 %v6172
    %v6229 = vunpack.c.l.b16 %v6173
    %v6230 = vunpack.c.l.b16 %v6174
    %v6231 = vunpack.c.l.b16 %v6175
    %v6232 = vunpack.c.l.b16 %v6176
    %v6233 = vunpack.c.l.b16 %v6177
    %v6234 = vunpack.c.l.b16 %v6178
    %v6235 = vunpack.c.l.b16 %v6179
    %v6236 = vunpack.c.l.b16 %v6180
    %v6237 = vunpack.c.l.b16 %v6181
    %v6238 = vunpack.c.l.b16 %v6182
    %v6239 = vunpack.c.l.b16 %v6183
    %v6240 = vunpack.c.l.b16 %v6184
    %v6241 = vunpack.c.l.b16 %v6185
    %v6242 = vunpack.c.l.b16 %v6186
    %v6243 = vunpack.c.l.b16 %v6187
    %v6244 = vunpack.c.l.b16 %v6188
    %v6245 = vunpack.c.l.b16 %v6189
    %v6246 = vunpack.c.l.b16 %v6190
    %v6247 = vunpack.c.l.b16 %v6191
    %v6248 = vunpack.c.l.b16 %v6192
    %v6249 = vunpack.c.l.b16 %v6193
    %v6250 = vunpack.c.l.b16 %v6194
    %v6251 = vunpack.c.l.b16 %v6195
    %v6252 = vunpack.c.l.b16 %v6196
    %v6253 = vpack.c.b16 %v6226, %v6225
    %v6254 = vpack.c.b16 %v6228, %v6227
    %v6255 = vpack.c.b16 %v6230, %v6229
    %v6256 = vpack.c.b16 %v6232, %v6231
    %v6257 = vpack.c.b16 %v6234, %v6233
    %v6258 = vpack.c.b16 %v6236, %v6235
    %v6259 = vpack.c.b16 %v6238, %v6237
    %v6260 = vpack.c.b16 %v6240, %v6239
    %v6261 = vpack.c.b16 %v6242, %v6241
    %v6262 = vpack.c.b16 %v6244, %v6243
    %v6263 = vpack.c.b16 %v6246, %v6245
    %v6264 = vpack.c.b16 %v6248, %v6247
    %v6265 = vpack.c.b16 %v6250, %v6249
    %v6266 = vpack.c.b16 %v6252, %v6251
    %v6282 = vsel %vm5098, %v6167, 0
    %6284 = vmatprep.subr.bf16.mxu0 0
    %6285 = vmatpush1.bf16.msra.mxu0 %v6253
    %6286 = vmatprep.subr.bf16.mxu0 0
    %6287 = vmatpush1.bf16.msra.mxu0 %v6254
    %6288 = vmatprep.subr.bf16.mxu0 0
    %6289 = vmatpush1.bf16.msra.mxu0 %v6255
    %6290 = vmatprep.subr.bf16.mxu0 0
    %6291 = vmatpush1.bf16.msra.mxu0 %v6256
    %6292 = vmatprep.subr.bf16.mxu0 0
    %6293 = vmatpush1.bf16.msra.mxu0 %v6257
    %6294 = vmatprep.subr.bf16.mxu0 0
    %6295 = vmatpush1.bf16.msra.mxu0 %v6258
    %6296 = vmatprep.subr.bf16.mxu0 0
    %6297 = vmatpush1.bf16.msra.mxu0 %v6259
    %6298 = vmatprep.subr.bf16.mxu0 0
    %6299 = vmatpush1.bf16.msra.mxu0 %v6260
    %6300 = vmatprep.subr.bf16.mxu0 0
    %6301 = vmatpush1.bf16.msra.mxu0 %v6261
    %6302 = vmatprep.subr.bf16.mxu0 0
    %6303 = vmatpush1.bf16.msra.mxu0 %v6262
    %6304 = vmatprep.subr.bf16.mxu0 0
    %6305 = vmatpush1.bf16.msra.mxu0 %v6263
    %6306 = vmatprep.subr.bf16.mxu0 0
    %6307 = vmatpush1.bf16.msra.mxu0 %v6264
    %6308 = vmatprep.subr.bf16.mxu0 0
    %6309 = vmatpush1.bf16.msra.mxu0 %v6265
    %6310 = vmatprep.subr.bf16.mxu0 0
    %6311 = vmatpush1.bf16.msra.mxu0 %v6266
    %6312 = vmatprep.subr.bf16.mxu0 0
    %6313 = vmatpush1.bf16.msra.mxu0 0
    %6314 = vmatprep.subr.bf16.mxu0 0
    %6315 = vmatpush1.bf16.msra.mxu0 0
    %6316 = vmatprep.mubr.bf16.mxu0 %v6282
    %6317 = vmatmul.mubr.bf16.gmra.mrb[0].mxu0 %v6166
    %v6318 = vpop.f32.mrb[0].mxu0
    %v6319 = vadd.f32 0.0, %v6318
    %v6320 = vpop.f32.mrb[0].mxu0
    %v6321 = vpop.f32.mrb[0].mxu0
    %v6322 = vpop.f32.mrb[0].mxu0
    %6323 = vdwg.mxu0
    %v6324 = vadd.f32 %v6119, %v6319
    %s6325 = scalar_lea.vmem [#allocation15], 8
    %v6326 = vld [vmem:[%s6325] sm:$0x3]
    %v6328 = vsel %vm5502, %v6326, 0
    %6330 = vmatprep.subr.bf16.mxu0 %v5511
    %6331 = vmatpush1.bf16.msra.mxu0 %v5508
    %6332 = vmatprep.subr.bf16.mxu0 0
    %6333 = vmatpush1.bf16.msra.mxu0 0
    %6334 = vmatprep.subr.bf16.mxu0 0
    %6335 = vmatpush1.bf16.msra.mxu0 0
    %6336 = vmatprep.subr.bf16.mxu0 0
    %6337 = vmatpush1.bf16.msra.mxu0 0
    %6338 = vmatprep.subr.bf16.mxu0 0
    %6339 = vmatpush1.bf16.msra.mxu0 0
    %6340 = vmatprep.subr.bf16.mxu0 0
    %6341 = vmatpush1.bf16.msra.mxu0 0
    %6342 = vmatprep.subr.bf16.mxu0 0
    %6343 = vmatpush1.bf16.msra.mxu0 0
    %6344 = vmatprep.subr.bf16.mxu0 0
    %6345 = vmatpush1.bf16.msra.mxu0 0
    %6346 = vmatprep.subr.bf16.mxu0 0
    %6347 = vmatpush1.bf16.msra.mxu0 0
    %6348 = vmatprep.subr.bf16.mxu0 0
    %6349 = vmatpush1.bf16.msra.mxu0 0
    %6350 = vmatprep.subr.bf16.mxu0 0
    %6351 = vmatpush1.bf16.msra.mxu0 0
    %6352 = vmatprep.subr.bf16.mxu0 0
    %6353 = vmatpush1.bf16.msra.mxu0 0
    %6354 = vmatprep.subr.bf16.mxu0 0
    %6355 = vmatpush1.bf16.msra.mxu0 0
    %6356 = vmatprep.subr.bf16.mxu0 0
    %6357 = vmatpush1.bf16.msra.mxu0 0
    %6358 = vmatprep.subr.bf16.mxu0 0
    %6359 = vmatpush1.bf16.msra.mxu0 0
    %6360 = vmatprep.subr.bf16.mxu0 0
    %6361 = vmatpush1.bf16.msra.mxu0 0
    %6362 = vmatprep.mubr.bf16.mxu0 0
    %6363 = vmatmul.mubr.bf16.gmra.mrb[0].mxu0 %v6328
    %v6364 = vpop.f32.mrb[0].mxu0
    %v6365 = vadd.f32 0.0, %v6364
    %v6366 = vpop.f32.mrb[0].mxu0
    %v6367 = vadd.f32 0.0, %v6366
    %v6368 = vpop.f32.mrb[0].mxu0
    %v6369 = vpop.f32.mrb[0].mxu0
    %6370 = vdwg.mxu0
    %v6371 = vpack.c.bf16 %v6365, %v6365
    %v6372 = vpack.c.bf16 %v6367, %v6367
    %s6373 = scalar_lea.vmem %s33, 448
    %v6374 = vld [vmem:[%s6373] sm:$0xf]
    %v6375 = vld [vmem:[%s6373 + $0x4] sm:$0xf]
    %v6376 = vld [vmem:[%s6373 + $0x8] sm:$0xf]
    %v6377 = vld [vmem:[%s6373 + $0xc] sm:$0xf]
    %v6378 = vld [vmem:[%s6373 + $0x10] sm:$0xf]
    %v6379 = vld [vmem:[%s6373 + $0x14] sm:$0xf]
    %v6380 = vld [vmem:[%s6373 + $0x18] sm:$0xf]
    %v6381 = vld [vmem:[%s6373 + $0x1c] sm:$0xf]
    %v6382 = vld [vmem:[%s6373 + $0x20] sm:$0xf]
    %v6383 = vld [vmem:[%s6373 + $0x24] sm:$0xf]
    %v6384 = vld [vmem:[%s6373 + $0x28] sm:$0xf]
    %v6385 = vld [vmem:[%s6373 + $0x2c] sm:$0xf]
    %v6386 = vld [vmem:[%s6373 + $0x30] sm:$0xf]
    %v6387 = vld [vmem:[%s6373 + $0x34] sm:$0xf]
    %v6388 = vld [vmem:[%s6373 + $0x38] sm:$0xf]
    %v6389 = vld [vmem:[%s6373 + $0x3c] sm:$0xf]
    %v6390 = vld [vmem:[%s6373 + $0x40] sm:$0xf]
    %v6391 = vld [vmem:[%s6373 + $0x44] sm:$0xf]
    %v6392 = vld [vmem:[%s6373 + $0x48] sm:$0xf]
    %v6393 = vld [vmem:[%s6373 + $0x4c] sm:$0xf]
    %v6394 = vld [vmem:[%s6373 + $0x50] sm:$0xf]
    %v6395 = vld [vmem:[%s6373 + $0x54] sm:$0xf]
    %v6396 = vld [vmem:[%s6373 + $0x58] sm:$0xf]
    %v6397 = vld [vmem:[%s6373 + $0x5c] sm:$0xf]
    %v6398 = vld [vmem:[%s6373 + $0x60] sm:$0xf]
    %v6399 = vld [vmem:[%s6373 + $0x64] sm:$0xf]
    %v6400 = vld [vmem:[%s6373 + $0x68] sm:$0xf]
    %v6401 = vld [vmem:[%s6373 + $0x6c] sm:$0xf]
    %v6430 = vunpack.c.l.b16 %v6374
    %v6431 = vunpack.c.l.b16 %v6375
    %v6432 = vunpack.c.l.b16 %v6376
    %v6433 = vunpack.c.l.b16 %v6377
    %v6434 = vunpack.c.l.b16 %v6378
    %v6435 = vunpack.c.l.b16 %v6379
    %v6436 = vunpack.c.l.b16 %v6380
    %v6437 = vunpack.c.l.b16 %v6381
    %v6438 = vunpack.c.l.b16 %v6382
    %v6439 = vunpack.c.l.b16 %v6383
    %v6440 = vunpack.c.l.b16 %v6384
    %v6441 = vunpack.c.l.b16 %v6385
    %v6442 = vunpack.c.l.b16 %v6386
    %v6443 = vunpack.c.l.b16 %v6387
    %v6444 = vunpack.c.l.b16 %v6388
    %v6445 = vunpack.c.l.b16 %v6389
    %v6446 = vunpack.c.l.b16 %v6390
    %v6447 = vunpack.c.l.b16 %v6391
    %v6448 = vunpack.c.l.b16 %v6392
    %v6449 = vunpack.c.l.b16 %v6393
    %v6450 = vunpack.c.l.b16 %v6394
    %v6451 = vunpack.c.l.b16 %v6395
    %v6452 = vunpack.c.l.b16 %v6396
    %v6453 = vunpack.c.l.b16 %v6397
    %v6454 = vunpack.c.l.b16 %v6398
    %v6455 = vunpack.c.l.b16 %v6399
    %v6456 = vunpack.c.l.b16 %v6400
    %v6457 = vunpack.c.l.b16 %v6401
    %v6458 = vpack.c.b16 %v6431, %v6430
    %v6459 = vpack.c.b16 %v6433, %v6432
    %v6460 = vpack.c.b16 %v6435, %v6434
    %v6461 = vpack.c.b16 %v6437, %v6436
    %v6462 = vpack.c.b16 %v6439, %v6438
    %v6463 = vpack.c.b16 %v6441, %v6440
    %v6464 = vpack.c.b16 %v6443, %v6442
    %v6465 = vpack.c.b16 %v6445, %v6444
    %v6466 = vpack.c.b16 %v6447, %v6446
    %v6467 = vpack.c.b16 %v6449, %v6448
    %v6468 = vpack.c.b16 %v6451, %v6450
    %v6469 = vpack.c.b16 %v6453, %v6452
    %v6470 = vpack.c.b16 %v6455, %v6454
    %v6471 = vpack.c.b16 %v6457, %v6456
    %v6487 = vsel %vm5098, %v6372, 0
    %6489 = vmatprep.subr.bf16.mxu0 0
    %6490 = vmatpush1.bf16.msra.mxu0 %v6458
    %6491 = vmatprep.subr.bf16.mxu0 0
    %6492 = vmatpush1.bf16.msra.mxu0 %v6459
    %6493 = vmatprep.subr.bf16.mxu0 0
    %6494 = vmatpush1.bf16.msra.mxu0 %v6460
    %6495 = vmatprep.subr.bf16.mxu0 0
    %6496 = vmatpush1.bf16.msra.mxu0 %v6461
    %6497 = vmatprep.subr.bf16.mxu0 0
    %6498 = vmatpush1.bf16.msra.mxu0 %v6462
    %6499 = vmatprep.subr.bf16.mxu0 0
    %6500 = vmatpush1.bf16.msra.mxu0 %v6463
    %6501 = vmatprep.subr.bf16.mxu0 0
    %6502 = vmatpush1.bf16.msra.mxu0 %v6464
    %6503 = vmatprep.subr.bf16.mxu0 0
    %6504 = vmatpush1.bf16.msra.mxu0 %v6465
    %6505 = vmatprep.subr.bf16.mxu0 0
    %6506 = vmatpush1.bf16.msra.mxu0 %v6466
    %6507 = vmatprep.subr.bf16.mxu0 0
    %6508 = vmatpush1.bf16.msra.mxu0 %v6467
    %6509 = vmatprep.subr.bf16.mxu0 0
    %6510 = vmatpush1.bf16.msra.mxu0 %v6468
    %6511 = vmatprep.subr.bf16.mxu0 0
    %6512 = vmatpush1.bf16.msra.mxu0 %v6469
    %6513 = vmatprep.subr.bf16.mxu0 0
    %6514 = vmatpush1.bf16.msra.mxu0 %v6470
    %6515 = vmatprep.subr.bf16.mxu0 0
    %6516 = vmatpush1.bf16.msra.mxu0 %v6471
    %6517 = vmatprep.subr.bf16.mxu0 0
    %6518 = vmatpush1.bf16.msra.mxu0 0
    %6519 = vmatprep.subr.bf16.mxu0 0
    %6520 = vmatpush1.bf16.msra.mxu0 0
    %6521 = vmatprep.mubr.bf16.mxu0 %v6487
    %6522 = vmatmul.mubr.bf16.gmra.mrb[0].mxu0 %v6371
    %v6523 = vpop.f32.mrb[0].mxu0
    %v6524 = vadd.f32 0.0, %v6523
    %v6525 = vpop.f32.mrb[0].mxu0
    %v6526 = vpop.f32.mrb[0].mxu0
    %v6527 = vpop.f32.mrb[0].mxu0
    %6528 = vdwg.mxu0
    %v6529 = vadd.f32 %v6324, %v6524
    %v6530 = vld [vmem:[#allocation16] sm:$0x1]
    %v6532 = vlaneseq
    %v6533 = vshrl.u32 %v6532, 7
    %v6534 = vsub.s32 0, %v6533
    %v6535 = vrot.slane %v6530, %v6534
    %v6537 = vadd.f32 %v6529, %v6535
    %vm6538 = vcmask 519168
    %v6539 = vsel %vm6538, %v6537, 0.0
    %v6540 = vrot.slane %v6539, 4
    %v6541 = vadd.f32 %v6539, %v6540
    %v6542 = vrot.slane %v6541, 2
    %v6543 = vadd.f32 %v6541, %v6542
    %v6544 = vrot.slane %v6543, 1
    %v6545 = vadd.f32 %v6543, %v6544
    %v6546 = vmul.f32 %v6537, %v6537
    %v6547 = vsel %vm6538, %v6546, 0.0
    %v6548 = vrot.slane %v6547, 4
    %v6549 = vadd.f32 %v6547, %v6548
    %v6550 = vrot.slane %v6549, 2
    %v6551 = vadd.f32 %v6549, %v6550
    %v6552 = vrot.slane %v6551, 1
    %v6553 = vadd.f32 %v6551, %v6552
    %v6554 = vld [vmem:[%s41] sm:$0xff]
    %v6555 = vld [vmem:[%s41 + $0x8] sm:$0xff]
    %v6556 = vld [vmem:[%s41 + $0x10] sm:$0xff]
    %v6557 = vld [vmem:[%s41 + $0x18] sm:$0xff]
    %v6558 = vld [vmem:[%s41 + $0x20] sm:$0xff]
    %v6559 = vld [vmem:[%s41 + $0x28] sm:$0xff]
    %v6560 = vld [vmem:[%s41 + $0x30] sm:$0xff]
    %v6561 = vld [vmem:[%s41 + $0x38] sm:$0xff]
    %vm6562 = vcmask 523264
    %v6564 = vsel %vm6562, %v6545, 0
    %6566 = vmatprep.subr.mxu0 0.0
    %6567 = vmatpush1.msra.mxu0 %v6554
    %6568 = vmatprep.subr.mxu0 0.0
    %6569 = vmatpush1.msra.mxu0 %v6555
    %6570 = vmatprep.subr.mxu0 0.0
    %6571 = vmatpush1.msra.mxu0 %v6556
    %6572 = vmatprep.subr.mxu0 0.0
    %6573 = vmatpush1.msra.mxu0 %v6557
    %6574 = vmatprep.subr.mxu0 0.0
    %6575 = vmatpush1.msra.mxu0 %v6558
    %6576 = vmatprep.subr.mxu0 0.0
    %6577 = vmatpush1.msra.mxu0 %v6559
    %6578 = vmatprep.subr.mxu0 0.0
    %6579 = vmatpush1.msra.mxu0 %v6560
    %6580 = vmatprep.subr.mxu0 0.0
    %6581 = vmatpush1.msra.mxu0 %v6561
    %6582 = vmatprep.subr.mxu0 0.0
    %6583 = vmatpush1.msra.mxu0 0.0
    %6584 = vmatprep.subr.mxu0 0.0
    %6585 = vmatpush1.msra.mxu0 0.0
    %6586 = vmatprep.subr.mxu0 0.0
    %6587 = vmatpush1.msra.mxu0 0.0
    %6588 = vmatprep.subr.mxu0 0.0
    %6589 = vmatpush1.msra.mxu0 0.0
    %6590 = vmatprep.subr.mxu0 0.0
    %6591 = vmatpush1.msra.mxu0 0.0
    %6592 = vmatprep.subr.mxu0 0.0
    %6593 = vmatpush1.msra.mxu0 0.0
    %6594 = vmatprep.subr.mxu0 0.0
    %6595 = vmatpush1.msra.mxu0 0.0
    %6596 = vmatprep.subr.mxu0 0.0
    %6597 = vmatpush1.msra.mxu0 0.0
    %6598 = vmatprep.subr.mxu0 0.0
    %6599 = vmatpush1.msra.mxu0 0.0
    %6600 = vmatprep.subr.mxu0 0.0
    %6601 = vmatpush1.msra.mxu0 0.0
    %6602 = vmatprep.subr.mxu0 0.0
    %6603 = vmatpush1.msra.mxu0 0.0
    %6604 = vmatprep.subr.mxu0 0.0
    %6605 = vmatpush1.msra.mxu0 0.0
    %6606 = vmatprep.subr.mxu0 0.0
    %6607 = vmatpush1.msra.mxu0 0.0
    %6608 = vmatprep.subr.mxu0 0.0
    %6609 = vmatpush1.msra.mxu0 0.0
    %6610 = vmatprep.subr.mxu0 0.0
    %6611 = vmatpush1.msra.mxu0 0.0
    %6612 = vmatprep.subr.mxu0 0.0
    %6613 = vmatpush1.msra.mxu0 0.0
    %6614 = vmatprep.subr.mxu0 0.0
    %6615 = vmatpush1.msra.mxu0 0.0
    %6616 = vmatprep.subr.mxu0 0.0
    %6617 = vmatpush1.msra.mxu0 0.0
    %6618 = vmatprep.subr.mxu0 0.0
    %6619 = vmatpush1.msra.mxu0 0.0
    %6620 = vmatprep.subr.mxu0 0.0
    %6621 = vmatpush1.msra.mxu0 0.0
    %6622 = vmatprep.subr.mxu0 0.0
    %6623 = vmatpush1.msra.mxu0 0.0
    %6624 = vmatprep.subr.mxu0 0.0
    %6625 = vmatpush1.msra.mxu0 0.0
    %6626 = vmatprep.subr.mxu0 0.0
    %6627 = vmatpush1.msra.mxu0 0.0
    %6628 = vmatprep.subr.mxu0 0.0
    %6629 = vmatpush1.msra.mxu0 0.0
    %6630 = vmatprep.mubr.f32.mxu0 0.0
    %6631 = vmatmul.mubr.f32.gmra.mrb[0].mxu0 %v6564
    %v6632 = vpop.f32.mrb[0].mxu0
    %v6633 = vadd.f32 0.0, %v6632
    %v6634 = vpop.f32.mrb[0].mxu0
    %6635 = vdwg.mxu0
    %v6636 = vmul.f32 %v6633, 0.125
    %v6638 = vsel %vm6562, %v6553, 0
    %6640 = vmatprep.subr.mxu0 0.0
    %6641 = vmatpush1.msra.mxu0 %v6554
    %6642 = vmatprep.subr.mxu0 0.0
    %6643 = vmatpush1.msra.mxu0 %v6555
    %6644 = vmatprep.subr.mxu0 0.0
    %6645 = vmatpush1.msra.mxu0 %v6556
    %6646 = vmatprep.subr.mxu0 0.0
    %6647 = vmatpush1.msra.mxu0 %v6557
    %6648 = vmatprep.subr.mxu0 0.0
    %6649 = vmatpush1.msra.mxu0 %v6558
    %6650 = vmatprep.subr.mxu0 0.0
    %6651 = vmatpush1.msra.mxu0 %v6559
    %6652 = vmatprep.subr.mxu0 0.0
    %6653 = vmatpush1.msra.mxu0 %v6560
    %6654 = vmatprep.subr.mxu0 0.0
    %6655 = vmatpush1.msra.mxu0 %v6561
    %6656 = vmatprep.subr.mxu0 0.0
    %6657 = vmatpush1.msra.mxu0 0.0
    %6658 = vmatprep.subr.mxu0 0.0
    %6659 = vmatpush1.msra.mxu0 0.0
    %6660 = vmatprep.subr.mxu0 0.0
    %6661 = vmatpush1.msra.mxu0 0.0
    %6662 = vmatprep.subr.mxu0 0.0
    %6663 = vmatpush1.msra.mxu0 0.0
    %6664 = vmatprep.subr.mxu0 0.0
    %6665 = vmatpush1.msra.mxu0 0.0
    %6666 = vmatprep.subr.mxu0 0.0
    %6667 = vmatpush1.msra.mxu0 0.0
    %6668 = vmatprep.subr.mxu0 0.0
    %6669 = vmatpush1.msra.mxu0 0.0
    %6670 = vmatprep.subr.mxu0 0.0
    %6671 = vmatpush1.msra.mxu0 0.0
    %6672 = vmatprep.subr.mxu0 0.0
    %6673 = vmatpush1.msra.mxu0 0.0
    %6674 = vmatprep.subr.mxu0 0.0
    %6675 = vmatpush1.msra.mxu0 0.0
    %6676 = vmatprep.subr.mxu0 0.0
    %6677 = vmatpush1.msra.mxu0 0.0
    %6678 = vmatprep.subr.mxu0 0.0
    %6679 = vmatpush1.msra.mxu0 0.0
    %6680 = vmatprep.subr.mxu0 0.0
    %6681 = vmatpush1.msra.mxu0 0.0
    %6682 = vmatprep.subr.mxu0 0.0
    %6683 = vmatpush1.msra.mxu0 0.0
    %6684 = vmatprep.subr.mxu0 0.0
    %6685 = vmatpush1.msra.mxu0 0.0
    %6686 = vmatprep.subr.mxu0 0.0
    %6687 = vmatpush1.msra.mxu0 0.0
    %6688 = vmatprep.subr.mxu0 0.0
    %6689 = vmatpush1.msra.mxu0 0.0
    %6690 = vmatprep.subr.mxu0 0.0
    %6691 = vmatpush1.msra.mxu0 0.0
    %6692 = vmatprep.subr.mxu0 0.0
    %6693 = vmatpush1.msra.mxu0 0.0
    %6694 = vmatprep.subr.mxu0 0.0
    %6695 = vmatpush1.msra.mxu0 0.0
    %6696 = vmatprep.subr.mxu0 0.0
    %6697 = vmatpush1.msra.mxu0 0.0
    %6698 = vmatprep.subr.mxu0 0.0
    %6699 = vmatpush1.msra.mxu0 0.0
    %6700 = vmatprep.subr.mxu0 0.0
    %6701 = vmatpush1.msra.mxu0 0.0
    %6702 = vmatprep.subr.mxu0 0.0
    %6703 = vmatpush1.msra.mxu0 0.0
    %6704 = vmatprep.mubr.f32.mxu0 0.0
    %6705 = vmatmul.mubr.f32.gmra.mrb[0].mxu0 %v6638
    %v6706 = vpop.f32.mrb[0].mxu0
    %v6707 = vadd.f32 0.0, %v6706
    %v6708 = vpop.f32.mrb[0].mxu0
    %6709 = vdwg.mxu0
    %v6710 = vmul.f32 %v6707, 0.125
    %v6711 = vmul.f32 %v6636, %v6636
    %v6712 = vsub.f32 %v6710, %v6711
    %v6713 = vld [vmem:[#allocation18] sm:$0x1]
    %v6714 = vadd.f32 %v6712, 1e-05
    %v6715 = vrsqrt.pop %v6714
    %v6716 = vmul.f32 %v6713, %v6715
    %v6717 = vld [vmem:[#allocation19] sm:$0x1]
    %v6718 = vmul.f32 %v6636, %v6716
    %v6719 = vsub.f32 %v6717, %v6718
    %v6720 = vld [vmem:[%s43] sm:$0xff]
    %v6721 = vld [vmem:[%s43 + $0x8] sm:$0xff]
    %v6722 = vld [vmem:[%s43 + $0x10] sm:$0xff]
    %v6723 = vld [vmem:[%s43 + $0x18] sm:$0xff]
    %v6725 = vsel %vm2257, %v6716, 0
    %6727 = vmatprep.subr.mxu0 0.0
    %6728 = vmatpush1.msra.mxu0 %v6720
    %6729 = vmatprep.subr.mxu0 0.0
    %6730 = vmatpush1.msra.mxu0 %v6721
    %6731 = vmatprep.subr.mxu0 0.0
    %6732 = vmatpush1.msra.mxu0 %v6722
    %6733 = vmatprep.subr.mxu0 0.0
    %6734 = vmatpush1.msra.mxu0 %v6723
    %6735 = vmatprep.subr.mxu0 0.0
    %6736 = vmatpush1.msra.mxu0 0.0
    %6737 = vmatprep.subr.mxu0 0.0
    %6738 = vmatpush1.msra.mxu0 0.0
    %6739 = vmatprep.subr.mxu0 0.0
    %6740 = vmatpush1.msra.mxu0 0.0
    %6741 = vmatprep.subr.mxu0 0.0
    %6742 = vmatpush1.msra.mxu0 0.0
    %6743 = vmatprep.subr.mxu0 0.0
    %6744 = vmatpush1.msra.mxu0 0.0
    %6745 = vmatprep.subr.mxu0 0.0
    %6746 = vmatpush1.msra.mxu0 0.0
    %6747 = vmatprep.subr.mxu0 0.0
    %6748 = vmatpush1.msra.mxu0 0.0
    %6749 = vmatprep.subr.mxu0 0.0
    %6750 = vmatpush1.msra.mxu0 0.0
    %6751 = vmatprep.subr.mxu0 0.0
    %6752 = vmatpush1.msra.mxu0 0.0
    %6753 = vmatprep.subr.mxu0 0.0
    %6754 = vmatpush1.msra.mxu0 0.0
    %6755 = vmatprep.subr.mxu0 0.0
    %6756 = vmatpush1.msra.mxu0 0.0
    %6757 = vmatprep.subr.mxu0 0.0
    %6758 = vmatpush1.msra.mxu0 0.0
    %6759 = vmatprep.subr.mxu0 0.0
    %6760 = vmatpush1.msra.mxu0 0.0
    %6761 = vmatprep.subr.mxu0 0.0
    %6762 = vmatpush1.msra.mxu0 0.0
    %6763 = vmatprep.subr.mxu0 0.0
    %6764 = vmatpush1.msra.mxu0 0.0
    %6765 = vmatprep.subr.mxu0 0.0
    %6766 = vmatpush1.msra.mxu0 0.0
    %6767 = vmatprep.subr.mxu0 0.0
    %6768 = vmatpush1.msra.mxu0 0.0
    %6769 = vmatprep.subr.mxu0 0.0
    %6770 = vmatpush1.msra.mxu0 0.0
    %6771 = vmatprep.subr.mxu0 0.0
    %6772 = vmatpush1.msra.mxu0 0.0
    %6773 = vmatprep.subr.mxu0 0.0
    %6774 = vmatpush1.msra.mxu0 0.0
    %6775 = vmatprep.subr.mxu0 0.0
    %6776 = vmatpush1.msra.mxu0 0.0
    %6777 = vmatprep.subr.mxu0 0.0
    %6778 = vmatpush1.msra.mxu0 0.0
    %6779 = vmatprep.subr.mxu0 0.0
    %6780 = vmatpush1.msra.mxu0 0.0
    %6781 = vmatprep.subr.mxu0 0.0
    %6782 = vmatpush1.msra.mxu0 0.0
    %6783 = vmatprep.subr.mxu0 0.0
    %6784 = vmatpush1.msra.mxu0 0.0
    %6785 = vmatprep.subr.mxu0 0.0
    %6786 = vmatpush1.msra.mxu0 0.0
    %6787 = vmatprep.subr.mxu0 0.0
    %6788 = vmatpush1.msra.mxu0 0.0
    %6789 = vmatprep.subr.mxu0 0.0
    %6790 = vmatpush1.msra.mxu0 0.0
    %6791 = vmatprep.mubr.f32.mxu0 0.0
    %6792 = vmatmul.mubr.f32.gmra.mrb[0].mxu0 %v6725
    %v6793 = vpop.f32.mrb[0].mxu0
    %v6794 = vadd.f32 0.0, %v6793
    %v6795 = vpop.f32.mrb[0].mxu0
    %6796 = vdwg.mxu0
    %v6798 = vsel %vm2257, %v6719, 0
    %6800 = vmatprep.subr.mxu0 0.0
    %6801 = vmatpush1.msra.mxu0 %v6720
    %6802 = vmatprep.subr.mxu0 0.0
    %6803 = vmatpush1.msra.mxu0 %v6721
    %6804 = vmatprep.subr.mxu0 0.0
    %6805 = vmatpush1.msra.mxu0 %v6722
    %6806 = vmatprep.subr.mxu0 0.0
    %6807 = vmatpush1.msra.mxu0 %v6723
    %6808 = vmatprep.subr.mxu0 0.0
    %6809 = vmatpush1.msra.mxu0 0.0
    %6810 = vmatprep.subr.mxu0 0.0
    %6811 = vmatpush1.msra.mxu0 0.0
    %6812 = vmatprep.subr.mxu0 0.0
    %6813 = vmatpush1.msra.mxu0 0.0
    %6814 = vmatprep.subr.mxu0 0.0
    %6815 = vmatpush1.msra.mxu0 0.0
    %6816 = vmatprep.subr.mxu0 0.0
    %6817 = vmatpush1.msra.mxu0 0.0
    %6818 = vmatprep.subr.mxu0 0.0
    %6819 = vmatpush1.msra.mxu0 0.0
    %6820 = vmatprep.subr.mxu0 0.0
    %6821 = vmatpush1.msra.mxu0 0.0
    %6822 = vmatprep.subr.mxu0 0.0
    %6823 = vmatpush1.msra.mxu0 0.0
    %6824 = vmatprep.subr.mxu0 0.0
    %6825 = vmatpush1.msra.mxu0 0.0
    %6826 = vmatprep.subr.mxu0 0.0
    %6827 = vmatpush1.msra.mxu0 0.0
    %6828 = vmatprep.subr.mxu0 0.0
    %6829 = vmatpush1.msra.mxu0 0.0
    %6830 = vmatprep.subr.mxu0 0.0
    %6831 = vmatpush1.msra.mxu0 0.0
    %6832 = vmatprep.subr.mxu0 0.0
    %6833 = vmatpush1.msra.mxu0 0.0
    %6834 = vmatprep.subr.mxu0 0.0
    %6835 = vmatpush1.msra.mxu0 0.0
    %6836 = vmatprep.subr.mxu0 0.0
    %6837 = vmatpush1.msra.mxu0 0.0
    %6838 = vmatprep.subr.mxu0 0.0
    %6839 = vmatpush1.msra.mxu0 0.0
    %6840 = vmatprep.subr.mxu0 0.0
    %6841 = vmatpush1.msra.mxu0 0.0
    %6842 = vmatprep.subr.mxu0 0.0
    %6843 = vmatpush1.msra.mxu0 0.0
    %6844 = vmatprep.subr.mxu0 0.0
    %6845 = vmatpush1.msra.mxu0 0.0
    %6846 = vmatprep.subr.mxu0 0.0
    %6847 = vmatpush1.msra.mxu0 0.0
    %6848 = vmatprep.subr.mxu0 0.0
    %6849 = vmatpush1.msra.mxu0 0.0
    %6850 = vmatprep.subr.mxu0 0.0
    %6851 = vmatpush1.msra.mxu0 0.0
    %6852 = vmatprep.subr.mxu0 0.0
    %6853 = vmatpush1.msra.mxu0 0.0
    %6854 = vmatprep.subr.mxu0 0.0
    %6855 = vmatpush1.msra.mxu0 0.0
    %6856 = vmatprep.subr.mxu0 0.0
    %6857 = vmatpush1.msra.mxu0 0.0
    %6858 = vmatprep.subr.mxu0 0.0
    %6859 = vmatpush1.msra.mxu0 0.0
    %6860 = vmatprep.subr.mxu0 0.0
    %6861 = vmatpush1.msra.mxu0 0.0
    %6862 = vmatprep.subr.mxu0 0.0
    %6863 = vmatpush1.msra.mxu0 0.0
    %6864 = vmatprep.mubr.f32.mxu0 0.0
    %6865 = vmatmul.mubr.f32.gmra.mrb[0].mxu0 %v6798
    %v6866 = vpop.f32.mrb[0].mxu0
    %v6867 = vadd.f32 0.0, %v6866
    %v6868 = vpop.f32.mrb[0].mxu0
    %6869 = vdwg.mxu0
    %v6870 = vlaneseq
    %v6871 = vshrl.u32 %v6870, 7
    %v6872 = vsub.s32 0, %v6871
    %v6873 = vrot.slane %v6794, %v6872
    %v6874 = vmul.f32 %v6537, %v6873
    %v6875 = vlaneseq
    %v6876 = vshrl.u32 %v6875, 7
    %v6877 = vsub.s32 0, %v6876
    %v6878 = vrot.slane %v6867, %v6877
    %v6879 = vadd.f32 %v6874, %v6878
    %v6880 = vmax.f32 %v6879, 0.0
    %v6881 = vpack.c.bf16 %v6880, %v6880
    %v6882 = vld [vmem:[%s45] sm:$0x1]
    %vm6883 = vcmask 31744
    %v6885 = vsel %vm6883, %v6882, 0
    %v6888 = vsel %vm3043, %v6881, 0
    %6890 = vmatprep.subr.bf16.mxu0 0
    %6891 = vmatpush1.bf16.msra.mxu0 %v6888
    %6892 = vmatprep.subr.bf16.mxu0 0
    %6893 = vmatpush1.bf16.msra.mxu0 0
    %6894 = vmatprep.subr.bf16.mxu0 0
    %6895 = vmatpush1.bf16.msra.mxu0 0
    %6896 = vmatprep.subr.bf16.mxu0 0
    %6897 = vmatpush1.bf16.msra.mxu0 0
    %6898 = vmatprep.subr.bf16.mxu0 0
    %6899 = vmatpush1.bf16.msra.mxu0 0
    %6900 = vmatprep.subr.bf16.mxu0 0
    %6901 = vmatpush1.bf16.msra.mxu0 0
    %6902 = vmatprep.subr.bf16.mxu0 0
    %6903 = vmatpush1.bf16.msra.mxu0 0
    %6904 = vmatprep.subr.bf16.mxu0 0
    %6905 = vmatpush1.bf16.msra.mxu0 0
    %6906 = vmatprep.subr.bf16.mxu0 0
    %6907 = vmatpush1.bf16.msra.mxu0 0
    %6908 = vmatprep.subr.bf16.mxu0 0
    %6909 = vmatpush1.bf16.msra.mxu0 0
    %6910 = vmatprep.subr.bf16.mxu0 0
    %6911 = vmatpush1.bf16.msra.mxu0 0
    %6912 = vmatprep.subr.bf16.mxu0 0
    %6913 = vmatpush1.bf16.msra.mxu0 0
    %6914 = vmatprep.subr.bf16.mxu0 0
    %6915 = vmatpush1.bf16.msra.mxu0 0
    %6916 = vmatprep.subr.bf16.mxu0 0
    %6917 = vmatpush1.bf16.msra.mxu0 0
    %6918 = vmatprep.subr.bf16.mxu0 0
    %6919 = vmatpush1.bf16.msra.mxu0 0
    %6920 = vmatprep.subr.bf16.mxu0 0
    %6921 = vmatpush1.bf16.msra.mxu0 0
    %6922 = vmatprep.mubr.bf16.mxu0 0
    %6923 = vmatmul.mubr.bf16.gmra.mrb[0].mxu0 %v6885
    %v6924 = vpop.f32.mrb[0].mxu0
    %v6925 = vadd.f32 0.0, %v6924
    %v6926 = vpop.f32.mrb[0].mxu0
    %v6927 = vpop.f32.mrb[0].mxu0
    %v6928 = vpop.f32.mrb[0].mxu0
    %6929 = vdwg.mxu0
    %v6930 = vpack.c.bf16 %v6925, %v6925
    %v6931 = vld [vmem:[%s47] sm:$0xf]
    %v6932 = vld [vmem:[%s47 + $0x4] sm:$0xf]
    %v6933 = vld [vmem:[%s47 + $0x8] sm:$0xf]
    %v6934 = vld [vmem:[%s47 + $0xc] sm:$0xf]
    %v6935 = vld [vmem:[%s47 + $0x10] sm:$0xf]
    %v6936 = vld [vmem:[%s47 + $0x14] sm:$0xf]
    %v6937 = vld [vmem:[%s47 + $0x18] sm:$0xf]
    %v6938 = vld [vmem:[%s47 + $0x1c] sm:$0xf]
    %v6939 = vld [vmem:[%s51] sm:$0xff]
    %v6940 = vld [vmem:[%s51 + $0x8] sm:$0xff]
    %v6941 = vld [vmem:[%s51 + $0x10] sm:$0xff]
    %v6942 = vld [vmem:[%s51 + $0x18] sm:$0xff]
    %v6943 = vld [vmem:[%s51 + $0x20] sm:$0xff]
    %v6944 = vld [vmem:[%s51 + $0x28] sm:$0xff]
    %v6945 = vld [vmem:[%s51 + $0x30] sm:$0xff]
    %v6946 = vld [vmem:[%s51 + $0x38] sm:$0xff]
    %v6947 = vld [vmem:[%s51 + $0x40] sm:$0xff]
    %v6948 = vld [vmem:[%s51 + $0x48] sm:$0xff]
    %v6949 = vld [vmem:[%s51 + $0x50] sm:$0xff]
    %v6950 = vld [vmem:[%s51 + $0x58] sm:$0xff]
    %v6951 = vld [vmem:[%s51 + $0x60] sm:$0xff]
    %v6952 = vld [vmem:[%s51 + $0x68] sm:$0xff]
    %v6953 = vld [vmem:[%s51 + $0x70] sm:$0xff]
    %v6954 = vld [vmem:[%s51 + $0x78] sm:$0xff]
    %v6955 = vld [vmem:[%s51 + $0x80] sm:$0xff]
    %v6956 = vld [vmem:[%s51 + $0x88] sm:$0xff]
    %v6957 = vld [vmem:[%s51 + $0x90] sm:$0xff]
    %v6958 = vld [vmem:[%s51 + $0x98] sm:$0xff]
    %v6959 = vld [vmem:[%s51 + $0xa0] sm:$0xff]
    %v6960 = vld [vmem:[%s51 + $0xa8] sm:$0xff]
    %v6961 = vld [vmem:[%s51 + $0xb0] sm:$0xff]
    %v6962 = vld [vmem:[%s51 + $0xb8] sm:$0xff]
    %v6963 = vld [vmem:[%s51 + $0xc0] sm:$0xff]
    %v6964 = vld [vmem:[%s51 + $0xc8] sm:$0xff]
    %v6965 = vld [vmem:[%s51 + $0xd0] sm:$0xff]
    %v6966 = vld [vmem:[%s51 + $0xd8] sm:$0xff]
    %v6967 = vld [vmem:[%s51 + $0xe0] sm:$0xff]
    %v6968 = vld [vmem:[%s51 + $0xe8] sm:$0xff]
    %v6969 = vld [vmem:[%s51 + $0xf0] sm:$0xff]
    %v6970 = vld [vmem:[%s51 + $0xf8] sm:$0xff]
    %s6971 = scalar_lea.vmem %s45, 1
    %v6972 = vld [vmem:[%s6971] sm:$0x1]
    %v6974 = vsel %vm6883, %v6972, 0
    %6976 = vmatprep.subr.bf16.mxu0 0
    %6977 = vmatpush1.bf16.msra.mxu0 %v6888
    %6978 = vmatprep.subr.bf16.mxu0 0
    %6979 = vmatpush1.bf16.msra.mxu0 0
    %6980 = vmatprep.subr.bf16.mxu0 0
    %6981 = vmatpush1.bf16.msra.mxu0 0
    %6982 = vmatprep.subr.bf16.mxu0 0
    %6983 = vmatpush1.bf16.msra.mxu0 0
    %6984 = vmatprep.subr.bf16.mxu0 0
    %6985 = vmatpush1.bf16.msra.mxu0 0
    %6986 = vmatprep.subr.bf16.mxu0 0
    %6987 = vmatpush1.bf16.msra.mxu0 0
    %6988 = vmatprep.subr.bf16.mxu0 0
    %6989 = vmatpush1.bf16.msra.mxu0 0
    %6990 = vmatprep.subr.bf16.mxu0 0
    %6991 = vmatpush1.bf16.msra.mxu0 0
    %6992 = vmatprep.subr.bf16.mxu0 0
    %6993 = vmatpush1.bf16.msra.mxu0 0
    %6994 = vmatprep.subr.bf16.mxu0 0
    %6995 = vmatpush1.bf16.msra.mxu0 0
    %6996 = vmatprep.subr.bf16.mxu0 0
    %6997 = vmatpush1.bf16.msra.mxu0 0
    %6998 = vmatprep.subr.bf16.mxu0 0
    %6999 = vmatpush1.bf16.msra.mxu0 0
    %7000 = vmatprep.subr.bf16.mxu0 0
    %7001 = vmatpush1.bf16.msra.mxu0 0
    %7002 = vmatprep.subr.bf16.mxu0 0
    %7003 = vmatpush1.bf16.msra.mxu0 0
    %7004 = vmatprep.subr.bf16.mxu0 0
    %7005 = vmatpush1.bf16.msra.mxu0 0
    %7006 = vmatprep.subr.bf16.mxu0 0
    %7007 = vmatpush1.bf16.msra.mxu0 0
    %7008 = vmatprep.mubr.bf16.mxu0 0
    %7009 = vmatmul.mubr.bf16.gmra.mrb[0].mxu0 %v6974
    %v7010 = vpop.f32.mrb[0].mxu0
    %v7011 = vadd.f32 0.0, %v7010
    %v7012 = vpop.f32.mrb[0].mxu0
    %v7013 = vpop.f32.mrb[0].mxu0
    %v7014 = vpop.f32.mrb[0].mxu0
    %7015 = vdwg.mxu0
    %v7016 = vpack.c.bf16 %v7011, %v7011
    %s7017 = scalar_lea.vmem %s47, 32
    %v7018 = vld [vmem:[%s7017] sm:$0xf]
    %v7019 = vld [vmem:[%s7017 + $0x4] sm:$0xf]
    %v7020 = vld [vmem:[%s7017 + $0x8] sm:$0xf]
    %v7021 = vld [vmem:[%s7017 + $0xc] sm:$0xf]
    %v7022 = vld [vmem:[%s7017 + $0x10] sm:$0xf]
    %v7023 = vld [vmem:[%s7017 + $0x14] sm:$0xf]
    %v7024 = vld [vmem:[%s7017 + $0x18] sm:$0xf]
    %v7025 = vld [vmem:[%s7017 + $0x1c] sm:$0xf]
    %v7034 = vunpack.c.l.b16 %v7018
    %v7035 = vunpack.c.l.b16 %v7019
    %v7036 = vunpack.c.l.b16 %v7020
    %v7037 = vunpack.c.l.b16 %v7021
    %v7038 = vunpack.c.l.b16 %v7022
    %v7039 = vunpack.c.l.b16 %v7023
    %v7040 = vunpack.c.l.b16 %v7024
    %v7041 = vunpack.c.l.b16 %v7025
    %v7042 = vpack.c.b16 %v7035, %v7034
    %v7043 = vpack.c.b16 %v7037, %v7036
    %v7044 = vpack.c.b16 %v7039, %v7038
    %v7045 = vpack.c.b16 %v7041, %v7040
    %v7051 = vsel %vm6562, %v7016, 0
    %7053 = vmatprep.subr.bf16.mxu0 0
    %7054 = vmatpush1.bf16.msra.mxu0 %v7042
    %7055 = vmatprep.subr.bf16.mxu0 0
    %7056 = vmatpush1.bf16.msra.mxu0 %v7043
    %7057 = vmatprep.subr.bf16.mxu0 0
    %7058 = vmatpush1.bf16.msra.mxu0 %v7044
    %7059 = vmatprep.subr.bf16.mxu0 0
    %7060 = vmatpush1.bf16.msra.mxu0 %v7045
    %7061 = vmatprep.subr.bf16.mxu0 0
    %7062 = vmatpush1.bf16.msra.mxu0 0
    %7063 = vmatprep.subr.bf16.mxu0 0
    %7064 = vmatpush1.bf16.msra.mxu0 0
    %7065 = vmatprep.subr.bf16.mxu0 0
    %7066 = vmatpush1.bf16.msra.mxu0 0
    %7067 = vmatprep.subr.bf16.mxu0 0
    %7068 = vmatpush1.bf16.msra.mxu0 0
    %7069 = vmatprep.subr.bf16.mxu0 0
    %7070 = vmatpush1.bf16.msra.mxu0 0
    %7071 = vmatprep.subr.bf16.mxu0 0
    %7072 = vmatpush1.bf16.msra.mxu0 0
    %7073 = vmatprep.subr.bf16.mxu0 0
    %7074 = vmatpush1.bf16.msra.mxu0 0
    %7075 = vmatprep.subr.bf16.mxu0 0
    %7076 = vmatpush1.bf16.msra.mxu0 0
    %7077 = vmatprep.subr.bf16.mxu0 0
    %7078 = vmatpush1.bf16.msra.mxu0 0
    %7079 = vmatprep.subr.bf16.mxu0 0
    %7080 = vmatpush1.bf16.msra.mxu0 0
    %7081 = vmatprep.subr.bf16.mxu0 0
    %7082 = vmatpush1.bf16.msra.mxu0 0
    %7083 = vmatprep.subr.bf16.mxu0 0
    %7084 = vmatpush1.bf16.msra.mxu0 0
    %7085 = vmatprep.mubr.bf16.mxu0 0
    %7086 = vmatmul.mubr.bf16.gmra.mrb[0].mxu0 %v7051
    %v7087 = vpop.f32.mrb[0].mxu0
    %v7088 = vadd.f32 0.0, %v7087
    %v7089 = vpop.f32.mrb[0].mxu0
    %v7090 = vpop.f32.mrb[0].mxu0
    %v7091 = vpop.f32.mrb[0].mxu0
    %7092 = vdwg.mxu0
    %s7093 = scalar_lea.vmem %s51, 256
    %v7094 = vld [vmem:[%s7093] sm:$0xff]
    %v7095 = vld [vmem:[%s7093 + $0x8] sm:$0xff]
    %v7096 = vld [vmem:[%s7093 + $0x10] sm:$0xff]
    %v7097 = vld [vmem:[%s7093 + $0x18] sm:$0xff]
    %v7098 = vld [vmem:[%s7093 + $0x20] sm:$0xff]
    %v7099 = vld [vmem:[%s7093 + $0x28] sm:$0xff]
    %v7100 = vld [vmem:[%s7093 + $0x30] sm:$0xff]
    %v7101 = vld [vmem:[%s7093 + $0x38] sm:$0xff]
    %v7102 = vld [vmem:[%s7093 + $0x40] sm:$0xff]
    %v7103 = vld [vmem:[%s7093 + $0x48] sm:$0xff]
    %v7104 = vld [vmem:[%s7093 + $0x50] sm:$0xff]
    %v7105 = vld [vmem:[%s7093 + $0x58] sm:$0xff]
    %v7106 = vld [vmem:[%s7093 + $0x60] sm:$0xff]
    %v7107 = vld [vmem:[%s7093 + $0x68] sm:$0xff]
    %v7108 = vld [vmem:[%s7093 + $0x70] sm:$0xff]
    %v7109 = vld [vmem:[%s7093 + $0x78] sm:$0xff]
    %v7110 = vld [vmem:[%s7093 + $0x80] sm:$0xff]
    %v7111 = vld [vmem:[%s7093 + $0x88] sm:$0xff]
    %v7112 = vld [vmem:[%s7093 + $0x90] sm:$0xff]
    %v7113 = vld [vmem:[%s7093 + $0x98] sm:$0xff]
    %v7114 = vld [vmem:[%s7093 + $0xa0] sm:$0xff]
    %v7115 = vld [vmem:[%s7093 + $0xa8] sm:$0xff]
    %v7116 = vld [vmem:[%s7093 + $0xb0] sm:$0xff]
    %v7117 = vld [vmem:[%s7093 + $0xb8] sm:$0xff]
    %v7118 = vld [vmem:[%s7093 + $0xc0] sm:$0xff]
    %v7119 = vld [vmem:[%s7093 + $0xc8] sm:$0xff]
    %v7120 = vld [vmem:[%s7093 + $0xd0] sm:$0xff]
    %v7121 = vld [vmem:[%s7093 + $0xd8] sm:$0xff]
    %v7122 = vld [vmem:[%s7093 + $0xe0] sm:$0xff]
    %v7123 = vld [vmem:[%s7093 + $0xe8] sm:$0xff]
    %v7124 = vld [vmem:[%s7093 + $0xf0] sm:$0xff]
    %v7125 = vld [vmem:[%s7093 + $0xf8] sm:$0xff]
    %v7158 = vunpack.c.l.b16 %v7094
    %v7159 = vunpack.c.h.b16 %v7094
    %v7160 = vunpack.c.l.b16 %v7095
    %v7161 = vunpack.c.h.b16 %v7095
    %v7162 = vunpack.c.l.b16 %v7096
    %v7163 = vunpack.c.h.b16 %v7096
    %v7164 = vunpack.c.l.b16 %v7097
    %v7165 = vunpack.c.h.b16 %v7097
    %v7166 = vunpack.c.l.b16 %v7098
    %v7167 = vunpack.c.h.b16 %v7098
    %v7168 = vunpack.c.l.b16 %v7099
    %v7169 = vunpack.c.h.b16 %v7099
    %v7170 = vunpack.c.l.b16 %v7100
    %v7171 = vunpack.c.h.b16 %v7100
    %v7172 = vunpack.c.l.b16 %v7101
    %v7173 = vunpack.c.h.b16 %v7101
    %v7174 = vunpack.c.l.b16 %v7102
    %v7175 = vunpack.c.h.b16 %v7102
    %v7176 = vunpack.c.l.b16 %v7103
    %v7177 = vunpack.c.h.b16 %v7103
    %v7178 = vunpack.c.l.b16 %v7104
    %v7179 = vunpack.c.h.b16 %v7104
    %v7180 = vunpack.c.l.b16 %v7105
    %v7181 = vunpack.c.h.b16 %v7105
    %v7182 = vunpack.c.l.b16 %v7106
    %v7183 = vunpack.c.h.b16 %v7106
    %v7184 = vunpack.c.l.b16 %v7107
    %v7185 = vunpack.c.h.b16 %v7107
    %v7186 = vunpack.c.l.b16 %v7108
    %v7187 = vunpack.c.h.b16 %v7108
    %v7188 = vunpack.c.l.b16 %v7109
    %v7189 = vunpack.c.h.b16 %v7109
    %v7190 = vunpack.c.l.b16 %v7110
    %v7191 = vunpack.c.h.b16 %v7110
    %v7192 = vunpack.c.l.b16 %v7111
    %v7193 = vunpack.c.h.b16 %v7111
    %v7194 = vunpack.c.l.b16 %v7112
    %v7195 = vunpack.c.h.b16 %v7112
    %v7196 = vunpack.c.l.b16 %v7113
    %v7197 = vunpack.c.h.b16 %v7113
    %v7198 = vunpack.c.l.b16 %v7114
    %v7199 = vunpack.c.h.b16 %v7114
    %v7200 = vunpack.c.l.b16 %v7115
    %v7201 = vunpack.c.h.b16 %v7115
    %v7202 = vunpack.c.l.b16 %v7116
    %v7203 = vunpack.c.h.b16 %v7116
    %v7204 = vunpack.c.l.b16 %v7117
    %v7205 = vunpack.c.h.b16 %v7117
    %v7206 = vunpack.c.l.b16 %v7118
    %v7207 = vunpack.c.h.b16 %v7118
    %v7208 = vunpack.c.l.b16 %v7119
    %v7209 = vunpack.c.h.b16 %v7119
    %v7210 = vunpack.c.l.b16 %v7120
    %v7211 = vunpack.c.h.b16 %v7120
    %v7212 = vunpack.c.l.b16 %v7121
    %v7213 = vunpack.c.h.b16 %v7121
    %v7214 = vunpack.c.l.b16 %v7122
    %v7215 = vunpack.c.h.b16 %v7122
    %v7216 = vunpack.c.l.b16 %v7123
    %v7217 = vunpack.c.h.b16 %v7123
    %v7218 = vunpack.c.l.b16 %v7124
    %v7219 = vunpack.c.h.b16 %v7124
    %v7220 = vunpack.c.l.b16 %v7125
    %v7221 = vunpack.c.h.b16 %v7125
    %v7222 = vpack.c.b16 %v7166, %v7158
    %v7223 = vpack.c.b16 %v7167, %v7159
    %v7224 = vpack.c.b16 %v7168, %v7160
    %v7225 = vpack.c.b16 %v7169, %v7161
    %v7226 = vpack.c.b16 %v7170, %v7162
    %v7227 = vpack.c.b16 %v7171, %v7163
    %v7228 = vpack.c.b16 %v7172, %v7164
    %v7229 = vpack.c.b16 %v7173, %v7165
    %v7230 = vpack.c.b16 %v7182, %v7174
    %v7231 = vpack.c.b16 %v7183, %v7175
    %v7232 = vpack.c.b16 %v7184, %v7176
    %v7233 = vpack.c.b16 %v7185, %v7177
    %v7234 = vpack.c.b16 %v7186, %v7178
    %v7235 = vpack.c.b16 %v7187, %v7179
    %v7236 = vpack.c.b16 %v7188, %v7180
    %v7237 = vpack.c.b16 %v7189, %v7181
    %v7238 = vpack.c.b16 %v7198, %v7190
    %v7239 = vpack.c.b16 %v7199, %v7191
    %v7240 = vpack.c.b16 %v7200, %v7192
    %v7241 = vpack.c.b16 %v7201, %v7193
    %v7242 = vpack.c.b16 %v7202, %v7194
    %v7243 = vpack.c.b16 %v7203, %v7195
    %v7244 = vpack.c.b16 %v7204, %v7196
    %v7245 = vpack.c.b16 %v7205, %v7197
    %v7246 = vpack.c.b16 %v7214, %v7206
    %v7247 = vpack.c.b16 %v7215, %v7207
    %v7248 = vpack.c.b16 %v7216, %v7208
    %v7249 = vpack.c.b16 %v7217, %v7209
    %v7250 = vpack.c.b16 %v7218, %v7210
    %v7251 = vpack.c.b16 %v7219, %v7211
    %v7252 = vpack.c.b16 %v7220, %v7212
    %v7253 = vpack.c.b16 %v7221, %v7213
    %7286 = vmatprep.subr.bf16.mxu0 %v7223
    %7287 = vmatpush1.bf16.msra.mxu0 %v7222
    %7288 = vmatprep.subr.bf16.mxu0 %v7231
    %7289 = vmatpush1.bf16.msra.mxu0 %v7230
    %7290 = vmatprep.subr.bf16.mxu0 %v7239
    %7291 = vmatpush1.bf16.msra.mxu0 %v7238
    %7292 = vmatprep.subr.bf16.mxu0 %v7247
    %7293 = vmatpush1.bf16.msra.mxu0 %v7246
    %7294 = vmatprep.subr.bf16.mxu0 0
    %7295 = vmatpush1.bf16.msra.mxu0 0
    %7296 = vmatprep.subr.bf16.mxu0 0
    %7297 = vmatpush1.bf16.msra.mxu0 0
    %7298 = vmatprep.subr.bf16.mxu0 0
    %7299 = vmatpush1.bf16.msra.mxu0 0
    %7300 = vmatprep.subr.bf16.mxu0 0
    %7301 = vmatpush1.bf16.msra.mxu0 0
    %7302 = vmatprep.subr.bf16.mxu0 0
    %7303 = vmatpush1.bf16.msra.mxu0 0
    %7304 = vmatprep.subr.bf16.mxu0 0
    %7305 = vmatpush1.bf16.msra.mxu0 0
    %7306 = vmatprep.subr.bf16.mxu0 0
    %7307 = vmatpush1.bf16.msra.mxu0 0
    %7308 = vmatprep.subr.bf16.mxu0 0
    %7309 = vmatpush1.bf16.msra.mxu0 0
    %7310 = vmatprep.subr.bf16.mxu0 0
    %7311 = vmatpush1.bf16.msra.mxu0 0
    %7312 = vmatprep.subr.bf16.mxu0 0
    %7313 = vmatpush1.bf16.msra.mxu0 0
    %7314 = vmatprep.subr.bf16.mxu0 0
    %7315 = vmatpush1.bf16.msra.mxu0 0
    %7316 = vmatprep.subr.bf16.mxu0 0
    %7317 = vmatpush1.bf16.msra.mxu0 0
    %7318 = vmatprep.mubr.bf16.mxu0 0
    %7319 = vmatmul.mubr.bf16.gmra.mrb[0].mxu0 %v7051
    %v7320 = vpop.f32.mrb[0].mxu0
    %v7321 = vadd.f32 0.0, %v7320
    %v7322 = vpop.f32.mrb[0].mxu0
    %v7323 = vadd.f32 0.0, %v7322
    %v7324 = vpop.f32.mrb[0].mxu0
    %v7325 = vpop.f32.mrb[0].mxu0
    %7326 = vdwg.mxu0
    %7327 = vmatprep.subr.bf16.mxu0 %v7225
    %7328 = vmatpush1.bf16.msra.mxu0 %v7224
    %7329 = vmatprep.subr.bf16.mxu0 %v7233
    %7330 = vmatpush1.bf16.msra.mxu0 %v7232
    %7331 = vmatprep.subr.bf16.mxu0 %v7241
    %7332 = vmatpush1.bf16.msra.mxu0 %v7240
    %7333 = vmatprep.subr.bf16.mxu0 %v7249
    %7334 = vmatpush1.bf16.msra.mxu0 %v7248
    %7335 = vmatprep.subr.bf16.mxu0 0
    %7336 = vmatpush1.bf16.msra.mxu0 0
    %7337 = vmatprep.subr.bf16.mxu0 0
    %7338 = vmatpush1.bf16.msra.mxu0 0
    %7339 = vmatprep.subr.bf16.mxu0 0
    %7340 = vmatpush1.bf16.msra.mxu0 0
    %7341 = vmatprep.subr.bf16.mxu0 0
    %7342 = vmatpush1.bf16.msra.mxu0 0
    %7343 = vmatprep.subr.bf16.mxu0 0
    %7344 = vmatpush1.bf16.msra.mxu0 0
    %7345 = vmatprep.subr.bf16.mxu0 0
    %7346 = vmatpush1.bf16.msra.mxu0 0
    %7347 = vmatprep.subr.bf16.mxu0 0
    %7348 = vmatpush1.bf16.msra.mxu0 0
    %7349 = vmatprep.subr.bf16.mxu0 0
    %7350 = vmatpush1.bf16.msra.mxu0 0
    %7351 = vmatprep.subr.bf16.mxu0 0
    %7352 = vmatpush1.bf16.msra.mxu0 0
    %7353 = vmatprep.subr.bf16.mxu0 0
    %7354 = vmatpush1.bf16.msra.mxu0 0
    %7355 = vmatprep.subr.bf16.mxu0 0
    %7356 = vmatpush1.bf16.msra.mxu0 0
    %7357 = vmatprep.subr.bf16.mxu0 0
    %7358 = vmatpush1.bf16.msra.mxu0 0
    %7359 = vmatprep.mubr.bf16.mxu0 0
    %7360 = vmatmul.mubr.bf16.gmra.mrb[0].mxu0 %v7051
    %v7361 = vpop.f32.mrb[0].mxu0
    %v7362 = vadd.f32 0.0, %v7361
    %v7363 = vpop.f32.mrb[0].mxu0
    %v7364 = vadd.f32 0.0, %v7363
    %v7365 = vpop.f32.mrb[0].mxu0
    %v7366 = vpop.f32.mrb[0].mxu0
    %7367 = vdwg.mxu0
    %7368 = vmatprep.subr.bf16.mxu0 %v7227
    %7369 = vmatpush1.bf16.msra.mxu0 %v7226
    %7370 = vmatprep.subr.bf16.mxu0 %v7235
    %7371 = vmatpush1.bf16.msra.mxu0 %v7234
    %7372 = vmatprep.subr.bf16.mxu0 %v7243
    %7373 = vmatpush1.bf16.msra.mxu0 %v7242
    %7374 = vmatprep.subr.bf16.mxu0 %v7251
    %7375 = vmatpush1.bf16.msra.mxu0 %v7250
    %7376 = vmatprep.subr.bf16.mxu0 0
    %7377 = vmatpush1.bf16.msra.mxu0 0
    %7378 = vmatprep.subr.bf16.mxu0 0
    %7379 = vmatpush1.bf16.msra.mxu0 0
    %7380 = vmatprep.subr.bf16.mxu0 0
    %7381 = vmatpush1.bf16.msra.mxu0 0
    %7382 = vmatprep.subr.bf16.mxu0 0
    %7383 = vmatpush1.bf16.msra.mxu0 0
    %7384 = vmatprep.subr.bf16.mxu0 0
    %7385 = vmatpush1.bf16.msra.mxu0 0
    %7386 = vmatprep.subr.bf16.mxu0 0
    %7387 = vmatpush1.bf16.msra.mxu0 0
    %7388 = vmatprep.subr.bf16.mxu0 0
    %7389 = vmatpush1.bf16.msra.mxu0 0
    %7390 = vmatprep.subr.bf16.mxu0 0
    %7391 = vmatpush1.bf16.msra.mxu0 0
    %7392 = vmatprep.subr.bf16.mxu0 0
    %7393 = vmatpush1.bf16.msra.mxu0 0
    %7394 = vmatprep.subr.bf16.mxu0 0
    %7395 = vmatpush1.bf16.msra.mxu0 0
    %7396 = vmatprep.subr.bf16.mxu0 0
    %7397 = vmatpush1.bf16.msra.mxu0 0
    %7398 = vmatprep.subr.bf16.mxu0 0
    %7399 = vmatpush1.bf16.msra.mxu0 0
    %7400 = vmatprep.mubr.bf16.mxu0 0
    %7401 = vmatmul.mubr.bf16.gmra.mrb[0].mxu0 %v7051
    %v7402 = vpop.f32.mrb[0].mxu0
    %v7403 = vadd.f32 0.0, %v7402
    %v7404 = vpop.f32.mrb[0].mxu0
    %v7405 = vadd.f32 0.0, %v7404
    %v7406 = vpop.f32.mrb[0].mxu0
    %v7407 = vpop.f32.mrb[0].mxu0
    %7408 = vdwg.mxu0
    %7409 = vmatprep.subr.bf16.mxu0 %v7229
    %7410 = vmatpush1.bf16.msra.mxu0 %v7228
    %7411 = vmatprep.subr.bf16.mxu0 %v7237
    %7412 = vmatpush1.bf16.msra.mxu0 %v7236
    %7413 = vmatprep.subr.bf16.mxu0 %v7245
    %7414 = vmatpush1.bf16.msra.mxu0 %v7244
    %7415 = vmatprep.subr.bf16.mxu0 %v7253
    %7416 = vmatpush1.bf16.msra.mxu0 %v7252
    %7417 = vmatprep.subr.bf16.mxu0 0
    %7418 = vmatpush1.bf16.msra.mxu0 0
    %7419 = vmatprep.subr.bf16.mxu0 0
    %7420 = vmatpush1.bf16.msra.mxu0 0
    %7421 = vmatprep.subr.bf16.mxu0 0
    %7422 = vmatpush1.bf16.msra.mxu0 0
    %7423 = vmatprep.subr.bf16.mxu0 0
    %7424 = vmatpush1.bf16.msra.mxu0 0
    %7425 = vmatprep.subr.bf16.mxu0 0
    %7426 = vmatpush1.bf16.msra.mxu0 0
    %7427 = vmatprep.subr.bf16.mxu0 0
    %7428 = vmatpush1.bf16.msra.mxu0 0
    %7429 = vmatprep.subr.bf16.mxu0 0
    %7430 = vmatpush1.bf16.msra.mxu0 0
    %7431 = vmatprep.subr.bf16.mxu0 0
    %7432 = vmatpush1.bf16.msra.mxu0 0
    %7433 = vmatprep.subr.bf16.mxu0 0
    %7434 = vmatpush1.bf16.msra.mxu0 0
    %7435 = vmatprep.subr.bf16.mxu0 0
    %7436 = vmatpush1.bf16.msra.mxu0 0
    %7437 = vmatprep.subr.bf16.mxu0 0
    %7438 = vmatpush1.bf16.msra.mxu0 0
    %7439 = vmatprep.subr.bf16.mxu0 0
    %7440 = vmatpush1.bf16.msra.mxu0 0
    %7441 = vmatprep.mubr.bf16.mxu0 0
    %7442 = vmatmul.mubr.bf16.gmra.mrb[0].mxu0 %v7051
    %v7443 = vpop.f32.mrb[0].mxu0
    %v7444 = vadd.f32 0.0, %v7443
    %v7445 = vpop.f32.mrb[0].mxu0
    %v7446 = vadd.f32 0.0, %v7445
    %v7447 = vpop.f32.mrb[0].mxu0
    %v7448 = vpop.f32.mrb[0].mxu0
    %7449 = vdwg.mxu0
    %v7458 = vunpack.c.l.b16 %v6931
    %v7459 = vunpack.c.l.b16 %v6932
    %v7460 = vunpack.c.l.b16 %v6933
    %v7461 = vunpack.c.l.b16 %v6934
    %v7462 = vunpack.c.l.b16 %v6935
    %v7463 = vunpack.c.l.b16 %v6936
    %v7464 = vunpack.c.l.b16 %v6937
    %v7465 = vunpack.c.l.b16 %v6938
    %v7466 = vpack.c.b16 %v7459, %v7458
    %v7467 = vpack.c.b16 %v7461, %v7460
    %v7468 = vpack.c.b16 %v7463, %v7462
    %v7469 = vpack.c.b16 %v7465, %v7464
    %v7475 = vsel %vm6562, %v6930, 0
    %7477 = vmatprep.subr.bf16.mxu0 0
    %7478 = vmatpush1.bf16.msra.mxu0 %v7466
    %7479 = vmatprep.subr.bf16.mxu0 0
    %7480 = vmatpush1.bf16.msra.mxu0 %v7467
    %7481 = vmatprep.subr.bf16.mxu0 0
    %7482 = vmatpush1.bf16.msra.mxu0 %v7468
    %7483 = vmatprep.subr.bf16.mxu0 0
    %7484 = vmatpush1.bf16.msra.mxu0 %v7469
    %7485 = vmatprep.subr.bf16.mxu0 0
    %7486 = vmatpush1.bf16.msra.mxu0 0
    %7487 = vmatprep.subr.bf16.mxu0 0
    %7488 = vmatpush1.bf16.msra.mxu0 0
    %7489 = vmatprep.subr.bf16.mxu0 0
    %7490 = vmatpush1.bf16.msra.mxu0 0
    %7491 = vmatprep.subr.bf16.mxu0 0
    %7492 = vmatpush1.bf16.msra.mxu0 0
    %7493 = vmatprep.subr.bf16.mxu0 0
    %7494 = vmatpush1.bf16.msra.mxu0 0
    %7495 = vmatprep.subr.bf16.mxu0 0
    %7496 = vmatpush1.bf16.msra.mxu0 0
    %7497 = vmatprep.subr.bf16.mxu0 0
    %7498 = vmatpush1.bf16.msra.mxu0 0
    %7499 = vmatprep.subr.bf16.mxu0 0
    %7500 = vmatpush1.bf16.msra.mxu0 0
    %7501 = vmatprep.subr.bf16.mxu0 0
    %7502 = vmatpush1.bf16.msra.mxu0 0
    %7503 = vmatprep.subr.bf16.mxu0 0
    %7504 = vmatpush1.bf16.msra.mxu0 0
    %7505 = vmatprep.subr.bf16.mxu0 0
    %7506 = vmatpush1.bf16.msra.mxu0 0
    %7507 = vmatprep.subr.bf16.mxu0 0
    %7508 = vmatpush1.bf16.msra.mxu0 0
    %7509 = vmatprep.mubr.bf16.mxu0 0
    %7510 = vmatmul.mubr.bf16.gmra.mrb[0].mxu0 %v7475
    %v7511 = vpop.f32.mrb[0].mxu0
    %v7512 = vadd.f32 %v7088, %v7511
    %v7513 = vpop.f32.mrb[0].mxu0
    %v7514 = vpop.f32.mrb[0].mxu0
    %v7515 = vpop.f32.mrb[0].mxu0
    %7516 = vdwg.mxu0
    %v7549 = vunpack.c.l.b16 %v6939
    %v7550 = vunpack.c.h.b16 %v6939
    %v7551 = vunpack.c.l.b16 %v6940
    %v7552 = vunpack.c.h.b16 %v6940
    %v7553 = vunpack.c.l.b16 %v6941
    %v7554 = vunpack.c.h.b16 %v6941
    %v7555 = vunpack.c.l.b16 %v6942
    %v7556 = vunpack.c.h.b16 %v6942
    %v7557 = vunpack.c.l.b16 %v6943
    %v7558 = vunpack.c.h.b16 %v6943
    %v7559 = vunpack.c.l.b16 %v6944
    %v7560 = vunpack.c.h.b16 %v6944
    %v7561 = vunpack.c.l.b16 %v6945
    %v7562 = vunpack.c.h.b16 %v6945
    %v7563 = vunpack.c.l.b16 %v6946
    %v7564 = vunpack.c.h.b16 %v6946
    %v7565 = vunpack.c.l.b16 %v6947
    %v7566 = vunpack.c.h.b16 %v6947
    %v7567 = vunpack.c.l.b16 %v6948
    %v7568 = vunpack.c.h.b16 %v6948
    %v7569 = vunpack.c.l.b16 %v6949
    %v7570 = vunpack.c.h.b16 %v6949
    %v7571 = vunpack.c.l.b16 %v6950
    %v7572 = vunpack.c.h.b16 %v6950
    %v7573 = vunpack.c.l.b16 %v6951
    %v7574 = vunpack.c.h.b16 %v6951
    %v7575 = vunpack.c.l.b16 %v6952
    %v7576 = vunpack.c.h.b16 %v6952
    %v7577 = vunpack.c.l.b16 %v6953
    %v7578 = vunpack.c.h.b16 %v6953
    %v7579 = vunpack.c.l.b16 %v6954
    %v7580 = vunpack.c.h.b16 %v6954
    %v7581 = vunpack.c.l.b16 %v6955
    %v7582 = vunpack.c.h.b16 %v6955
    %v7583 = vunpack.c.l.b16 %v6956
    %v7584 = vunpack.c.h.b16 %v6956
    %v7585 = vunpack.c.l.b16 %v6957
    %v7586 = vunpack.c.h.b16 %v6957
    %v7587 = vunpack.c.l.b16 %v6958
    %v7588 = vunpack.c.h.b16 %v6958
    %v7589 = vunpack.c.l.b16 %v6959
    %v7590 = vunpack.c.h.b16 %v6959
    %v7591 = vunpack.c.l.b16 %v6960
    %v7592 = vunpack.c.h.b16 %v6960
    %v7593 = vunpack.c.l.b16 %v6961
    %v7594 = vunpack.c.h.b16 %v6961
    %v7595 = vunpack.c.l.b16 %v6962
    %v7596 = vunpack.c.h.b16 %v6962
    %v7597 = vunpack.c.l.b16 %v6963
    %v7598 = vunpack.c.h.b16 %v6963
    %v7599 = vunpack.c.l.b16 %v6964
    %v7600 = vunpack.c.h.b16 %v6964
    %v7601 = vunpack.c.l.b16 %v6965
    %v7602 = vunpack.c.h.b16 %v6965
    %v7603 = vunpack.c.l.b16 %v6966
    %v7604 = vunpack.c.h.b16 %v6966
    %v7605 = vunpack.c.l.b16 %v6967
    %v7606 = vunpack.c.h.b16 %v6967
    %v7607 = vunpack.c.l.b16 %v6968
    %v7608 = vunpack.c.h.b16 %v6968
    %v7609 = vunpack.c.l.b16 %v6969
    %v7610 = vunpack.c.h.b16 %v6969
    %v7611 = vunpack.c.l.b16 %v6970
    %v7612 = vunpack.c.h.b16 %v6970
    %v7613 = vpack.c.b16 %v7557, %v7549
    %v7614 = vpack.c.b16 %v7558, %v7550
    %v7615 = vpack.c.b16 %v7559, %v7551
    %v7616 = vpack.c.b16 %v7560, %v7552
    %v7617 = vpack.c.b16 %v7561, %v7553
    %v7618 = vpack.c.b16 %v7562, %v7554
    %v7619 = vpack.c.b16 %v7563, %v7555
    %v7620 = vpack.c.b16 %v7564, %v7556
    %v7621 = vpack.c.b16 %v7573, %v7565
    %v7622 = vpack.c.b16 %v7574, %v7566
    %v7623 = vpack.c.b16 %v7575, %v7567
    %v7624 = vpack.c.b16 %v7576, %v7568
    %v7625 = vpack.c.b16 %v7577, %v7569
    %v7626 = vpack.c.b16 %v7578, %v7570
    %v7627 = vpack.c.b16 %v7579, %v7571
    %v7628 = vpack.c.b16 %v7580, %v7572
    %v7629 = vpack.c.b16 %v7589, %v7581
    %v7630 = vpack.c.b16 %v7590, %v7582
    %v7631 = vpack.c.b16 %v7591, %v7583
    %v7632 = vpack.c.b16 %v7592, %v7584
    %v7633 = vpack.c.b16 %v7593, %v7585
    %v7634 = vpack.c.b16 %v7594, %v7586
    %v7635 = vpack.c.b16 %v7595, %v7587
    %v7636 = vpack.c.b16 %v7596, %v7588
    %v7637 = vpack.c.b16 %v7605, %v7597
    %v7638 = vpack.c.b16 %v7606, %v7598
    %v7639 = vpack.c.b16 %v7607, %v7599
    %v7640 = vpack.c.b16 %v7608, %v7600
    %v7641 = vpack.c.b16 %v7609, %v7601
    %v7642 = vpack.c.b16 %v7610, %v7602
    %v7643 = vpack.c.b16 %v7611, %v7603
    %v7644 = vpack.c.b16 %v7612, %v7604
    %7677 = vmatprep.subr.bf16.mxu0 %v7614
    %7678 = vmatpush1.bf16.msra.mxu0 %v7613
    %7679 = vmatprep.subr.bf16.mxu0 %v7622
    %7680 = vmatpush1.bf16.msra.mxu0 %v7621
    %7681 = vmatprep.subr.bf16.mxu0 %v7630
    %7682 = vmatpush1.bf16.msra.mxu0 %v7629
    %7683 = vmatprep.subr.bf16.mxu0 %v7638
    %7684 = vmatpush1.bf16.msra.mxu0 %v7637
    %7685 = vmatprep.subr.bf16.mxu0 0
    %7686 = vmatpush1.bf16.msra.mxu0 0
    %7687 = vmatprep.subr.bf16.mxu0 0
    %7688 = vmatpush1.bf16.msra.mxu0 0
    %7689 = vmatprep.subr.bf16.mxu0 0
    %7690 = vmatpush1.bf16.msra.mxu0 0
    %7691 = vmatprep.subr.bf16.mxu0 0
    %7692 = vmatpush1.bf16.msra.mxu0 0
    %7693 = vmatprep.subr.bf16.mxu0 0
    %7694 = vmatpush1.bf16.msra.mxu0 0
    %7695 = vmatprep.subr.bf16.mxu0 0
    %7696 = vmatpush1.bf16.msra.mxu0 0
    %7697 = vmatprep.subr.bf16.mxu0 0
    %7698 = vmatpush1.bf16.msra.mxu0 0
    %7699 = vmatprep.subr.bf16.mxu0 0
    %7700 = vmatpush1.bf16.msra.mxu0 0
    %7701 = vmatprep.subr.bf16.mxu0 0
    %7702 = vmatpush1.bf16.msra.mxu0 0
    %7703 = vmatprep.subr.bf16.mxu0 0
    %7704 = vmatpush1.bf16.msra.mxu0 0
    %7705 = vmatprep.subr.bf16.mxu0 0
    %7706 = vmatpush1.bf16.msra.mxu0 0
    %7707 = vmatprep.subr.bf16.mxu0 0
    %7708 = vmatpush1.bf16.msra.mxu0 0
    %7709 = vmatprep.mubr.bf16.mxu0 0
    %7710 = vmatmul.mubr.bf16.gmra.mrb[0].mxu0 %v7475
    %v7711 = vpop.f32.mrb[0].mxu0
    %v7712 = vadd.f32 %v7321, %v7711
    %v7713 = vpop.f32.mrb[0].mxu0
    %v7714 = vadd.f32 %v7323, %v7713
    %v7715 = vpop.f32.mrb[0].mxu0
    %v7716 = vpop.f32.mrb[0].mxu0
    %7717 = vdwg.mxu0
    %7718 = vmatprep.subr.bf16.mxu0 %v7616
    %7719 = vmatpush1.bf16.msra.mxu0 %v7615
    %7720 = vmatprep.subr.bf16.mxu0 %v7624
    %7721 = vmatpush1.bf16.msra.mxu0 %v7623
    %7722 = vmatprep.subr.bf16.mxu0 %v7632
    %7723 = vmatpush1.bf16.msra.mxu0 %v7631
    %7724 = vmatprep.subr.bf16.mxu0 %v7640
    %7725 = vmatpush1.bf16.msra.mxu0 %v7639
    %7726 = vmatprep.subr.bf16.mxu0 0
    %7727 = vmatpush1.bf16.msra.mxu0 0
    %7728 = vmatprep.subr.bf16.mxu0 0
    %7729 = vmatpush1.bf16.msra.mxu0 0
    %7730 = vmatprep.subr.bf16.mxu0 0
    %7731 = vmatpush1.bf16.msra.mxu0 0
    %7732 = vmatprep.subr.bf16.mxu0 0
    %7733 = vmatpush1.bf16.msra.mxu0 0
    %7734 = vmatprep.subr.bf16.mxu0 0
    %7735 = vmatpush1.bf16.msra.mxu0 0
    %7736 = vmatprep.subr.bf16.mxu0 0
    %7737 = vmatpush1.bf16.msra.mxu0 0
    %7738 = vmatprep.subr.bf16.mxu0 0
    %7739 = vmatpush1.bf16.msra.mxu0 0
    %7740 = vmatprep.subr.bf16.mxu0 0
    %7741 = vmatpush1.bf16.msra.mxu0 0
    %7742 = vmatprep.subr.bf16.mxu0 0
    %7743 = vmatpush1.bf16.msra.mxu0 0
    %7744 = vmatprep.subr.bf16.mxu0 0
    %7745 = vmatpush1.bf16.msra.mxu0 0
    %7746 = vmatprep.subr.bf16.mxu0 0
    %7747 = vmatpush1.bf16.msra.mxu0 0
    %7748 = vmatprep.subr.bf16.mxu0 0
    %7749 = vmatpush1.bf16.msra.mxu0 0
    %7750 = vmatprep.mubr.bf16.mxu0 0
    %7751 = vmatmul.mubr.bf16.gmra.mrb[0].mxu0 %v7475
    %v7752 = vpop.f32.mrb[0].mxu0
    %v7753 = vadd.f32 %v7362, %v7752
    %v7754 = vpop.f32.mrb[0].mxu0
    %v7755 = vadd.f32 %v7364, %v7754
    %v7756 = vpop.f32.mrb[0].mxu0
    %v7757 = vpop.f32.mrb[0].mxu0
    %7758 = vdwg.mxu0
    %7759 = vmatprep.subr.bf16.mxu0 %v7618
    %7760 = vmatpush1.bf16.msra.mxu0 %v7617
    %7761 = vmatprep.subr.bf16.mxu0 %v7626
    %7762 = vmatpush1.bf16.msra.mxu0 %v7625
    %7763 = vmatprep.subr.bf16.mxu0 %v7634
    %7764 = vmatpush1.bf16.msra.mxu0 %v7633
    %7765 = vmatprep.subr.bf16.mxu0 %v7642
    %7766 = vmatpush1.bf16.msra.mxu0 %v7641
    %7767 = vmatprep.subr.bf16.mxu0 0
    %7768 = vmatpush1.bf16.msra.mxu0 0
    %7769 = vmatprep.subr.bf16.mxu0 0
    %7770 = vmatpush1.bf16.msra.mxu0 0
    %7771 = vmatprep.subr.bf16.mxu0 0
    %7772 = vmatpush1.bf16.msra.mxu0 0
    %7773 = vmatprep.subr.bf16.mxu0 0
    %7774 = vmatpush1.bf16.msra.mxu0 0
    %7775 = vmatprep.subr.bf16.mxu0 0
    %7776 = vmatpush1.bf16.msra.mxu0 0
    %7777 = vmatprep.subr.bf16.mxu0 0
    %7778 = vmatpush1.bf16.msra.mxu0 0
    %7779 = vmatprep.subr.bf16.mxu0 0
    %7780 = vmatpush1.bf16.msra.mxu0 0
    %7781 = vmatprep.subr.bf16.mxu0 0
    %7782 = vmatpush1.bf16.msra.mxu0 0
    %7783 = vmatprep.subr.bf16.mxu0 0
    %7784 = vmatpush1.bf16.msra.mxu0 0
    %7785 = vmatprep.subr.bf16.mxu0 0
    %7786 = vmatpush1.bf16.msra.mxu0 0
    %7787 = vmatprep.subr.bf16.mxu0 0
    %7788 = vmatpush1.bf16.msra.mxu0 0
    %7789 = vmatprep.subr.bf16.mxu0 0
    %7790 = vmatpush1.bf16.msra.mxu0 0
    %7791 = vmatprep.mubr.bf16.mxu0 0
    %7792 = vmatmul.mubr.bf16.gmra.mrb[0].mxu0 %v7475
    %v7793 = vpop.f32.mrb[0].mxu0
    %v7794 = vadd.f32 %v7403, %v7793
    %v7795 = vpop.f32.mrb[0].mxu0
    %v7796 = vadd.f32 %v7405, %v7795
    %v7797 = vpop.f32.mrb[0].mxu0
    %v7798 = vpop.f32.mrb[0].mxu0
    %7799 = vdwg.mxu0
    %7800 = vmatprep.subr.bf16.mxu0 %v7620
    %7801 = vmatpush1.bf16.msra.mxu0 %v7619
    %7802 = vmatprep.subr.bf16.mxu0 %v7628
    %7803 = vmatpush1.bf16.msra.mxu0 %v7627
    %7804 = vmatprep.subr.bf16.mxu0 %v7636
    %7805 = vmatpush1.bf16.msra.mxu0 %v7635
    %7806 = vmatprep.subr.bf16.mxu0 %v7644
    %7807 = vmatpush1.bf16.msra.mxu0 %v7643
    %7808 = vmatprep.subr.bf16.mxu0 0
    %7809 = vmatpush1.bf16.msra.mxu0 0
    %7810 = vmatprep.subr.bf16.mxu0 0
    %7811 = vmatpush1.bf16.msra.mxu0 0
    %7812 = vmatprep.subr.bf16.mxu0 0
    %7813 = vmatpush1.bf16.msra.mxu0 0
    %7814 = vmatprep.subr.bf16.mxu0 0
    %7815 = vmatpush1.bf16.msra.mxu0 0
    %7816 = vmatprep.subr.bf16.mxu0 0
    %7817 = vmatpush1.bf16.msra.mxu0 0
    %7818 = vmatprep.subr.bf16.mxu0 0
    %7819 = vmatpush1.bf16.msra.mxu0 0
    %7820 = vmatprep.subr.bf16.mxu0 0
    %7821 = vmatpush1.bf16.msra.mxu0 0
    %7822 = vmatprep.subr.bf16.mxu0 0
    %7823 = vmatpush1.bf16.msra.mxu0 0
    %7824 = vmatprep.subr.bf16.mxu0 0
    %7825 = vmatpush1.bf16.msra.mxu0 0
    %7826 = vmatprep.subr.bf16.mxu0 0
    %7827 = vmatpush1.bf16.msra.mxu0 0
    %7828 = vmatprep.subr.bf16.mxu0 0
    %7829 = vmatpush1.bf16.msra.mxu0 0
    %7830 = vmatprep.subr.bf16.mxu0 0
    %7831 = vmatpush1.bf16.msra.mxu0 0
    %7832 = vmatprep.mubr.bf16.mxu0 0
    %7833 = vmatmul.mubr.bf16.gmra.mrb[0].mxu0 %v7475
    %v7834 = vpop.f32.mrb[0].mxu0
    %v7835 = vadd.f32 %v7444, %v7834
    %v7836 = vpop.f32.mrb[0].mxu0
    %v7837 = vadd.f32 %v7446, %v7836
    %v7838 = vpop.f32.mrb[0].mxu0
    %v7839 = vpop.f32.mrb[0].mxu0
    %7840 = vdwg.mxu0
    %v7841 = vld [vmem:[#allocation21] sm:$0x1]
    %v7843 = vlaneseq
    %v7844 = vshrl.u32 %v7843, 7
    %v7845 = vsub.s32 0, %v7844
    %v7846 = vrot.slane %v7841, %v7845
    %v7848 = vadd.f32 %v7512, %v7846
    %vm7849 = vcmask 25600
    %7850 = vst.msk [vmem:[#allocation24] sm:$0x3] %vm7849, %v7848
    %v7851 = vld [vmem:[#allocation22] sm:$0xff]
    %v7853 = vlaneseq
    %v7854 = vshrl.u32 %v7853, 7
    %v7855 = vsub.s32 0, %v7854
    %v7856 = vrot.slane %v7851, %v7855
    %v7857 = vlaneseq
    %v7858 = vshrl.u32 %v7857, 7
    %v7859 = vsub.s32 1, %v7858
    %v7860 = vrot.slane %v7851, %v7859
    %v7861 = vlaneseq
    %v7862 = vshrl.u32 %v7861, 7
    %v7863 = vsub.s32 2, %v7862
    %v7864 = vrot.slane %v7851, %v7863
    %v7865 = vlaneseq
    %v7866 = vshrl.u32 %v7865, 7
    %v7867 = vsub.s32 3, %v7866
    %v7868 = vrot.slane %v7851, %v7867
    %v7869 = vlaneseq
    %v7870 = vshrl.u32 %v7869, 7
    %v7871 = vsub.s32 4, %v7870
    %v7872 = vrot.slane %v7851, %v7871
    %v7873 = vlaneseq
    %v7874 = vshrl.u32 %v7873, 7
    %v7875 = vsub.s32 5, %v7874
    %v7876 = vrot.slane %v7851, %v7875
    %v7877 = vlaneseq
    %v7878 = vshrl.u32 %v7877, 7
    %v7879 = vsub.s32 6, %v7878
    %v7880 = vrot.slane %v7851, %v7879
    %v7881 = vlaneseq
    %v7882 = vshrl.u32 %v7881, 7
    %v7883 = vsub.s32 7, %v7882
    %v7884 = vrot.slane %v7851, %v7883
    %v7893 = vadd.f32 %v7712, %v7856
    %v7894 = vadd.f32 %v7714, %v7860
    %v7895 = vadd.f32 %v7753, %v7864
    %v7896 = vadd.f32 %v7755, %v7868
    %v7897 = vadd.f32 %v7794, %v7872
    %v7898 = vadd.f32 %v7796, %v7876
    %v7899 = vadd.f32 %v7835, %v7880
    %v7900 = vadd.f32 %v7837, %v7884
    %v7909 = vcombine.low %v7893, %v7894
    %v7910 = vcombine.low %v7895, %v7896
    %v7912 = vunpack.c.l.s4 1983009808
    %v7913 = vunpack.c.0.s8 %v7912
    %v7914 = vlaneseq
    %v7915 = vshrl.u32 %v7914, 7
    %v7916 = vsub.s32 %v7913, %v7915
    %v7917 = vrot.slane %v7909, %v7916
    %v7919 = vunpack.c.l.s4 1983009808
    %v7920 = vunpack.c.0.s8 %v7919
    %v7921 = vlaneseq
    %v7922 = vshrl.u32 %v7921, 7
    %v7923 = vsub.s32 %v7920, %v7922
    %v7924 = vrot.slane %v7910, %v7923
    %v7925 = vcombine.low %v7917, %v7924
    %v7926 = vcombine.low %v7897, %v7898
    %v7927 = vcombine.low %v7899, %v7900
    %v7929 = vunpack.c.l.s4 1983009808
    %v7930 = vunpack.c.0.s8 %v7929
    %v7931 = vlaneseq
    %v7932 = vshrl.u32 %v7931, 7
    %v7933 = vsub.s32 %v7930, %v7932
    %v7934 = vrot.slane %v7926, %v7933
    %v7936 = vunpack.c.l.s4 1983009808
    %v7937 = vunpack.c.0.s8 %v7936
    %v7938 = vlaneseq
    %v7939 = vshrl.u32 %v7938, 7
    %v7940 = vsub.s32 %v7937, %v7939
    %v7941 = vrot.slane %v7927, %v7940
    %v7942 = vcombine.low %v7934, %v7941
    %7945 = vst [vmem:[#allocation2] sm:$0xff] %v7925
    %7946 = vst [vmem:[#allocation2 + $0x8] sm:$0xff] %v7942
    %v7947 = vld [vmem:[#allocation2] ss:$2 sm:$0xff]
    %v7948 = vld [vmem:[%s55] sm:$0xff]
    %v7949 = vld [vmem:[%s55 + $0x8] sm:$0xff]
    %v7950 = vld [vmem:[%s55 + $0x10] sm:$0xff]
    %v7951 = vld [vmem:[%s55 + $0x18] sm:$0xff]
    %v7952 = vld [vmem:[%s55 + $0x20] sm:$0xff]
    %v7953 = vld [vmem:[%s55 + $0x28] sm:$0xff]
    %v7954 = vld [vmem:[%s55 + $0x30] sm:$0xff]
    %v7955 = vld [vmem:[%s55 + $0x38] sm:$0xff]
    %v7956 = vld [vmem:[%s55 + $0x40] sm:$0xff]
    %v7957 = vld [vmem:[%s55 + $0x48] sm:$0xff]
    %v7958 = vld [vmem:[%s55 + $0x50] sm:$0xff]
    %v7959 = vld [vmem:[%s55 + $0x58] sm:$0xff]
    %v7960 = vld [vmem:[%s55 + $0x60] sm:$0xff]
    %v7961 = vld [vmem:[%s55 + $0x68] sm:$0xff]
    %v7962 = vld [vmem:[%s55 + $0x70] sm:$0xff]
    %v7963 = vld [vmem:[%s55 + $0x78] sm:$0xff]
    %v7964 = vld [vmem:[%s55 + $0x80] sm:$0xff]
    %v7965 = vld [vmem:[%s55 + $0x88] sm:$0xff]
    %v7966 = vld [vmem:[%s55 + $0x90] sm:$0xff]
    %v7967 = vld [vmem:[%s55 + $0x98] sm:$0xff]
    %v7968 = vld [vmem:[%s55 + $0xa0] sm:$0xff]
    %v7969 = vld [vmem:[%s55 + $0xa8] sm:$0xff]
    %v7970 = vld [vmem:[%s55 + $0xb0] sm:$0xff]
    %v7971 = vld [vmem:[%s55 + $0xb8] sm:$0xff]
    %v7972 = vld [vmem:[%s55 + $0xc0] sm:$0xff]
    %v7973 = vld [vmem:[%s55 + $0xc8] sm:$0xff]
    %v7974 = vld [vmem:[%s55 + $0xd0] sm:$0xff]
    %v7975 = vld [vmem:[%s55 + $0xd8] sm:$0xff]
    %v7976 = vld [vmem:[%s55 + $0xe0] sm:$0xff]
    %v7977 = vld [vmem:[%s55 + $0xe8] sm:$0xff]
    %v7978 = vld [vmem:[%s55 + $0xf0] sm:$0xff]
    %v7979 = vld [vmem:[%s55 + $0xf8] sm:$0xff]
    %v7980 = vld [vmem:[%s55 + $0x100] sm:$0xff]
    %v7981 = vld [vmem:[%s55 + $0x108] sm:$0xff]
    %v7982 = vld [vmem:[%s55 + $0x110] sm:$0xff]
    %v7983 = vld [vmem:[%s55 + $0x118] sm:$0xff]
    %v7984 = vld [vmem:[%s55 + $0x120] sm:$0xff]
    %v7985 = vld [vmem:[%s55 + $0x128] sm:$0xff]
    %v7986 = vld [vmem:[%s55 + $0x130] sm:$0xff]
    %v7987 = vld [vmem:[%s55 + $0x138] sm:$0xff]
    %v7988 = vld [vmem:[%s55 + $0x140] sm:$0xff]
    %v7989 = vld [vmem:[%s55 + $0x148] sm:$0xff]
    %v7990 = vld [vmem:[%s55 + $0x150] sm:$0xff]
    %v7991 = vld [vmem:[%s55 + $0x158] sm:$0xff]
    %v7992 = vld [vmem:[%s55 + $0x160] sm:$0xff]
    %v7993 = vld [vmem:[%s55 + $0x168] sm:$0xff]
    %v7994 = vld [vmem:[%s55 + $0x170] sm:$0xff]
    %v7995 = vld [vmem:[%s55 + $0x178] sm:$0xff]
    %v7996 = vld [vmem:[%s55 + $0x180] sm:$0xff]
    %v7997 = vld [vmem:[%s55 + $0x188] sm:$0xff]
    %v7998 = vld [vmem:[%s55 + $0x190] sm:$0xff]
    %v7999 = vld [vmem:[%s55 + $0x198] sm:$0xff]
    %v8000 = vld [vmem:[%s55 + $0x1a0] sm:$0xff]
    %v8001 = vld [vmem:[%s55 + $0x1a8] sm:$0xff]
    %v8002 = vld [vmem:[%s55 + $0x1b0] sm:$0xff]
    %v8003 = vld [vmem:[%s55 + $0x1b8] sm:$0xff]
    %v8004 = vld [vmem:[%s55 + $0x1c0] sm:$0xff]
    %v8005 = vld [vmem:[%s55 + $0x1c8] sm:$0xff]
    %v8006 = vld [vmem:[%s55 + $0x1d0] sm:$0xff]
    %v8007 = vld [vmem:[%s55 + $0x1d8] sm:$0xff]
    %v8008 = vld [vmem:[%s55 + $0x1e0] sm:$0xff]
    %v8009 = vld [vmem:[%s55 + $0x1e8] sm:$0xff]
    %v8010 = vld [vmem:[%s55 + $0x1f0] sm:$0xff]
    %v8011 = vld [vmem:[%s55 + $0x1f8] sm:$0xff]
    %v8012 = vld [vmem:[%s55 + $0x200] sm:$0xff]
    %v8013 = vld [vmem:[%s55 + $0x208] sm:$0xff]
    %v8014 = vld [vmem:[%s55 + $0x210] sm:$0xff]
    %v8015 = vld [vmem:[%s55 + $0x218] sm:$0xff]
    %v8016 = vld [vmem:[%s55 + $0x220] sm:$0xff]
    %v8017 = vld [vmem:[%s55 + $0x228] sm:$0xff]
    %v8018 = vld [vmem:[%s55 + $0x230] sm:$0xff]
    %v8019 = vld [vmem:[%s55 + $0x238] sm:$0xff]
    %v8020 = vld [vmem:[%s55 + $0x240] sm:$0xff]
    %v8021 = vld [vmem:[%s55 + $0x248] sm:$0xff]
    %v8022 = vld [vmem:[%s55 + $0x250] sm:$0xff]
    %v8023 = vld [vmem:[%s55 + $0x258] sm:$0xff]
    %v8024 = vld [vmem:[%s55 + $0x260] sm:$0xff]
    %v8025 = vld [vmem:[%s55 + $0x268] sm:$0xff]
    %v8026 = vld [vmem:[%s55 + $0x270] sm:$0xff]
    %v8027 = vld [vmem:[%s55 + $0x278] sm:$0xff]
    %v8028 = vld [vmem:[%s55 + $0x280] sm:$0xff]
    %v8029 = vld [vmem:[%s55 + $0x288] sm:$0xff]
    %v8030 = vld [vmem:[%s55 + $0x290] sm:$0xff]
    %v8031 = vld [vmem:[%s55 + $0x298] sm:$0xff]
    %v8032 = vld [vmem:[%s55 + $0x2a0] sm:$0xff]
    %v8033 = vld [vmem:[%s55 + $0x2a8] sm:$0xff]
    %v8034 = vld [vmem:[%s55 + $0x2b0] sm:$0xff]
    %v8035 = vld [vmem:[%s55 + $0x2b8] sm:$0xff]
    %v8036 = vld [vmem:[%s55 + $0x2c0] sm:$0xff]
    %v8037 = vld [vmem:[%s55 + $0x2c8] sm:$0xff]
    %v8038 = vld [vmem:[%s55 + $0x2d0] sm:$0xff]
    %v8039 = vld [vmem:[%s55 + $0x2d8] sm:$0xff]
    %v8040 = vld [vmem:[%s55 + $0x2e0] sm:$0xff]
    %v8041 = vld [vmem:[%s55 + $0x2e8] sm:$0xff]
    %v8042 = vld [vmem:[%s55 + $0x2f0] sm:$0xff]
    %v8043 = vld [vmem:[%s55 + $0x2f8] sm:$0xff]
    %v8044 = vld [vmem:[%s55 + $0x300] sm:$0xff]
    %v8045 = vld [vmem:[%s55 + $0x308] sm:$0xff]
    %v8046 = vld [vmem:[%s55 + $0x310] sm:$0xff]
    %v8047 = vld [vmem:[%s55 + $0x318] sm:$0xff]
    %v8048 = vld [vmem:[%s55 + $0x320] sm:$0xff]
    %v8049 = vld [vmem:[%s55 + $0x328] sm:$0xff]
    %v8050 = vld [vmem:[%s55 + $0x330] sm:$0xff]
    %v8051 = vld [vmem:[%s55 + $0x338] sm:$0xff]
    %v8052 = vld [vmem:[%s55 + $0x340] sm:$0xff]
    %v8053 = vld [vmem:[%s55 + $0x348] sm:$0xff]
    %v8054 = vld [vmem:[%s55 + $0x350] sm:$0xff]
    %v8055 = vld [vmem:[%s55 + $0x358] sm:$0xff]
    %v8056 = vld [vmem:[%s55 + $0x360] sm:$0xff]
    %v8057 = vld [vmem:[%s55 + $0x368] sm:$0xff]
    %v8058 = vld [vmem:[%s55 + $0x370] sm:$0xff]
    %v8059 = vld [vmem:[%s55 + $0x378] sm:$0xff]
    %v8060 = vld [vmem:[%s55 + $0x380] sm:$0xff]
    %v8061 = vld [vmem:[%s55 + $0x388] sm:$0xff]
    %v8062 = vld [vmem:[%s55 + $0x390] sm:$0xff]
    %v8063 = vld [vmem:[%s55 + $0x398] sm:$0xff]
    %v8064 = vld [vmem:[%s55 + $0x3a0] sm:$0xff]
    %v8065 = vld [vmem:[%s55 + $0x3a8] sm:$0xff]
    %v8066 = vld [vmem:[%s55 + $0x3b0] sm:$0xff]
    %v8067 = vld [vmem:[%s55 + $0x3b8] sm:$0xff]
    %v8068 = vld [vmem:[%s55 + $0x3c0] sm:$0xff]
    %v8069 = vld [vmem:[%s55 + $0x3c8] sm:$0xff]
    %v8070 = vld [vmem:[%s55 + $0x3d0] sm:$0xff]
    %v8071 = vld [vmem:[%s55 + $0x3d8] sm:$0xff]
    %v8072 = vld [vmem:[%s55 + $0x3e0] sm:$0xff]
    %v8073 = vld [vmem:[%s55 + $0x3e8] sm:$0xff]
    %v8074 = vld [vmem:[%s55 + $0x3f0] sm:$0xff]
    %v8075 = vld [vmem:[%s55 + $0x3f8] sm:$0xff]
    %v8204 = vunpack.c.l.b16 %v7948
    %v8205 = vunpack.c.h.b16 %v7948
    %v8206 = vunpack.c.l.b16 %v7949
    %v8207 = vunpack.c.h.b16 %v7949
    %v8208 = vunpack.c.l.b16 %v7950
    %v8209 = vunpack.c.h.b16 %v7950
    %v8210 = vunpack.c.l.b16 %v7951
    %v8211 = vunpack.c.h.b16 %v7951
    %v8212 = vunpack.c.l.b16 %v7952
    %v8213 = vunpack.c.h.b16 %v7952
    %v8214 = vunpack.c.l.b16 %v7953
    %v8215 = vunpack.c.h.b16 %v7953
    %v8216 = vunpack.c.l.b16 %v7954
    %v8217 = vunpack.c.h.b16 %v7954
    %v8218 = vunpack.c.l.b16 %v7955
    %v8219 = vunpack.c.h.b16 %v7955
    %v8220 = vunpack.c.l.b16 %v7956
    %v8221 = vunpack.c.h.b16 %v7956
    %v8222 = vunpack.c.l.b16 %v7957
    %v8223 = vunpack.c.h.b16 %v7957
    %v8224 = vunpack.c.l.b16 %v7958
    %v8225 = vunpack.c.h.b16 %v7958
    %v8226 = vunpack.c.l.b16 %v7959
    %v8227 = vunpack.c.h.b16 %v7959
    %v8228 = vunpack.c.l.b16 %v7960
    %v8229 = vunpack.c.h.b16 %v7960
    %v8230 = vunpack.c.l.b16 %v7961
    %v8231 = vunpack.c.h.b16 %v7961
    %v8232 = vunpack.c.l.b16 %v7962
    %v8233 = vunpack.c.h.b16 %v7962
    %v8234 = vunpack.c.l.b16 %v7963
    %v8235 = vunpack.c.h.b16 %v7963
    %v8236 = vunpack.c.l.b16 %v7964
    %v8237 = vunpack.c.h.b16 %v7964
    %v8238 = vunpack.c.l.b16 %v7965
    %v8239 = vunpack.c.h.b16 %v7965
    %v8240 = vunpack.c.l.b16 %v7966
    %v8241 = vunpack.c.h.b16 %v7966
    %v8242 = vunpack.c.l.b16 %v7967
    %v8243 = vunpack.c.h.b16 %v7967
    %v8244 = vunpack.c.l.b16 %v7968
    %v8245 = vunpack.c.h.b16 %v7968
    %v8246 = vunpack.c.l.b16 %v7969
    %v8247 = vunpack.c.h.b16 %v7969
    %v8248 = vunpack.c.l.b16 %v7970
    %v8249 = vunpack.c.h.b16 %v7970
    %v8250 = vunpack.c.l.b16 %v7971
    %v8251 = vunpack.c.h.b16 %v7971
    %v8252 = vunpack.c.l.b16 %v7972
    %v8253 = vunpack.c.h.b16 %v7972
    %v8254 = vunpack.c.l.b16 %v7973
    %v8255 = vunpack.c.h.b16 %v7973
    %v8256 = vunpack.c.l.b16 %v7974
    %v8257 = vunpack.c.h.b16 %v7974
    %v8258 = vunpack.c.l.b16 %v7975
    %v8259 = vunpack.c.h.b16 %v7975
    %v8260 = vunpack.c.l.b16 %v7976
    %v8261 = vunpack.c.h.b16 %v7976
    %v8262 = vunpack.c.l.b16 %v7977
    %v8263 = vunpack.c.h.b16 %v7977
    %v8264 = vunpack.c.l.b16 %v7978
    %v8265 = vunpack.c.h.b16 %v7978
    %v8266 = vunpack.c.l.b16 %v7979
    %v8267 = vunpack.c.h.b16 %v7979
    %v8268 = vunpack.c.l.b16 %v7980
    %v8269 = vunpack.c.h.b16 %v7980
    %v8270 = vunpack.c.l.b16 %v7981
    %v8271 = vunpack.c.h.b16 %v7981
    %v8272 = vunpack.c.l.b16 %v7982
    %v8273 = vunpack.c.h.b16 %v7982
    %v8274 = vunpack.c.l.b16 %v7983
    %v8275 = vunpack.c.h.b16 %v7983
    %v8276 = vunpack.c.l.b16 %v7984
    %v8277 = vunpack.c.h.b16 %v7984
    %v8278 = vunpack.c.l.b16 %v7985
    %v8279 = vunpack.c.h.b16 %v7985
    %v8280 = vunpack.c.l.b16 %v7986
    %v8281 = vunpack.c.h.b16 %v7986
    %v8282 = vunpack.c.l.b16 %v7987
    %v8283 = vunpack.c.h.b16 %v7987
    %v8284 = vunpack.c.l.b16 %v7988
    %v8285 = vunpack.c.h.b16 %v7988
    %v8286 = vunpack.c.l.b16 %v7989
    %v8287 = vunpack.c.h.b16 %v7989
    %v8288 = vunpack.c.l.b16 %v7990
    %v8289 = vunpack.c.h.b16 %v7990
    %v8290 = vunpack.c.l.b16 %v7991
    %v8291 = vunpack.c.h.b16 %v7991
    %v8292 = vunpack.c.l.b16 %v7992
    %v8293 = vunpack.c.h.b16 %v7992
    %v8294 = vunpack.c.l.b16 %v7993
    %v8295 = vunpack.c.h.b16 %v7993
    %v8296 = vunpack.c.l.b16 %v7994
    %v8297 = vunpack.c.h.b16 %v7994
    %v8298 = vunpack.c.l.b16 %v7995
    %v8299 = vunpack.c.h.b16 %v7995
    %v8300 = vunpack.c.l.b16 %v7996
    %v8301 = vunpack.c.h.b16 %v7996
    %v8302 = vunpack.c.l.b16 %v7997
    %v8303 = vunpack.c.h.b16 %v7997
    %v8304 = vunpack.c.l.b16 %v7998
    %v8305 = vunpack.c.h.b16 %v7998
    %v8306 = vunpack.c.l.b16 %v7999
    %v8307 = vunpack.c.h.b16 %v7999
    %v8308 = vunpack.c.l.b16 %v8000
    %v8309 = vunpack.c.h.b16 %v8000
    %v8310 = vunpack.c.l.b16 %v8001
    %v8311 = vunpack.c.h.b16 %v8001
    %v8312 = vunpack.c.l.b16 %v8002
    %v8313 = vunpack.c.h.b16 %v8002
    %v8314 = vunpack.c.l.b16 %v8003
    %v8315 = vunpack.c.h.b16 %v8003
    %v8316 = vunpack.c.l.b16 %v8004
    %v8317 = vunpack.c.h.b16 %v8004
    %v8318 = vunpack.c.l.b16 %v8005
    %v8319 = vunpack.c.h.b16 %v8005
    %v8320 = vunpack.c.l.b16 %v8006
    %v8321 = vunpack.c.h.b16 %v8006
    %v8322 = vunpack.c.l.b16 %v8007
    %v8323 = vunpack.c.h.b16 %v8007
    %v8324 = vunpack.c.l.b16 %v8008
    %v8325 = vunpack.c.h.b16 %v8008
    %v8326 = vunpack.c.l.b16 %v8009
    %v8327 = vunpack.c.h.b16 %v8009
    %v8328 = vunpack.c.l.b16 %v8010
    %v8329 = vunpack.c.h.b16 %v8010
    %v8330 = vunpack.c.l.b16 %v8011
    %v8331 = vunpack.c.h.b16 %v8011
    %v8332 = vunpack.c.l.b16 %v8012
    %v8333 = vunpack.c.h.b16 %v8012
    %v8334 = vunpack.c.l.b16 %v8013
    %v8335 = vunpack.c.h.b16 %v8013
    %v8336 = vunpack.c.l.b16 %v8014
    %v8337 = vunpack.c.h.b16 %v8014
    %v8338 = vunpack.c.l.b16 %v8015
    %v8339 = vunpack.c.h.b16 %v8015
    %v8340 = vunpack.c.l.b16 %v8016
    %v8341 = vunpack.c.h.b16 %v8016
    %v8342 = vunpack.c.l.b16 %v8017
    %v8343 = vunpack.c.h.b16 %v8017
    %v8344 = vunpack.c.l.b16 %v8018
    %v8345 = vunpack.c.h.b16 %v8018
    %v8346 = vunpack.c.l.b16 %v8019
    %v8347 = vunpack.c.h.b16 %v8019
    %v8348 = vunpack.c.l.b16 %v8020
    %v8349 = vunpack.c.h.b16 %v8020
    %v8350 = vunpack.c.l.b16 %v8021
    %v8351 = vunpack.c.h.b16 %v8021
    %v8352 = vunpack.c.l.b16 %v8022
    %v8353 = vunpack.c.h.b16 %v8022
    %v8354 = vunpack.c.l.b16 %v8023
    %v8355 = vunpack.c.h.b16 %v8023
    %v8356 = vunpack.c.l.b16 %v8024
    %v8357 = vunpack.c.h.b16 %v8024
    %v8358 = vunpack.c.l.b16 %v8025
    %v8359 = vunpack.c.h.b16 %v8025
    %v8360 = vunpack.c.l.b16 %v8026
    %v8361 = vunpack.c.h.b16 %v8026
    %v8362 = vunpack.c.l.b16 %v8027
    %v8363 = vunpack.c.h.b16 %v8027
    %v8364 = vunpack.c.l.b16 %v8028
    %v8365 = vunpack.c.h.b16 %v8028
    %v8366 = vunpack.c.l.b16 %v8029
    %v8367 = vunpack.c.h.b16 %v8029
    %v8368 = vunpack.c.l.b16 %v8030
    %v8369 = vunpack.c.h.b16 %v8030
    %v8370 = vunpack.c.l.b16 %v8031
    %v8371 = vunpack.c.h.b16 %v8031
    %v8372 = vunpack.c.l.b16 %v8032
    %v8373 = vunpack.c.h.b16 %v8032
    %v8374 = vunpack.c.l.b16 %v8033
    %v8375 = vunpack.c.h.b16 %v8033
    %v8376 = vunpack.c.l.b16 %v8034
    %v8377 = vunpack.c.h.b16 %v8034
    %v8378 = vunpack.c.l.b16 %v8035
    %v8379 = vunpack.c.h.b16 %v8035
    %v8380 = vunpack.c.l.b16 %v8036
    %v8381 = vunpack.c.h.b16 %v8036
    %v8382 = vunpack.c.l.b16 %v8037
    %v8383 = vunpack.c.h.b16 %v8037
    %v8384 = vunpack.c.l.b16 %v8038
    %v8385 = vunpack.c.h.b16 %v8038
    %v8386 = vunpack.c.l.b16 %v8039
    %v8387 = vunpack.c.h.b16 %v8039
    %v8388 = vunpack.c.l.b16 %v8040
    %v8389 = vunpack.c.h.b16 %v8040
    %v8390 = vunpack.c.l.b16 %v8041
    %v8391 = vunpack.c.h.b16 %v8041
    %v8392 = vunpack.c.l.b16 %v8042
    %v8393 = vunpack.c.h.b16 %v8042
    %v8394 = vunpack.c.l.b16 %v8043
    %v8395 = vunpack.c.h.b16 %v8043
    %v8396 = vunpack.c.l.b16 %v8044
    %v8397 = vunpack.c.h.b16 %v8044
    %v8398 = vunpack.c.l.b16 %v8045
    %v8399 = vunpack.c.h.b16 %v8045
    %v8400 = vunpack.c.l.b16 %v8046
    %v8401 = vunpack.c.h.b16 %v8046
    %v8402 = vunpack.c.l.b16 %v8047
    %v8403 = vunpack.c.h.b16 %v8047
    %v8404 = vunpack.c.l.b16 %v8048
    %v8405 = vunpack.c.h.b16 %v8048
    %v8406 = vunpack.c.l.b16 %v8049
    %v8407 = vunpack.c.h.b16 %v8049
    %v8408 = vunpack.c.l.b16 %v8050
    %v8409 = vunpack.c.h.b16 %v8050
    %v8410 = vunpack.c.l.b16 %v8051
    %v8411 = vunpack.c.h.b16 %v8051
    %v8412 = vunpack.c.l.b16 %v8052
    %v8413 = vunpack.c.h.b16 %v8052
    %v8414 = vunpack.c.l.b16 %v8053
    %v8415 = vunpack.c.h.b16 %v8053
    %v8416 = vunpack.c.l.b16 %v8054
    %v8417 = vunpack.c.h.b16 %v8054
    %v8418 = vunpack.c.l.b16 %v8055
    %v8419 = vunpack.c.h.b16 %v8055
    %v8420 = vunpack.c.l.b16 %v8056
    %v8421 = vunpack.c.h.b16 %v8056
    %v8422 = vunpack.c.l.b16 %v8057
    %v8423 = vunpack.c.h.b16 %v8057
    %v8424 = vunpack.c.l.b16 %v8058
    %v8425 = vunpack.c.h.b16 %v8058
    %v8426 = vunpack.c.l.b16 %v8059
    %v8427 = vunpack.c.h.b16 %v8059
    %v8428 = vunpack.c.l.b16 %v8060
    %v8429 = vunpack.c.h.b16 %v8060
    %v8430 = vunpack.c.l.b16 %v8061
    %v8431 = vunpack.c.h.b16 %v8061
    %v8432 = vunpack.c.l.b16 %v8062
    %v8433 = vunpack.c.h.b16 %v8062
    %v8434 = vunpack.c.l.b16 %v8063
    %v8435 = vunpack.c.h.b16 %v8063
    %v8436 = vunpack.c.l.b16 %v8064
    %v8437 = vunpack.c.h.b16 %v8064
    %v8438 = vunpack.c.l.b16 %v8065
    %v8439 = vunpack.c.h.b16 %v8065
    %v8440 = vunpack.c.l.b16 %v8066
    %v8441 = vunpack.c.h.b16 %v8066
    %v8442 = vunpack.c.l.b16 %v8067
    %v8443 = vunpack.c.h.b16 %v8067
    %v8444 = vunpack.c.l.b16 %v8068
    %v8445 = vunpack.c.h.b16 %v8068
    %v8446 = vunpack.c.l.b16 %v8069
    %v8447 = vunpack.c.h.b16 %v8069
    %v8448 = vunpack.c.l.b16 %v8070
    %v8449 = vunpack.c.h.b16 %v8070
    %v8450 = vunpack.c.l.b16 %v8071
    %v8451 = vunpack.c.h.b16 %v8071
    %v8452 = vunpack.c.l.b16 %v8072
    %v8453 = vunpack.c.h.b16 %v8072
    %v8454 = vunpack.c.l.b16 %v8073
    %v8455 = vunpack.c.h.b16 %v8073
    %v8456 = vunpack.c.l.b16 %v8074
    %v8457 = vunpack.c.h.b16 %v8074
    %v8458 = vunpack.c.l.b16 %v8075
    %v8459 = vunpack.c.h.b16 %v8075
    %v8460 = vpack.c.b16 %v8212, %v8204
    %v8461 = vpack.c.b16 %v8213, %v8205
    %v8462 = vpack.c.b16 %v8214, %v8206
    %v8463 = vpack.c.b16 %v8215, %v8207
    %v8464 = vpack.c.b16 %v8216, %v8208
    %v8465 = vpack.c.b16 %v8217, %v8209
    %v8466 = vpack.c.b16 %v8218, %v8210
    %v8467 = vpack.c.b16 %v8219, %v8211
    %v8468 = vpack.c.b16 %v8228, %v8220
    %v8469 = vpack.c.b16 %v8229, %v8221
    %v8470 = vpack.c.b16 %v8230, %v8222
    %v8471 = vpack.c.b16 %v8231, %v8223
    %v8472 = vpack.c.b16 %v8232, %v8224
    %v8473 = vpack.c.b16 %v8233, %v8225
    %v8474 = vpack.c.b16 %v8234, %v8226
    %v8475 = vpack.c.b16 %v8235, %v8227
    %v8476 = vpack.c.b16 %v8244, %v8236
    %v8477 = vpack.c.b16 %v8245, %v8237
    %v8478 = vpack.c.b16 %v8246, %v8238
    %v8479 = vpack.c.b16 %v8247, %v8239
    %v8480 = vpack.c.b16 %v8248, %v8240
    %v8481 = vpack.c.b16 %v8249, %v8241
    %v8482 = vpack.c.b16 %v8250, %v8242
    %v8483 = vpack.c.b16 %v8251, %v8243
    %v8484 = vpack.c.b16 %v8260, %v8252
    %v8485 = vpack.c.b16 %v8261, %v8253
    %v8486 = vpack.c.b16 %v8262, %v8254
    %v8487 = vpack.c.b16 %v8263, %v8255
    %v8488 = vpack.c.b16 %v8264, %v8256
    %v8489 = vpack.c.b16 %v8265, %v8257
    %v8490 = vpack.c.b16 %v8266, %v8258
    %v8491 = vpack.c.b16 %v8267, %v8259
    %v8492 = vpack.c.b16 %v8276, %v8268
    %v8493 = vpack.c.b16 %v8277, %v8269
    %v8494 = vpack.c.b16 %v8278, %v8270
    %v8495 = vpack.c.b16 %v8279, %v8271
    %v8496 = vpack.c.b16 %v8280, %v8272
    %v8497 = vpack.c.b16 %v8281, %v8273
    %v8498 = vpack.c.b16 %v8282, %v8274
    %v8499 = vpack.c.b16 %v8283, %v8275
    %v8500 = vpack.c.b16 %v8292, %v8284
    %v8501 = vpack.c.b16 %v8293, %v8285
    %v8502 = vpack.c.b16 %v8294, %v8286
    %v8503 = vpack.c.b16 %v8295, %v8287
    %v8504 = vpack.c.b16 %v8296, %v8288
    %v8505 = vpack.c.b16 %v8297, %v8289
    %v8506 = vpack.c.b16 %v8298, %v8290
    %v8507 = vpack.c.b16 %v8299, %v8291
    %v8508 = vpack.c.b16 %v8308, %v8300
    %v8509 = vpack.c.b16 %v8309, %v8301
    %v8510 = vpack.c.b16 %v8310, %v8302
    %v8511 = vpack.c.b16 %v8311, %v8303
    %v8512 = vpack.c.b16 %v8312, %v8304
    %v8513 = vpack.c.b16 %v8313, %v8305
    %v8514 = vpack.c.b16 %v8314, %v8306
    %v8515 = vpack.c.b16 %v8315, %v8307
    %v8516 = vpack.c.b16 %v8324, %v8316
    %v8517 = vpack.c.b16 %v8325, %v8317
    %v8518 = vpack.c.b16 %v8326, %v8318
    %v8519 = vpack.c.b16 %v8327, %v8319
    %v8520 = vpack.c.b16 %v8328, %v8320
    %v8521 = vpack.c.b16 %v8329, %v8321
    %v8522 = vpack.c.b16 %v8330, %v8322
    %v8523 = vpack.c.b16 %v8331, %v8323
    %v8524 = vpack.c.b16 %v8340, %v8332
    %v8525 = vpack.c.b16 %v8341, %v8333
    %v8526 = vpack.c.b16 %v8342, %v8334
    %v8527 = vpack.c.b16 %v8343, %v8335
    %v8528 = vpack.c.b16 %v8344, %v8336
    %v8529 = vpack.c.b16 %v8345, %v8337
    %v8530 = vpack.c.b16 %v8346, %v8338
    %v8531 = vpack.c.b16 %v8347, %v8339
    %v8532 = vpack.c.b16 %v8356, %v8348
    %v8533 = vpack.c.b16 %v8357, %v8349
    %v8534 = vpack.c.b16 %v8358, %v8350
    %v8535 = vpack.c.b16 %v8359, %v8351
    %v8536 = vpack.c.b16 %v8360, %v8352
    %v8537 = vpack.c.b16 %v8361, %v8353
    %v8538 = vpack.c.b16 %v8362, %v8354
    %v8539 = vpack.c.b16 %v8363, %v8355
    %v8540 = vpack.c.b16 %v8372, %v8364
    %v8541 = vpack.c.b16 %v8373, %v8365
    %v8542 = vpack.c.b16 %v8374, %v8366
    %v8543 = vpack.c.b16 %v8375, %v8367
    %v8544 = vpack.c.b16 %v8376, %v8368
    %v8545 = vpack.c.b16 %v8377, %v8369
    %v8546 = vpack.c.b16 %v8378, %v8370
    %v8547 = vpack.c.b16 %v8379, %v8371
    %v8548 = vpack.c.b16 %v8388, %v8380
    %v8549 = vpack.c.b16 %v8389, %v8381
    %v8550 = vpack.c.b16 %v8390, %v8382
    %v8551 = vpack.c.b16 %v8391, %v8383
    %v8552 = vpack.c.b16 %v8392, %v8384
    %v8553 = vpack.c.b16 %v8393, %v8385
    %v8554 = vpack.c.b16 %v8394, %v8386
    %v8555 = vpack.c.b16 %v8395, %v8387
    %v8556 = vpack.c.b16 %v8404, %v8396
    %v8557 = vpack.c.b16 %v8405, %v8397
    %v8558 = vpack.c.b16 %v8406, %v8398
    %v8559 = vpack.c.b16 %v8407, %v8399
    %v8560 = vpack.c.b16 %v8408, %v8400
    %v8561 = vpack.c.b16 %v8409, %v8401
    %v8562 = vpack.c.b16 %v8410, %v8402
    %v8563 = vpack.c.b16 %v8411, %v8403
    %v8564 = vpack.c.b16 %v8420, %v8412
    %v8565 = vpack.c.b16 %v8421, %v8413
    %v8566 = vpack.c.b16 %v8422, %v8414
    %v8567 = vpack.c.b16 %v8423, %v8415
    %v8568 = vpack.c.b16 %v8424, %v8416
    %v8569 = vpack.c.b16 %v8425, %v8417
    %v8570 = vpack.c.b16 %v8426, %v8418
    %v8571 = vpack.c.b16 %v8427, %v8419
    %v8572 = vpack.c.b16 %v8436, %v8428
    %v8573 = vpack.c.b16 %v8437, %v8429
    %v8574 = vpack.c.b16 %v8438, %v8430
    %v8575 = vpack.c.b16 %v8439, %v8431
    %v8576 = vpack.c.b16 %v8440, %v8432
    %v8577 = vpack.c.b16 %v8441, %v8433
    %v8578 = vpack.c.b16 %v8442, %v8434
    %v8579 = vpack.c.b16 %v8443, %v8435
    %v8580 = vpack.c.b16 %v8452, %v8444
    %v8581 = vpack.c.b16 %v8453, %v8445
    %v8582 = vpack.c.b16 %v8454, %v8446
    %v8583 = vpack.c.b16 %v8455, %v8447
    %v8584 = vpack.c.b16 %v8456, %v8448
    %v8585 = vpack.c.b16 %v8457, %v8449
    %v8586 = vpack.c.b16 %v8458, %v8450
    %v8587 = vpack.c.b16 %v8459, %v8451
    %8716 = vmatprep.subr.bf16.mxu0 %v8461
    %8717 = vmatpush1.bf16.msra.mxu0 %v8460
    %8718 = vmatprep.subr.bf16.mxu0 %v8469
    %8719 = vmatpush1.bf16.msra.mxu0 %v8468
    %8720 = vmatprep.subr.bf16.mxu0 %v8477
    %8721 = vmatpush1.bf16.msra.mxu0 %v8476
    %8722 = vmatprep.subr.bf16.mxu0 %v8485
    %8723 = vmatpush1.bf16.msra.mxu0 %v8484
    %8724 = vmatprep.subr.bf16.mxu0 %v8493
    %8725 = vmatpush1.bf16.msra.mxu0 %v8492
    %8726 = vmatprep.subr.bf16.mxu0 %v8501
    %8727 = vmatpush1.bf16.msra.mxu0 %v8500
    %8728 = vmatprep.subr.bf16.mxu0 %v8509
    %8729 = vmatpush1.bf16.msra.mxu0 %v8508
    %8730 = vmatprep.subr.bf16.mxu0 %v8517
    %8731 = vmatpush1.bf16.msra.mxu0 %v8516
    %8732 = vmatprep.subr.bf16.mxu0 %v8525
    %8733 = vmatpush1.bf16.msra.mxu0 %v8524
    %8734 = vmatprep.subr.bf16.mxu0 %v8533
    %8735 = vmatpush1.bf16.msra.mxu0 %v8532
    %8736 = vmatprep.subr.bf16.mxu0 %v8541
    %8737 = vmatpush1.bf16.msra.mxu0 %v8540
    %8738 = vmatprep.subr.bf16.mxu0 %v8549
    %8739 = vmatpush1.bf16.msra.mxu0 %v8548
    %8740 = vmatprep.subr.bf16.mxu0 %v8557
    %8741 = vmatpush1.bf16.msra.mxu0 %v8556
    %8742 = vmatprep.subr.bf16.mxu0 %v8565
    %8743 = vmatpush1.bf16.msra.mxu0 %v8564
    %8744 = vmatprep.subr.bf16.mxu0 %v8573
    %8745 = vmatpush1.bf16.msra.mxu0 %v8572
    %8746 = vmatprep.subr.bf16.mxu0 %v8581
    %8747 = vmatpush1.bf16.msra.mxu0 %v8580
    %8748 = vmatprep.mubr.bf16.mxu0 0
    %8749 = vmatmul.mubr.bf16.gmra.mrb[0].mxu0 0
    %v8750 = vpop.f32.mrb[0].mxu0
    %v8751 = vadd.f32 0.0, %v8750
    %v8752 = vpop.f32.mrb[0].mxu0
    %v8753 = vadd.f32 0.0, %v8752
    %v8754 = vpop.f32.mrb[0].mxu0
    %v8755 = vpop.f32.mrb[0].mxu0
    %8756 = vdwg.mxu0
    %8757 = vmatprep.subr.bf16.mxu0 %v8463
    %8758 = vmatpush1.bf16.msra.mxu0 %v8462
    %8759 = vmatprep.subr.bf16.mxu0 %v8471
    %8760 = vmatpush1.bf16.msra.mxu0 %v8470
    %8761 = vmatprep.subr.bf16.mxu0 %v8479
    %8762 = vmatpush1.bf16.msra.mxu0 %v8478
    %8763 = vmatprep.subr.bf16.mxu0 %v8487
    %8764 = vmatpush1.bf16.msra.mxu0 %v8486
    %8765 = vmatprep.subr.bf16.mxu0 %v8495
    %8766 = vmatpush1.bf16.msra.mxu0 %v8494
    %8767 = vmatprep.subr.bf16.mxu0 %v8503
    %8768 = vmatpush1.bf16.msra.mxu0 %v8502
    %8769 = vmatprep.subr.bf16.mxu0 %v8511
    %8770 = vmatpush1.bf16.msra.mxu0 %v8510
    %8771 = vmatprep.subr.bf16.mxu0 %v8519
    %8772 = vmatpush1.bf16.msra.mxu0 %v8518
    %8773 = vmatprep.subr.bf16.mxu0 %v8527
    %8774 = vmatpush1.bf16.msra.mxu0 %v8526
    %8775 = vmatprep.subr.bf16.mxu0 %v8535
    %8776 = vmatpush1.bf16.msra.mxu0 %v8534
    %8777 = vmatprep.subr.bf16.mxu0 %v8543
    %8778 = vmatpush1.bf16.msra.mxu0 %v8542
    %8779 = vmatprep.subr.bf16.mxu0 %v8551
    %8780 = vmatpush1.bf16.msra.mxu0 %v8550
    %8781 = vmatprep.subr.bf16.mxu0 %v8559
    %8782 = vmatpush1.bf16.msra.mxu0 %v8558
    %8783 = vmatprep.subr.bf16.mxu0 %v8567
    %8784 = vmatpush1.bf16.msra.mxu0 %v8566
    %8785 = vmatprep.subr.bf16.mxu0 %v8575
    %8786 = vmatpush1.bf16.msra.mxu0 %v8574
    %8787 = vmatprep.subr.bf16.mxu0 %v8583
    %8788 = vmatpush1.bf16.msra.mxu0 %v8582
    %8789 = vmatprep.mubr.bf16.mxu0 0
    %8790 = vmatmul.mubr.bf16.gmra.mrb[0].mxu0 0
    %v8791 = vpop.f32.mrb[0].mxu0
    %v8792 = vadd.f32 0.0, %v8791
    %v8793 = vpop.f32.mrb[0].mxu0
    %v8794 = vadd.f32 0.0, %v8793
    %v8795 = vpop.f32.mrb[0].mxu0
    %v8796 = vpop.f32.mrb[0].mxu0
    %8797 = vdwg.mxu0
    %8798 = vmatprep.subr.bf16.mxu0 %v8465
    %8799 = vmatpush1.bf16.msra.mxu0 %v8464
    %8800 = vmatprep.subr.bf16.mxu0 %v8473
    %8801 = vmatpush1.bf16.msra.mxu0 %v8472
    %8802 = vmatprep.subr.bf16.mxu0 %v8481
    %8803 = vmatpush1.bf16.msra.mxu0 %v8480
    %8804 = vmatprep.subr.bf16.mxu0 %v8489
    %8805 = vmatpush1.bf16.msra.mxu0 %v8488
    %8806 = vmatprep.subr.bf16.mxu0 %v8497
    %8807 = vmatpush1.bf16.msra.mxu0 %v8496
    %8808 = vmatprep.subr.bf16.mxu0 %v8505
    %8809 = vmatpush1.bf16.msra.mxu0 %v8504
    %8810 = vmatprep.subr.bf16.mxu0 %v8513
    %8811 = vmatpush1.bf16.msra.mxu0 %v8512
    %8812 = vmatprep.subr.bf16.mxu0 %v8521
    %8813 = vmatpush1.bf16.msra.mxu0 %v8520
    %8814 = vmatprep.subr.bf16.mxu0 %v8529
    %8815 = vmatpush1.bf16.msra.mxu0 %v8528
    %8816 = vmatprep.subr.bf16.mxu0 %v8537
    %8817 = vmatpush1.bf16.msra.mxu0 %v8536
    %8818 = vmatprep.subr.bf16.mxu0 %v8545
    %8819 = vmatpush1.bf16.msra.mxu0 %v8544
    %8820 = vmatprep.subr.bf16.mxu0 %v8553
    %8821 = vmatpush1.bf16.msra.mxu0 %v8552
    %8822 = vmatprep.subr.bf16.mxu0 %v8561
    %8823 = vmatpush1.bf16.msra.mxu0 %v8560
    %8824 = vmatprep.subr.bf16.mxu0 %v8569
    %8825 = vmatpush1.bf16.msra.mxu0 %v8568
    %8826 = vmatprep.subr.bf16.mxu0 %v8577
    %8827 = vmatpush1.bf16.msra.mxu0 %v8576
    %8828 = vmatprep.subr.bf16.mxu0 %v8585
    %8829 = vmatpush1.bf16.msra.mxu0 %v8584
    %8830 = vmatprep.mubr.bf16.mxu0 0
    %8831 = vmatmul.mubr.bf16.gmra.mrb[0].mxu0 0
    %v8832 = vpop.f32.mrb[0].mxu0
    %v8833 = vadd.f32 0.0, %v8832
    %v8834 = vpop.f32.mrb[0].mxu0
    %v8835 = vadd.f32 0.0, %v8834
    %v8836 = vpop.f32.mrb[0].mxu0
    %v8837 = vpop.f32.mrb[0].mxu0
    %8838 = vdwg.mxu0
    %8839 = vmatprep.subr.bf16.mxu0 %v8467
    %8840 = vmatpush1.bf16.msra.mxu0 %v8466
    %8841 = vmatprep.subr.bf16.mxu0 %v8475
    %8842 = vmatpush1.bf16.msra.mxu0 %v8474
    %8843 = vmatprep.subr.bf16.mxu0 %v8483
    %8844 = vmatpush1.bf16.msra.mxu0 %v8482
    %8845 = vmatprep.subr.bf16.mxu0 %v8491
    %8846 = vmatpush1.bf16.msra.mxu0 %v8490
    %8847 = vmatprep.subr.bf16.mxu0 %v8499
    %8848 = vmatpush1.bf16.msra.mxu0 %v8498
    %8849 = vmatprep.subr.bf16.mxu0 %v8507
    %8850 = vmatpush1.bf16.msra.mxu0 %v8506
    %8851 = vmatprep.subr.bf16.mxu0 %v8515
    %8852 = vmatpush1.bf16.msra.mxu0 %v8514
    %8853 = vmatprep.subr.bf16.mxu0 %v8523
    %8854 = vmatpush1.bf16.msra.mxu0 %v8522
    %8855 = vmatprep.subr.bf16.mxu0 %v8531
    %8856 = vmatpush1.bf16.msra.mxu0 %v8530
    %8857 = vmatprep.subr.bf16.mxu0 %v8539
    %8858 = vmatpush1.bf16.msra.mxu0 %v8538
    %8859 = vmatprep.subr.bf16.mxu0 %v8547
    %8860 = vmatpush1.bf16.msra.mxu0 %v8546
    %8861 = vmatprep.subr.bf16.mxu0 %v8555
    %8862 = vmatpush1.bf16.msra.mxu0 %v8554
    %8863 = vmatprep.subr.bf16.mxu0 %v8563
    %8864 = vmatpush1.bf16.msra.mxu0 %v8562
    %8865 = vmatprep.subr.bf16.mxu0 %v8571
    %8866 = vmatpush1.bf16.msra.mxu0 %v8570
    %8867 = vmatprep.subr.bf16.mxu0 %v8579
    %8868 = vmatpush1.bf16.msra.mxu0 %v8578
    %8869 = vmatprep.subr.bf16.mxu0 %v8587
    %8870 = vmatpush1.bf16.msra.mxu0 %v8586
    %8871 = vmatprep.mubr.bf16.mxu0 0
    %8872 = vmatmul.mubr.bf16.gmra.mrb[0].mxu0 0
    %v8873 = vpop.f32.mrb[0].mxu0
    %v8874 = vadd.f32 0.0, %v8873
    %v8875 = vpop.f32.mrb[0].mxu0
    %v8876 = vadd.f32 0.0, %v8875
    %v8877 = vpop.f32.mrb[0].mxu0
    %v8878 = vpop.f32.mrb[0].mxu0
    %8879 = vdwg.mxu0
    %v8888 = vcombine.low %v8751, %v8753
    %v8889 = vcombine.low %v8792, %v8794
    %v8890 = vcombine.low %v8833, %v8835
    %v8891 = vcombine.low %v8874, %v8876
    %v8893 = vunpack.c.l.s4 1966171168
    %v8894 = vunpack.c.0.s8 %v8893
    %v8895 = vlaneseq
    %v8896 = vshrl.u32 %v8895, 7
    %v8897 = vsub.s32 %v8894, %v8896
    %v8898 = vrot.slane %v8888, %v8897
    %v8900 = vunpack.c.l.s4 1966171168
    %v8901 = vunpack.c.0.s8 %v8900
    %v8902 = vlaneseq
    %v8903 = vshrl.u32 %v8902, 7
    %v8904 = vsub.s32 %v8901, %v8903
    %v8905 = vrot.slane %v8889, %v8904
    %v8907 = vunpack.c.l.s4 1966171168
    %v8908 = vunpack.c.0.s8 %v8907
    %v8909 = vlaneseq
    %v8910 = vshrl.u32 %v8909, 7
    %v8911 = vsub.s32 %v8908, %v8910
    %v8912 = vrot.slane %v8890, %v8911
    %v8914 = vunpack.c.l.s4 1966171168
    %v8915 = vunpack.c.0.s8 %v8914
    %v8916 = vlaneseq
    %v8917 = vshrl.u32 %v8916, 7
    %v8918 = vsub.s32 %v8915, %v8917
    %v8919 = vrot.slane %v8891, %v8918
    %v8920 = vcombine.low %v8898, %v8905
    %v8921 = vcombine.low %v8912, %v8919
    %v8923 = vunpack.c.l.s4 1966171168
    %v8924 = vunpack.c.0.s8 %v8923
    %v8925 = vlaneseq
    %v8926 = vshrl.u32 %v8925, 7
    %v8927 = vsub.s32 %v8924, %v8926
    %v8928 = vrot.slane %v8920, %v8927
    %v8930 = vunpack.c.l.s4 1966171168
    %v8931 = vunpack.c.0.s8 %v8930
    %v8932 = vlaneseq
    %v8933 = vshrl.u32 %v8932, 7
    %v8934 = vsub.s32 %v8931, %v8933
    %v8935 = vrot.slane %v8921, %v8934
    %v8936 = vcombine.low %v8928, %v8935
    %v8938 = vadd.f32 %v7947, %v8936
    %v8939 = vmul.f32 %v8938, 0.5
    %v8940 = vtanh.pop %v8939
    %v8941 = vadd.f32 %v8940, 1.0
    %v8942 = vmul.f32 %v8941, 0.5
    %v8944 = vrot.slane %v8938, 2
    %v8946 = vmul.f32 %v8944, 0.5
    %v8947 = vtanh.pop %v8946
    %v8948 = vadd.f32 %v8947, 1.0
    %v8949 = vmul.f32 %v8948, 0.5
    %v8950 = vrot.slane %v8938, 4
    %v8952 = vtanh.pop %v8950
    %v8953 = vrot.slane %v8938, 6
    %v8955 = vmul.f32 %v8953, 0.5
    %v8956 = vtanh.pop %v8955
    %v8957 = vadd.f32 %v8956, 1.0
    %v8958 = vmul.f32 %v8957, 0.5
    %v8959 = vmul.f32 %v8949, 0.0
    %v8960 = vmul.f32 %v8942, %v8952
    %v8961 = vadd.f32 %v8959, %v8960
    %v8962 = vtanh.pop %v8961
    %v8963 = vmul.f32 %v8958, %v8962
    %s8964 = scalar_lea.vmem [#allocation2], 1
    %v8965 = vld [vmem:[%s8964] ss:$2 sm:$0xff]
    %v8967 = vlaneseq
    %v8968 = vshrl.u32 %v8967, 7
    %v8969 = vsub.s32 0, %v8968
    %v8970 = vrot.slane %v8963, %v8969
    %v8971 = vlaneseq
    %v8972 = vshrl.u32 %v8971, 7
    %v8973 = vsub.s32 1, %v8972
    %v8974 = vrot.slane %v8963, %v8973
    %v8977 = vpack.c.bf16 %v8970, %v8970
    %v8978 = vpack.c.bf16 %v8974, %v8974
    %8979 = vmatprep.subr.bf16.mxu0 %v8461
    %8980 = vmatpush1.bf16.msra.mxu0 %v8460
    %8981 = vmatprep.subr.bf16.mxu0 %v8469
    %8982 = vmatpush1.bf16.msra.mxu0 %v8468
    %8983 = vmatprep.subr.bf16.mxu0 %v8477
    %8984 = vmatpush1.bf16.msra.mxu0 %v8476
    %8985 = vmatprep.subr.bf16.mxu0 %v8485
    %8986 = vmatpush1.bf16.msra.mxu0 %v8484
    %8987 = vmatprep.subr.bf16.mxu0 %v8493
    %8988 = vmatpush1.bf16.msra.mxu0 %v8492
    %8989 = vmatprep.subr.bf16.mxu0 %v8501
    %8990 = vmatpush1.bf16.msra.mxu0 %v8500
    %8991 = vmatprep.subr.bf16.mxu0 %v8509
    %8992 = vmatpush1.bf16.msra.mxu0 %v8508
    %8993 = vmatprep.subr.bf16.mxu0 %v8517
    %8994 = vmatpush1.bf16.msra.mxu0 %v8516
    %8995 = vmatprep.subr.bf16.mxu0 %v8525
    %8996 = vmatpush1.bf16.msra.mxu0 %v8524
    %8997 = vmatprep.subr.bf16.mxu0 %v8533
    %8998 = vmatpush1.bf16.msra.mxu0 %v8532
    %8999 = vmatprep.subr.bf16.mxu0 %v8541
    %9000 = vmatpush1.bf16.msra.mxu0 %v8540
    %9001 = vmatprep.subr.bf16.mxu0 %v8549
    %9002 = vmatpush1.bf16.msra.mxu0 %v8548
    %9003 = vmatprep.subr.bf16.mxu0 %v8557
    %9004 = vmatpush1.bf16.msra.mxu0 %v8556
    %9005 = vmatprep.subr.bf16.mxu0 %v8565
    %9006 = vmatpush1.bf16.msra.mxu0 %v8564
    %9007 = vmatprep.subr.bf16.mxu0 %v8573
    %9008 = vmatpush1.bf16.msra.mxu0 %v8572
    %9009 = vmatprep.subr.bf16.mxu0 %v8581
    %9010 = vmatpush1.bf16.msra.mxu0 %v8580
    %9011 = vmatprep.mubr.bf16.mxu0 %v8978
    %9012 = vmatmul.mubr.bf16.gmra.mrb[0].mxu0 %v8977
    %v9013 = vpop.f32.mrb[0].mxu0
    %v9014 = vadd.f32 0.0, %v9013
    %v9015 = vpop.f32.mrb[0].mxu0
    %v9016 = vadd.f32 0.0, %v9015
    %v9017 = vpop.f32.mrb[0].mxu0
    %v9018 = vpop.f32.mrb[0].mxu0
    %9019 = vdwg.mxu0
    %9020 = vmatprep.subr.bf16.mxu0 %v8463
    %9021 = vmatpush1.bf16.msra.mxu0 %v8462
    %9022 = vmatprep.subr.bf16.mxu0 %v8471
    %9023 = vmatpush1.bf16.msra.mxu0 %v8470
    %9024 = vmatprep.subr.bf16.mxu0 %v8479
    %9025 = vmatpush1.bf16.msra.mxu0 %v8478
    %9026 = vmatprep.subr.bf16.mxu0 %v8487
    %9027 = vmatpush1.bf16.msra.mxu0 %v8486
    %9028 = vmatprep.subr.bf16.mxu0 %v8495
    %9029 = vmatpush1.bf16.msra.mxu0 %v8494
    %9030 = vmatprep.subr.bf16.mxu0 %v8503
    %9031 = vmatpush1.bf16.msra.mxu0 %v8502
    %9032 = vmatprep.subr.bf16.mxu0 %v8511
    %9033 = vmatpush1.bf16.msra.mxu0 %v8510
    %9034 = vmatprep.subr.bf16.mxu0 %v8519
    %9035 = vmatpush1.bf16.msra.mxu0 %v8518
    %9036 = vmatprep.subr.bf16.mxu0 %v8527
    %9037 = vmatpush1.bf16.msra.mxu0 %v8526
    %9038 = vmatprep.subr.bf16.mxu0 %v8535
    %9039 = vmatpush1.bf16.msra.mxu0 %v8534
    %9040 = vmatprep.subr.bf16.mxu0 %v8543
    %9041 = vmatpush1.bf16.msra.mxu0 %v8542
    %9042 = vmatprep.subr.bf16.mxu0 %v8551
    %9043 = vmatpush1.bf16.msra.mxu0 %v8550
    %9044 = vmatprep.subr.bf16.mxu0 %v8559
    %9045 = vmatpush1.bf16.msra.mxu0 %v8558
    %9046 = vmatprep.subr.bf16.mxu0 %v8567
    %9047 = vmatpush1.bf16.msra.mxu0 %v8566
    %9048 = vmatprep.subr.bf16.mxu0 %v8575
    %9049 = vmatpush1.bf16.msra.mxu0 %v8574
    %9050 = vmatprep.subr.bf16.mxu0 %v8583
    %9051 = vmatpush1.bf16.msra.mxu0 %v8582
    %9052 = vmatprep.mubr.bf16.mxu0 %v8978
    %9053 = vmatmul.mubr.bf16.gmra.mrb[0].mxu0 %v8977
    %v9054 = vpop.f32.mrb[0].mxu0
    %v9055 = vadd.f32 0.0, %v9054
    %v9056 = vpop.f32.mrb[0].mxu0
    %v9057 = vadd.f32 0.0, %v9056
    %v9058 = vpop.f32.mrb[0].mxu0
    %v9059 = vpop.f32.mrb[0].mxu0
    %9060 = vdwg.mxu0
    %9061 = vmatprep.subr.bf16.mxu0 %v8465
    %9062 = vmatpush1.bf16.msra.mxu0 %v8464
    %9063 = vmatprep.subr.bf16.mxu0 %v8473
    %9064 = vmatpush1.bf16.msra.mxu0 %v8472
    %9065 = vmatprep.subr.bf16.mxu0 %v8481
    %9066 = vmatpush1.bf16.msra.mxu0 %v8480
    %9067 = vmatprep.subr.bf16.mxu0 %v8489
    %9068 = vmatpush1.bf16.msra.mxu0 %v8488
    %9069 = vmatprep.subr.bf16.mxu0 %v8497
    %9070 = vmatpush1.bf16.msra.mxu0 %v8496
    %9071 = vmatprep.subr.bf16.mxu0 %v8505
    %9072 = vmatpush1.bf16.msra.mxu0 %v8504
    %9073 = vmatprep.subr.bf16.mxu0 %v8513
    %9074 = vmatpush1.bf16.msra.mxu0 %v8512
    %9075 = vmatprep.subr.bf16.mxu0 %v8521
    %9076 = vmatpush1.bf16.msra.mxu0 %v8520
    %9077 = vmatprep.subr.bf16.mxu0 %v8529
    %9078 = vmatpush1.bf16.msra.mxu0 %v8528
    %9079 = vmatprep.subr.bf16.mxu0 %v8537
    %9080 = vmatpush1.bf16.msra.mxu0 %v8536
    %9081 = vmatprep.subr.bf16.mxu0 %v8545
    %9082 = vmatpush1.bf16.msra.mxu0 %v8544
    %9083 = vmatprep.subr.bf16.mxu0 %v8553
    %9084 = vmatpush1.bf16.msra.mxu0 %v8552
    %9085 = vmatprep.subr.bf16.mxu0 %v8561
    %9086 = vmatpush1.bf16.msra.mxu0 %v8560
    %9087 = vmatprep.subr.bf16.mxu0 %v8569
    %9088 = vmatpush1.bf16.msra.mxu0 %v8568
    %9089 = vmatprep.subr.bf16.mxu0 %v8577
    %9090 = vmatpush1.bf16.msra.mxu0 %v8576
    %9091 = vmatprep.subr.bf16.mxu0 %v8585
    %9092 = vmatpush1.bf16.msra.mxu0 %v8584
    %9093 = vmatprep.mubr.bf16.mxu0 %v8978
    %9094 = vmatmul.mubr.bf16.gmra.mrb[0].mxu0 %v8977
    %v9095 = vpop.f32.mrb[0].mxu0
    %v9096 = vadd.f32 0.0, %v9095
    %v9097 = vpop.f32.mrb[0].mxu0
    %v9098 = vadd.f32 0.0, %v9097
    %v9099 = vpop.f32.mrb[0].mxu0
    %v9100 = vpop.f32.mrb[0].mxu0
    %9101 = vdwg.mxu0
    %9102 = vmatprep.subr.bf16.mxu0 %v8467
    %9103 = vmatpush1.bf16.msra.mxu0 %v8466
    %9104 = vmatprep.subr.bf16.mxu0 %v8475
    %9105 = vmatpush1.bf16.msra.mxu0 %v8474
    %9106 = vmatprep.subr.bf16.mxu0 %v8483
    %9107 = vmatpush1.bf16.msra.mxu0 %v8482
    %9108 = vmatprep.subr.bf16.mxu0 %v8491
    %9109 = vmatpush1.bf16.msra.mxu0 %v8490
    %9110 = vmatprep.subr.bf16.mxu0 %v8499
    %9111 = vmatpush1.bf16.msra.mxu0 %v8498
    %9112 = vmatprep.subr.bf16.mxu0 %v8507
    %9113 = vmatpush1.bf16.msra.mxu0 %v8506
    %9114 = vmatprep.subr.bf16.mxu0 %v8515
    %9115 = vmatpush1.bf16.msra.mxu0 %v8514
    %9116 = vmatprep.subr.bf16.mxu0 %v8523
    %9117 = vmatpush1.bf16.msra.mxu0 %v8522
    %9118 = vmatprep.subr.bf16.mxu0 %v8531
    %9119 = vmatpush1.bf16.msra.mxu0 %v8530
    %9120 = vmatprep.subr.bf16.mxu0 %v8539
    %9121 = vmatpush1.bf16.msra.mxu0 %v8538
    %9122 = vmatprep.subr.bf16.mxu0 %v8547
    %9123 = vmatpush1.bf16.msra.mxu0 %v8546
    %9124 = vmatprep.subr.bf16.mxu0 %v8555
    %9125 = vmatpush1.bf16.msra.mxu0 %v8554
    %9126 = vmatprep.subr.bf16.mxu0 %v8563
    %9127 = vmatpush1.bf16.msra.mxu0 %v8562
    %9128 = vmatprep.subr.bf16.mxu0 %v8571
    %9129 = vmatpush1.bf16.msra.mxu0 %v8570
    %9130 = vmatprep.subr.bf16.mxu0 %v8579
    %9131 = vmatpush1.bf16.msra.mxu0 %v8578
    %9132 = vmatprep.subr.bf16.mxu0 %v8587
    %9133 = vmatpush1.bf16.msra.mxu0 %v8586
    %9134 = vmatprep.mubr.bf16.mxu0 %v8978
    %9135 = vmatmul.mubr.bf16.gmra.mrb[0].mxu0 %v8977
    %v9136 = vpop.f32.mrb[0].mxu0
    %v9137 = vadd.f32 0.0, %v9136
    %v9138 = vpop.f32.mrb[0].mxu0
    %v9139 = vadd.f32 0.0, %v9138
    %v9140 = vpop.f32.mrb[0].mxu0
    %v9141 = vpop.f32.mrb[0].mxu0
    %9142 = vdwg.mxu0
    %v9151 = vcombine.low %v9014, %v9016
    %v9152 = vcombine.low %v9055, %v9057
    %v9153 = vcombine.low %v9096, %v9098
    %v9154 = vcombine.low %v9137, %v9139
    %v9156 = vunpack.c.l.s4 1966171168
    %v9157 = vunpack.c.0.s8 %v9156
    %v9158 = vlaneseq
    %v9159 = vshrl.u32 %v9158, 7
    %v9160 = vsub.s32 %v9157, %v9159
    %v9161 = vrot.slane %v9151, %v9160
    %v9163 = vunpack.c.l.s4 1966171168
    %v9164 = vunpack.c.0.s8 %v9163
    %v9165 = vlaneseq
    %v9166 = vshrl.u32 %v9165, 7
    %v9167 = vsub.s32 %v9164, %v9166
    %v9168 = vrot.slane %v9152, %v9167
    %v9170 = vunpack.c.l.s4 1966171168
    %v9171 = vunpack.c.0.s8 %v9170
    %v9172 = vlaneseq
    %v9173 = vshrl.u32 %v9172, 7
    %v9174 = vsub.s32 %v9171, %v9173
    %v9175 = vrot.slane %v9153, %v9174
    %v9177 = vunpack.c.l.s4 1966171168
    %v9178 = vunpack.c.0.s8 %v9177
    %v9179 = vlaneseq
    %v9180 = vshrl.u32 %v9179, 7
    %v9181 = vsub.s32 %v9178, %v9180
    %v9182 = vrot.slane %v9154, %v9181
    %v9183 = vcombine.low %v9161, %v9168
    %v9184 = vcombine.low %v9175, %v9182
    %v9186 = vunpack.c.l.s4 1966171168
    %v9187 = vunpack.c.0.s8 %v9186
    %v9188 = vlaneseq
    %v9189 = vshrl.u32 %v9188, 7
    %v9190 = vsub.s32 %v9187, %v9189
    %v9191 = vrot.slane %v9183, %v9190
    %v9193 = vunpack.c.l.s4 1966171168
    %v9194 = vunpack.c.0.s8 %v9193
    %v9195 = vlaneseq
    %v9196 = vshrl.u32 %v9195, 7
    %v9197 = vsub.s32 %v9194, %v9196
    %v9198 = vrot.slane %v9184, %v9197
    %v9199 = vcombine.low %v9191, %v9198
    %v9201 = vadd.f32 %v8965, %v9199
    %v9202 = vmul.f32 %v9201, 0.5
    %v9203 = vtanh.pop %v9202
    %v9204 = vadd.f32 %v9203, 1.0
    %v9205 = vmul.f32 %v9204, 0.5
    %v9207 = vrot.slane %v9201, 2
    %v9209 = vmul.f32 %v9207, 0.5
    %v9210 = vtanh.pop %v9209
    %v9211 = vadd.f32 %v9210, 1.0
    %v9212 = vmul.f32 %v9211, 0.5
    %v9213 = vrot.slane %v9201, 4
    %v9215 = vtanh.pop %v9213
    %v9216 = vrot.slane %v9201, 6
    %v9218 = vmul.f32 %v9216, 0.5
    %v9219 = vtanh.pop %v9218
    %v9220 = vadd.f32 %v9219, 1.0
    %v9221 = vmul.f32 %v9220, 0.5
    %v9222 = vmul.f32 %v9212, %v8961
    %v9223 = vmul.f32 %v9205, %v9215
    %v9224 = vadd.f32 %v9222, %v9223
    %v9225 = vtanh.pop %v9224
    %v9226 = vmul.f32 %v9221, %v9225
    %v9227 = vld [vmem:[%s57] sm:$0xff]
    %v9228 = vld [vmem:[%s57 + $0x8] sm:$0xff]
    %v9229 = vld [vmem:[%s57 + $0x10] sm:$0xff]
    %v9230 = vld [vmem:[%s57 + $0x18] sm:$0xff]
    %v9231 = vld [vmem:[%s57 + $0x20] sm:$0xff]
    %v9232 = vld [vmem:[%s57 + $0x28] sm:$0xff]
    %v9233 = vld [vmem:[%s57 + $0x30] sm:$0xff]
    %v9234 = vld [vmem:[%s57 + $0x38] sm:$0xff]
    %v9235 = vld [vmem:[%s57 + $0x40] sm:$0xff]
    %v9236 = vld [vmem:[%s57 + $0x48] sm:$0xff]
    %v9237 = vld [vmem:[%s57 + $0x50] sm:$0xff]
    %v9238 = vld [vmem:[%s57 + $0x58] sm:$0xff]
    %v9239 = vld [vmem:[%s57 + $0x60] sm:$0xff]
    %v9240 = vld [vmem:[%s57 + $0x68] sm:$0xff]
    %v9241 = vld [vmem:[%s57 + $0x70] sm:$0xff]
    %v9242 = vld [vmem:[%s57 + $0x78] sm:$0xff]
    %v9243 = vld [vmem:[%s57 + $0x80] sm:$0xff]
    %v9244 = vld [vmem:[%s57 + $0x88] sm:$0xff]
    %v9245 = vld [vmem:[%s57 + $0x90] sm:$0xff]
    %v9246 = vld [vmem:[%s57 + $0x98] sm:$0xff]
    %v9247 = vld [vmem:[%s57 + $0xa0] sm:$0xff]
    %v9248 = vld [vmem:[%s57 + $0xa8] sm:$0xff]
    %v9249 = vld [vmem:[%s57 + $0xb0] sm:$0xff]
    %v9250 = vld [vmem:[%s57 + $0xb8] sm:$0xff]
    %v9251 = vld [vmem:[%s57 + $0xc0] sm:$0xff]
    %v9252 = vld [vmem:[%s57 + $0xc8] sm:$0xff]
    %v9253 = vld [vmem:[%s57 + $0xd0] sm:$0xff]
    %v9254 = vld [vmem:[%s57 + $0xd8] sm:$0xff]
    %v9255 = vld [vmem:[%s57 + $0xe0] sm:$0xff]
    %v9256 = vld [vmem:[%s57 + $0xe8] sm:$0xff]
    %v9257 = vld [vmem:[%s57 + $0xf0] sm:$0xff]
    %v9258 = vld [vmem:[%s57 + $0xf8] sm:$0xff]
    %v9259 = vld [vmem:[#allocation3] sm:$0x1]
    %v9261 = vlaneseq
    %v9262 = vshrl.u32 %v9261, 7
    %v9263 = vsub.s32 0, %v9262
    %v9264 = vrot.slane %v9226, %v9263
    %v9265 = vlaneseq
    %v9266 = vshrl.u32 %v9265, 7
    %v9267 = vsub.s32 1, %v9266
    %v9268 = vrot.slane %v9226, %v9267
    %9271 = vmatprep.subr.mxu0 0.0
    %9272 = vmatpush1.msra.mxu0 %v9227
    %9273 = vmatprep.subr.mxu0 0.0
    %9274 = vmatpush1.msra.mxu0 %v9228
    %9275 = vmatprep.subr.mxu0 0.0
    %9276 = vmatpush1.msra.mxu0 %v9229
    %9277 = vmatprep.subr.mxu0 0.0
    %9278 = vmatpush1.msra.mxu0 %v9230
    %9279 = vmatprep.subr.mxu0 0.0
    %9280 = vmatpush1.msra.mxu0 %v9231
    %9281 = vmatprep.subr.mxu0 0.0
    %9282 = vmatpush1.msra.mxu0 %v9232
    %9283 = vmatprep.subr.mxu0 0.0
    %9284 = vmatpush1.msra.mxu0 %v9233
    %9285 = vmatprep.subr.mxu0 0.0
    %9286 = vmatpush1.msra.mxu0 %v9234
    %9287 = vmatprep.subr.mxu0 0.0
    %9288 = vmatpush1.msra.mxu0 %v9235
    %9289 = vmatprep.subr.mxu0 0.0
    %9290 = vmatpush1.msra.mxu0 %v9236
    %9291 = vmatprep.subr.mxu0 0.0
    %9292 = vmatpush1.msra.mxu0 %v9237
    %9293 = vmatprep.subr.mxu0 0.0
    %9294 = vmatpush1.msra.mxu0 %v9238
    %9295 = vmatprep.subr.mxu0 0.0
    %9296 = vmatpush1.msra.mxu0 %v9239
    %9297 = vmatprep.subr.mxu0 0.0
    %9298 = vmatpush1.msra.mxu0 %v9240
    %9299 = vmatprep.subr.mxu0 0.0
    %9300 = vmatpush1.msra.mxu0 %v9241
    %9301 = vmatprep.subr.mxu0 0.0
    %9302 = vmatpush1.msra.mxu0 %v9242
    %9303 = vmatprep.subr.mxu0 0.0
    %9304 = vmatpush1.msra.mxu0 %v9243
    %9305 = vmatprep.subr.mxu0 0.0
    %9306 = vmatpush1.msra.mxu0 %v9244
    %9307 = vmatprep.subr.mxu0 0.0
    %9308 = vmatpush1.msra.mxu0 %v9245
    %9309 = vmatprep.subr.mxu0 0.0
    %9310 = vmatpush1.msra.mxu0 %v9246
    %9311 = vmatprep.subr.mxu0 0.0
    %9312 = vmatpush1.msra.mxu0 %v9247
    %9313 = vmatprep.subr.mxu0 0.0
    %9314 = vmatpush1.msra.mxu0 %v9248
    %9315 = vmatprep.subr.mxu0 0.0
    %9316 = vmatpush1.msra.mxu0 %v9249
    %9317 = vmatprep.subr.mxu0 0.0
    %9318 = vmatpush1.msra.mxu0 %v9250
    %9319 = vmatprep.subr.mxu0 0.0
    %9320 = vmatpush1.msra.mxu0 %v9251
    %9321 = vmatprep.subr.mxu0 0.0
    %9322 = vmatpush1.msra.mxu0 %v9252
    %9323 = vmatprep.subr.mxu0 0.0
    %9324 = vmatpush1.msra.mxu0 %v9253
    %9325 = vmatprep.subr.mxu0 0.0
    %9326 = vmatpush1.msra.mxu0 %v9254
    %9327 = vmatprep.subr.mxu0 0.0
    %9328 = vmatpush1.msra.mxu0 %v9255
    %9329 = vmatprep.subr.mxu0 0.0
    %9330 = vmatpush1.msra.mxu0 %v9256
    %9331 = vmatprep.subr.mxu0 0.0
    %9332 = vmatpush1.msra.mxu0 %v9257
    %9333 = vmatprep.subr.mxu0 0.0
    %9334 = vmatpush1.msra.mxu0 %v9258
    %9335 = vmatprep.mubr.f32.mxu0 %v9268
    %9336 = vmatmul.mubr.f32.gmra.mrb[0].mxu0 %v9264
    %v9337 = vpop.f32.mrb[0].mxu0
    %v9338 = vadd.f32 %v9259, %v9337
    %v9339 = vpop.f32.mrb[0].mxu0
    %9340 = vdwg.mxu0
    %vm9341 = vcmask 0
    %9342 = vst.msk [vmem:[#allocation25] sm:$0x1] %vm9341, %v9338
    // Predicated region
    $region170: #{policy_forward.1} parent=1 // pred_check
      _
    $region171: #{policy_forward.1} parent=1 // pred_check_branch
      %9344 = sbr.rel (0) target = $region173
    $region172: #{policy_forward.1} parent=1 // pred_region
      %s9346 = ssub.s32 32, 32
      %9347 = vsyncadd [#allocation6], %s9346
      %s9349 = sshll.u32 [#allocation24], 4
      %s9350 = int_to_ptr.vmem [resolvable:$true] %s9349
      %9352 = dma.vmem_to_hbm [thread:$0]  %s9350, 32, %s61, [#allocation6]
    $region173: #{policy_forward.1} parent=1 // pred_fallthru
      _
    // Predicated region
    $region174: #{policy_forward.1} parent=1 // pred_check
      _
    $region175: #{policy_forward.1} parent=1 // pred_check_branch
      %9354 = sbr.rel (0) target = $region177
    $region176: #{policy_forward.1} parent=1 // pred_region
      %s9356 = ssub.s32 16, 16
      %9357 = vsyncadd [#allocation26], %s9356
      %s9359 = sshll.u32 [#allocation25], 4
      %s9360 = int_to_ptr.vmem [resolvable:$true] %s9359
      %9362 = dma.vmem_to_hbm [thread:$0]  %s9360, 16, %s63, [#allocation26]
    $region177: #{policy_forward.1} parent=1 // pred_fallthru
      _
    // Predicated region
    $region178: #{policy_forward.1} parent=1 // pred_check
      _
    $region179: #{policy_forward.1} parent=1 // pred_check_branch
      %9364 = sbr.rel (0) target = $region181
    $region180: #{policy_forward.1} parent=1 // pred_region
      %9365 = dma.done [#allocation6], 32
    $region181: #{policy_forward.1} parent=1 // pred_fallthru
      _
    // Predicated region
    $region182: #{policy_forward.1} parent=1 // pred_check
      _
    $region183: #{policy_forward.1} parent=1 // pred_check_branch
      %9367 = sbr.rel (0) target = $region185
    $region184: #{policy_forward.1} parent=1 // pred_region
      %9368 = dma.done [#allocation26], 16
    $region185: #{policy_forward.1} parent=1 // pred_fallthru
      _
    %9369 = vsyncpa [#allocation5], 1
    %9370 = vsyncpa [#allocation8], 1
    %9371 = vsyncpa [#allocation11], 1
    %9372 = vsyncpa [#allocation14], 1
    %9373 = vsyncpa [#allocation17], 1
    %9374 = vsyncpa [#allocation20], 1
    %9375 = vsyncpa [#allocation23], 1
    %9376 = vsyncpa [#allocation6], 1
    %9377 = vsyncpa [#allocation26], 1

</llo_original>
